<compile_context>
chip_gen: v7x
topology: tpu7x:2x2x1
jax: 0.10.0
libtpu: 0.0.40
codegen_flags: <defaults>
</compile_context>

<pallas_src>
import functools
import numpy as np
import jax
import jax.numpy as jnp
from jax import lax
from jax.experimental import pallas as pl
from jax.experimental.pallas import tpu as pltpu

# ---------------- small synthetic config (shapes consistent with the module) -------------
SR = 16000
N_FFT = 256          # real model: 1024
WIN_LEN = 256        # real model: 800
HOP = 128            # real model: 320
N_MELS = 32          # real model: 128
NUM_CLASSES = 32     # TODO(synk): real model has 527 AudioSet classes read from a CSV (labels()).
STEM_CH = 16
EXP_CH = 64
BLK_CH = 32
HID = 64
K_PAD = 16           # stem 3x3 taps (9) zero-padded for the MXU stem matmul

# TODO(synk): real AugmentMelSTFT has WIN/HOP = 800/320 (2.5 hops per frame); the
# in-kernel framing below assumes WIN == 2*HOP and would need a 3-hop variant.
assert WIN_LEN == 2 * HOP


def _round_up(x, m):
    return ((x + m - 1) // m) * m


F_BINS = N_FFT // 2 + 1          # 129
F_PAD = _round_up(F_BINS, 128)   # 256, lane-aligned spectral dimension
VMEM_LIMIT = 32 * 1024 * 1024    # explicit scoped-VMEM budget (safe on v5e/v6e/v7x)


def _hardswish(y):
    return y * jnp.clip(y + 3.0, 0.0, 6.0) * (1.0 / 6.0)


def _pick_tile_t(t, cap=256):
    """Bounded frame-tile size: prefer a multiple of 128 (lane-dense transposed
    mel stores) that divides T, else a multiple-of-8 divisor, else cap (caller pads)."""
    c = max(8, min(cap, _round_up(t, 8)))
    c -= c % 8
    for m in range(c - c % 128, 127, -128):
        if t % m == 0:
            return m
    for m in range(c, 7, -8):
        if t % m == 0:
            return m
    return c


def _resident_spec(shape, index_map):
    """Constant-index-map operand: single-buffered where supported (frees VMEM on v7x)."""
    try:
        return pl.BlockSpec(shape, index_map, pipeline_mode=pl.Buffered(1))
    except Exception:  # older BlockSpec signature: fall back to default buffering
        return pl.BlockSpec(shape, index_map)


def _full_spec(arr):
    nd = arr.ndim
    return pl.BlockSpec(arr.shape, lambda *args, _nd=nd: (0,) * _nd)


# ================================ Pallas kernels =========================================

def _mel_kernel(hops_ref, edge_ref, dft_ref, fbt_ref, out_ref):
    # hops: (1, tm, HOP) bf16 (non-overlapping hop rows); edge: (1,1,1,HOP) bf16
    # dft : (WIN, 2*F_PAD) bf16 (Hann window folded, zero-padded cols)
    # fbt : (N_MELS, F_PAD) f32 transposed mel filterbank (f32 path per review)
    hops = hops_ref[0]                                        # (tm, HOP)
    right = jnp.concatenate([hops[1:, :], edge_ref[0, 0]], axis=0)
    frames = jnp.concatenate([hops, right], axis=1)           # (tm, WIN) bf16
    fp = dft_ref.shape[1] // 2
    y = jnp.dot(frames, dft_ref[...], preferred_element_type=jnp.float32)
    re = y[:, :fp]
    im = y[:, fp:]
    power = re * re + im * im                                 # (tm, F_PAD) f32
    # mel^T = fb^T @ power^T, contracted on the spectral axis of both operands
    mel_t = lax.dot_general(fbt_ref[...], power, (((1,), (1,)), ((), ())),
                            preferred_element_type=jnp.float32)   # (N_MELS, tm)
    # EfficientAT AugmentMelSTFT: log(mel + 1e-5) then "fast normalization" (+4.5)/5
    out_ref[0] = (jnp.log(mel_t + 1e-5) + 4.5) / 5.0


def _encoder_kernel(p_ref, jm_ref, stem_w_ref, stem_b_ref, exp_w_ref, exp_b_ref,
                    dw_w_ref, dw_b_ref, proj_w_ref, proj_b_ref,
                    feat_ref, s_ref, *, w2, spad):
    """One sample: stem 3x3 s2 -> 1x1 expand -> dw 3x3 s2 -> 1x1 project -> avg pool."""
    f32, bf16 = jnp.float32, jnp.bfloat16
    hw2 = jm_ref.shape[0]
    exp_ch = exp_w_ref.shape[1]
    a0, a1 = spad, spad + hw2

    # --- stem conv as one MXU matmul (M = 4*hw2) + single fused 1x1 expand ------------
    pat = p_ref[0]                                                      # (4*hw2, K_PAD) bf16
    h = jnp.dot(pat, stem_w_ref[...], preferred_element_type=f32) + stem_b_ref[...]
    h = _hardswish(h)                                                   # (4*hw2, STEM_CH)
    e = jnp.dot(h.astype(bf16), exp_w_ref[...],
                preferred_element_type=f32) + exp_b_ref[...]
    e = _hardswish(e).astype(bf16)                                      # (4*hw2, EXP_CH)

    # halo rows re-zeroed every step: the grid axis is "parallel" and each TensorCore
    # owns its own scratch, so a program_id==0 gate would leave core>0 uninitialized.
    s_ref[:, 0:spad, :] = jnp.zeros((4, spad, exp_ch), bf16)
    for p in range(4):                                                  # aligned scatters
        s_ref[p, a0:a1, :] = e[p * hw2:(p + 1) * hw2, :]

    # --- depthwise 3x3 stride-2: 9 shifted FMAs, f32 accumulation over bf16 scratch ----
    w = dw_w_ref[...]                     # (9, EXP_CH) f32
    jm = jm_ref[...]                      # (hw2, 1): 0.0 where output col j == 0
    acc = dw_b_ref[...] + s_ref[0, a0:a1, :] * w[4:5, :]
    acc = acc + s_ref[1, a0:a1, :] * w[5:6, :]
    acc = acc + s_ref[2, a0:a1, :] * w[7:8, :]
    acc = acc + s_ref[2, a0 - w2:a1 - w2, :] * w[1:2, :]
    acc = acc + s_ref[3, a0:a1, :] * w[8:9, :]
    acc = acc + s_ref[3, a0 - w2:a1 - w2, :] * w[2:3, :]
    # only 2 misaligned scratch reads; the phase-3 span is read once and re-sliced
    p1s = s_ref[1, a0 - 1:a1 - 1, :]                   # (hw2, C)
    p3s = s_ref[3, a0 - w2 - 1:a1 - 1, :]              # (hw2 + w2, C)
    acc = acc + (p1s * w[3:4, :]) * jm
    acc = acc + (p3s[w2:, :] * w[6:7, :]) * jm
    acc = acc + (p3s[:hw2, :] * w[0:1, :]) * jm
    d = _hardswish(acc)                                # (hw2, EXP_CH) f32

    # --- 1x1 project (linear, bf16 MXU) + fused global average pool --------------------
    pr = jnp.dot(d.astype(bf16), proj_w_ref[...],
                 preferred_element_type=f32) + proj_b_ref[...]          # (hw2, BLK_CH)
    feat_ref[0] = jnp.mean(pr, axis=0, keepdims=True)


def _head_kernel(f_ref, w1_ref, b1_ref, w2_ref, b2_ref, o_ref):
    # MLP head batched over all samples: Linear -> ReLU -> Linear
    f32, bf16 = jnp.float32, jnp.bfloat16
    h = jnp.dot(f_ref[...].astype(bf16), w1_ref[...], preferred_element_type=f32) + b1_ref[...]
    h = jnp.maximum(h, 0.0)
    o_ref[...] = jnp.dot(h.astype(bf16), w2_ref[...], preferred_element_type=f32) + b2_ref[...]


# ================================ Pallas wrappers ========================================

def log_melspec(hops, edges, dft, fbt, *, tm):
    b_sz, t_hops, hop = hops.shape
    t_pad = t_hops - 1
    t_tiles = t_pad // tm
    n_mels, fpad = fbt.shape
    win, fp2 = dft.shape
    return pl.pallas_call(
        _mel_kernel,
        out_shape=jax.ShapeDtypeStruct((b_sz, n_mels, t_pad), jnp.float32),
        grid=(b_sz, t_tiles),
        in_specs=[pl.BlockSpec((1, tm, hop), lambda b, i: (b, i, 0)),
                  pl.BlockSpec((1, 1, 1, hop), lambda b, i: (b, i, 0, 0)),
                  _resident_spec((win, fp2), lambda b, i: (0, 0)),
                  _resident_spec((n_mels, fpad), lambda b, i: (0, 0))],
        out_specs=pl.BlockSpec((1, n_mels, tm), lambda b, i: (b, 0, i)),
        compiler_params=pltpu.CompilerParams(
            dimension_semantics=("parallel", "parallel"),
            vmem_limit_bytes=VMEM_LIMIT),
    )(hops, edges, dft, fbt)


def encoder_block(patches, jm, params, *, w2, spad):
    """Fused stem/expand/dw/project/pool. patches: (B, 4*hw2, K_PAD) bf16, phase-major rows."""
    b_sz, m4, kpad = patches.shape
    hw2 = jm.shape[0]
    exp_ch = params["exp_w"].shape[1]
    blk_ch = params["proj_w"].shape[1]
    weights = [params[k] for k in ("stem_w", "stem_b", "exp_w", "exp_b",
                                   "dw_w", "dw_b", "proj_w", "proj_b")]
    kern = functools.partial(_encoder_kernel, w2=w2, spad=spad)
    # TODO(synk): for B==1 on a 2-TensorCore chip add a second parallel axis (e.g. split
    # hw2 / phases) so both cores are used; B>=2 already gives a parallel grid here.
    feat3 = pl.pallas_call(
        kern,
        out_shape=jax.ShapeDtypeStruct((b_sz, 1, blk_ch), jnp.float32),
        grid=(b_sz,),
        in_specs=[pl.BlockSpec((1, m4, kpad), lambda b: (b, 0, 0)),
                  _full_spec(jm)] + [_full_spec(a) for a in weights],
        out_specs=pl.BlockSpec((1, 1, blk_ch), lambda b: (b, 0, 0)),
        scratch_shapes=[pltpu.VMEM((4, spad + hw2, exp_ch), jnp.bfloat16)],
        compiler_params=pltpu.CompilerParams(
            dimension_semantics=("parallel",),
            vmem_limit_bytes=VMEM_LIMIT),
    )(patches, jm, *weights)
    return feat3[:, 0, :]


def mlp_head(feat, w1, b1, w2, b2):
    b_sz = feat.shape[0]
    n_cls = w2.shape[1]
    return pl.pallas_call(
        _head_kernel,
        out_shape=jax.ShapeDtypeStruct((b_sz, n_cls), jnp.float32),
        compiler_params=pltpu.CompilerParams(vmem_limit_bytes=VMEM_LIMIT),
    )(feat, w1, b1, w2, b2)


# ================================ glue (plain JAX / numpy) ===============================

def _stem_phase_patches(spec):
    """spec: (B, H, W) -> phase-major stem patches (B, 4*(H//4)*(W//4), K_PAD) bf16.

    Patches are gathered at the single-channel input (cheap, 9x of 1 channel); the
    polyphase split lets the fused kernel compute the stride-2 depthwise conv with
    plain contiguous slices instead of an im2col at EXP_CH width.
    """
    b_sz, h, w = spec.shape
    xp = jnp.pad(spec, ((0, 0), (1, 1), (1, 1)))
    ho, wo = h // 2, w // 2
    taps = [xp[:, dy:dy + 2 * ho:2, dx:dx + 2 * wo:2]
            for dy in range(3) for dx in range(3)]
    pats = jnp.stack(taps, axis=-1)                          # (B, Ho, Wo, 9)
    h2, w2 = ho // 2, wo // 2
    phases = [pats[:, p::2, q::2, :].reshape(b_sz, h2 * w2, 9)
              for p in range(2) for q in range(2)]
    out = jnp.concatenate(phases, axis=1)                    # (B, 4*hw2, 9)
    out = jnp.pad(out, ((0, 0), (0, 0), (0, K_PAD - 9)))     # K padded for the MXU matmul
    return out.astype(jnp.bfloat16), h2, w2


def _mel_filterbank(n_mels, n_fft, sr, fmin=0.0, fmax=None):
    fmax = fmax or sr / 2.0
    hz2mel = lambda f: 2595.0 * np.log10(1.0 + f / 700.0)
    mel2hz = lambda m: 700.0 * (10.0 ** (m / 2595.0) - 1.0)
    mels = np.linspace(hz2mel(fmin), hz2mel(fmax), n_mels + 2)
    bins = np.floor((n_fft + 1) * mel2hz(mels) / sr).astype(np.int64)
    fb = np.zeros((n_fft // 2 + 1, n_mels), dtype=np.float32)
    for m in range(1, n_mels + 1):
        fl, fc, fr = bins[m - 1], bins[m], bins[m + 1]
        for k in range(fl, fc):
            if fc > fl:
                fb[k, m - 1] = (k - fl) / float(fc - fl)
        for k in range(fc, fr):
            if fr > fc:
                fb[k, m - 1] = (fr - k) / float(fr - fc)
    return fb


def init_params(key):
    """Deterministic synthetic parameters (BatchNorms folded into conv weight/bias)."""
    ks = jax.random.split(key, 16)
    p = {}

    def nrm(k, shape, fan_in):
        return jax.random.normal(k, shape, jnp.float32) / np.sqrt(float(fan_in))

    def bn(k1, k2, c):
        scale = 1.0 + 0.1 * jax.random.normal(k1, (c,), jnp.float32)
        shift = 0.05 * jax.random.normal(k2, (c,), jnp.float32)
        return scale, shift

    # front-end: single padded [win*cos | win*sin] DFT matrix (bf16) + f32 mel fb (transposed)
    win = np.hanning(WIN_LEN).astype(np.float64)
    n = np.arange(WIN_LEN)[:, None]
    kk = np.arange(F_BINS)[None, :]
    ang = 2.0 * np.pi * n * kk / float(N_FFT)
    dft = np.zeros((WIN_LEN, 2 * F_PAD), dtype=np.float32)
    dft[:, :F_BINS] = (win[:, None] * np.cos(ang)).astype(np.float32)
    dft[:, F_PAD:F_PAD + F_BINS] = (win[:, None] * np.sin(ang)).astype(np.float32)
    p["dft"] = jnp.asarray(dft, jnp.bfloat16)
    fbt = np.zeros((N_MELS, F_PAD), dtype=np.float32)
    fbt[:, :F_BINS] = _mel_filterbank(N_MELS, N_FFT, SR).T
    p["melfb_t"] = jnp.asarray(fbt, jnp.float32)             # f32 mel matmul (review concern)

    # stem conv 3x3 s2 (PyTorch layout (O, I, 3, 3)), BN folded, K padded 9->K_PAD (MXU)
    w = nrm(ks[0], (STEM_CH, 1, 3, 3), 9)
    s, b = bn(ks[1], ks[2], STEM_CH)
    w9 = jnp.transpose(w, (2, 3, 1, 0)).reshape(9, STEM_CH) * s[None, :]
    p["stem_w"] = jnp.pad(w9, ((0, K_PAD - 9), (0, 0))).astype(jnp.bfloat16)
    p["stem_b"] = b.reshape(1, STEM_CH)

    # inverted-residual block: 1x1 expand -> dw 3x3 s2 -> 1x1 project
    w = nrm(ks[3], (EXP_CH, STEM_CH, 1, 1), STEM_CH)
    s, b = bn(ks[4], ks[5], EXP_CH)
    p["exp_w"] = (w[:, :, 0, 0].T * s[None, :]).astype(jnp.bfloat16)   # MXU operand
    p["exp_b"] = b.reshape(1, EXP_CH)

    w = nrm(ks[6], (EXP_CH, 1, 3, 3), 9)                               # depthwise (C,1,3,3)
    s, b = bn(ks[7], ks[8], EXP_CH)
    p["dw_w"] = jnp.transpose(w, (2, 3, 1, 0)).reshape(9, EXP_CH) * s[None, :]  # f32 VPU path
    p["dw_b"] = b.reshape(1, EXP_CH)

    w = nrm(ks[9], (BLK_CH, EXP_CH, 1, 1), EXP_CH)
    s, b = bn(ks[10], ks[11], BLK_CH)
    p["proj_w"] = (w[:, :, 0, 0].T * s[None, :]).astype(jnp.bfloat16)  # MXU operand
    p["proj_b"] = b.reshape(1, BLK_CH)

    # MLP head (head_type='mlp'): Linear -> ReLU -> Linear
    p["fc1_w"] = nrm(ks[12], (HID, BLK_CH), BLK_CH).T.astype(jnp.bfloat16)
    p["fc1_b"] = (0.01 * jax.random.normal(ks[13], (HID,), jnp.float32)).reshape(1, HID)
    p["fc2_w"] = nrm(ks[14], (NUM_CLASSES, HID), HID).T.astype(jnp.bfloat16)
    p["fc2_b"] = (0.01 * jax.random.normal(ks[15], (NUM_CLASSES,), jnp.float32)).reshape(1, NUM_CLASSES)
    return p


def mobilenet_encoder_forward(params, x):
    """x: (B, N) raw audio. Returns (logits, feature) like Mobilenet_Encoder.forward."""
    b_sz = x.shape[0]
    # ---- preprocess (AugmentMelSTFT, eval mode: no spec augmentation) ----
    # preemphasis conv1d with taps [-0.97, 1] (valid) -> length N-1; bf16 STFT operand
    xp = (x[:, 1:] - 0.97 * x[:, :-1]).astype(jnp.bfloat16)
    n_samp = xp.shape[1]
    # TODO(synk): torch.stft uses center=True reflect padding; here center=False.
    t_frames = 1 + (n_samp - WIN_LEN) // HOP
    tm = _pick_tile_t(t_frames)
    t_pad = _round_up(t_frames, tm)
    need = (t_pad + 1) * HOP
    if need > n_samp:
        xp = jnp.pad(xp, ((0, 0), (0, need - n_samp)))
    # Non-overlapping hop view: each kernel step rebuilds its overlapping frames from
    # the main (tm, HOP) hop block + one edge hop, so audio is read from HBM only once.
    hops = xp[:, :need].reshape(b_sz, t_pad + 1, HOP)
    t_tiles = t_pad // tm
    edges = hops[:, tm::tm, :].reshape(b_sz, t_tiles, 1, HOP)
    spec = log_melspec(hops, edges, params["dft"], params["melfb_t"], tm=tm)  # (B, n_mels, T)
    if t_pad != t_frames:
        spec = spec[:, :, :t_frames]

    # ---- MobileNet encoder + head ----
    # TODO(synk): real mn10_as has 15 inverted-residual blocks + SE; one block stands in here.
    # TODO(synk): at real mn10 shapes, tile hw2 with an inner pltpu.emit_pipeline if the
    # bf16 phase scratch approaches the v7x scoped-VMEM budget.
    patches, h2, w2 = _stem_phase_patches(spec)                # (B, 4*hw2, K_PAD)
    hw2 = h2 * w2
    spad = _round_up(w2 + 1, 8)
    jm = jnp.asarray((np.arange(hw2) % w2 != 0).astype(np.float32).reshape(hw2, 1))
    feat = encoder_block(patches, jm, params, w2=w2, spad=spad)   # (B, BLK_CH)
    logits = mlp_head(feat, params["fc1_w"], params["fc1_b"],
                      params["fc2_w"], params["fc2_b"])           # (B, classes)
    return logits, feat


if __name__ == "__main__":
    key = jax.random.PRNGKey(0)
    pkey, xkey = jax.random.split(key)
    params = init_params(pkey)
    # N chosen so the preemphasized audio is exactly 129 hops -> T = 128 frames, W = 128
    x = jax.random.normal(xkey, (2, 16513), jnp.float32)
    fwd = jax.jit(mobilenet_encoder_forward)
    logits, feature = fwd(params, x)
    jax.block_until_ready((logits, feature))
    assert logits.shape == (2, NUM_CLASSES) and feature.shape == (2, BLK_CH)
    assert bool(jnp.all(jnp.isfinite(logits))) and bool(jnp.all(jnp.isfinite(feature)))
    print("KERNEL_OK")
</pallas_src>

<mosaic_0001>
module attributes {stable_mosaic.version = 11 : i64} {
  func.func @_mel_kernel(%arg0: i32, %arg1: i32, %arg2: memref<1x128x128xbf16, #tpu.memory_space<vmem>>, %arg3: memref<1x1x1x128xbf16, #tpu.memory_space<vmem>>, %arg4: memref<256x512xbf16, #tpu.memory_space<vmem>>, %arg5: memref<32x256xf32, #tpu.memory_space<vmem>>, %arg6: memref<1x32x128xf32, #tpu.memory_space<vmem>>) attributes {dimension_semantics = [#tpu.dimension_semantics<parallel>, #tpu.dimension_semantics<parallel>], iteration_bounds = array<i64: 2, 1>, scalar_prefetch = 0 : i64, scratch_operands = 0 : i64, tpu.core_type = #tpu.core_type<tc>, window_params = [{transform_indices = @transform_0, window_bounds = array<i64: 1, 128, 128>}, {transform_indices = @transform_1, window_bounds = array<i64: 1, 1, 1, 128>}, {pipeline_mode = #tpu.pipeline_mode<synchronous>, transform_indices = @transform_2, window_bounds = array<i64: 256, 512>}, {pipeline_mode = #tpu.pipeline_mode<synchronous>, transform_indices = @transform_3, window_bounds = array<i64: 32, 256>}, {transform_indices = @transform_4, window_bounds = array<i64: 1, 32, 128>}]} {
    %c0 = arith.constant 0 : index
    %c0_0 = arith.constant 0 : index
    %c0_1 = arith.constant 0 : index
    %0 = vector.load %arg2[%c0, %c0_0, %c0_1] : memref<1x128x128xbf16, #tpu.memory_space<vmem>>, vector<1x128x128xbf16>
    %1 = vector.shape_cast %0 : vector<1x128x128xbf16> to vector<128x128xbf16>
    %2 = vector.extract_strided_slice %1 {offsets = [1, 0], sizes = [127, 128], strides = [1, 1]} : vector<128x128xbf16> to vector<127x128xbf16>
    %c0_2 = arith.constant 0 : index
    %c0_3 = arith.constant 0 : index
    %c0_4 = arith.constant 0 : index
    %c0_5 = arith.constant 0 : index
    %3 = vector.load %arg3[%c0_2, %c0_3, %c0_4, %c0_5] : memref<1x1x1x128xbf16, #tpu.memory_space<vmem>>, vector<1x1x1x128xbf16>
    %4 = vector.shape_cast %3 : vector<1x1x1x128xbf16> to vector<1x128xbf16>
    %5 = tpu.concatenate %2, %4 in 0 : vector<127x128xbf16>, vector<1x128xbf16> -> vector<128x128xbf16>
    %6 = tpu.concatenate %1, %5 in 1 : vector<128x128xbf16>, vector<128x128xbf16> -> vector<128x256xbf16>
    %c0_6 = arith.constant 0 : index
    %c0_7 = arith.constant 0 : index
    %7 = vector.load %arg4[%c0_6, %c0_7] : memref<256x512xbf16, #tpu.memory_space<vmem>>, vector<256x512xbf16>
    %cst = arith.constant dense<0.000000e+00> : vector<128x512xf32>
    %8 = tpu.matmul %6, %7, %cst {dimension_numbers = #tpu.dot_dimension_numbers<[1], [0], [0], [1], [0, 0, 1, 1], [], []>} : vector<128x256xbf16>, vector<256x512xbf16>, vector<128x512xf32> -> vector<128x512xf32>
    %9 = vector.extract_strided_slice %8 {offsets = [0, 0], sizes = [128, 256], strides = [1, 1]} : vector<128x512xf32> to vector<128x256xf32>
    %10 = vector.extract_strided_slice %8 {offsets = [0, 256], sizes = [128, 256], strides = [1, 1]} : vector<128x512xf32> to vector<128x256xf32>
    %11 = arith.mulf %9, %9 : vector<128x256xf32>
    %12 = arith.mulf %10, %10 : vector<128x256xf32>
    %13 = arith.addf %11, %12 : vector<128x256xf32>
    %c0_8 = arith.constant 0 : index
    %c0_9 = arith.constant 0 : index
    %14 = vector.load %arg5[%c0_8, %c0_9] : memref<32x256xf32, #tpu.memory_space<vmem>>, vector<32x256xf32>
    %cst_10 = arith.constant dense<0.000000e+00> : vector<32x128xf32>
    %15 = tpu.matmul %14, %13, %cst_10 {dimension_numbers = #tpu.dot_dimension_numbers<[1], [1], [0], [0], [0, 0, 1, 0], [], []>} : vector<32x256xf32>, vector<128x256xf32>, vector<32x128xf32> -> vector<32x128xf32>
    %cst_11 = arith.constant 9.99999974E-6 : f32
    %16 = vector.broadcast %cst_11 : f32 to vector<32x128xf32>
    %17 = arith.addf %15, %16 : vector<32x128xf32>
    %18 = math.log %17 : vector<32x128xf32>
    %cst_12 = arith.constant 4.500000e+00 : f32
    %19 = vector.broadcast %cst_12 : f32 to vector<32x128xf32>
    %20 = arith.addf %18, %19 : vector<32x128xf32>
    %cst_13 = arith.constant 5.000000e+00 : f32
    %21 = vector.broadcast %cst_13 : f32 to vector<32x128xf32>
    %22 = arith.divf %20, %21 : vector<32x128xf32>
    %c0_14 = arith.constant 0 : index
    %c0_15 = arith.constant 0 : index
    %c0_16 = arith.constant 0 : index
    %23 = vector.load %arg6[%c0_14, %c0_15, %c0_16] : memref<1x32x128xf32, #tpu.memory_space<vmem>>, vector<1x32x128xf32>
    %24 = vector.shape_cast %23 : vector<1x32x128xf32> to vector<32x128xf32>
    %25 = vector.shape_cast %22 : vector<32x128xf32> to vector<1x32x128xf32>
    tpu.vector_store %arg6[%c0_14, %c0_15, %c0_16], %25 {strides = array<i32>} : memref<1x32x128xf32, #tpu.memory_space<vmem>>, vector<1x32x128xf32>,
    return
  }
  func.func @transform_0(%arg0: i32, %arg1: i32) -> (i32, i32, i32) {
    %c0_i32 = arith.constant 0 : i32
    %c0_i32_0 = arith.constant 0 : i32
    return %arg0, %arg1, %c0_i32 : i32, i32, i32
  }
  func.func @transform_1(%arg0: i32, %arg1: i32) -> (i32, i32, i32, i32) {
    %c0_i32 = arith.constant 0 : i32
    %c0_i32_0 = arith.constant 0 : i32
    %c0_i32_1 = arith.constant 0 : i32
    return %arg0, %arg1, %c0_i32, %c0_i32_0 : i32, i32, i32, i32
  }
  func.func @transform_2(%arg0: i32, %arg1: i32) -> (i32, i32) {
    %c0_i32 = arith.constant 0 : i32
    %c0_i32_0 = arith.constant 0 : i32
    %c0_i32_1 = arith.constant 0 : i32
    return %c0_i32, %c0_i32_0 : i32, i32
  }
  func.func @transform_3(%arg0: i32, %arg1: i32) -> (i32, i32) {
    %c0_i32 = arith.constant 0 : i32
    %c0_i32_0 = arith.constant 0 : i32
    %c0_i32_1 = arith.constant 0 : i32
    return %c0_i32, %c0_i32_0 : i32, i32
  }
  func.func @transform_4(%arg0: i32, %arg1: i32) -> (i32, i32, i32) {
    %c0_i32 = arith.constant 0 : i32
    %c0_i32_0 = arith.constant 0 : i32
    return %arg0, %c0_i32, %arg1 : i32, i32, i32
  }
}

module attributes {stable_mosaic.version = 11 : i64} {
  func.func @_encoder_kernel(%arg0: i32, %arg1: memref<1x1024x16xbf16, #tpu.memory_space<vmem>>, %arg2: memref<256x1xf32, #tpu.memory_space<vmem>>, %arg3: memref<16x16xbf16, #tpu.memory_space<vmem>>, %arg4: memref<1x16xf32, #tpu.memory_space<vmem>>, %arg5: memref<16x64xbf16, #tpu.memory_space<vmem>>, %arg6: memref<1x64xf32, #tpu.memory_space<vmem>>, %arg7: memref<9x64xf32, #tpu.memory_space<vmem>>, %arg8: memref<1x64xf32, #tpu.memory_space<vmem>>, %arg9: memref<64x32xbf16, #tpu.memory_space<vmem>>, %arg10: memref<1x32xf32, #tpu.memory_space<vmem>>, %arg11: memref<1x1x32xf32, #tpu.memory_space<vmem>>, %arg12: memref<4x296x64xbf16, #tpu.memory_space<vmem>>) attributes {dimension_semantics = [#tpu.dimension_semantics<parallel>], iteration_bounds = array<i64: 2>, scalar_prefetch = 0 : i64, scratch_operands = 1 : i64, tpu.core_type = #tpu.core_type<tc>, window_params = [{transform_indices = @transform_0, window_bounds = array<i64: 1, 1024, 16>}, {pipeline_mode = #tpu.pipeline_mode<synchronous>, transform_indices = @transform_1, window_bounds = array<i64: 256, 1>}, {pipeline_mode = #tpu.pipeline_mode<synchronous>, transform_indices = @transform_2, window_bounds = array<i64: 16, 16>}, {pipeline_mode = #tpu.pipeline_mode<synchronous>, transform_indices = @transform_3, window_bounds = array<i64: 1, 16>}, {pipeline_mode = #tpu.pipeline_mode<synchronous>, transform_indices = @transform_4, window_bounds = array<i64: 16, 64>}, {pipeline_mode = #tpu.pipeline_mode<synchronous>, transform_indices = @transform_5, window_bounds = array<i64: 1, 64>}, {pipeline_mode = #tpu.pipeline_mode<synchronous>, transform_indices = @transform_6, window_bounds = array<i64: 9, 64>}, {pipeline_mode = #tpu.pipeline_mode<synchronous>, transform_indices = @transform_7, window_bounds = array<i64: 1, 64>}, {pipeline_mode = #tpu.pipeline_mode<synchronous>, transform_indices = @transform_8, window_bounds = array<i64: 64, 32>}, {pipeline_mode = #tpu.pipeline_mode<synchronous>, transform_indices = @transform_9, window_bounds = array<i64: 1, 32>}, {transform_indices = @transform_10, window_bounds = array<i64: 1, 1, 32>}]} {
    %c0 = arith.constant 0 : index
    %c0_0 = arith.constant 0 : index
    %c0_1 = arith.constant 0 : index
    %0 = vector.load %arg1[%c0, %c0_0, %c0_1] : memref<1x1024x16xbf16, #tpu.memory_space<vmem>>, vector<1x1024x16xbf16>
    %1 = vector.shape_cast %0 : vector<1x1024x16xbf16> to vector<1024x16xbf16>
    %c0_2 = arith.constant 0 : index
    %c0_3 = arith.constant 0 : index
    %2 = vector.load %arg3[%c0_2, %c0_3] : memref<16x16xbf16, #tpu.memory_space<vmem>>, vector<16x16xbf16>
    %cst = arith.constant dense<0.000000e+00> : vector<1024x16xf32>
    %3 = tpu.matmul %1, %2, %cst {dimension_numbers = #tpu.dot_dimension_numbers<[1], [0], [0], [1], [0, 0, 1, 1], [], []>} : vector<1024x16xbf16>, vector<16x16xbf16>, vector<1024x16xf32> -> vector<1024x16xf32>
    %c0_4 = arith.constant 0 : index
    %c0_5 = arith.constant 0 : index
    %4 = vector.load %arg4[%c0_4, %c0_5] : memref<1x16xf32, #tpu.memory_space<vmem>>, vector<1x16xf32>
    %5 = vector.broadcast %4 : vector<1x16xf32> to vector<1024x16xf32>
    %6 = arith.addf %3, %5 : vector<1024x16xf32>
    %cst_6 = arith.constant 3.000000e+00 : f32
    %7 = vector.broadcast %cst_6 : f32 to vector<1024x16xf32>
    %8 = arith.addf %6, %7 : vector<1024x16xf32>
    %cst_7 = arith.constant 0.000000e+00 : f32
    %cst_8 = arith.constant 6.000000e+00 : f32
    %9 = vector.broadcast %cst_7 : f32 to vector<1024x16xf32>
    %10 = arith.maximumf %9, %8 : vector<1024x16xf32>
    %11 = vector.broadcast %cst_8 : f32 to vector<1024x16xf32>
    %12 = arith.minimumf %11, %10 : vector<1024x16xf32>
    %13 = arith.mulf %6, %12 : vector<1024x16xf32>
    %cst_9 = arith.constant 0.166666672 : f32
    %14 = vector.broadcast %cst_9 : f32 to vector<1024x16xf32>
    %15 = arith.mulf %13, %14 : vector<1024x16xf32>
    %16 = arith.truncf %15 : vector<1024x16xf32> to vector<1024x16xbf16>
    %c0_10 = arith.constant 0 : index
    %c0_11 = arith.constant 0 : index
    %17 = vector.load %arg5[%c0_10, %c0_11] : memref<16x64xbf16, #tpu.memory_space<vmem>>, vector<16x64xbf16>
    %cst_12 = arith.constant dense<0.000000e+00> : vector<1024x64xf32>
    %18 = tpu.matmul %16, %17, %cst_12 {dimension_numbers = #tpu.dot_dimension_numbers<[1], [0], [0], [1], [0, 0, 1, 1], [], []>} : vector<1024x16xbf16>, vector<16x64xbf16>, vector<1024x64xf32> -> vector<1024x64xf32>
    %c0_13 = arith.constant 0 : index
    %c0_14 = arith.constant 0 : index
    %19 = vector.load %arg6[%c0_13, %c0_14] : memref<1x64xf32, #tpu.memory_space<vmem>>, vector<1x64xf32>
    %20 = vector.broadcast %19 : vector<1x64xf32> to vector<1024x64xf32>
    %21 = arith.addf %18, %20 : vector<1024x64xf32>
    %cst_15 = arith.constant 3.000000e+00 : f32
    %22 = vector.broadcast %cst_15 : f32 to vector<1024x64xf32>
    %23 = arith.addf %21, %22 : vector<1024x64xf32>
    %cst_16 = arith.constant 0.000000e+00 : f32
    %cst_17 = arith.constant 6.000000e+00 : f32
    %24 = vector.broadcast %cst_16 : f32 to vector<1024x64xf32>
    %25 = arith.maximumf %24, %23 : vector<1024x64xf32>
    %26 = vector.broadcast %cst_17 : f32 to vector<1024x64xf32>
    %27 = arith.minimumf %26, %25 : vector<1024x64xf32>
    %28 = arith.mulf %21, %27 : vector<1024x64xf32>
    %cst_18 = arith.constant 0.166666672 : f32
    %29 = vector.broadcast %cst_18 : f32 to vector<1024x64xf32>
    %30 = arith.mulf %28, %29 : vector<1024x64xf32>
    %31 = arith.truncf %30 : vector<1024x64xf32> to vector<1024x64xbf16>
    %cst_19 = arith.constant 0.000000e+00 : bf16
    %32 = vector.broadcast %cst_19 : bf16 to vector<4x40x64xbf16>
    %c0_20 = arith.constant 0 : index
    %c0_21 = arith.constant 0 : index
    %c0_22 = arith.constant 0 : index
    %33 = vector.load %arg12[%c0_20, %c0_21, %c0_22] : memref<4x296x64xbf16, #tpu.memory_space<vmem>>, vector<4x40x64xbf16>
    tpu.vector_store %arg12[%c0_20, %c0_21, %c0_22], %32 {strides = array<i32>} : memref<4x296x64xbf16, #tpu.memory_space<vmem>>, vector<4x40x64xbf16>,
    %34 = vector.extract_strided_slice %31 {offsets = [0, 0], sizes = [256, 64], strides = [1, 1]} : vector<1024x64xbf16> to vector<256x64xbf16>
    %c0_23 = arith.constant 0 : index
    %c40 = arith.constant 40 : index
    %c0_24 = arith.constant 0 : index
    %35 = vector.load %arg12[%c0_23, %c40, %c0_24] : memref<4x296x64xbf16, #tpu.memory_space<vmem>>, vector<1x256x64xbf16>
    %36 = vector.shape_cast %35 : vector<1x256x64xbf16> to vector<256x64xbf16>
    %37 = vector.shape_cast %34 : vector<256x64xbf16> to vector<1x256x64xbf16>
    tpu.vector_store %arg12[%c0_23, %c40, %c0_24], %37 {strides = array<i32>} : memref<4x296x64xbf16, #tpu.memory_space<vmem>>, vector<1x256x64xbf16>,
    %38 = vector.extract_strided_slice %31 {offsets = [256, 0], sizes = [256, 64], strides = [1, 1]} : vector<1024x64xbf16> to vector<256x64xbf16>
    %c1 = arith.constant 1 : index
    %c40_25 = arith.constant 40 : index
    %c0_26 = arith.constant 0 : index
    %39 = vector.load %arg12[%c1, %c40_25, %c0_26] : memref<4x296x64xbf16, #tpu.memory_space<vmem>>, vector<1x256x64xbf16>
    %40 = vector.shape_cast %39 : vector<1x256x64xbf16> to vector<256x64xbf16>
    %41 = vector.shape_cast %38 : vector<256x64xbf16> to vector<1x256x64xbf16>
    tpu.vector_store %arg12[%c1, %c40_25, %c0_26], %41 {strides = array<i32>} : memref<4x296x64xbf16, #tpu.memory_space<vmem>>, vector<1x256x64xbf16>,
    %42 = vector.extract_strided_slice %31 {offsets = [512, 0], sizes = [256, 64], strides = [1, 1]} : vector<1024x64xbf16> to vector<256x64xbf16>
    %c2 = arith.constant 2 : index
    %c40_27 = arith.constant 40 : index
    %c0_28 = arith.constant 0 : index
    %43 = vector.load %arg12[%c2, %c40_27, %c0_28] : memref<4x296x64xbf16, #tpu.memory_space<vmem>>, vector<1x256x64xbf16>
    %44 = vector.shape_cast %43 : vector<1x256x64xbf16> to vector<256x64xbf16>
    %45 = vector.shape_cast %42 : vector<256x64xbf16> to vector<1x256x64xbf16>
    tpu.vector_store %arg12[%c2, %c40_27, %c0_28], %45 {strides = array<i32>} : memref<4x296x64xbf16, #tpu.memory_space<vmem>>, vector<1x256x64xbf16>,
    %46 = vector.extract_strided_slice %31 {offsets = [768, 0], sizes = [256, 64], strides = [1, 1]} : vector<1024x64xbf16> to vector<256x64xbf16>
    %c3 = arith.constant 3 : index
    %c40_29 = arith.constant 40 : index
    %c0_30 = arith.constant 0 : index
    %47 = vector.load %arg12[%c3, %c40_29, %c0_30] : memref<4x296x64xbf16, #tpu.memory_space<vmem>>, vector<1x256x64xbf16>
    %48 = vector.shape_cast %47 : vector<1x256x64xbf16> to vector<256x64xbf16>
    %49 = vector.shape_cast %46 : vector<256x64xbf16> to vector<1x256x64xbf16>
    tpu.vector_store %arg12[%c3, %c40_29, %c0_30], %49 {strides = array<i32>} : memref<4x296x64xbf16, #tpu.memory_space<vmem>>, vector<1x256x64xbf16>,
    %c0_31 = arith.constant 0 : index
    %c0_32 = arith.constant 0 : index
    %50 = vector.load %arg7[%c0_31, %c0_32] : memref<9x64xf32, #tpu.memory_space<vmem>>, vector<9x64xf32>
    %c0_33 = arith.constant 0 : index
    %c0_34 = arith.constant 0 : index
    %51 = vector.load %arg2[%c0_33, %c0_34] : memref<256x1xf32, #tpu.memory_space<vmem>>, vector<256x1xf32>
    %c0_35 = arith.constant 0 : index
    %c0_36 = arith.constant 0 : index
    %52 = vector.load %arg8[%c0_35, %c0_36] : memref<1x64xf32, #tpu.memory_space<vmem>>, vector<1x64xf32>
    %c0_37 = arith.constant 0 : index
    %c40_38 = arith.constant 40 : index
    %c0_39 = arith.constant 0 : index
    %53 = vector.load %arg12[%c0_37, %c40_38, %c0_39] : memref<4x296x64xbf16, #tpu.memory_space<vmem>>, vector<1x256x64xbf16>
    %54 = vector.shape_cast %53 : vector<1x256x64xbf16> to vector<256x64xbf16>
    %55 = vector.extract_strided_slice %50 {offsets = [4, 0], sizes = [1, 64], strides = [1, 1]} : vector<9x64xf32> to vector<1x64xf32>
    %56 = arith.extf %54 : vector<256x64xbf16> to vector<256x64xf32>
    %57 = vector.broadcast %55 : vector<1x64xf32> to vector<256x64xf32>
    %58 = arith.mulf %56, %57 : vector<256x64xf32>
    %59 = vector.broadcast %52 : vector<1x64xf32> to vector<256x64xf32>
    %60 = arith.addf %59, %58 : vector<256x64xf32>
    %c1_40 = arith.constant 1 : index
    %c40_41 = arith.constant 40 : index
    %c0_42 = arith.constant 0 : index
    %61 = vector.load %arg12[%c1_40, %c40_41, %c0_42] : memref<4x296x64xbf16, #tpu.memory_space<vmem>>, vector<1x256x64xbf16>
    %62 = vector.shape_cast %61 : vector<1x256x64xbf16> to vector<256x64xbf16>
    %63 = vector.extract_strided_slice %50 {offsets = [5, 0], sizes = [1, 64], strides = [1, 1]} : vector<9x64xf32> to vector<1x64xf32>
    %64 = arith.extf %62 : vector<256x64xbf16> to vector<256x64xf32>
    %65 = vector.broadcast %63 : vector<1x64xf32> to vector<256x64xf32>
    %66 = arith.mulf %64, %65 : vector<256x64xf32>
    %67 = arith.addf %60, %66 : vector<256x64xf32>
    %c2_43 = arith.constant 2 : index
    %c40_44 = arith.constant 40 : index
    %c0_45 = arith.constant 0 : index
    %68 = vector.load %arg12[%c2_43, %c40_44, %c0_45] : memref<4x296x64xbf16, #tpu.memory_space<vmem>>, vector<1x256x64xbf16>
    %69 = vector.shape_cast %68 : vector<1x256x64xbf16> to vector<256x64xbf16>
    %70 = vector.extract_strided_slice %50 {offsets = [7, 0], sizes = [1, 64], strides = [1, 1]} : vector<9x64xf32> to vector<1x64xf32>
    %71 = arith.extf %69 : vector<256x64xbf16> to vector<256x64xf32>
    %72 = vector.broadcast %70 : vector<1x64xf32> to vector<256x64xf32>
    %73 = arith.mulf %71, %72 : vector<256x64xf32>
    %74 = arith.addf %67, %73 : vector<256x64xf32>
    %c2_46 = arith.constant 2 : index
    %c8 = arith.constant 8 : index
    %c0_47 = arith.constant 0 : index
    %75 = vector.load %arg12[%c2_46, %c8, %c0_47] : memref<4x296x64xbf16, #tpu.memory_space<vmem>>, vector<1x256x64xbf16>
    %76 = vector.shape_cast %75 : vector<1x256x64xbf16> to vector<256x64xbf16>
    %77 = vector.extract_strided_slice %50 {offsets = [1, 0], sizes = [1, 64], strides = [1, 1]} : vector<9x64xf32> to vector<1x64xf32>
    %78 = arith.extf %76 : vector<256x64xbf16> to vector<256x64xf32>
    %79 = vector.broadcast %77 : vector<1x64xf32> to vector<256x64xf32>
    %80 = arith.mulf %78, %79 : vector<256x64xf32>
    %81 = arith.addf %74, %80 : vector<256x64xf32>
    %c3_48 = arith.constant 3 : index
    %c40_49 = arith.constant 40 : index
    %c0_50 = arith.constant 0 : index
    %82 = vector.load %arg12[%c3_48, %c40_49, %c0_50] : memref<4x296x64xbf16, #tpu.memory_space<vmem>>, vector<1x256x64xbf16>
    %83 = vector.shape_cast %82 : vector<1x256x64xbf16> to vector<256x64xbf16>
    %84 = vector.extract_strided_slice %50 {offsets = [8, 0], sizes = [1, 64], strides = [1, 1]} : vector<9x64xf32> to vector<1x64xf32>
    %85 = arith.extf %83 : vector<256x64xbf16> to vector<256x64xf32>
    %86 = vector.broadcast %84 : vector<1x64xf32> to vector<256x64xf32>
    %87 = arith.mulf %85, %86 : vector<256x64xf32>
    %88 = arith.addf %81, %87 : vector<256x64xf32>
    %c3_51 = arith.constant 3 : index
    %c8_52 = arith.constant 8 : index
    %c0_53 = arith.constant 0 : index
    %89 = vector.load %arg12[%c3_51, %c8_52, %c0_53] : memref<4x296x64xbf16, #tpu.memory_space<vmem>>, vector<1x256x64xbf16>
    %90 = vector.shape_cast %89 : vector<1x256x64xbf16> to vector<256x64xbf16>
    %91 = vector.extract_strided_slice %50 {offsets = [2, 0], sizes = [1, 64], strides = [1, 1]} : vector<9x64xf32> to vector<1x64xf32>
    %92 = arith.extf %90 : vector<256x64xbf16> to vector<256x64xf32>
    %93 = vector.broadcast %91 : vector<1x64xf32> to vector<256x64xf32>
    %94 = arith.mulf %92, %93 : vector<256x64xf32>
    %95 = arith.addf %88, %94 : vector<256x64xf32>
    %c1_54 = arith.constant 1 : index
    %c39 = arith.constant 39 : index
    %c0_55 = arith.constant 0 : index
    %96 = vector.load %arg12[%c1_54, %c39, %c0_55] : memref<4x296x64xbf16, #tpu.memory_space<vmem>>, vector<1x256x64xbf16>
    %97 = vector.shape_cast %96 : vector<1x256x64xbf16> to vector<256x64xbf16>
    %c3_56 = arith.constant 3 : index
    %c7 = arith.constant 7 : index
    %c0_57 = arith.constant 0 : index
    %98 = vector.load %arg12[%c3_56, %c7, %c0_57] : memref<4x296x64xbf16, #tpu.memory_space<vmem>>, vector<1x288x64xbf16>
    %99 = vector.shape_cast %98 : vector<1x288x64xbf16> to vector<288x64xbf16>
    %100 = vector.extract_strided_slice %50 {offsets = [3, 0], sizes = [1, 64], strides = [1, 1]} : vector<9x64xf32> to vector<1x64xf32>
    %101 = arith.extf %97 : vector<256x64xbf16> to vector<256x64xf32>
    %102 = vector.broadcast %100 : vector<1x64xf32> to vector<256x64xf32>
    %103 = arith.mulf %101, %102 : vector<256x64xf32>
    %104 = vector.broadcast %51 : vector<256x1xf32> to vector<256x64xf32>
    %105 = arith.mulf %103, %104 : vector<256x64xf32>
    %106 = arith.addf %95, %105 : vector<256x64xf32>
    %107 = vector.extract_strided_slice %99 {offsets = [32, 0], sizes = [256, 64], strides = [1, 1]} : vector<288x64xbf16> to vector<256x64xbf16>
    %108 = vector.extract_strided_slice %50 {offsets = [6, 0], sizes = [1, 64], strides = [1, 1]} : vector<9x64xf32> to vector<1x64xf32>
    %109 = arith.extf %107 : vector<256x64xbf16> to vector<256x64xf32>
    %110 = vector.broadcast %108 : vector<1x64xf32> to vector<256x64xf32>
    %111 = arith.mulf %109, %110 : vector<256x64xf32>
    %112 = vector.broadcast %51 : vector<256x1xf32> to vector<256x64xf32>
    %113 = arith.mulf %111, %112 : vector<256x64xf32>
    %114 = arith.addf %106, %113 : vector<256x64xf32>
    %115 = vector.extract_strided_slice %99 {offsets = [0, 0], sizes = [256, 64], strides = [1, 1]} : vector<288x64xbf16> to vector<256x64xbf16>
    %116 = vector.extract_strided_slice %50 {offsets = [0, 0], sizes = [1, 64], strides = [1, 1]} : vector<9x64xf32> to vector<1x64xf32>
    %117 = arith.extf %115 : vector<256x64xbf16> to vector<256x64xf32>
    %118 = vector.broadcast %116 : vector<1x64xf32> to vector<256x64xf32>
    %119 = arith.mulf %117, %118 : vector<256x64xf32>
    %120 = vector.broadcast %51 : vector<256x1xf32> to vector<256x64xf32>
    %121 = arith.mulf %119, %120 : vector<256x64xf32>
    %122 = arith.addf %114, %121 : vector<256x64xf32>
    %cst_58 = arith.constant 3.000000e+00 : f32
    %123 = vector.broadcast %cst_58 : f32 to vector<256x64xf32>
    %124 = arith.addf %122, %123 : vector<256x64xf32>
    %cst_59 = arith.constant 0.000000e+00 : f32
    %cst_60 = arith.constant 6.000000e+00 : f32
    %125 = vector.broadcast %cst_59 : f32 to vector<256x64xf32>
    %126 = arith.maximumf %125, %124 : vector<256x64xf32>
    %127 = vector.broadcast %cst_60 : f32 to vector<256x64xf32>
    %128 = arith.minimumf %127, %126 : vector<256x64xf32>
    %129 = arith.mulf %122, %128 : vector<256x64xf32>
    %cst_61 = arith.constant 0.166666672 : f32
    %130 = vector.broadcast %cst_61 : f32 to vector<256x64xf32>
    %131 = arith.mulf %129, %130 : vector<256x64xf32>
    %132 = arith.truncf %131 : vector<256x64xf32> to vector<256x64xbf16>
    %c0_62 = arith.constant 0 : index
    %c0_63 = arith.constant 0 : index
    %133 = vector.load %arg9[%c0_62, %c0_63] : memref<64x32xbf16, #tpu.memory_space<vmem>>, vector<64x32xbf16>
    %cst_64 = arith.constant dense<0.000000e+00> : vector<256x32xf32>
    %134 = tpu.matmul %132, %133, %cst_64 {dimension_numbers = #tpu.dot_dimension_numbers<[1], [0], [0], [1], [0, 0, 1, 1], [], []>} : vector<256x64xbf16>, vector<64x32xbf16>, vector<256x32xf32> -> vector<256x32xf32>
    %c0_65 = arith.constant 0 : index
    %c0_66 = arith.constant 0 : index
    %135 = vector.load %arg10[%c0_65, %c0_66] : memref<1x32xf32, #tpu.memory_space<vmem>>, vector<1x32xf32>
    %136 = vector.broadcast %135 : vector<1x32xf32> to vector<256x32xf32>
    %137 = arith.addf %134, %136 : vector<256x32xf32>
    %cst_67 = arith.constant dense<0.000000e+00> : vector<32xf32>
    %138 = vector.multi_reduction <add>, %137, %cst_67 [0] : vector<256x32xf32> to vector<32xf32>
    %139 = vector.shape_cast %138 : vector<32xf32> to vector<1x32xf32>
    %cst_68 = arith.constant 2.560000e+02 : f32
    %140 = vector.broadcast %cst_68 : f32 to vector<1x32xf32>
    %141 = arith.divf %139, %140 : vector<1x32xf32>
    %c0_69 = arith.constant 0 : index
    %c0_70 = arith.constant 0 : index
    %c0_71 = arith.constant 0 : index
    %142 = vector.load %arg11[%c0_69, %c0_70, %c0_71] : memref<1x1x32xf32, #tpu.memory_space<vmem>>, vector<1x1x32xf32>
    %143 = vector.shape_cast %142 : vector<1x1x32xf32> to vector<1x32xf32>
    %144 = vector.shape_cast %141 : vector<1x32xf32> to vector<1x1x32xf32>
    tpu.vector_store %arg11[%c0_69, %c0_70, %c0_71], %144 {strides = array<i32>} : memref<1x1x32xf32, #tpu.memory_space<vmem>>, vector<1x1x32xf32>,
    return
  }
  func.func @transform_0(%arg0: i32) -> (i32, i32, i32) {
    %c0_i32 = arith.constant 0 : i32
    %c0_i32_0 = arith.constant 0 : i32
    %c0_i32_1 = arith.constant 0 : i32
    return %arg0, %c0_i32, %c0_i32_0 : i32, i32, i32
  }
  func.func @transform_1(%arg0: i32) -> (i32, i32) {
    %c0_i32 = arith.constant 0 : i32
    %c0_i32_0 = arith.constant 0 : i32
    %c0_i32_1 = arith.constant 0 : i32
    return %c0_i32, %c0_i32_0 : i32, i32
  }
  func.func @transform_2(%arg0: i32) -> (i32, i32) {
    %c0_i32 = arith.constant 0 : i32
    %c0_i32_0 = arith.constant 0 : i32
    %c0_i32_1 = arith.constant 0 : i32
    return %c0_i32, %c0_i32_0 : i32, i32
  }
  func.func @transform_3(%arg0: i32) -> (i32, i32) {
    %c0_i32 = arith.constant 0 : i32
    %c0_i32_0 = arith.constant 0 : i32
    %c0_i32_1 = arith.constant 0 : i32
    return %c0_i32, %c0_i32_0 : i32, i32
  }
  func.func @transform_4(%arg0: i32) -> (i32, i32) {
    %c0_i32 = arith.constant 0 : i32
    %c0_i32_0 = arith.constant 0 : i32
    %c0_i32_1 = arith.constant 0 : i32
    return %c0_i32, %c0_i32_0 : i32, i32
  }
  func.func @transform_5(%arg0: i32) -> (i32, i32) {
    %c0_i32 = arith.constant 0 : i32
    %c0_i32_0 = arith.constant 0 : i32
    %c0_i32_1 = arith.constant 0 : i32
    return %c0_i32, %c0_i32_0 : i32, i32
  }
  func.func @transform_6(%arg0: i32) -> (i32, i32) {
    %c0_i32 = arith.constant 0 : i32
    %c0_i32_0 = arith.constant 0 : i32
    %c0_i32_1 = arith.constant 0 : i32
    return %c0_i32, %c0_i32_0 : i32, i32
  }
  func.func @transform_7(%arg0: i32) -> (i32, i32) {
    %c0_i32 = arith.constant 0 : i32
    %c0_i32_0 = arith.constant 0 : i32
    %c0_i32_1 = arith.constant 0 : i32
    return %c0_i32, %c0_i32_0 : i32, i32
  }
  func.func @transform_8(%arg0: i32) -> (i32, i32) {
    %c0_i32 = arith.constant 0 : i32
    %c0_i32_0 = arith.constant 0 : i32
    %c0_i32_1 = arith.constant 0 : i32
    return %c0_i32, %c0_i32_0 : i32, i32
  }
  func.func @transform_9(%arg0: i32) -> (i32, i32) {
    %c0_i32 = arith.constant 0 : i32
    %c0_i32_0 = arith.constant 0 : i32
    %c0_i32_1 = arith.constant 0 : i32
    return %c0_i32, %c0_i32_0 : i32, i32
  }
  func.func @transform_10(%arg0: i32) -> (i32, i32, i32) {
    %c0_i32 = arith.constant 0 : i32
    %c0_i32_0 = arith.constant 0 : i32
    %c0_i32_1 = arith.constant 0 : i32
    return %arg0, %c0_i32, %c0_i32_0 : i32, i32, i32
  }
}

module attributes {stable_mosaic.version = 11 : i64} {
  func.func @_head_kernel(%arg0: memref<2x32xf32, #tpu.memory_space<vmem>>, %arg1: memref<32x64xbf16, #tpu.memory_space<vmem>>, %arg2: memref<1x64xf32, #tpu.memory_space<vmem>>, %arg3: memref<64x32xbf16, #tpu.memory_space<vmem>>, %arg4: memref<1x32xf32, #tpu.memory_space<vmem>>, %arg5: memref<2x32xf32, #tpu.memory_space<vmem>>) attributes {dimension_semantics = [], scalar_prefetch = 0 : i64, scratch_operands = 0 : i64, tpu.core_type = #tpu.core_type<tc>} {
    %c0 = arith.constant 0 : index
    %c0_0 = arith.constant 0 : index
    %0 = vector.load %arg0[%c0, %c0_0] : memref<2x32xf32, #tpu.memory_space<vmem>>, vector<2x32xf32>
    %1 = arith.truncf %0 : vector<2x32xf32> to vector<2x32xbf16>
    %c0_1 = arith.constant 0 : index
    %c0_2 = arith.constant 0 : index
    %2 = vector.load %arg1[%c0_1, %c0_2] : memref<32x64xbf16, #tpu.memory_space<vmem>>, vector<32x64xbf16>
    %cst = arith.constant dense<0.000000e+00> : vector<2x64xf32>
    %3 = tpu.matmul %1, %2, %cst {dimension_numbers = #tpu.dot_dimension_numbers<[1], [0], [0], [1], [0, 0, 1, 1], [], []>} : vector<2x32xbf16>, vector<32x64xbf16>, vector<2x64xf32> -> vector<2x64xf32>
    %c0_3 = arith.constant 0 : index
    %c0_4 = arith.constant 0 : index
    %4 = vector.load %arg2[%c0_3, %c0_4] : memref<1x64xf32, #tpu.memory_space<vmem>>, vector<1x64xf32>
    %5 = vector.broadcast %4 : vector<1x64xf32> to vector<2x64xf32>
    %6 = arith.addf %3, %5 : vector<2x64xf32>
    %cst_5 = arith.constant 0.000000e+00 : f32
    %7 = vector.broadcast %cst_5 : f32 to vector<2x64xf32>
    %8 = arith.maximumf %6, %7 : vector<2x64xf32>
    %9 = arith.truncf %8 : vector<2x64xf32> to vector<2x64xbf16>
    %c0_6 = arith.constant 0 : index
    %c0_7 = arith.constant 0 : index
    %10 = vector.load %arg3[%c0_6, %c0_7] : memref<64x32xbf16, #tpu.memory_space<vmem>>, vector<64x32xbf16>
    %cst_8 = arith.constant dense<0.000000e+00> : vector<2x32xf32>
    %11 = tpu.matmul %9, %10, %cst_8 {dimension_numbers = #tpu.dot_dimension_numbers<[1], [0], [0], [1], [0, 0, 1, 1], [], []>} : vector<2x64xbf16>, vector<64x32xbf16>, vector<2x32xf32> -> vector<2x32xf32>
    %c0_9 = arith.constant 0 : index
    %c0_10 = arith.constant 0 : index
    %12 = vector.load %arg4[%c0_9, %c0_10] : memref<1x32xf32, #tpu.memory_space<vmem>>, vector<1x32xf32>
    %13 = vector.broadcast %12 : vector<1x32xf32> to vector<2x32xf32>
    %14 = arith.addf %11, %13 : vector<2x32xf32>
    %c0_11 = arith.constant 0 : index
    %c0_12 = arith.constant 0 : index
    %15 = vector.load %arg5[%c0_11, %c0_12] : memref<2x32xf32, #tpu.memory_space<vmem>>, vector<2x32xf32>
    tpu.vector_store %arg5[%c0_11, %c0_12], %14 {strides = array<i32>} : memref<2x32xf32, #tpu.memory_space<vmem>>, vector<2x32xf32>,
    return
  }
}

</mosaic_0001>

<llo_original>
// kernel: mobilenet_encoder_forward.3
$region0: #{mobilenet_encoder_forward.3}
  #allocation0 [shape = 'u32[]', space=smem, size = 0x4, offset = 0x4, fixed_abs, tag = 'smem constant byte address 0x4 - core index']
  #allocation1 [shape = 'u32[144,128]{1,0:T(1,128)}', space=vmem, size = 0x12000, scoped, tag = 'internal scratch']
  %s0 = inlined_call_operand.vmem [shape: bf16[2,129,128], index: 0, kind: input, shape index: {}]
  %s1 = inlined_call_operand.vmem [shape: bf16[2,1,1,128], index: 1, kind: input, shape index: {}]
  %s2 = inlined_call_operand.vmem [shape: bf16[256,512], index: 2, kind: input, shape index: {}]
  %s3 = inlined_call_operand.vmem [shape: f32[32,256], index: 3, kind: input, shape index: {}]
  %s4 = inlined_call_operand.vmem [shape: f32[2,32,128], index: 4, kind: output, shape index: {}]
  %s5 = sld [smem:[#allocation0]]
  $region49: #{mobilenet_encoder_forward.3} parent=0
    _
  %s7 = ssub.s32 1, %s5
  %s8 = scalar_select 0, %s7, %s5
  loop: start=0, step=1, limit=4
  $region2: #{mobilenet_encoder_forward.3} parent=0 // loop_pre_header
    _
  $region3: #{mobilenet_encoder_forward.3} parent=0 // loop_header
    %s10 = sphi 0, %s14
    %p11 = scmp.ge.s32.totalorder %s10, 4
    %s17 = sphi 0, %s29
    %s18 = sphi 0, %s25
    %s19 = sphi 0, %s17
    %s20 = sphi 0, %s18
    %s21 = sphi 0, %s19
    %s22 = sphi 0, %s20
    %s34 = sphi 0, %s36
    %s37 = sphi 0, %s34
    %s38 = sphi 0, %s37
    %s54 = sphi 0, %s38
    %s62 = sphi 0, %s64
    %s65 = sphi 0, %s62
    %s66 = sphi 0, %s65
    %s82 = sphi 0, %s66
    %s86 = sphi 0, %s86
    %s88 = sphi 0, %s86
    %s89 = sphi 0, %s88
    %s103 = sphi 0, %s89
    %s107 = sphi 0, %s107
    %s109 = sphi 0, %s107
    %s110 = sphi 0, %s109
    %s124 = sphi 0, %s110
    %s132 = sphi 0, %s134
    %s135 = sphi 0, %s132
    %s136 = sphi 0, %s135
    %s152 = sphi 0, %s136
  $region4: #{mobilenet_encoder_forward.3} parent=0 // loop_header_branch
    %13 = sbr.rel (%p11) target = $region8
  $region5: #{mobilenet_encoder_forward.3} parent=0 // loop_body
    %s15 = ssub.s32 %s10, 1
    %s16 = ssub.s32 %s10, 2
    %s23 = sadd.s32 1, %s18
    %p24 = scmp.ge.s32.totalorder %s23, 1
    %s25 = scalar_select %p24, 0, %s23
    %s26 = sadd.s32 1, %s17
    %s27 = scalar_select %p24, %s26, %s17
    %p28 = scmp.ge.s32.totalorder %s27, 2
    %s29 = scalar_select %p28, 0, %s27
    %s30 = ssub.s32 %s17, %s29
    %s31 = ssub.s32 %s18, %s25
    %s32 = sor.u32 %s30, %s31
    %p33 = scmp.eq.s32.totalorder %s32, 0
    %s35 = sadd.s32 %s34, 1
    %s36 = scalar_select %p33, %s34, %s35
    %p39 = pneg %p33
    %p40 = scmp.eq.s32.totalorder %s10, 1
    %p41 = por %p39, %p40
    %p42 = scmp.ne.s32.totalorder %s34, %s37
    %p43 = scmp.eq.s32.totalorder %s10, 0
    %p44 = por %p42, %p43
    %p45 = scmp.ne.s32.totalorder %s34, %s37
    %p46 = scmp.eq.s32.totalorder %s15, 1
    %p47 = por %p45, %p46
    %p48 = scmp.ne.s32.totalorder %s37, %s38
    %p49 = scmp.eq.s32.totalorder %s15, 0
    %p50 = por %p48, %p49
    %p51 = scmp.ne.s32.totalorder %s37, %s38
    %p52 = scmp.eq.s32.totalorder %s16, 1
    %p53 = por %p51, %p52
    %p55 = scmp.ne.s32.totalorder %s38, %s54
    %p56 = scmp.eq.s32.totalorder %s16, 0
    %p57 = por %p55, %p56
    %s58 = ssub.s32 %s17, %s29
    %s59 = ssub.s32 %s18, %s25
    %s60 = sor.u32 %s58, %s59
    %p61 = scmp.eq.s32.totalorder %s60, 0
    %s63 = sadd.s32 %s62, 1
    %s64 = scalar_select %p61, %s62, %s63
    %p67 = pneg %p61
    %p68 = scmp.eq.s32.totalorder %s10, 1
    %p69 = por %p67, %p68
    %p70 = scmp.ne.s32.totalorder %s62, %s65
    %p71 = scmp.eq.s32.totalorder %s10, 0
    %p72 = por %p70, %p71
    %p73 = scmp.ne.s32.totalorder %s62, %s65
    %p74 = scmp.eq.s32.totalorder %s15, 1
    %p75 = por %p73, %p74
    %p76 = scmp.ne.s32.totalorder %s65, %s66
    %p77 = scmp.eq.s32.totalorder %s15, 0
    %p78 = por %p76, %p77
    %p79 = scmp.ne.s32.totalorder %s65, %s66
    %p80 = scmp.eq.s32.totalorder %s16, 1
    %p81 = por %p79, %p80
    %p83 = scmp.ne.s32.totalorder %s66, %s82
    %p84 = scmp.eq.s32.totalorder %s16, 0
    %p85 = por %p83, %p84
    %s87 = sadd.s32 %s86, 1
    %p90 = scmp.eq.s32.totalorder %s10, 1
    %p91 = scmp.ne.s32.totalorder %s86, %s88
    %p92 = scmp.eq.s32.totalorder %s10, 0
    %p93 = por %p91, %p92
    %p94 = scmp.ne.s32.totalorder %s86, %s88
    %p95 = scmp.eq.s32.totalorder %s15, 1
    %p96 = por %p94, %p95
    %p97 = scmp.ne.s32.totalorder %s88, %s89
    %p98 = scmp.eq.s32.totalorder %s15, 0
    %p99 = por %p97, %p98
    %p100 = scmp.ne.s32.totalorder %s88, %s89
    %p101 = scmp.eq.s32.totalorder %s16, 1
    %p102 = por %p100, %p101
    %p104 = scmp.ne.s32.totalorder %s89, %s103
    %p105 = scmp.eq.s32.totalorder %s16, 0
    %p106 = por %p104, %p105
    %s108 = sadd.s32 %s107, 1
    %p111 = scmp.eq.s32.totalorder %s10, 1
    %p112 = scmp.ne.s32.totalorder %s107, %s109
    %p113 = scmp.eq.s32.totalorder %s10, 0
    %p114 = por %p112, %p113
    %p115 = scmp.ne.s32.totalorder %s107, %s109
    %p116 = scmp.eq.s32.totalorder %s15, 1
    %p117 = por %p115, %p116
    %p118 = scmp.ne.s32.totalorder %s109, %s110
    %p119 = scmp.eq.s32.totalorder %s15, 0
    %p120 = por %p118, %p119
    %p121 = scmp.ne.s32.totalorder %s109, %s110
    %p122 = scmp.eq.s32.totalorder %s16, 1
    %p123 = por %p121, %p122
    %p125 = scmp.ne.s32.totalorder %s110, %s124
    %p126 = scmp.eq.s32.totalorder %s16, 0
    %p127 = por %p125, %p126
    %s128 = ssub.s32 %s17, %s29
    %s129 = ssub.s32 %s18, %s25
    %s130 = sor.u32 %s128, %s129
    %p131 = scmp.eq.s32.totalorder %s130, 0
    %s133 = sadd.s32 %s132, 1
    %s134 = scalar_select %p131, %s132, %s133
    %p137 = pneg %p131
    %p138 = scmp.eq.s32.totalorder %s10, 1
    %p139 = por %p137, %p138
    %p140 = scmp.ne.s32.totalorder %s132, %s135
    %p141 = scmp.eq.s32.totalorder %s10, 0
    %p142 = por %p140, %p141
    %p143 = scmp.ne.s32.totalorder %s132, %s135
    %p144 = scmp.eq.s32.totalorder %s15, 1
    %p145 = por %p143, %p144
    %p146 = scmp.ne.s32.totalorder %s135, %s136
    %p147 = scmp.eq.s32.totalorder %s15, 0
    %p148 = por %p146, %p147
    %p149 = scmp.ne.s32.totalorder %s135, %s136
    %p150 = scmp.eq.s32.totalorder %s16, 1
    %p151 = por %p149, %p150
    %p153 = scmp.ne.s32.totalorder %s136, %s152
    %p154 = scmp.eq.s32.totalorder %s16, 0
    %p155 = por %p153, %p154
    %p156 = scmp.le.s32.totalorder 1, %s10
    %p157 = scmp.lt.s32.totalorder %s10, 3
    %p158 = pnand %p156, %p157
    %p159 = pneg %p158
    // Predicated region
    $region9: #{mobilenet_encoder_forward.3} parent=5 // pred_check
      _
    $region10: #{mobilenet_encoder_forward.3} parent=5 // pred_check_branch
      %161 = sbr.rel (%p158) target = $region12
    $region11: #{mobilenet_encoder_forward.3} parent=5 // pred_region
      %s162 = ssub.s32 %s10, 1
      // Predicated region
      $region13: #{mobilenet_encoder_forward.3} parent=11 // pred_check
        %p163 = pneg %p99
      $region14: #{mobilenet_encoder_forward.3} parent=11 // pred_check_branch
        %165 = sbr.rel (%p163) target = $region16
      $region15: #{mobilenet_encoder_forward.3} parent=11 // pred_region
        _
      $region16: #{mobilenet_encoder_forward.3} parent=11 // pred_fallthru
        _
      // Predicated region
      $region17: #{mobilenet_encoder_forward.3} parent=11 // pred_check
        %p166 = pneg %p120
      $region18: #{mobilenet_encoder_forward.3} parent=11 // pred_check_branch
        %168 = sbr.rel (%p166) target = $region20
      $region19: #{mobilenet_encoder_forward.3} parent=11 // pred_region
        _
      $region20: #{mobilenet_encoder_forward.3} parent=11 // pred_fallthru
        _
    $region12: #{mobilenet_encoder_forward.3} parent=5 // pred_fallthru
      _
    %p169 = scmp.lt.s32.totalorder %s10, 2
    // Predicated region
    $region21: #{mobilenet_encoder_forward.3} parent=5 // pred_check
      %p170 = pneg %p169
    $region22: #{mobilenet_encoder_forward.3} parent=5 // pred_check_branch
      %172 = sbr.rel (%p170) target = $region24
    $region23: #{mobilenet_encoder_forward.3} parent=5 // pred_region
      // Predicated region
      $region25: #{mobilenet_encoder_forward.3} parent=23 // pred_check
        %p173 = pneg %p44
      $region26: #{mobilenet_encoder_forward.3} parent=23 // pred_check_branch
        %175 = sbr.rel (%p173) target = $region28
      $region27: #{mobilenet_encoder_forward.3} parent=23 // pred_region
        %s176 = smul.u32 16, %s18
        %s177 = ssub.s32 17, %s176
        %p178 = scmp.lt.s32.totalorder %s177, 16
        %s179 = scalar_select %p178, %s177, 16
        %s180 = smul.u32 64, %s179
        %p181 = scmp.lt.s32.totalorder %s17, 1
        %s182 = scalar_select %p181, %s17, 1
        %p183 = scmp.lt.s32.totalorder %s176, 16
        %s184 = scalar_select %p183, %s176, 16
        %s185 = smul.addr %s182, 17
        %s186 = sadd.s32 %s184, %s185
        %s187 = smul.addr %s186, 4
        %s188 = scalar_lea.vmem %s0, %s187
        %s189 = smul.u32 16, %s18
        %s190 = ssub.s32 17, %s189
        %p191 = scmp.lt.s32.totalorder %s190, 16
        %s192 = scalar_select %p191, %s190, 16
        %s193 = smul.u32 64, %s192
      $region28: #{mobilenet_encoder_forward.3} parent=23 // pred_fallthru
        _
      // Predicated region
      $region29: #{mobilenet_encoder_forward.3} parent=23 // pred_check
        %p194 = pneg %p72
      $region30: #{mobilenet_encoder_forward.3} parent=23 // pred_check_branch
        %196 = sbr.rel (%p194) target = $region32
      $region31: #{mobilenet_encoder_forward.3} parent=23 // pred_region
        %p197 = scmp.lt.s32.totalorder %s17, 1
        %s198 = scalar_select %p197, %s17, 1
        %p199 = scmp.lt.s32.totalorder %s18, 0
        %s200 = scalar_select %p199, %s18, 0
        %s201 = sadd.s32 %s200, %s198
        %s202 = scalar_lea.vmem %s1, %s201
      $region32: #{mobilenet_encoder_forward.3} parent=23 // pred_fallthru
        _
    $region24: #{mobilenet_encoder_forward.3} parent=5 // pred_fallthru
      _
    %p203 = scmp.le.s32.totalorder 1, %s10
    %p204 = scmp.lt.s32.totalorder %s10, 3
    %p205 = pnand %p203, %p204
    %p206 = pneg %p205
    // Predicated region
    $region33: #{mobilenet_encoder_forward.3} parent=5 // pred_check
      _
    $region34: #{mobilenet_encoder_forward.3} parent=5 // pred_check_branch
      %208 = sbr.rel (%p205) target = $region36
    $region35: #{mobilenet_encoder_forward.3} parent=5 // pred_region
      %s209 = ssub.s32 %s10, 1
      %s210 = smul.u32 16, %s20
      %s211 = ssub.s32 17, %s210
      %p212 = scmp.lt.s32.totalorder %s211, 16
      %s213 = scalar_select %p212, %s211, 16
      %s214 = smul.u32 64, %s213
      %p215 = scmp.lt.s32.totalorder %s19, 1
      %s216 = scalar_select %p215, %s19, 1
      %p217 = scmp.lt.s32.totalorder %s210, 16
      %s218 = scalar_select %p217, %s210, 16
      %s219 = smul.addr %s216, 17
      %s220 = sadd.s32 %s218, %s219
      %s221 = smul.addr %s220, 4
      %s222 = scalar_lea.vmem %s0, %s221
      %p223 = pneg %p50
      %p224 = pneg %p47
      %p225 = scmp.lt.s32.totalorder %s19, 1
      %s226 = scalar_select %p225, %s19, 1
      %p227 = scmp.lt.s32.totalorder %s20, 0
      %s228 = scalar_select %p227, %s20, 0
      %s229 = sadd.s32 %s228, %s226
      %s230 = scalar_lea.vmem %s1, %s229
      %p231 = pneg %p78
      %p232 = pneg %p75
      %p233 = pneg %p99
      %p234 = pneg %p96
      %p235 = pneg %p120
      %p236 = pneg %p117
      %p237 = pneg %p148
      %p238 = pneg %p145
      %p239 = scmp.lt.s32.totalorder %s19, 1
      %s240 = scalar_select %p239, %s19, 1
      %p241 = scmp.lt.s32.totalorder %s20, 0
      %s242 = scalar_select %p241, %s20, 0
      %s243 = smul.addr %s240, 4
      %s244 = sadd.s32 %s242, %s243
      %s245 = smul.addr %s244, 8
      %s246 = scalar_lea.vmem %s4, %s245
      %s247 = smul.u32 16, %s20
      %s248 = ssub.s32 17, %s247
      %p249 = scmp.lt.s32.totalorder %s248, 16
      %s250 = scalar_select %p249, %s248, 16
      %s251 = smul.u32 64, %s250
      %p252 = scmp.lt.s32.totalorder %s19, 1
      %s253 = scalar_select %p252, %s19, 1
      %p254 = scmp.lt.s32.totalorder %s247, 16
      %s255 = scalar_select %p254, %s247, 16
      %s256 = smul.addr %s253, 17
      %s257 = sadd.s32 %s255, %s256
      %s258 = smul.addr %s257, 4
      %s259 = scalar_lea.vmem %s0, %s258
      %s260 = smul.u32 16, %s20
      %s261 = ssub.s32 17, %s260
      %p262 = scmp.lt.s32.totalorder %s261, 16
      %s263 = scalar_select %p262, %s261, 16
      %s264 = smul.u32 64, %s263
      %p265 = scmp.lt.s32.totalorder %s19, 1
      %s266 = scalar_select %p265, %s19, 1
      %p267 = scmp.lt.s32.totalorder %s20, 0
      %s268 = scalar_select %p267, %s20, 0
      %s269 = sadd.s32 %s268, %s266
      %s270 = scalar_lea.vmem %s1, %s269
      %p271 = scmp.lt.s32.totalorder %s19, 1
      %s272 = scalar_select %p271, %s19, 1
      %p273 = scmp.lt.s32.totalorder %s20, 0
      %s274 = scalar_select %p273, %s20, 0
      %s275 = smul.addr %s272, 4
      %s276 = sadd.s32 %s274, %s275
      %s277 = smul.addr %s276, 8
      %s278 = scalar_lea.vmem %s4, %s277
      %v279 = vld [vmem:[%s259] sm:$0xf]
      %v280 = vld [vmem:[%s259 + $0x4] sm:$0xf]
      %v281 = vld [vmem:[%s259 + $0x8] sm:$0xf]
      %v282 = vld [vmem:[%s259 + $0xc] sm:$0xf]
      %v283 = vld [vmem:[%s259 + $0x10] sm:$0xf]
      %v284 = vld [vmem:[%s259 + $0x14] sm:$0xf]
      %v285 = vld [vmem:[%s259 + $0x18] sm:$0xf]
      %v286 = vld [vmem:[%s259 + $0x1c] sm:$0xf]
      %v287 = vld [vmem:[%s259 + $0x20] sm:$0xf]
      %v288 = vld [vmem:[%s259 + $0x24] sm:$0xf]
      %v289 = vld [vmem:[%s259 + $0x28] sm:$0xf]
      %v290 = vld [vmem:[%s259 + $0x2c] sm:$0xf]
      %v291 = vld [vmem:[%s259 + $0x30] sm:$0xf]
      %v292 = vld [vmem:[%s259 + $0x34] sm:$0xf]
      %v293 = vld [vmem:[%s259 + $0x38] sm:$0xf]
      %v294 = vld [vmem:[%s259 + $0x3c] sm:$0xf]
      %v295 = vld [vmem:[%s270] sm:$0x1]
      %v312 = vunpack.c.l.b16 %v279
      %v313 = vunpack.c.l.b16 %v280
      %v314 = vunpack.c.l.b16 %v281
      %v315 = vunpack.c.l.b16 %v282
      %v316 = vunpack.c.l.b16 %v283
      %v317 = vunpack.c.l.b16 %v284
      %v318 = vunpack.c.l.b16 %v285
      %v319 = vunpack.c.l.b16 %v286
      %v320 = vunpack.c.l.b16 %v287
      %v321 = vunpack.c.l.b16 %v288
      %v322 = vunpack.c.l.b16 %v289
      %v323 = vunpack.c.l.b16 %v290
      %v324 = vunpack.c.l.b16 %v291
      %v325 = vunpack.c.l.b16 %v292
      %v326 = vunpack.c.l.b16 %v293
      %v327 = vunpack.c.l.b16 %v294
      %v328 = vpack.c.b16 %v313, %v312
      %v329 = vpack.c.b16 %v315, %v314
      %v330 = vpack.c.b16 %v317, %v316
      %v331 = vpack.c.b16 %v319, %v318
      %v332 = vpack.c.b16 %v321, %v320
      %v333 = vpack.c.b16 %v323, %v322
      %v334 = vpack.c.b16 %v325, %v324
      %v335 = vpack.c.b16 %v327, %v326
      %vm336 = vsmask.f32 7424
      %v338 = vshrl.u32 %v328, 16
      %v340 = vshll.u32 %v328, 16
      %v342 = vrot.slane %v340, 1
      %v343 = vor.u32 %v338, %v342
      %v345 = vshll.u32 %v329, 16
      %v347 = vrot.slane %v345, 1
      %v348 = vsel %vm336, %v343, %v347
      %v349 = vshrl.u32 %v329, 16
      %v351 = vor.u32 %v349, %v347
      %v353 = vshll.u32 %v330, 16
      %v355 = vrot.slane %v353, 1
      %v356 = vsel %vm336, %v351, %v355
      %v357 = vshrl.u32 %v330, 16
      %v359 = vor.u32 %v357, %v355
      %v361 = vshll.u32 %v331, 16
      %v363 = vrot.slane %v361, 1
      %v364 = vsel %vm336, %v359, %v363
      %v365 = vshrl.u32 %v331, 16
      %v367 = vor.u32 %v365, %v363
      %v369 = vshll.u32 %v332, 16
      %v371 = vrot.slane %v369, 1
      %v372 = vsel %vm336, %v367, %v371
      %v373 = vshrl.u32 %v332, 16
      %v375 = vor.u32 %v373, %v371
      %v377 = vshll.u32 %v333, 16
      %v379 = vrot.slane %v377, 1
      %v380 = vsel %vm336, %v375, %v379
      %v381 = vshrl.u32 %v333, 16
      %v383 = vor.u32 %v381, %v379
      %v385 = vshll.u32 %v334, 16
      %v387 = vrot.slane %v385, 1
      %v388 = vsel %vm336, %v383, %v387
      %v389 = vshrl.u32 %v334, 16
      %v391 = vor.u32 %v389, %v387
      %v393 = vshll.u32 %v335, 16
      %v395 = vrot.slane %v393, 1
      %v396 = vsel %vm336, %v391, %v395
      %v397 = vshrl.u32 %v335, 16
      %v399 = vor.u32 %v397, %v395
      %v410 = vunpack.c.l.s4 1966171168
      %v411 = vunpack.c.0.s8 %v410
      %v412 = vlaneseq
      %v413 = vshrl.u32 %v412, 7
      %v414 = vsub.s32 %v411, %v413
      %v415 = vrot.slane %v295, %v414
      %v417 = vunpack.c.l.s4 1966171168
      %v418 = vunpack.c.0.s8 %v417
      %v419 = vlaneseq
      %v420 = vshrl.u32 %v419, 7
      %v421 = vsub.s32 %v418, %v420
      %v422 = vrot.slane %v415, %v421
      %v424 = vshll.u32 %v422, 16
      %v426 = vrot.slane %v424, 1
      %vm428 = vcmask 1047552
      %vm429 = vmand %vm428, %vm336
      %v430 = vsel %vm429, %v399, %v426
      %v439 = vld [vmem:[%s2] sm:$0xff]
      %v440 = vld [vmem:[%s2 + $0x8] sm:$0xff]
      %v441 = vld [vmem:[%s2 + $0x10] sm:$0xff]
      %v442 = vld [vmem:[%s2 + $0x18] sm:$0xff]
      %v443 = vld [vmem:[%s2 + $0x20] sm:$0xff]
      %v444 = vld [vmem:[%s2 + $0x28] sm:$0xff]
      %v445 = vld [vmem:[%s2 + $0x30] sm:$0xff]
      %v446 = vld [vmem:[%s2 + $0x38] sm:$0xff]
      %v447 = vld [vmem:[%s2 + $0x40] sm:$0xff]
      %v448 = vld [vmem:[%s2 + $0x48] sm:$0xff]
      %v449 = vld [vmem:[%s2 + $0x50] sm:$0xff]
      %v450 = vld [vmem:[%s2 + $0x58] sm:$0xff]
      %v451 = vld [vmem:[%s2 + $0x60] sm:$0xff]
      %v452 = vld [vmem:[%s2 + $0x68] sm:$0xff]
      %v453 = vld [vmem:[%s2 + $0x70] sm:$0xff]
      %v454 = vld [vmem:[%s2 + $0x78] sm:$0xff]
      %v455 = vld [vmem:[%s2 + $0x80] sm:$0xff]
      %v456 = vld [vmem:[%s2 + $0x88] sm:$0xff]
      %v457 = vld [vmem:[%s2 + $0x90] sm:$0xff]
      %v458 = vld [vmem:[%s2 + $0x98] sm:$0xff]
      %v459 = vld [vmem:[%s2 + $0xa0] sm:$0xff]
      %v460 = vld [vmem:[%s2 + $0xa8] sm:$0xff]
      %v461 = vld [vmem:[%s2 + $0xb0] sm:$0xff]
      %v462 = vld [vmem:[%s2 + $0xb8] sm:$0xff]
      %v463 = vld [vmem:[%s2 + $0xc0] sm:$0xff]
      %v464 = vld [vmem:[%s2 + $0xc8] sm:$0xff]
      %v465 = vld [vmem:[%s2 + $0xd0] sm:$0xff]
      %v466 = vld [vmem:[%s2 + $0xd8] sm:$0xff]
      %v467 = vld [vmem:[%s2 + $0xe0] sm:$0xff]
      %v468 = vld [vmem:[%s2 + $0xe8] sm:$0xff]
      %v469 = vld [vmem:[%s2 + $0xf0] sm:$0xff]
      %v470 = vld [vmem:[%s2 + $0xf8] sm:$0xff]
      %v471 = vld [vmem:[%s2 + $0x100] sm:$0xff]
      %v472 = vld [vmem:[%s2 + $0x108] sm:$0xff]
      %v473 = vld [vmem:[%s2 + $0x110] sm:$0xff]
      %v474 = vld [vmem:[%s2 + $0x118] sm:$0xff]
      %v475 = vld [vmem:[%s2 + $0x120] sm:$0xff]
      %v476 = vld [vmem:[%s2 + $0x128] sm:$0xff]
      %v477 = vld [vmem:[%s2 + $0x130] sm:$0xff]
      %v478 = vld [vmem:[%s2 + $0x138] sm:$0xff]
      %v479 = vld [vmem:[%s2 + $0x140] sm:$0xff]
      %v480 = vld [vmem:[%s2 + $0x148] sm:$0xff]
      %v481 = vld [vmem:[%s2 + $0x150] sm:$0xff]
      %v482 = vld [vmem:[%s2 + $0x158] sm:$0xff]
      %v483 = vld [vmem:[%s2 + $0x160] sm:$0xff]
      %v484 = vld [vmem:[%s2 + $0x168] sm:$0xff]
      %v485 = vld [vmem:[%s2 + $0x170] sm:$0xff]
      %v486 = vld [vmem:[%s2 + $0x178] sm:$0xff]
      %v487 = vld [vmem:[%s2 + $0x180] sm:$0xff]
      %v488 = vld [vmem:[%s2 + $0x188] sm:$0xff]
      %v489 = vld [vmem:[%s2 + $0x190] sm:$0xff]
      %v490 = vld [vmem:[%s2 + $0x198] sm:$0xff]
      %v491 = vld [vmem:[%s2 + $0x1a0] sm:$0xff]
      %v492 = vld [vmem:[%s2 + $0x1a8] sm:$0xff]
      %v493 = vld [vmem:[%s2 + $0x1b0] sm:$0xff]
      %v494 = vld [vmem:[%s2 + $0x1b8] sm:$0xff]
      %v495 = vld [vmem:[%s2 + $0x1c0] sm:$0xff]
      %v496 = vld [vmem:[%s2 + $0x1c8] sm:$0xff]
      %v497 = vld [vmem:[%s2 + $0x1d0] sm:$0xff]
      %v498 = vld [vmem:[%s2 + $0x1d8] sm:$0xff]
      %v499 = vld [vmem:[%s2 + $0x1e0] sm:$0xff]
      %v500 = vld [vmem:[%s2 + $0x1e8] sm:$0xff]
      %v501 = vld [vmem:[%s2 + $0x1f0] sm:$0xff]
      %v502 = vld [vmem:[%s2 + $0x1f8] sm:$0xff]
      %v567 = vunpack.c.l.b16 %v439
      %v568 = vunpack.c.h.b16 %v439
      %v569 = vunpack.c.l.b16 %v440
      %v570 = vunpack.c.h.b16 %v440
      %v571 = vunpack.c.l.b16 %v441
      %v572 = vunpack.c.h.b16 %v441
      %v573 = vunpack.c.l.b16 %v442
      %v574 = vunpack.c.h.b16 %v442
      %v575 = vunpack.c.l.b16 %v443
      %v576 = vunpack.c.h.b16 %v443
      %v577 = vunpack.c.l.b16 %v444
      %v578 = vunpack.c.h.b16 %v444
      %v579 = vunpack.c.l.b16 %v445
      %v580 = vunpack.c.h.b16 %v445
      %v581 = vunpack.c.l.b16 %v446
      %v582 = vunpack.c.h.b16 %v446
      %v583 = vunpack.c.l.b16 %v447
      %v584 = vunpack.c.h.b16 %v447
      %v585 = vunpack.c.l.b16 %v448
      %v586 = vunpack.c.h.b16 %v448
      %v587 = vunpack.c.l.b16 %v449
      %v588 = vunpack.c.h.b16 %v449
      %v589 = vunpack.c.l.b16 %v450
      %v590 = vunpack.c.h.b16 %v450
      %v591 = vunpack.c.l.b16 %v451
      %v592 = vunpack.c.h.b16 %v451
      %v593 = vunpack.c.l.b16 %v452
      %v594 = vunpack.c.h.b16 %v452
      %v595 = vunpack.c.l.b16 %v453
      %v596 = vunpack.c.h.b16 %v453
      %v597 = vunpack.c.l.b16 %v454
      %v598 = vunpack.c.h.b16 %v454
      %v599 = vunpack.c.l.b16 %v455
      %v600 = vunpack.c.h.b16 %v455
      %v601 = vunpack.c.l.b16 %v456
      %v602 = vunpack.c.h.b16 %v456
      %v603 = vunpack.c.l.b16 %v457
      %v604 = vunpack.c.h.b16 %v457
      %v605 = vunpack.c.l.b16 %v458
      %v606 = vunpack.c.h.b16 %v458
      %v607 = vunpack.c.l.b16 %v459
      %v608 = vunpack.c.h.b16 %v459
      %v609 = vunpack.c.l.b16 %v460
      %v610 = vunpack.c.h.b16 %v460
      %v611 = vunpack.c.l.b16 %v461
      %v612 = vunpack.c.h.b16 %v461
      %v613 = vunpack.c.l.b16 %v462
      %v614 = vunpack.c.h.b16 %v462
      %v615 = vunpack.c.l.b16 %v463
      %v616 = vunpack.c.h.b16 %v463
      %v617 = vunpack.c.l.b16 %v464
      %v618 = vunpack.c.h.b16 %v464
      %v619 = vunpack.c.l.b16 %v465
      %v620 = vunpack.c.h.b16 %v465
      %v621 = vunpack.c.l.b16 %v466
      %v622 = vunpack.c.h.b16 %v466
      %v623 = vunpack.c.l.b16 %v467
      %v624 = vunpack.c.h.b16 %v467
      %v625 = vunpack.c.l.b16 %v468
      %v626 = vunpack.c.h.b16 %v468
      %v627 = vunpack.c.l.b16 %v469
      %v628 = vunpack.c.h.b16 %v469
      %v629 = vunpack.c.l.b16 %v470
      %v630 = vunpack.c.h.b16 %v470
      %v631 = vunpack.c.l.b16 %v471
      %v632 = vunpack.c.h.b16 %v471
      %v633 = vunpack.c.l.b16 %v472
      %v634 = vunpack.c.h.b16 %v472
      %v635 = vunpack.c.l.b16 %v473
      %v636 = vunpack.c.h.b16 %v473
      %v637 = vunpack.c.l.b16 %v474
      %v638 = vunpack.c.h.b16 %v474
      %v639 = vunpack.c.l.b16 %v475
      %v640 = vunpack.c.h.b16 %v475
      %v641 = vunpack.c.l.b16 %v476
      %v642 = vunpack.c.h.b16 %v476
      %v643 = vunpack.c.l.b16 %v477
      %v644 = vunpack.c.h.b16 %v477
      %v645 = vunpack.c.l.b16 %v478
      %v646 = vunpack.c.h.b16 %v478
      %v647 = vunpack.c.l.b16 %v479
      %v648 = vunpack.c.h.b16 %v479
      %v649 = vunpack.c.l.b16 %v480
      %v650 = vunpack.c.h.b16 %v480
      %v651 = vunpack.c.l.b16 %v481
      %v652 = vunpack.c.h.b16 %v481
      %v653 = vunpack.c.l.b16 %v482
      %v654 = vunpack.c.h.b16 %v482
      %v655 = vunpack.c.l.b16 %v483
      %v656 = vunpack.c.h.b16 %v483
      %v657 = vunpack.c.l.b16 %v484
      %v658 = vunpack.c.h.b16 %v484
      %v659 = vunpack.c.l.b16 %v485
      %v660 = vunpack.c.h.b16 %v485
      %v661 = vunpack.c.l.b16 %v486
      %v662 = vunpack.c.h.b16 %v486
      %v663 = vunpack.c.l.b16 %v487
      %v664 = vunpack.c.h.b16 %v487
      %v665 = vunpack.c.l.b16 %v488
      %v666 = vunpack.c.h.b16 %v488
      %v667 = vunpack.c.l.b16 %v489
      %v668 = vunpack.c.h.b16 %v489
      %v669 = vunpack.c.l.b16 %v490
      %v670 = vunpack.c.h.b16 %v490
      %v671 = vunpack.c.l.b16 %v491
      %v672 = vunpack.c.h.b16 %v491
      %v673 = vunpack.c.l.b16 %v492
      %v674 = vunpack.c.h.b16 %v492
      %v675 = vunpack.c.l.b16 %v493
      %v676 = vunpack.c.h.b16 %v493
      %v677 = vunpack.c.l.b16 %v494
      %v678 = vunpack.c.h.b16 %v494
      %v679 = vunpack.c.l.b16 %v495
      %v680 = vunpack.c.h.b16 %v495
      %v681 = vunpack.c.l.b16 %v496
      %v682 = vunpack.c.h.b16 %v496
      %v683 = vunpack.c.l.b16 %v497
      %v684 = vunpack.c.h.b16 %v497
      %v685 = vunpack.c.l.b16 %v498
      %v686 = vunpack.c.h.b16 %v498
      %v687 = vunpack.c.l.b16 %v499
      %v688 = vunpack.c.h.b16 %v499
      %v689 = vunpack.c.l.b16 %v500
      %v690 = vunpack.c.h.b16 %v500
      %v691 = vunpack.c.l.b16 %v501
      %v692 = vunpack.c.h.b16 %v501
      %v693 = vunpack.c.l.b16 %v502
      %v694 = vunpack.c.h.b16 %v502
      %v695 = vpack.c.b16 %v571, %v567
      %v696 = vpack.c.b16 %v572, %v568
      %v697 = vpack.c.b16 %v573, %v569
      %v698 = vpack.c.b16 %v574, %v570
      %v699 = vpack.c.b16 %v579, %v575
      %v700 = vpack.c.b16 %v580, %v576
      %v701 = vpack.c.b16 %v581, %v577
      %v702 = vpack.c.b16 %v582, %v578
      %v703 = vpack.c.b16 %v587, %v583
      %v704 = vpack.c.b16 %v588, %v584
      %v705 = vpack.c.b16 %v589, %v585
      %v706 = vpack.c.b16 %v590, %v586
      %v707 = vpack.c.b16 %v595, %v591
      %v708 = vpack.c.b16 %v596, %v592
      %v709 = vpack.c.b16 %v597, %v593
      %v710 = vpack.c.b16 %v598, %v594
      %v711 = vpack.c.b16 %v603, %v599
      %v712 = vpack.c.b16 %v604, %v600
      %v713 = vpack.c.b16 %v605, %v601
      %v714 = vpack.c.b16 %v606, %v602
      %v715 = vpack.c.b16 %v611, %v607
      %v716 = vpack.c.b16 %v612, %v608
      %v717 = vpack.c.b16 %v613, %v609
      %v718 = vpack.c.b16 %v614, %v610
      %v719 = vpack.c.b16 %v619, %v615
      %v720 = vpack.c.b16 %v620, %v616
      %v721 = vpack.c.b16 %v621, %v617
      %v722 = vpack.c.b16 %v622, %v618
      %v723 = vpack.c.b16 %v627, %v623
      %v724 = vpack.c.b16 %v628, %v624
      %v725 = vpack.c.b16 %v629, %v625
      %v726 = vpack.c.b16 %v630, %v626
      %v727 = vpack.c.b16 %v635, %v631
      %v728 = vpack.c.b16 %v636, %v632
      %v729 = vpack.c.b16 %v637, %v633
      %v730 = vpack.c.b16 %v638, %v634
      %v731 = vpack.c.b16 %v643, %v639
      %v732 = vpack.c.b16 %v644, %v640
      %v733 = vpack.c.b16 %v645, %v641
      %v734 = vpack.c.b16 %v646, %v642
      %v735 = vpack.c.b16 %v651, %v647
      %v736 = vpack.c.b16 %v652, %v648
      %v737 = vpack.c.b16 %v653, %v649
      %v738 = vpack.c.b16 %v654, %v650
      %v739 = vpack.c.b16 %v659, %v655
      %v740 = vpack.c.b16 %v660, %v656
      %v741 = vpack.c.b16 %v661, %v657
      %v742 = vpack.c.b16 %v662, %v658
      %v743 = vpack.c.b16 %v667, %v663
      %v744 = vpack.c.b16 %v668, %v664
      %v745 = vpack.c.b16 %v669, %v665
      %v746 = vpack.c.b16 %v670, %v666
      %v747 = vpack.c.b16 %v675, %v671
      %v748 = vpack.c.b16 %v676, %v672
      %v749 = vpack.c.b16 %v677, %v673
      %v750 = vpack.c.b16 %v678, %v674
      %v751 = vpack.c.b16 %v683, %v679
      %v752 = vpack.c.b16 %v684, %v680
      %v753 = vpack.c.b16 %v685, %v681
      %v754 = vpack.c.b16 %v686, %v682
      %v755 = vpack.c.b16 %v691, %v687
      %v756 = vpack.c.b16 %v692, %v688
      %v757 = vpack.c.b16 %v693, %v689
      %v758 = vpack.c.b16 %v694, %v690
      %823 = vmatprep.subr.bf16.mxu0 %v696
      %824 = vmatpush1.bf16.msra.mxu0 %v695
      %825 = vmatprep.subr.bf16.mxu0 %v700
      %826 = vmatpush1.bf16.msra.mxu0 %v699
      %827 = vmatprep.subr.bf16.mxu0 %v704
      %828 = vmatpush1.bf16.msra.mxu0 %v703
      %829 = vmatprep.subr.bf16.mxu0 %v708
      %830 = vmatpush1.bf16.msra.mxu0 %v707
      %831 = vmatprep.subr.bf16.mxu0 %v712
      %832 = vmatpush1.bf16.msra.mxu0 %v711
      %833 = vmatprep.subr.bf16.mxu0 %v716
      %834 = vmatpush1.bf16.msra.mxu0 %v715
      %835 = vmatprep.subr.bf16.mxu0 %v720
      %836 = vmatpush1.bf16.msra.mxu0 %v719
      %837 = vmatprep.subr.bf16.mxu0 %v724
      %838 = vmatpush1.bf16.msra.mxu0 %v723
      %839 = vmatprep.subr.bf16.mxu0 %v728
      %840 = vmatpush1.bf16.msra.mxu0 %v727
      %841 = vmatprep.subr.bf16.mxu0 %v732
      %842 = vmatpush1.bf16.msra.mxu0 %v731
      %843 = vmatprep.subr.bf16.mxu0 %v736
      %844 = vmatpush1.bf16.msra.mxu0 %v735
      %845 = vmatprep.subr.bf16.mxu0 %v740
      %846 = vmatpush1.bf16.msra.mxu0 %v739
      %847 = vmatprep.subr.bf16.mxu0 %v744
      %848 = vmatpush1.bf16.msra.mxu0 %v743
      %849 = vmatprep.subr.bf16.mxu0 %v748
      %850 = vmatpush1.bf16.msra.mxu0 %v747
      %851 = vmatprep.subr.bf16.mxu0 %v752
      %852 = vmatpush1.bf16.msra.mxu0 %v751
      %853 = vmatprep.subr.bf16.mxu0 %v756
      %854 = vmatpush1.bf16.msra.mxu0 %v755
      %855 = vmatprep.mubr.bf16.mxu0 %v348
      %856 = vmatmul.mubr.bf16.gmra.mrb[0].mxu0 %v328
      %v857 = vpop.f32.mrb[0].mxu0
      %v858 = vadd.f32 0.0, %v857
      %v859 = vpop.f32.mrb[0].mxu0
      %v860 = vadd.f32 0.0, %v859
      %v861 = vpop.f32.mrb[0].mxu0
      %v862 = vadd.f32 0.0, %v861
      %v863 = vpop.f32.mrb[0].mxu0
      %v864 = vadd.f32 0.0, %v863
      %865 = vmatprep.mubr.bf16.mxu0 %v356
      %866 = vmatmul.mubr.bf16.gmra.mrb[0].mxu0 %v329
      %v867 = vpop.f32.mrb[0].mxu0
      %v868 = vadd.f32 0.0, %v867
      %v869 = vpop.f32.mrb[0].mxu0
      %v870 = vadd.f32 0.0, %v869
      %v871 = vpop.f32.mrb[0].mxu0
      %v872 = vadd.f32 0.0, %v871
      %v873 = vpop.f32.mrb[0].mxu0
      %v874 = vadd.f32 0.0, %v873
      %875 = vmatprep.mubr.bf16.mxu0 %v364
      %876 = vmatmul.mubr.bf16.gmra.mrb[0].mxu0 %v330
      %v877 = vpop.f32.mrb[0].mxu0
      %v878 = vadd.f32 0.0, %v877
      %v879 = vpop.f32.mrb[0].mxu0
      %v880 = vadd.f32 0.0, %v879
      %v881 = vpop.f32.mrb[0].mxu0
      %v882 = vadd.f32 0.0, %v881
      %v883 = vpop.f32.mrb[0].mxu0
      %v884 = vadd.f32 0.0, %v883
      %885 = vmatprep.mubr.bf16.mxu0 %v372
      %886 = vmatmul.mubr.bf16.gmra.mrb[0].mxu0 %v331
      %v887 = vpop.f32.mrb[0].mxu0
      %v888 = vadd.f32 0.0, %v887
      %v889 = vpop.f32.mrb[0].mxu0
      %v890 = vadd.f32 0.0, %v889
      %v891 = vpop.f32.mrb[0].mxu0
      %v892 = vadd.f32 0.0, %v891
      %v893 = vpop.f32.mrb[0].mxu0
      %v894 = vadd.f32 0.0, %v893
      %895 = vmatprep.mubr.bf16.mxu0 %v380
      %896 = vmatmul.mubr.bf16.gmra.mrb[0].mxu0 %v332
      %v897 = vpop.f32.mrb[0].mxu0
      %v898 = vadd.f32 0.0, %v897
      %v899 = vpop.f32.mrb[0].mxu0
      %v900 = vadd.f32 0.0, %v899
      %v901 = vpop.f32.mrb[0].mxu0
      %v902 = vadd.f32 0.0, %v901
      %v903 = vpop.f32.mrb[0].mxu0
      %v904 = vadd.f32 0.0, %v903
      %905 = vmatprep.mubr.bf16.mxu0 %v388
      %906 = vmatmul.mubr.bf16.gmra.mrb[0].mxu0 %v333
      %v907 = vpop.f32.mrb[0].mxu0
      %v908 = vadd.f32 0.0, %v907
      %v909 = vpop.f32.mrb[0].mxu0
      %v910 = vadd.f32 0.0, %v909
      %v911 = vpop.f32.mrb[0].mxu0
      %v912 = vadd.f32 0.0, %v911
      %v913 = vpop.f32.mrb[0].mxu0
      %v914 = vadd.f32 0.0, %v913
      %915 = vmatprep.mubr.bf16.mxu0 %v396
      %916 = vmatmul.mubr.bf16.gmra.mrb[0].mxu0 %v334
      %v917 = vpop.f32.mrb[0].mxu0
      %v918 = vadd.f32 0.0, %v917
      %v919 = vpop.f32.mrb[0].mxu0
      %v920 = vadd.f32 0.0, %v919
      %v921 = vpop.f32.mrb[0].mxu0
      %v922 = vadd.f32 0.0, %v921
      %v923 = vpop.f32.mrb[0].mxu0
      %v924 = vadd.f32 0.0, %v923
      %925 = vmatprep.mubr.bf16.mxu0 %v430
      %926 = vmatmul.mubr.bf16.gmra.mrb[0].mxu0 %v335
      %v927 = vpop.f32.mrb[0].mxu0
      %v928 = vadd.f32 0.0, %v927
      %v929 = vpop.f32.mrb[0].mxu0
      %v930 = vadd.f32 0.0, %v929
      %v931 = vpop.f32.mrb[0].mxu0
      %v932 = vadd.f32 0.0, %v931
      %v933 = vpop.f32.mrb[0].mxu0
      %v934 = vadd.f32 0.0, %v933
      %935 = vdwg.mxu0
      %936 = vmatprep.subr.bf16.mxu0 %v698
      %937 = vmatpush1.bf16.msra.mxu0 %v697
      %938 = vmatprep.subr.bf16.mxu0 %v702
      %939 = vmatpush1.bf16.msra.mxu0 %v701
      %940 = vmatprep.subr.bf16.mxu0 %v706
      %941 = vmatpush1.bf16.msra.mxu0 %v705
      %942 = vmatprep.subr.bf16.mxu0 %v710
      %943 = vmatpush1.bf16.msra.mxu0 %v709
      %944 = vmatprep.subr.bf16.mxu0 %v714
      %945 = vmatpush1.bf16.msra.mxu0 %v713
      %946 = vmatprep.subr.bf16.mxu0 %v718
      %947 = vmatpush1.bf16.msra.mxu0 %v717
      %948 = vmatprep.subr.bf16.mxu0 %v722
      %949 = vmatpush1.bf16.msra.mxu0 %v721
      %950 = vmatprep.subr.bf16.mxu0 %v726
      %951 = vmatpush1.bf16.msra.mxu0 %v725
      %952 = vmatprep.subr.bf16.mxu0 %v730
      %953 = vmatpush1.bf16.msra.mxu0 %v729
      %954 = vmatprep.subr.bf16.mxu0 %v734
      %955 = vmatpush1.bf16.msra.mxu0 %v733
      %956 = vmatprep.subr.bf16.mxu0 %v738
      %957 = vmatpush1.bf16.msra.mxu0 %v737
      %958 = vmatprep.subr.bf16.mxu0 %v742
      %959 = vmatpush1.bf16.msra.mxu0 %v741
      %960 = vmatprep.subr.bf16.mxu0 %v746
      %961 = vmatpush1.bf16.msra.mxu0 %v745
      %962 = vmatprep.subr.bf16.mxu0 %v750
      %963 = vmatpush1.bf16.msra.mxu0 %v749
      %964 = vmatprep.subr.bf16.mxu0 %v754
      %965 = vmatpush1.bf16.msra.mxu0 %v753
      %966 = vmatprep.subr.bf16.mxu0 %v758
      %967 = vmatpush1.bf16.msra.mxu0 %v757
      %968 = vmatprep.mubr.bf16.mxu0 %v348
      %969 = vmatmul.mubr.bf16.gmra.mrb[0].mxu0 %v328
      %v970 = vpop.f32.mrb[0].mxu0
      %v971 = vadd.f32 0.0, %v970
      %v972 = vpop.f32.mrb[0].mxu0
      %v973 = vadd.f32 0.0, %v972
      %v974 = vpop.f32.mrb[0].mxu0
      %v975 = vadd.f32 0.0, %v974
      %v976 = vpop.f32.mrb[0].mxu0
      %v977 = vadd.f32 0.0, %v976
      %978 = vmatprep.mubr.bf16.mxu0 %v356
      %979 = vmatmul.mubr.bf16.gmra.mrb[0].mxu0 %v329
      %v980 = vpop.f32.mrb[0].mxu0
      %v981 = vadd.f32 0.0, %v980
      %v982 = vpop.f32.mrb[0].mxu0
      %v983 = vadd.f32 0.0, %v982
      %v984 = vpop.f32.mrb[0].mxu0
      %v985 = vadd.f32 0.0, %v984
      %v986 = vpop.f32.mrb[0].mxu0
      %v987 = vadd.f32 0.0, %v986
      %988 = vmatprep.mubr.bf16.mxu0 %v364
      %989 = vmatmul.mubr.bf16.gmra.mrb[0].mxu0 %v330
      %v990 = vpop.f32.mrb[0].mxu0
      %v991 = vadd.f32 0.0, %v990
      %v992 = vpop.f32.mrb[0].mxu0
      %v993 = vadd.f32 0.0, %v992
      %v994 = vpop.f32.mrb[0].mxu0
      %v995 = vadd.f32 0.0, %v994
      %v996 = vpop.f32.mrb[0].mxu0
      %v997 = vadd.f32 0.0, %v996
      %998 = vmatprep.mubr.bf16.mxu0 %v372
      %999 = vmatmul.mubr.bf16.gmra.mrb[0].mxu0 %v331
      %v1000 = vpop.f32.mrb[0].mxu0
      %v1001 = vadd.f32 0.0, %v1000
      %v1002 = vpop.f32.mrb[0].mxu0
      %v1003 = vadd.f32 0.0, %v1002
      %v1004 = vpop.f32.mrb[0].mxu0
      %v1005 = vadd.f32 0.0, %v1004
      %v1006 = vpop.f32.mrb[0].mxu0
      %v1007 = vadd.f32 0.0, %v1006
      %1008 = vmatprep.mubr.bf16.mxu0 %v380
      %1009 = vmatmul.mubr.bf16.gmra.mrb[0].mxu0 %v332
      %v1010 = vpop.f32.mrb[0].mxu0
      %v1011 = vadd.f32 0.0, %v1010
      %v1012 = vpop.f32.mrb[0].mxu0
      %v1013 = vadd.f32 0.0, %v1012
      %v1014 = vpop.f32.mrb[0].mxu0
      %v1015 = vadd.f32 0.0, %v1014
      %v1016 = vpop.f32.mrb[0].mxu0
      %v1017 = vadd.f32 0.0, %v1016
      %1018 = vmatprep.mubr.bf16.mxu0 %v388
      %1019 = vmatmul.mubr.bf16.gmra.mrb[0].mxu0 %v333
      %v1020 = vpop.f32.mrb[0].mxu0
      %v1021 = vadd.f32 0.0, %v1020
      %v1022 = vpop.f32.mrb[0].mxu0
      %v1023 = vadd.f32 0.0, %v1022
      %v1024 = vpop.f32.mrb[0].mxu0
      %v1025 = vadd.f32 0.0, %v1024
      %v1026 = vpop.f32.mrb[0].mxu0
      %v1027 = vadd.f32 0.0, %v1026
      %1028 = vmatprep.mubr.bf16.mxu0 %v396
      %1029 = vmatmul.mubr.bf16.gmra.mrb[0].mxu0 %v334
      %v1030 = vpop.f32.mrb[0].mxu0
      %v1031 = vadd.f32 0.0, %v1030
      %v1032 = vpop.f32.mrb[0].mxu0
      %v1033 = vadd.f32 0.0, %v1032
      %v1034 = vpop.f32.mrb[0].mxu0
      %v1035 = vadd.f32 0.0, %v1034
      %v1036 = vpop.f32.mrb[0].mxu0
      %v1037 = vadd.f32 0.0, %v1036
      %1038 = vmatprep.mubr.bf16.mxu0 %v430
      %1039 = vmatmul.mubr.bf16.gmra.mrb[0].mxu0 %v335
      %v1040 = vpop.f32.mrb[0].mxu0
      %v1041 = vadd.f32 0.0, %v1040
      %v1042 = vpop.f32.mrb[0].mxu0
      %v1043 = vadd.f32 0.0, %v1042
      %v1044 = vpop.f32.mrb[0].mxu0
      %v1045 = vadd.f32 0.0, %v1044
      %v1046 = vpop.f32.mrb[0].mxu0
      %v1047 = vadd.f32 0.0, %v1046
      %1048 = vdwg.mxu0
      %v1049 = vmul.f32 %v858, %v858
      %v1050 = vmul.f32 %v860, %v860
      %v1051 = vmul.f32 %v862, %v862
      %v1052 = vmul.f32 %v864, %v864
      %v1053 = vmul.f32 %v868, %v868
      %v1054 = vmul.f32 %v870, %v870
      %v1055 = vmul.f32 %v872, %v872
      %v1056 = vmul.f32 %v874, %v874
      %v1057 = vmul.f32 %v878, %v878
      %v1058 = vmul.f32 %v880, %v880
      %v1059 = vmul.f32 %v882, %v882
      %v1060 = vmul.f32 %v884, %v884
      %v1061 = vmul.f32 %v888, %v888
      %v1062 = vmul.f32 %v890, %v890
      %v1063 = vmul.f32 %v892, %v892
      %v1064 = vmul.f32 %v894, %v894
      %v1065 = vmul.f32 %v898, %v898
      %v1066 = vmul.f32 %v900, %v900
      %v1067 = vmul.f32 %v902, %v902
      %v1068 = vmul.f32 %v904, %v904
      %v1069 = vmul.f32 %v908, %v908
      %v1070 = vmul.f32 %v910, %v910
      %v1071 = vmul.f32 %v912, %v912
      %v1072 = vmul.f32 %v914, %v914
      %v1073 = vmul.f32 %v918, %v918
      %v1074 = vmul.f32 %v920, %v920
      %v1075 = vmul.f32 %v922, %v922
      %v1076 = vmul.f32 %v924, %v924
      %v1077 = vmul.f32 %v928, %v928
      %v1078 = vmul.f32 %v930, %v930
      %v1079 = vmul.f32 %v932, %v932
      %v1080 = vmul.f32 %v934, %v934
      %v1081 = vmul.f32 %v971, %v971
      %v1082 = vmul.f32 %v973, %v973
      %v1083 = vmul.f32 %v975, %v975
      %v1084 = vmul.f32 %v977, %v977
      %v1085 = vmul.f32 %v981, %v981
      %v1086 = vmul.f32 %v983, %v983
      %v1087 = vmul.f32 %v985, %v985
      %v1088 = vmul.f32 %v987, %v987
      %v1089 = vmul.f32 %v991, %v991
      %v1090 = vmul.f32 %v993, %v993
      %v1091 = vmul.f32 %v995, %v995
      %v1092 = vmul.f32 %v997, %v997
      %v1093 = vmul.f32 %v1001, %v1001
      %v1094 = vmul.f32 %v1003, %v1003
      %v1095 = vmul.f32 %v1005, %v1005
      %v1096 = vmul.f32 %v1007, %v1007
      %v1097 = vmul.f32 %v1011, %v1011
      %v1098 = vmul.f32 %v1013, %v1013
      %v1099 = vmul.f32 %v1015, %v1015
      %v1100 = vmul.f32 %v1017, %v1017
      %v1101 = vmul.f32 %v1021, %v1021
      %v1102 = vmul.f32 %v1023, %v1023
      %v1103 = vmul.f32 %v1025, %v1025
      %v1104 = vmul.f32 %v1027, %v1027
      %v1105 = vmul.f32 %v1031, %v1031
      %v1106 = vmul.f32 %v1033, %v1033
      %v1107 = vmul.f32 %v1035, %v1035
      %v1108 = vmul.f32 %v1037, %v1037
      %v1109 = vmul.f32 %v1041, %v1041
      %v1110 = vmul.f32 %v1043, %v1043
      %v1111 = vmul.f32 %v1045, %v1045
      %v1112 = vmul.f32 %v1047, %v1047
      %v1113 = vadd.f32 %v1049, %v1081
      %v1114 = vadd.f32 %v1050, %v1082
      %v1115 = vadd.f32 %v1051, %v1083
      %v1116 = vadd.f32 %v1052, %v1084
      %v1117 = vadd.f32 %v1053, %v1085
      %v1118 = vadd.f32 %v1054, %v1086
      %v1119 = vadd.f32 %v1055, %v1087
      %v1120 = vadd.f32 %v1056, %v1088
      %v1121 = vadd.f32 %v1057, %v1089
      %v1122 = vadd.f32 %v1058, %v1090
      %v1123 = vadd.f32 %v1059, %v1091
      %v1124 = vadd.f32 %v1060, %v1092
      %v1125 = vadd.f32 %v1061, %v1093
      %v1126 = vadd.f32 %v1062, %v1094
      %v1127 = vadd.f32 %v1063, %v1095
      %v1128 = vadd.f32 %v1064, %v1096
      %v1129 = vadd.f32 %v1065, %v1097
      %v1130 = vadd.f32 %v1066, %v1098
      %v1131 = vadd.f32 %v1067, %v1099
      %v1132 = vadd.f32 %v1068, %v1100
      %v1133 = vadd.f32 %v1069, %v1101
      %v1134 = vadd.f32 %v1070, %v1102
      %v1135 = vadd.f32 %v1071, %v1103
      %v1136 = vadd.f32 %v1072, %v1104
      %v1137 = vadd.f32 %v1073, %v1105
      %v1138 = vadd.f32 %v1074, %v1106
      %v1139 = vadd.f32 %v1075, %v1107
      %v1140 = vadd.f32 %v1076, %v1108
      %v1141 = vadd.f32 %v1077, %v1109
      %v1142 = vadd.f32 %v1078, %v1110
      %v1143 = vadd.f32 %v1079, %v1111
      %v1144 = vadd.f32 %v1080, %v1112
      %v1145 = vld [vmem:[%s3] sm:$0xff]
      %v1146 = vld [vmem:[%s3 + $0x8] sm:$0xff]
      %v1147 = vld [vmem:[%s3 + $0x10] sm:$0xff]
      %v1148 = vld [vmem:[%s3 + $0x18] sm:$0xff]
      %v1149 = vld [vmem:[%s3 + $0x20] sm:$0xff]
      %v1150 = vld [vmem:[%s3 + $0x28] sm:$0xff]
      %v1151 = vld [vmem:[%s3 + $0x30] sm:$0xff]
      %v1152 = vld [vmem:[%s3 + $0x38] sm:$0xff]
      %1153 = vmatprep.subr.mxu0 %v1114
      %1154 = vmatpush1.xpose.msra.mxu0 %v1113
      %1155 = vmatprep.subr.mxu0 %v1116
      %1156 = vmatpush1.xpose.msra.mxu0 %v1115
      %1157 = vmatprep.subr.mxu0 %v1118
      %1158 = vmatpush1.xpose.msra.mxu0 %v1117
      %1159 = vmatprep.subr.mxu0 %v1120
      %1160 = vmatpush1.xpose.msra.mxu0 %v1119
      %1161 = vmatprep.subr.mxu0 %v1122
      %1162 = vmatpush1.xpose.msra.mxu0 %v1121
      %1163 = vmatprep.subr.mxu0 %v1124
      %1164 = vmatpush1.xpose.msra.mxu0 %v1123
      %1165 = vmatprep.subr.mxu0 %v1126
      %1166 = vmatpush1.xpose.msra.mxu0 %v1125
      %1167 = vmatprep.subr.mxu0 %v1128
      %1168 = vmatpush1.xpose.msra.mxu0 %v1127
      %1169 = vmatprep.subr.mxu0 %v1130
      %1170 = vmatpush1.xpose.msra.mxu0 %v1129
      %1171 = vmatprep.subr.mxu0 %v1132
      %1172 = vmatpush1.xpose.msra.mxu0 %v1131
      %1173 = vmatprep.subr.mxu0 %v1134
      %1174 = vmatpush1.xpose.msra.mxu0 %v1133
      %1175 = vmatprep.subr.mxu0 %v1136
      %1176 = vmatpush1.xpose.msra.mxu0 %v1135
      %1177 = vmatprep.subr.mxu0 %v1138
      %1178 = vmatpush1.xpose.msra.mxu0 %v1137
      %1179 = vmatprep.subr.mxu0 %v1140
      %1180 = vmatpush1.xpose.msra.mxu0 %v1139
      %1181 = vmatprep.subr.mxu0 %v1142
      %1182 = vmatpush1.xpose.msra.mxu0 %v1141
      %1183 = vmatprep.subr.mxu0 %v1144
      %1184 = vmatpush1.xpose.msra.mxu0 %v1143
      %1185 = vmatprep.subr.mxu0 0.0
      %1186 = vmatpush1.xpose.msra.mxu0 0.0
      %1187 = vmatprep.subr.mxu0 0.0
      %1188 = vmatpush1.xpose.msra.mxu0 0.0
      %1189 = vmatprep.subr.mxu0 0.0
      %1190 = vmatpush1.xpose.msra.mxu0 0.0
      %1191 = vmatprep.subr.mxu0 0.0
      %1192 = vmatpush1.xpose.msra.mxu0 0.0
      %1193 = vmatprep.subr.mxu0 0.0
      %1194 = vmatpush1.xpose.msra.mxu0 0.0
      %1195 = vmatprep.subr.mxu0 0.0
      %1196 = vmatpush1.xpose.msra.mxu0 0.0
      %1197 = vmatprep.subr.mxu0 0.0
      %1198 = vmatpush1.xpose.msra.mxu0 0.0
      %1199 = vmatprep.subr.mxu0 0.0
      %1200 = vmatpush1.xpose.msra.mxu0 0.0
      %1201 = vmatprep.subr.mxu0 0.0
      %1202 = vmatpush1.xpose.msra.mxu0 0.0
      %1203 = vmatprep.subr.mxu0 0.0
      %1204 = vmatpush1.xpose.msra.mxu0 0.0
      %1205 = vmatprep.subr.mxu0 0.0
      %1206 = vmatpush1.xpose.msra.mxu0 0.0
      %1207 = vmatprep.subr.mxu0 0.0
      %1208 = vmatpush1.xpose.msra.mxu0 0.0
      %1209 = vmatprep.subr.mxu0 0.0
      %1210 = vmatpush1.xpose.msra.mxu0 0.0
      %1211 = vmatprep.subr.mxu0 0.0
      %1212 = vmatpush1.xpose.msra.mxu0 0.0
      %1213 = vmatprep.subr.mxu0 0.0
      %1214 = vmatpush1.xpose.msra.mxu0 0.0
      %1215 = vmatprep.subr.mxu0 0.0
      %1216 = vmatpush1.xpose.msra.mxu0 0.0
      %1217 = vmatprep.mubr.f32.mxu0 %v1146
      %1218 = vmatmul.mubr.f32.gmra.mrb[0].mxu0 %v1145
      %v1219 = vpop.f32.mrb[0].mxu0
      %v1220 = vadd.f32 1e-05, %v1219
      %v1221 = vpop.f32.mrb[0].mxu0
      %1222 = vmatprep.mubr.f32.mxu0 %v1148
      %1223 = vmatmul.mubr.f32.gmra.mrb[0].mxu0 %v1147
      %v1224 = vpop.f32.mrb[0].mxu0
      %v1225 = vadd.f32 1e-05, %v1224
      %v1226 = vpop.f32.mrb[0].mxu0
      %1227 = vmatprep.mubr.f32.mxu0 %v1150
      %1228 = vmatmul.mubr.f32.gmra.mrb[0].mxu0 %v1149
      %v1229 = vpop.f32.mrb[0].mxu0
      %v1230 = vadd.f32 1e-05, %v1229
      %v1231 = vpop.f32.mrb[0].mxu0
      %1232 = vmatprep.mubr.f32.mxu0 %v1152
      %1233 = vmatmul.mubr.f32.gmra.mrb[0].mxu0 %v1151
      %v1234 = vpop.f32.mrb[0].mxu0
      %v1235 = vadd.f32 1e-05, %v1234
      %v1236 = vpop.f32.mrb[0].mxu0
      %1237 = vdwg.mxu0
      %v1238 = vlog2.pop %v1220
      %v1239 = vmul.f32 %v1238, 0.6931472
      %v1240 = vlog2.pop %v1225
      %v1241 = vmul.f32 %v1240, 0.6931472
      %v1242 = vlog2.pop %v1230
      %v1243 = vmul.f32 %v1242, 0.6931472
      %v1244 = vlog2.pop %v1235
      %v1245 = vmul.f32 %v1244, 0.6931472
      %v1246 = vadd.f32 %v1239, 4.5
      %v1247 = vadd.f32 %v1241, 4.5
      %v1248 = vadd.f32 %v1243, 4.5
      %v1249 = vadd.f32 %v1245, 4.5
      %v1250 = vrcp.pop 5.0
      %v1251 = vmul.f32 %v1246, %v1250
      %v1252 = vmul.f32 %v1247, %v1250
      %v1253 = vmul.f32 %v1248, %v1250
      %v1254 = vmul.f32 %v1249, %v1250
      %1255 = vst [vmem:[%s278] sm:$0xff] %v1251
      %1256 = vst [vmem:[%s278 + $0x8] sm:$0xff] %v1252
      %1257 = vst [vmem:[%s278 + $0x10] sm:$0xff] %v1253
      %1258 = vst [vmem:[%s278 + $0x18] sm:$0xff] %v1254
      %p1259 = scmp.lt.s32.totalorder %s19, 1
      %s1260 = scalar_select %p1259, %s19, 1
      %p1261 = scmp.lt.s32.totalorder %s20, 0
      %s1262 = scalar_select %p1261, %s20, 0
      %s1263 = smul.addr %s1260, 4
      %s1264 = sadd.s32 %s1262, %s1263
      %s1265 = smul.addr %s1264, 8
      %s1266 = scalar_lea.vmem %s4, %s1265
      // Predicated region
      $region37: #{mobilenet_encoder_forward.3} parent=35 // pred_check
        %p1267 = pneg %p145
      $region38: #{mobilenet_encoder_forward.3} parent=35 // pred_check_branch
        %1269 = sbr.rel (%p1267) target = $region40
      $region39: #{mobilenet_encoder_forward.3} parent=35 // pred_region
        _
      $region40: #{mobilenet_encoder_forward.3} parent=35 // pred_fallthru
        _
    $region36: #{mobilenet_encoder_forward.3} parent=5 // pred_fallthru
      _
    %p1270 = scmp.le.s32.totalorder 2, %s10
    // Predicated region
    $region41: #{mobilenet_encoder_forward.3} parent=5 // pred_check
      %p1271 = pneg %p1270
    $region42: #{mobilenet_encoder_forward.3} parent=5 // pred_check_branch
      %1273 = sbr.rel (%p1271) target = $region44
    $region43: #{mobilenet_encoder_forward.3} parent=5 // pred_region
      %s1274 = ssub.s32 %s10, 2
      // Predicated region
      $region45: #{mobilenet_encoder_forward.3} parent=43 // pred_check
        %p1275 = pneg %p151
      $region46: #{mobilenet_encoder_forward.3} parent=43 // pred_check_branch
        %1277 = sbr.rel (%p1275) target = $region48
      $region47: #{mobilenet_encoder_forward.3} parent=43 // pred_region
        %p1278 = scmp.lt.s32.totalorder %s21, 1
        %s1279 = scalar_select %p1278, %s21, 1
        %p1280 = scmp.lt.s32.totalorder %s22, 0
        %s1281 = scalar_select %p1280, %s22, 0
        %s1282 = smul.addr %s1279, 4
        %s1283 = sadd.s32 %s1281, %s1282
        %s1284 = smul.addr %s1283, 8
        %s1285 = scalar_lea.vmem %s4, %s1284
      $region48: #{mobilenet_encoder_forward.3} parent=43 // pred_fallthru
        _
    $region44: #{mobilenet_encoder_forward.3} parent=5 // pred_fallthru
      _
  $region6: #{mobilenet_encoder_forward.3} parent=0 // loop_footer
    %s14 = sadd.s32 1, %s10
  $region7: #{mobilenet_encoder_forward.3} parent=0 // loop_footer_branch
    %9 = sbr.rel target = $region3
  $region8: #{mobilenet_encoder_forward.3} parent=0 // loop_exit
    _

// kernel: mobilenet_encoder_forward.5
$region0: #{mobilenet_encoder_forward.5}
  #allocation0 [shape = 'u32[]', space=smem, size = 0x4, offset = 0x4, fixed_abs, tag = 'smem constant byte address 0x4 - core index']
  #allocation1 [shape = 'u32[144,128]{1,0:T(1,128)}', space=vmem, size = 0x12000, scoped, tag = 'internal scratch']
  %s0 = inlined_call_operand.vmem [shape: f32[2,32], index: 0, kind: input, shape index: {}]
  %s1 = inlined_call_operand.vmem [shape: bf16[32,64], index: 1, kind: input, shape index: {}]
  %s2 = inlined_call_operand.vmem [shape: f32[1,64], index: 2, kind: input, shape index: {}]
  %s3 = inlined_call_operand.vmem [shape: bf16[64,32], index: 3, kind: input, shape index: {}]
  %s4 = inlined_call_operand.vmem [shape: f32[1,32], index: 4, kind: input, shape index: {}]
  %s5 = inlined_call_operand.hbm [shape: f32[2,32], index: 5, kind: output, shape index: {}]
  %s6 = sld [smem:[#allocation0]]
  $region30: #{mobilenet_encoder_forward.5} parent=0
    _
  %s8 = ssub.s32 1, %s6
  %s9 = scalar_select 0, %s8, %s6
  $region1: #{mobilenet_encoder_forward.5} parent=0
    #allocation2 [shape = 'u8[1024]{0}', space=vmem, size = 0x400, scoped, tag = 'output window, operand 0, single buffered']
    #allocation3 [shape = 's32[1]{0}', space=sflag, size = 0x4, scoped, tag = 'scoped memory for mobilenet_encoder_forward.5']
    %10 = vsyncpa [#allocation3], 0
    // Predicated region
    $region2: #{mobilenet_encoder_forward.5} parent=1 // pred_check
      _
    $region3: #{mobilenet_encoder_forward.5} parent=1 // pred_check_branch
      %12 = sbr.rel (0) target = $region5
    $region4: #{mobilenet_encoder_forward.5} parent=1 // pred_region
      _
    $region5: #{mobilenet_encoder_forward.5} parent=1 // pred_fallthru
      _
    // Predicated region
    $region6: #{mobilenet_encoder_forward.5} parent=1 // pred_check
      _
    $region7: #{mobilenet_encoder_forward.5} parent=1 // pred_check_branch
      %14 = sbr.rel (0) target = $region9
    $region8: #{mobilenet_encoder_forward.5} parent=1 // pred_region
      _
    $region9: #{mobilenet_encoder_forward.5} parent=1 // pred_fallthru
      _
    // Predicated region
    $region10: #{mobilenet_encoder_forward.5} parent=1 // pred_check
      _
    $region11: #{mobilenet_encoder_forward.5} parent=1 // pred_check_branch
      %16 = sbr.rel (0) target = $region13
    $region12: #{mobilenet_encoder_forward.5} parent=1 // pred_region
      _
    $region13: #{mobilenet_encoder_forward.5} parent=1 // pred_fallthru
      _
    // Predicated region
    $region14: #{mobilenet_encoder_forward.5} parent=1 // pred_check
      _
    $region15: #{mobilenet_encoder_forward.5} parent=1 // pred_check_branch
      %18 = sbr.rel (0) target = $region17
    $region16: #{mobilenet_encoder_forward.5} parent=1 // pred_region
      _
    $region17: #{mobilenet_encoder_forward.5} parent=1 // pred_fallthru
      _
    // Predicated region
    $region18: #{mobilenet_encoder_forward.5} parent=1 // pred_check
      _
    $region19: #{mobilenet_encoder_forward.5} parent=1 // pred_check_branch
      %20 = sbr.rel (0) target = $region21
    $region20: #{mobilenet_encoder_forward.5} parent=1 // pred_region
      _
    $region21: #{mobilenet_encoder_forward.5} parent=1 // pred_fallthru
      _
    %v22 = vld [vmem:[%s0] sm:$0x3]
    %v23 = vpack.c.bf16 %v22, %v22
    %v24 = vld [vmem:[%s1] sm:$0xf]
    %v25 = vld [vmem:[%s1 + $0x4] sm:$0xf]
    %v26 = vld [vmem:[%s1 + $0x8] sm:$0xf]
    %v27 = vld [vmem:[%s1 + $0xc] sm:$0xf]
    %v28 = vld [vmem:[%s2] sm:$0x1]
    %v30 = vlaneseq
    %v31 = vshrl.u32 %v30, 7
    %v32 = vsub.s32 0, %v31
    %v33 = vrot.slane %v28, %v32
    %v39 = vunpack.c.l.b16 %v24
    %v40 = vunpack.c.l.b16 %v25
    %v41 = vunpack.c.l.b16 %v26
    %v42 = vunpack.c.l.b16 %v27
    %v43 = vpack.c.b16 %v40, %v39
    %v44 = vpack.c.b16 %v42, %v41
    %vm47 = vcmask 261120
    %v49 = vsel %vm47, %v23, 0
    %51 = vmatprep.subr.bf16.mxu0 0
    %52 = vmatpush1.bf16.msra.mxu0 %v43
    %53 = vmatprep.subr.bf16.mxu0 0
    %54 = vmatpush1.bf16.msra.mxu0 %v44
    %55 = vmatprep.subr.bf16.mxu0 0
    %56 = vmatpush1.bf16.msra.mxu0 0
    %57 = vmatprep.subr.bf16.mxu0 0
    %58 = vmatpush1.bf16.msra.mxu0 0
    %59 = vmatprep.subr.bf16.mxu0 0
    %60 = vmatpush1.bf16.msra.mxu0 0
    %61 = vmatprep.subr.bf16.mxu0 0
    %62 = vmatpush1.bf16.msra.mxu0 0
    %63 = vmatprep.subr.bf16.mxu0 0
    %64 = vmatpush1.bf16.msra.mxu0 0
    %65 = vmatprep.subr.bf16.mxu0 0
    %66 = vmatpush1.bf16.msra.mxu0 0
    %67 = vmatprep.subr.bf16.mxu0 0
    %68 = vmatpush1.bf16.msra.mxu0 0
    %69 = vmatprep.subr.bf16.mxu0 0
    %70 = vmatpush1.bf16.msra.mxu0 0
    %71 = vmatprep.subr.bf16.mxu0 0
    %72 = vmatpush1.bf16.msra.mxu0 0
    %73 = vmatprep.subr.bf16.mxu0 0
    %74 = vmatpush1.bf16.msra.mxu0 0
    %75 = vmatprep.subr.bf16.mxu0 0
    %76 = vmatpush1.bf16.msra.mxu0 0
    %77 = vmatprep.subr.bf16.mxu0 0
    %78 = vmatpush1.bf16.msra.mxu0 0
    %79 = vmatprep.subr.bf16.mxu0 0
    %80 = vmatpush1.bf16.msra.mxu0 0
    %81 = vmatprep.subr.bf16.mxu0 0
    %82 = vmatpush1.bf16.msra.mxu0 0
    %83 = vmatprep.mubr.bf16.mxu0 0
    %84 = vmatmul.mubr.bf16.gmra.mrb[0].mxu0 %v49
    %v85 = vpop.f32.mrb[0].mxu0
    %v86 = vadd.f32 %v33, %v85
    %v87 = vpop.f32.mrb[0].mxu0
    %v88 = vpop.f32.mrb[0].mxu0
    %v89 = vpop.f32.mrb[0].mxu0
    %90 = vdwg.mxu0
    %v91 = vmax.f32 %v86, 0.0
    %v92 = vpack.c.bf16 %v91, %v91
    %v93 = vld [vmem:[%s3] sm:$0xf]
    %v94 = vld [vmem:[%s3 + $0x4] sm:$0xf]
    %v95 = vld [vmem:[%s3 + $0x8] sm:$0xf]
    %v96 = vld [vmem:[%s3 + $0xc] sm:$0xf]
    %v97 = vld [vmem:[%s3 + $0x10] sm:$0xf]
    %v98 = vld [vmem:[%s3 + $0x14] sm:$0xf]
    %v99 = vld [vmem:[%s3 + $0x18] sm:$0xf]
    %v100 = vld [vmem:[%s3 + $0x1c] sm:$0xf]
    %v101 = vld [vmem:[%s4] sm:$0x1]
    %v103 = vlaneseq
    %v104 = vshrl.u32 %v103, 7
    %v105 = vsub.s32 0, %v104
    %v106 = vrot.slane %v101, %v105
    %v116 = vunpack.c.l.b16 %v93
    %v117 = vunpack.c.l.b16 %v94
    %v118 = vunpack.c.l.b16 %v95
    %v119 = vunpack.c.l.b16 %v96
    %v120 = vunpack.c.l.b16 %v97
    %v121 = vunpack.c.l.b16 %v98
    %v122 = vunpack.c.l.b16 %v99
    %v123 = vunpack.c.l.b16 %v100
    %v124 = vpack.c.b16 %v117, %v116
    %v125 = vpack.c.b16 %v119, %v118
    %v126 = vpack.c.b16 %v121, %v120
    %v127 = vpack.c.b16 %v123, %v122
    %vm132 = vcmask 523264
    %v134 = vsel %vm132, %v92, 0
    %136 = vmatprep.subr.bf16.mxu0 0
    %137 = vmatpush1.bf16.msra.mxu0 %v124
    %138 = vmatprep.subr.bf16.mxu0 0
    %139 = vmatpush1.bf16.msra.mxu0 %v125
    %140 = vmatprep.subr.bf16.mxu0 0
    %141 = vmatpush1.bf16.msra.mxu0 %v126
    %142 = vmatprep.subr.bf16.mxu0 0
    %143 = vmatpush1.bf16.msra.mxu0 %v127
    %144 = vmatprep.subr.bf16.mxu0 0
    %145 = vmatpush1.bf16.msra.mxu0 0
    %146 = vmatprep.subr.bf16.mxu0 0
    %147 = vmatpush1.bf16.msra.mxu0 0
    %148 = vmatprep.subr.bf16.mxu0 0
    %149 = vmatpush1.bf16.msra.mxu0 0
    %150 = vmatprep.subr.bf16.mxu0 0
    %151 = vmatpush1.bf16.msra.mxu0 0
    %152 = vmatprep.subr.bf16.mxu0 0
    %153 = vmatpush1.bf16.msra.mxu0 0
    %154 = vmatprep.subr.bf16.mxu0 0
    %155 = vmatpush1.bf16.msra.mxu0 0
    %156 = vmatprep.subr.bf16.mxu0 0
    %157 = vmatpush1.bf16.msra.mxu0 0
    %158 = vmatprep.subr.bf16.mxu0 0
    %159 = vmatpush1.bf16.msra.mxu0 0
    %160 = vmatprep.subr.bf16.mxu0 0
    %161 = vmatpush1.bf16.msra.mxu0 0
    %162 = vmatprep.subr.bf16.mxu0 0
    %163 = vmatpush1.bf16.msra.mxu0 0
    %164 = vmatprep.subr.bf16.mxu0 0
    %165 = vmatpush1.bf16.msra.mxu0 0
    %166 = vmatprep.subr.bf16.mxu0 0
    %167 = vmatpush1.bf16.msra.mxu0 0
    %168 = vmatprep.mubr.bf16.mxu0 0
    %169 = vmatmul.mubr.bf16.gmra.mrb[0].mxu0 %v134
    %v170 = vpop.f32.mrb[0].mxu0
    %v171 = vadd.f32 %v106, %v170
    %v172 = vpop.f32.mrb[0].mxu0
    %v173 = vpop.f32.mrb[0].mxu0
    %v174 = vpop.f32.mrb[0].mxu0
    %175 = vdwg.mxu0
    %vm176 = vcmask 254976
    %177 = vst.msk [vmem:[#allocation2] sm:$0x3] %vm176, %v171
    // Predicated region
    $region22: #{mobilenet_encoder_forward.5} parent=1 // pred_check
      _
    $region23: #{mobilenet_encoder_forward.5} parent=1 // pred_check_branch
      %179 = sbr.rel (0) target = $region25
    $region24: #{mobilenet_encoder_forward.5} parent=1 // pred_region
      %s181 = ssub.s32 32, 32
      %182 = vsyncadd [#allocation3], %s181
      %s184 = sshll.u32 [#allocation2], 4
      %s185 = int_to_ptr.vmem [resolvable:$true] %s184
      %187 = dma.vmem_to_hbm [thread:$0]  %s185, 32, %s5, [#allocation3]
    $region25: #{mobilenet_encoder_forward.5} parent=1 // pred_fallthru
      _
    // Predicated region
    $region26: #{mobilenet_encoder_forward.5} parent=1 // pred_check
      _
    $region27: #{mobilenet_encoder_forward.5} parent=1 // pred_check_branch
      %189 = sbr.rel (0) target = $region29
    $region28: #{mobilenet_encoder_forward.5} parent=1 // pred_region
      %190 = dma.done [#allocation3], 32
    $region29: #{mobilenet_encoder_forward.5} parent=1 // pred_fallthru
      _
    %191 = vsyncpa [#allocation3], 1

// kernel: mobilenet_encoder_forward.4
$region0: #{mobilenet_encoder_forward.4}
  #allocation0 [shape = 'u32[]', space=smem, size = 0x4, offset = 0x4, fixed_abs, tag = 'smem constant byte address 0x4 - core index']
  #allocation1 [shape = 'u32[144,128]{1,0:T(1,128)}', space=vmem, size = 0x12000, scoped, tag = 'internal scratch']
  #allocation2 [shape = 'bf16[4,296,64]{2,1,0:T(8,128)(2,1)}', space=vmem, size = 0x4a000, scoped, tag = 'scratch operand']
  %s0 = inlined_call_operand.vmem [shape: bf16[2,1024,16], index: 0, kind: input, shape index: {}]
  %s1 = inlined_call_operand.vmem [shape: f32[256,1], index: 1, kind: input, shape index: {}]
  %s2 = inlined_call_operand.vmem [shape: bf16[16,16], index: 2, kind: input, shape index: {}]
  %s3 = inlined_call_operand.vmem [shape: f32[1,16], index: 3, kind: input, shape index: {}]
  %s4 = inlined_call_operand.vmem [shape: bf16[16,64], index: 4, kind: input, shape index: {}]
  %s5 = inlined_call_operand.vmem [shape: f32[1,64], index: 5, kind: input, shape index: {}]
  %s6 = inlined_call_operand.vmem [shape: f32[9,64], index: 6, kind: input, shape index: {}]
  %s7 = inlined_call_operand.vmem [shape: f32[1,64], index: 7, kind: input, shape index: {}]
  %s8 = inlined_call_operand.vmem [shape: bf16[64,32], index: 8, kind: input, shape index: {}]
  %s9 = inlined_call_operand.vmem [shape: f32[1,32], index: 9, kind: input, shape index: {}]
  %s10 = inlined_call_operand.vmem [shape: f32[2,1,32], index: 10, kind: output, shape index: {}]
  %s11 = sld [smem:[#allocation0]]
  $region73: #{mobilenet_encoder_forward.4} parent=0
    _
  %s13 = ssub.s32 1, %s11
  %s14 = scalar_select 0, %s13, %s11
  loop: start=0, step=1, limit=4
  $region2: #{mobilenet_encoder_forward.4} parent=0 // loop_pre_header
    _
  $region3: #{mobilenet_encoder_forward.4} parent=0 // loop_header
    %s16 = sphi 0, %s20
    %p17 = scmp.ge.s32.totalorder %s16, 4
    %s26 = sphi 0, %s28
    %s29 = sphi 0, %s26
    %s30 = sphi 0, %s29
    %s46 = sphi 0, %s30
    %s50 = sphi 0, %s50
    %s52 = sphi 0, %s50
    %s53 = sphi 0, %s52
    %s67 = sphi 0, %s53
    %s71 = sphi 0, %s71
    %s73 = sphi 0, %s71
    %s74 = sphi 0, %s73
    %s88 = sphi 0, %s74
    %s92 = sphi 0, %s92
    %s94 = sphi 0, %s92
    %s95 = sphi 0, %s94
    %s109 = sphi 0, %s95
    %s113 = sphi 0, %s113
    %s115 = sphi 0, %s113
    %s116 = sphi 0, %s115
    %s130 = sphi 0, %s116
    %s134 = sphi 0, %s134
    %s136 = sphi 0, %s134
    %s137 = sphi 0, %s136
    %s151 = sphi 0, %s137
    %s155 = sphi 0, %s155
    %s157 = sphi 0, %s155
    %s158 = sphi 0, %s157
    %s172 = sphi 0, %s158
    %s176 = sphi 0, %s176
    %s178 = sphi 0, %s176
    %s179 = sphi 0, %s178
    %s193 = sphi 0, %s179
    %s197 = sphi 0, %s197
    %s199 = sphi 0, %s197
    %s200 = sphi 0, %s199
    %s214 = sphi 0, %s200
    %s218 = sphi 0, %s218
    %s220 = sphi 0, %s218
    %s221 = sphi 0, %s220
    %s235 = sphi 0, %s221
    %s241 = sphi 0, %s243
    %s244 = sphi 0, %s241
    %s245 = sphi 0, %s244
    %s261 = sphi 0, %s245
  $region4: #{mobilenet_encoder_forward.4} parent=0 // loop_header_branch
    %19 = sbr.rel (%p17) target = $region8
  $region5: #{mobilenet_encoder_forward.4} parent=0 // loop_body
    %s21 = ssub.s32 %s16, 1
    %s22 = ssub.s32 %s16, 2
    %s23 = sadd.s32 %s16, 1
    %s24 = ssub.s32 %s16, %s23
    %p25 = scmp.eq.s32.totalorder %s24, 0
    %s27 = sadd.s32 %s26, 1
    %s28 = scalar_select %p25, %s26, %s27
    %p31 = pneg %p25
    %p32 = scmp.eq.s32.totalorder %s16, 1
    %p33 = por %p31, %p32
    %p34 = scmp.ne.s32.totalorder %s26, %s29
    %p35 = scmp.eq.s32.totalorder %s16, 0
    %p36 = por %p34, %p35
    %p37 = scmp.ne.s32.totalorder %s26, %s29
    %p38 = scmp.eq.s32.totalorder %s21, 1
    %p39 = por %p37, %p38
    %p40 = scmp.ne.s32.totalorder %s29, %s30
    %p41 = scmp.eq.s32.totalorder %s21, 0
    %p42 = por %p40, %p41
    %p43 = scmp.ne.s32.totalorder %s29, %s30
    %p44 = scmp.eq.s32.totalorder %s22, 1
    %p45 = por %p43, %p44
    %p47 = scmp.ne.s32.totalorder %s30, %s46
    %p48 = scmp.eq.s32.totalorder %s22, 0
    %p49 = por %p47, %p48
    %s51 = sadd.s32 %s50, 1
    %p54 = scmp.eq.s32.totalorder %s16, 1
    %p55 = scmp.ne.s32.totalorder %s50, %s52
    %p56 = scmp.eq.s32.totalorder %s16, 0
    %p57 = por %p55, %p56
    %p58 = scmp.ne.s32.totalorder %s50, %s52
    %p59 = scmp.eq.s32.totalorder %s21, 1
    %p60 = por %p58, %p59
    %p61 = scmp.ne.s32.totalorder %s52, %s53
    %p62 = scmp.eq.s32.totalorder %s21, 0
    %p63 = por %p61, %p62
    %p64 = scmp.ne.s32.totalorder %s52, %s53
    %p65 = scmp.eq.s32.totalorder %s22, 1
    %p66 = por %p64, %p65
    %p68 = scmp.ne.s32.totalorder %s53, %s67
    %p69 = scmp.eq.s32.totalorder %s22, 0
    %p70 = por %p68, %p69
    %s72 = sadd.s32 %s71, 1
    %p75 = scmp.eq.s32.totalorder %s16, 1
    %p76 = scmp.ne.s32.totalorder %s71, %s73
    %p77 = scmp.eq.s32.totalorder %s16, 0
    %p78 = por %p76, %p77
    %p79 = scmp.ne.s32.totalorder %s71, %s73
    %p80 = scmp.eq.s32.totalorder %s21, 1
    %p81 = por %p79, %p80
    %p82 = scmp.ne.s32.totalorder %s73, %s74
    %p83 = scmp.eq.s32.totalorder %s21, 0
    %p84 = por %p82, %p83
    %p85 = scmp.ne.s32.totalorder %s73, %s74
    %p86 = scmp.eq.s32.totalorder %s22, 1
    %p87 = por %p85, %p86
    %p89 = scmp.ne.s32.totalorder %s74, %s88
    %p90 = scmp.eq.s32.totalorder %s22, 0
    %p91 = por %p89, %p90
    %s93 = sadd.s32 %s92, 1
    %p96 = scmp.eq.s32.totalorder %s16, 1
    %p97 = scmp.ne.s32.totalorder %s92, %s94
    %p98 = scmp.eq.s32.totalorder %s16, 0
    %p99 = por %p97, %p98
    %p100 = scmp.ne.s32.totalorder %s92, %s94
    %p101 = scmp.eq.s32.totalorder %s21, 1
    %p102 = por %p100, %p101
    %p103 = scmp.ne.s32.totalorder %s94, %s95
    %p104 = scmp.eq.s32.totalorder %s21, 0
    %p105 = por %p103, %p104
    %p106 = scmp.ne.s32.totalorder %s94, %s95
    %p107 = scmp.eq.s32.totalorder %s22, 1
    %p108 = por %p106, %p107
    %p110 = scmp.ne.s32.totalorder %s95, %s109
    %p111 = scmp.eq.s32.totalorder %s22, 0
    %p112 = por %p110, %p111
    %s114 = sadd.s32 %s113, 1
    %p117 = scmp.eq.s32.totalorder %s16, 1
    %p118 = scmp.ne.s32.totalorder %s113, %s115
    %p119 = scmp.eq.s32.totalorder %s16, 0
    %p120 = por %p118, %p119
    %p121 = scmp.ne.s32.totalorder %s113, %s115
    %p122 = scmp.eq.s32.totalorder %s21, 1
    %p123 = por %p121, %p122
    %p124 = scmp.ne.s32.totalorder %s115, %s116
    %p125 = scmp.eq.s32.totalorder %s21, 0
    %p126 = por %p124, %p125
    %p127 = scmp.ne.s32.totalorder %s115, %s116
    %p128 = scmp.eq.s32.totalorder %s22, 1
    %p129 = por %p127, %p128
    %p131 = scmp.ne.s32.totalorder %s116, %s130
    %p132 = scmp.eq.s32.totalorder %s22, 0
    %p133 = por %p131, %p132
    %s135 = sadd.s32 %s134, 1
    %p138 = scmp.eq.s32.totalorder %s16, 1
    %p139 = scmp.ne.s32.totalorder %s134, %s136
    %p140 = scmp.eq.s32.totalorder %s16, 0
    %p141 = por %p139, %p140
    %p142 = scmp.ne.s32.totalorder %s134, %s136
    %p143 = scmp.eq.s32.totalorder %s21, 1
    %p144 = por %p142, %p143
    %p145 = scmp.ne.s32.totalorder %s136, %s137
    %p146 = scmp.eq.s32.totalorder %s21, 0
    %p147 = por %p145, %p146
    %p148 = scmp.ne.s32.totalorder %s136, %s137
    %p149 = scmp.eq.s32.totalorder %s22, 1
    %p150 = por %p148, %p149
    %p152 = scmp.ne.s32.totalorder %s137, %s151
    %p153 = scmp.eq.s32.totalorder %s22, 0
    %p154 = por %p152, %p153
    %s156 = sadd.s32 %s155, 1
    %p159 = scmp.eq.s32.totalorder %s16, 1
    %p160 = scmp.ne.s32.totalorder %s155, %s157
    %p161 = scmp.eq.s32.totalorder %s16, 0
    %p162 = por %p160, %p161
    %p163 = scmp.ne.s32.totalorder %s155, %s157
    %p164 = scmp.eq.s32.totalorder %s21, 1
    %p165 = por %p163, %p164
    %p166 = scmp.ne.s32.totalorder %s157, %s158
    %p167 = scmp.eq.s32.totalorder %s21, 0
    %p168 = por %p166, %p167
    %p169 = scmp.ne.s32.totalorder %s157, %s158
    %p170 = scmp.eq.s32.totalorder %s22, 1
    %p171 = por %p169, %p170
    %p173 = scmp.ne.s32.totalorder %s158, %s172
    %p174 = scmp.eq.s32.totalorder %s22, 0
    %p175 = por %p173, %p174
    %s177 = sadd.s32 %s176, 1
    %p180 = scmp.eq.s32.totalorder %s16, 1
    %p181 = scmp.ne.s32.totalorder %s176, %s178
    %p182 = scmp.eq.s32.totalorder %s16, 0
    %p183 = por %p181, %p182
    %p184 = scmp.ne.s32.totalorder %s176, %s178
    %p185 = scmp.eq.s32.totalorder %s21, 1
    %p186 = por %p184, %p185
    %p187 = scmp.ne.s32.totalorder %s178, %s179
    %p188 = scmp.eq.s32.totalorder %s21, 0
    %p189 = por %p187, %p188
    %p190 = scmp.ne.s32.totalorder %s178, %s179
    %p191 = scmp.eq.s32.totalorder %s22, 1
    %p192 = por %p190, %p191
    %p194 = scmp.ne.s32.totalorder %s179, %s193
    %p195 = scmp.eq.s32.totalorder %s22, 0
    %p196 = por %p194, %p195
    %s198 = sadd.s32 %s197, 1
    %p201 = scmp.eq.s32.totalorder %s16, 1
    %p202 = scmp.ne.s32.totalorder %s197, %s199
    %p203 = scmp.eq.s32.totalorder %s16, 0
    %p204 = por %p202, %p203
    %p205 = scmp.ne.s32.totalorder %s197, %s199
    %p206 = scmp.eq.s32.totalorder %s21, 1
    %p207 = por %p205, %p206
    %p208 = scmp.ne.s32.totalorder %s199, %s200
    %p209 = scmp.eq.s32.totalorder %s21, 0
    %p210 = por %p208, %p209
    %p211 = scmp.ne.s32.totalorder %s199, %s200
    %p212 = scmp.eq.s32.totalorder %s22, 1
    %p213 = por %p211, %p212
    %p215 = scmp.ne.s32.totalorder %s200, %s214
    %p216 = scmp.eq.s32.totalorder %s22, 0
    %p217 = por %p215, %p216
    %s219 = sadd.s32 %s218, 1
    %p222 = scmp.eq.s32.totalorder %s16, 1
    %p223 = scmp.ne.s32.totalorder %s218, %s220
    %p224 = scmp.eq.s32.totalorder %s16, 0
    %p225 = por %p223, %p224
    %p226 = scmp.ne.s32.totalorder %s218, %s220
    %p227 = scmp.eq.s32.totalorder %s21, 1
    %p228 = por %p226, %p227
    %p229 = scmp.ne.s32.totalorder %s220, %s221
    %p230 = scmp.eq.s32.totalorder %s21, 0
    %p231 = por %p229, %p230
    %p232 = scmp.ne.s32.totalorder %s220, %s221
    %p233 = scmp.eq.s32.totalorder %s22, 1
    %p234 = por %p232, %p233
    %p236 = scmp.ne.s32.totalorder %s221, %s235
    %p237 = scmp.eq.s32.totalorder %s22, 0
    %p238 = por %p236, %p237
    %s239 = ssub.s32 %s16, %s23
    %p240 = scmp.eq.s32.totalorder %s239, 0
    %s242 = sadd.s32 %s241, 1
    %s243 = scalar_select %p240, %s241, %s242
    %p246 = pneg %p240
    %p247 = scmp.eq.s32.totalorder %s16, 1
    %p248 = por %p246, %p247
    %p249 = scmp.ne.s32.totalorder %s241, %s244
    %p250 = scmp.eq.s32.totalorder %s16, 0
    %p251 = por %p249, %p250
    %p252 = scmp.ne.s32.totalorder %s241, %s244
    %p253 = scmp.eq.s32.totalorder %s21, 1
    %p254 = por %p252, %p253
    %p255 = scmp.ne.s32.totalorder %s244, %s245
    %p256 = scmp.eq.s32.totalorder %s21, 0
    %p257 = por %p255, %p256
    %p258 = scmp.ne.s32.totalorder %s244, %s245
    %p259 = scmp.eq.s32.totalorder %s22, 1
    %p260 = por %p258, %p259
    %p262 = scmp.ne.s32.totalorder %s245, %s261
    %p263 = scmp.eq.s32.totalorder %s22, 0
    %p264 = por %p262, %p263
    %p265 = scmp.le.s32.totalorder 1, %s16
    %p266 = scmp.lt.s32.totalorder %s16, 3
    %p267 = pnand %p265, %p266
    %p268 = pneg %p267
    // Predicated region
    $region9: #{mobilenet_encoder_forward.4} parent=5 // pred_check
      _
    $region10: #{mobilenet_encoder_forward.4} parent=5 // pred_check_branch
      %270 = sbr.rel (%p267) target = $region12
    $region11: #{mobilenet_encoder_forward.4} parent=5 // pred_region
      %s271 = ssub.s32 %s16, 1
      // Predicated region
      $region13: #{mobilenet_encoder_forward.4} parent=11 // pred_check
        %p272 = pneg %p63
      $region14: #{mobilenet_encoder_forward.4} parent=11 // pred_check_branch
        %274 = sbr.rel (%p272) target = $region16
      $region15: #{mobilenet_encoder_forward.4} parent=11 // pred_region
        _
      $region16: #{mobilenet_encoder_forward.4} parent=11 // pred_fallthru
        _
      // Predicated region
      $region17: #{mobilenet_encoder_forward.4} parent=11 // pred_check
        %p275 = pneg %p84
      $region18: #{mobilenet_encoder_forward.4} parent=11 // pred_check_branch
        %277 = sbr.rel (%p275) target = $region20
      $region19: #{mobilenet_encoder_forward.4} parent=11 // pred_region
        _
      $region20: #{mobilenet_encoder_forward.4} parent=11 // pred_fallthru
        _
      // Predicated region
      $region21: #{mobilenet_encoder_forward.4} parent=11 // pred_check
        %p278 = pneg %p105
      $region22: #{mobilenet_encoder_forward.4} parent=11 // pred_check_branch
        %280 = sbr.rel (%p278) target = $region24
      $region23: #{mobilenet_encoder_forward.4} parent=11 // pred_region
        _
      $region24: #{mobilenet_encoder_forward.4} parent=11 // pred_fallthru
        _
      // Predicated region
      $region25: #{mobilenet_encoder_forward.4} parent=11 // pred_check
        %p281 = pneg %p126
      $region26: #{mobilenet_encoder_forward.4} parent=11 // pred_check_branch
        %283 = sbr.rel (%p281) target = $region28
      $region27: #{mobilenet_encoder_forward.4} parent=11 // pred_region
        _
      $region28: #{mobilenet_encoder_forward.4} parent=11 // pred_fallthru
        _
      // Predicated region
      $region29: #{mobilenet_encoder_forward.4} parent=11 // pred_check
        %p284 = pneg %p147
      $region30: #{mobilenet_encoder_forward.4} parent=11 // pred_check_branch
        %286 = sbr.rel (%p284) target = $region32
      $region31: #{mobilenet_encoder_forward.4} parent=11 // pred_region
        _
      $region32: #{mobilenet_encoder_forward.4} parent=11 // pred_fallthru
        _
      // Predicated region
      $region33: #{mobilenet_encoder_forward.4} parent=11 // pred_check
        %p287 = pneg %p168
      $region34: #{mobilenet_encoder_forward.4} parent=11 // pred_check_branch
        %289 = sbr.rel (%p287) target = $region36
      $region35: #{mobilenet_encoder_forward.4} parent=11 // pred_region
        _
      $region36: #{mobilenet_encoder_forward.4} parent=11 // pred_fallthru
        _
      // Predicated region
      $region37: #{mobilenet_encoder_forward.4} parent=11 // pred_check
        %p290 = pneg %p189
      $region38: #{mobilenet_encoder_forward.4} parent=11 // pred_check_branch
        %292 = sbr.rel (%p290) target = $region40
      $region39: #{mobilenet_encoder_forward.4} parent=11 // pred_region
        _
      $region40: #{mobilenet_encoder_forward.4} parent=11 // pred_fallthru
        _
      // Predicated region
      $region41: #{mobilenet_encoder_forward.4} parent=11 // pred_check
        %p293 = pneg %p210
      $region42: #{mobilenet_encoder_forward.4} parent=11 // pred_check_branch
        %295 = sbr.rel (%p293) target = $region44
      $region43: #{mobilenet_encoder_forward.4} parent=11 // pred_region
        _
      $region44: #{mobilenet_encoder_forward.4} parent=11 // pred_fallthru
        _
      // Predicated region
      $region45: #{mobilenet_encoder_forward.4} parent=11 // pred_check
        %p296 = pneg %p231
      $region46: #{mobilenet_encoder_forward.4} parent=11 // pred_check_branch
        %298 = sbr.rel (%p296) target = $region48
      $region47: #{mobilenet_encoder_forward.4} parent=11 // pred_region
        _
      $region48: #{mobilenet_encoder_forward.4} parent=11 // pred_fallthru
        _
    $region12: #{mobilenet_encoder_forward.4} parent=5 // pred_fallthru
      _
    %p299 = scmp.lt.s32.totalorder %s16, 2
    // Predicated region
    $region49: #{mobilenet_encoder_forward.4} parent=5 // pred_check
      %p300 = pneg %p299
    $region50: #{mobilenet_encoder_forward.4} parent=5 // pred_check_branch
      %302 = sbr.rel (%p300) target = $region52
    $region51: #{mobilenet_encoder_forward.4} parent=5 // pred_region
      // Predicated region
      $region53: #{mobilenet_encoder_forward.4} parent=51 // pred_check
        %p303 = pneg %p36
      $region54: #{mobilenet_encoder_forward.4} parent=51 // pred_check_branch
        %305 = sbr.rel (%p303) target = $region56
      $region55: #{mobilenet_encoder_forward.4} parent=51 // pred_region
        %p306 = scmp.lt.s32.totalorder %s16, 1
        %s307 = scalar_select %p306, %s16, 1
        %s308 = smul.addr %s307, 128
        %s309 = smul.addr %s308, 4
        %s310 = scalar_lea.vmem %s0, %s309
      $region56: #{mobilenet_encoder_forward.4} parent=51 // pred_fallthru
        _
    $region52: #{mobilenet_encoder_forward.4} parent=5 // pred_fallthru
      _
    %p311 = scmp.le.s32.totalorder 1, %s16
    %p312 = scmp.lt.s32.totalorder %s16, 3
    %p313 = pnand %p311, %p312
    %p314 = pneg %p313
    // Predicated region
    $region57: #{mobilenet_encoder_forward.4} parent=5 // pred_check
      _
    $region58: #{mobilenet_encoder_forward.4} parent=5 // pred_check_branch
      %316 = sbr.rel (%p313) target = $region60
    $region59: #{mobilenet_encoder_forward.4} parent=5 // pred_region
      %s317 = ssub.s32 %s16, 1
      %p318 = scmp.lt.s32.totalorder %s21, 1
      %s319 = scalar_select %p318, %s21, 1
      %s320 = smul.addr %s319, 128
      %s321 = smul.addr %s320, 4
      %s322 = scalar_lea.vmem %s0, %s321
      %p323 = pneg %p42
      %p324 = pneg %p39
      %p325 = pneg %p63
      %p326 = pneg %p60
      %p327 = pneg %p84
      %p328 = pneg %p81
      %p329 = pneg %p105
      %p330 = pneg %p102
      %p331 = pneg %p126
      %p332 = pneg %p123
      %p333 = pneg %p147
      %p334 = pneg %p144
      %p335 = pneg %p168
      %p336 = pneg %p165
      %p337 = pneg %p189
      %p338 = pneg %p186
      %p339 = pneg %p210
      %p340 = pneg %p207
      %p341 = pneg %p231
      %p342 = pneg %p228
      %p343 = pneg %p257
      %p344 = pneg %p254
      %p345 = scmp.lt.s32.totalorder %s21, 1
      %s346 = scalar_select %p345, %s21, 1
      %s347 = scalar_lea.vmem %s10, %s346
      %p348 = scmp.lt.s32.totalorder %s21, 1
      %s349 = scalar_select %p348, %s21, 1
      %s350 = smul.addr %s349, 128
      %s351 = smul.addr %s350, 4
      %s352 = scalar_lea.vmem %s0, %s351
      %p353 = scmp.lt.s32.totalorder %s21, 1
      %s354 = scalar_select %p353, %s21, 1
      %s355 = scalar_lea.vmem %s10, %s354
      %v357 = vld [vmem:[%s352] sm:$0xf]
      %v358 = vld [vmem:[%s352 + $0x4] sm:$0xf]
      %v359 = vld [vmem:[%s352 + $0x8] sm:$0xf]
      %v360 = vld [vmem:[%s352 + $0xc] sm:$0xf]
      %v361 = vld [vmem:[%s352 + $0x10] sm:$0xf]
      %v362 = vld [vmem:[%s352 + $0x14] sm:$0xf]
      %v363 = vld [vmem:[%s352 + $0x18] sm:$0xf]
      %v364 = vld [vmem:[%s352 + $0x1c] sm:$0xf]
      %v365 = vld [vmem:[%s352 + $0x20] sm:$0xf]
      %v366 = vld [vmem:[%s352 + $0x24] sm:$0xf]
      %v367 = vld [vmem:[%s352 + $0x28] sm:$0xf]
      %v368 = vld [vmem:[%s352 + $0x2c] sm:$0xf]
      %v369 = vld [vmem:[%s352 + $0x30] sm:$0xf]
      %v370 = vld [vmem:[%s352 + $0x34] sm:$0xf]
      %v371 = vld [vmem:[%s352 + $0x38] sm:$0xf]
      %v372 = vld [vmem:[%s352 + $0x3c] sm:$0xf]
      %v373 = vld [vmem:[%s352 + $0x40] sm:$0xf]
      %v374 = vld [vmem:[%s352 + $0x44] sm:$0xf]
      %v375 = vld [vmem:[%s352 + $0x48] sm:$0xf]
      %v376 = vld [vmem:[%s352 + $0x4c] sm:$0xf]
      %v377 = vld [vmem:[%s352 + $0x50] sm:$0xf]
      %v378 = vld [vmem:[%s352 + $0x54] sm:$0xf]
      %v379 = vld [vmem:[%s352 + $0x58] sm:$0xf]
      %v380 = vld [vmem:[%s352 + $0x5c] sm:$0xf]
      %v381 = vld [vmem:[%s352 + $0x60] sm:$0xf]
      %v382 = vld [vmem:[%s352 + $0x64] sm:$0xf]
      %v383 = vld [vmem:[%s352 + $0x68] sm:$0xf]
      %v384 = vld [vmem:[%s352 + $0x6c] sm:$0xf]
      %v385 = vld [vmem:[%s352 + $0x70] sm:$0xf]
      %v386 = vld [vmem:[%s352 + $0x74] sm:$0xf]
      %v387 = vld [vmem:[%s352 + $0x78] sm:$0xf]
      %v388 = vld [vmem:[%s352 + $0x7c] sm:$0xf]
      %v389 = vld [vmem:[%s352 + $0x80] sm:$0xf]
      %v390 = vld [vmem:[%s352 + $0x84] sm:$0xf]
      %v391 = vld [vmem:[%s352 + $0x88] sm:$0xf]
      %v392 = vld [vmem:[%s352 + $0x8c] sm:$0xf]
      %v393 = vld [vmem:[%s352 + $0x90] sm:$0xf]
      %v394 = vld [vmem:[%s352 + $0x94] sm:$0xf]
      %v395 = vld [vmem:[%s352 + $0x98] sm:$0xf]
      %v396 = vld [vmem:[%s352 + $0x9c] sm:$0xf]
      %v397 = vld [vmem:[%s352 + $0xa0] sm:$0xf]
      %v398 = vld [vmem:[%s352 + $0xa4] sm:$0xf]
      %v399 = vld [vmem:[%s352 + $0xa8] sm:$0xf]
      %v400 = vld [vmem:[%s352 + $0xac] sm:$0xf]
      %v401 = vld [vmem:[%s352 + $0xb0] sm:$0xf]
      %v402 = vld [vmem:[%s352 + $0xb4] sm:$0xf]
      %v403 = vld [vmem:[%s352 + $0xb8] sm:$0xf]
      %v404 = vld [vmem:[%s352 + $0xbc] sm:$0xf]
      %v405 = vld [vmem:[%s352 + $0xc0] sm:$0xf]
      %v406 = vld [vmem:[%s352 + $0xc4] sm:$0xf]
      %v407 = vld [vmem:[%s352 + $0xc8] sm:$0xf]
      %v408 = vld [vmem:[%s352 + $0xcc] sm:$0xf]
      %v409 = vld [vmem:[%s352 + $0xd0] sm:$0xf]
      %v410 = vld [vmem:[%s352 + $0xd4] sm:$0xf]
      %v411 = vld [vmem:[%s352 + $0xd8] sm:$0xf]
      %v412 = vld [vmem:[%s352 + $0xdc] sm:$0xf]
      %v413 = vld [vmem:[%s352 + $0xe0] sm:$0xf]
      %v414 = vld [vmem:[%s352 + $0xe4] sm:$0xf]
      %v415 = vld [vmem:[%s352 + $0xe8] sm:$0xf]
      %v416 = vld [vmem:[%s352 + $0xec] sm:$0xf]
      %v417 = vld [vmem:[%s352 + $0xf0] sm:$0xf]
      %v418 = vld [vmem:[%s352 + $0xf4] sm:$0xf]
      %v419 = vld [vmem:[%s352 + $0xf8] sm:$0xf]
      %v420 = vld [vmem:[%s352 + $0xfc] sm:$0xf]
      %v421 = vld [vmem:[%s352 + $0x100] sm:$0xf]
      %v422 = vld [vmem:[%s352 + $0x104] sm:$0xf]
      %v423 = vld [vmem:[%s352 + $0x108] sm:$0xf]
      %v424 = vld [vmem:[%s352 + $0x10c] sm:$0xf]
      %v425 = vld [vmem:[%s352 + $0x110] sm:$0xf]
      %v426 = vld [vmem:[%s352 + $0x114] sm:$0xf]
      %v427 = vld [vmem:[%s352 + $0x118] sm:$0xf]
      %v428 = vld [vmem:[%s352 + $0x11c] sm:$0xf]
      %v429 = vld [vmem:[%s352 + $0x120] sm:$0xf]
      %v430 = vld [vmem:[%s352 + $0x124] sm:$0xf]
      %v431 = vld [vmem:[%s352 + $0x128] sm:$0xf]
      %v432 = vld [vmem:[%s352 + $0x12c] sm:$0xf]
      %v433 = vld [vmem:[%s352 + $0x130] sm:$0xf]
      %v434 = vld [vmem:[%s352 + $0x134] sm:$0xf]
      %v435 = vld [vmem:[%s352 + $0x138] sm:$0xf]
      %v436 = vld [vmem:[%s352 + $0x13c] sm:$0xf]
      %v437 = vld [vmem:[%s352 + $0x140] sm:$0xf]
      %v438 = vld [vmem:[%s352 + $0x144] sm:$0xf]
      %v439 = vld [vmem:[%s352 + $0x148] sm:$0xf]
      %v440 = vld [vmem:[%s352 + $0x14c] sm:$0xf]
      %v441 = vld [vmem:[%s352 + $0x150] sm:$0xf]
      %v442 = vld [vmem:[%s352 + $0x154] sm:$0xf]
      %v443 = vld [vmem:[%s352 + $0x158] sm:$0xf]
      %v444 = vld [vmem:[%s352 + $0x15c] sm:$0xf]
      %v445 = vld [vmem:[%s352 + $0x160] sm:$0xf]
      %v446 = vld [vmem:[%s352 + $0x164] sm:$0xf]
      %v447 = vld [vmem:[%s352 + $0x168] sm:$0xf]
      %v448 = vld [vmem:[%s352 + $0x16c] sm:$0xf]
      %v449 = vld [vmem:[%s352 + $0x170] sm:$0xf]
      %v450 = vld [vmem:[%s352 + $0x174] sm:$0xf]
      %v451 = vld [vmem:[%s352 + $0x178] sm:$0xf]
      %v452 = vld [vmem:[%s352 + $0x17c] sm:$0xf]
      %v453 = vld [vmem:[%s352 + $0x180] sm:$0xf]
      %v454 = vld [vmem:[%s352 + $0x184] sm:$0xf]
      %v455 = vld [vmem:[%s352 + $0x188] sm:$0xf]
      %v456 = vld [vmem:[%s352 + $0x18c] sm:$0xf]
      %v457 = vld [vmem:[%s352 + $0x190] sm:$0xf]
      %v458 = vld [vmem:[%s352 + $0x194] sm:$0xf]
      %v459 = vld [vmem:[%s352 + $0x198] sm:$0xf]
      %v460 = vld [vmem:[%s352 + $0x19c] sm:$0xf]
      %v461 = vld [vmem:[%s352 + $0x1a0] sm:$0xf]
      %v462 = vld [vmem:[%s352 + $0x1a4] sm:$0xf]
      %v463 = vld [vmem:[%s352 + $0x1a8] sm:$0xf]
      %v464 = vld [vmem:[%s352 + $0x1ac] sm:$0xf]
      %v465 = vld [vmem:[%s352 + $0x1b0] sm:$0xf]
      %v466 = vld [vmem:[%s352 + $0x1b4] sm:$0xf]
      %v467 = vld [vmem:[%s352 + $0x1b8] sm:$0xf]
      %v468 = vld [vmem:[%s352 + $0x1bc] sm:$0xf]
      %v469 = vld [vmem:[%s352 + $0x1c0] sm:$0xf]
      %v470 = vld [vmem:[%s352 + $0x1c4] sm:$0xf]
      %v471 = vld [vmem:[%s352 + $0x1c8] sm:$0xf]
      %v472 = vld [vmem:[%s352 + $0x1cc] sm:$0xf]
      %v473 = vld [vmem:[%s352 + $0x1d0] sm:$0xf]
      %v474 = vld [vmem:[%s352 + $0x1d4] sm:$0xf]
      %v475 = vld [vmem:[%s352 + $0x1d8] sm:$0xf]
      %v476 = vld [vmem:[%s352 + $0x1dc] sm:$0xf]
      %v477 = vld [vmem:[%s352 + $0x1e0] sm:$0xf]
      %v478 = vld [vmem:[%s352 + $0x1e4] sm:$0xf]
      %v479 = vld [vmem:[%s352 + $0x1e8] sm:$0xf]
      %v480 = vld [vmem:[%s352 + $0x1ec] sm:$0xf]
      %v481 = vld [vmem:[%s352 + $0x1f0] sm:$0xf]
      %v482 = vld [vmem:[%s352 + $0x1f4] sm:$0xf]
      %v483 = vld [vmem:[%s352 + $0x1f8] sm:$0xf]
      %v484 = vld [vmem:[%s352 + $0x1fc] sm:$0xf]
      %v485 = vld [vmem:[%s2] sm:$0xf]
      %v486 = vld [vmem:[%s2 + $0x4] sm:$0xf]
      %v487 = vld [vmem:[%s3] sm:$0x1]
      %v489 = vlaneseq
      %v490 = vshrl.u32 %v489, 7
      %v491 = vsub.s32 0, %v490
      %v492 = vrot.slane %v487, %v491
      %v622 = vunpack.c.l.b16 %v357
      %v623 = vunpack.c.l.b16 %v358
      %v624 = vunpack.c.l.b16 %v359
      %v625 = vunpack.c.l.b16 %v360
      %v626 = vunpack.c.l.b16 %v361
      %v627 = vunpack.c.l.b16 %v362
      %v628 = vunpack.c.l.b16 %v363
      %v629 = vunpack.c.l.b16 %v364
      %v630 = vunpack.c.l.b16 %v365
      %v631 = vunpack.c.l.b16 %v366
      %v632 = vunpack.c.l.b16 %v367
      %v633 = vunpack.c.l.b16 %v368
      %v634 = vunpack.c.l.b16 %v369
      %v635 = vunpack.c.l.b16 %v370
      %v636 = vunpack.c.l.b16 %v371
      %v637 = vunpack.c.l.b16 %v372
      %v638 = vunpack.c.l.b16 %v373
      %v639 = vunpack.c.l.b16 %v374
      %v640 = vunpack.c.l.b16 %v375
      %v641 = vunpack.c.l.b16 %v376
      %v642 = vunpack.c.l.b16 %v377
      %v643 = vunpack.c.l.b16 %v378
      %v644 = vunpack.c.l.b16 %v379
      %v645 = vunpack.c.l.b16 %v380
      %v646 = vunpack.c.l.b16 %v381
      %v647 = vunpack.c.l.b16 %v382
      %v648 = vunpack.c.l.b16 %v383
      %v649 = vunpack.c.l.b16 %v384
      %v650 = vunpack.c.l.b16 %v385
      %v651 = vunpack.c.l.b16 %v386
      %v652 = vunpack.c.l.b16 %v387
      %v653 = vunpack.c.l.b16 %v388
      %v654 = vunpack.c.l.b16 %v389
      %v655 = vunpack.c.l.b16 %v390
      %v656 = vunpack.c.l.b16 %v391
      %v657 = vunpack.c.l.b16 %v392
      %v658 = vunpack.c.l.b16 %v393
      %v659 = vunpack.c.l.b16 %v394
      %v660 = vunpack.c.l.b16 %v395
      %v661 = vunpack.c.l.b16 %v396
      %v662 = vunpack.c.l.b16 %v397
      %v663 = vunpack.c.l.b16 %v398
      %v664 = vunpack.c.l.b16 %v399
      %v665 = vunpack.c.l.b16 %v400
      %v666 = vunpack.c.l.b16 %v401
      %v667 = vunpack.c.l.b16 %v402
      %v668 = vunpack.c.l.b16 %v403
      %v669 = vunpack.c.l.b16 %v404
      %v670 = vunpack.c.l.b16 %v405
      %v671 = vunpack.c.l.b16 %v406
      %v672 = vunpack.c.l.b16 %v407
      %v673 = vunpack.c.l.b16 %v408
      %v674 = vunpack.c.l.b16 %v409
      %v675 = vunpack.c.l.b16 %v410
      %v676 = vunpack.c.l.b16 %v411
      %v677 = vunpack.c.l.b16 %v412
      %v678 = vunpack.c.l.b16 %v413
      %v679 = vunpack.c.l.b16 %v414
      %v680 = vunpack.c.l.b16 %v415
      %v681 = vunpack.c.l.b16 %v416
      %v682 = vunpack.c.l.b16 %v417
      %v683 = vunpack.c.l.b16 %v418
      %v684 = vunpack.c.l.b16 %v419
      %v685 = vunpack.c.l.b16 %v420
      %v686 = vunpack.c.l.b16 %v421
      %v687 = vunpack.c.l.b16 %v422
      %v688 = vunpack.c.l.b16 %v423
      %v689 = vunpack.c.l.b16 %v424
      %v690 = vunpack.c.l.b16 %v425
      %v691 = vunpack.c.l.b16 %v426
      %v692 = vunpack.c.l.b16 %v427
      %v693 = vunpack.c.l.b16 %v428
      %v694 = vunpack.c.l.b16 %v429
      %v695 = vunpack.c.l.b16 %v430
      %v696 = vunpack.c.l.b16 %v431
      %v697 = vunpack.c.l.b16 %v432
      %v698 = vunpack.c.l.b16 %v433
      %v699 = vunpack.c.l.b16 %v434
      %v700 = vunpack.c.l.b16 %v435
      %v701 = vunpack.c.l.b16 %v436
      %v702 = vunpack.c.l.b16 %v437
      %v703 = vunpack.c.l.b16 %v438
      %v704 = vunpack.c.l.b16 %v439
      %v705 = vunpack.c.l.b16 %v440
      %v706 = vunpack.c.l.b16 %v441
      %v707 = vunpack.c.l.b16 %v442
      %v708 = vunpack.c.l.b16 %v443
      %v709 = vunpack.c.l.b16 %v444
      %v710 = vunpack.c.l.b16 %v445
      %v711 = vunpack.c.l.b16 %v446
      %v712 = vunpack.c.l.b16 %v447
      %v713 = vunpack.c.l.b16 %v448
      %v714 = vunpack.c.l.b16 %v449
      %v715 = vunpack.c.l.b16 %v450
      %v716 = vunpack.c.l.b16 %v451
      %v717 = vunpack.c.l.b16 %v452
      %v718 = vunpack.c.l.b16 %v453
      %v719 = vunpack.c.l.b16 %v454
      %v720 = vunpack.c.l.b16 %v455
      %v721 = vunpack.c.l.b16 %v456
      %v722 = vunpack.c.l.b16 %v457
      %v723 = vunpack.c.l.b16 %v458
      %v724 = vunpack.c.l.b16 %v459
      %v725 = vunpack.c.l.b16 %v460
      %v726 = vunpack.c.l.b16 %v461
      %v727 = vunpack.c.l.b16 %v462
      %v728 = vunpack.c.l.b16 %v463
      %v729 = vunpack.c.l.b16 %v464
      %v730 = vunpack.c.l.b16 %v465
      %v731 = vunpack.c.l.b16 %v466
      %v732 = vunpack.c.l.b16 %v467
      %v733 = vunpack.c.l.b16 %v468
      %v734 = vunpack.c.l.b16 %v469
      %v735 = vunpack.c.l.b16 %v470
      %v736 = vunpack.c.l.b16 %v471
      %v737 = vunpack.c.l.b16 %v472
      %v738 = vunpack.c.l.b16 %v473
      %v739 = vunpack.c.l.b16 %v474
      %v740 = vunpack.c.l.b16 %v475
      %v741 = vunpack.c.l.b16 %v476
      %v742 = vunpack.c.l.b16 %v477
      %v743 = vunpack.c.l.b16 %v478
      %v744 = vunpack.c.l.b16 %v479
      %v745 = vunpack.c.l.b16 %v480
      %v746 = vunpack.c.l.b16 %v481
      %v747 = vunpack.c.l.b16 %v482
      %v748 = vunpack.c.l.b16 %v483
      %v749 = vunpack.c.l.b16 %v484
      %v750 = vpack.c.b16 %v623, %v622
      %v751 = vpack.c.b16 %v625, %v624
      %v752 = vpack.c.b16 %v627, %v626
      %v753 = vpack.c.b16 %v629, %v628
      %v754 = vpack.c.b16 %v631, %v630
      %v755 = vpack.c.b16 %v633, %v632
      %v756 = vpack.c.b16 %v635, %v634
      %v757 = vpack.c.b16 %v637, %v636
      %v758 = vpack.c.b16 %v639, %v638
      %v759 = vpack.c.b16 %v641, %v640
      %v760 = vpack.c.b16 %v643, %v642
      %v761 = vpack.c.b16 %v645, %v644
      %v762 = vpack.c.b16 %v647, %v646
      %v763 = vpack.c.b16 %v649, %v648
      %v764 = vpack.c.b16 %v651, %v650
      %v765 = vpack.c.b16 %v653, %v652
      %v766 = vpack.c.b16 %v655, %v654
      %v767 = vpack.c.b16 %v657, %v656
      %v768 = vpack.c.b16 %v659, %v658
      %v769 = vpack.c.b16 %v661, %v660
      %v770 = vpack.c.b16 %v663, %v662
      %v771 = vpack.c.b16 %v665, %v664
      %v772 = vpack.c.b16 %v667, %v666
      %v773 = vpack.c.b16 %v669, %v668
      %v774 = vpack.c.b16 %v671, %v670
      %v775 = vpack.c.b16 %v673, %v672
      %v776 = vpack.c.b16 %v675, %v674
      %v777 = vpack.c.b16 %v677, %v676
      %v778 = vpack.c.b16 %v679, %v678
      %v779 = vpack.c.b16 %v681, %v680
      %v780 = vpack.c.b16 %v683, %v682
      %v781 = vpack.c.b16 %v685, %v684
      %v782 = vpack.c.b16 %v687, %v686
      %v783 = vpack.c.b16 %v689, %v688
      %v784 = vpack.c.b16 %v691, %v690
      %v785 = vpack.c.b16 %v693, %v692
      %v786 = vpack.c.b16 %v695, %v694
      %v787 = vpack.c.b16 %v697, %v696
      %v788 = vpack.c.b16 %v699, %v698
      %v789 = vpack.c.b16 %v701, %v700
      %v790 = vpack.c.b16 %v703, %v702
      %v791 = vpack.c.b16 %v705, %v704
      %v792 = vpack.c.b16 %v707, %v706
      %v793 = vpack.c.b16 %v709, %v708
      %v794 = vpack.c.b16 %v711, %v710
      %v795 = vpack.c.b16 %v713, %v712
      %v796 = vpack.c.b16 %v715, %v714
      %v797 = vpack.c.b16 %v717, %v716
      %v798 = vpack.c.b16 %v719, %v718
      %v799 = vpack.c.b16 %v721, %v720
      %v800 = vpack.c.b16 %v723, %v722
      %v801 = vpack.c.b16 %v725, %v724
      %v802 = vpack.c.b16 %v727, %v726
      %v803 = vpack.c.b16 %v729, %v728
      %v804 = vpack.c.b16 %v731, %v730
      %v805 = vpack.c.b16 %v733, %v732
      %v806 = vpack.c.b16 %v735, %v734
      %v807 = vpack.c.b16 %v737, %v736
      %v808 = vpack.c.b16 %v739, %v738
      %v809 = vpack.c.b16 %v741, %v740
      %v810 = vpack.c.b16 %v743, %v742
      %v811 = vpack.c.b16 %v745, %v744
      %v812 = vpack.c.b16 %v747, %v746
      %v813 = vpack.c.b16 %v749, %v748
      %v816 = vunpack.c.l.b16 %v485
      %v817 = vunpack.c.l.b16 %v486
      %v818 = vpack.c.b16 %v817, %v816
      %vm820 = vcmask 130048
      %v822 = vsel %vm820, %v750, 0
      %v825 = vsel %vm820, %v751, 0
      %v828 = vsel %vm820, %v752, 0
      %v831 = vsel %vm820, %v753, 0
      %v834 = vsel %vm820, %v754, 0
      %v837 = vsel %vm820, %v755, 0
      %v840 = vsel %vm820, %v756, 0
      %v843 = vsel %vm820, %v757, 0
      %v846 = vsel %vm820, %v758, 0
      %v849 = vsel %vm820, %v759, 0
      %v852 = vsel %vm820, %v760, 0
      %v855 = vsel %vm820, %v761, 0
      %v858 = vsel %vm820, %v762, 0
      %v861 = vsel %vm820, %v763, 0
      %v864 = vsel %vm820, %v764, 0
      %v867 = vsel %vm820, %v765, 0
      %v870 = vsel %vm820, %v766, 0
      %v873 = vsel %vm820, %v767, 0
      %v876 = vsel %vm820, %v768, 0
      %v879 = vsel %vm820, %v769, 0
      %v882 = vsel %vm820, %v770, 0
      %v885 = vsel %vm820, %v771, 0
      %v888 = vsel %vm820, %v772, 0
      %v891 = vsel %vm820, %v773, 0
      %v894 = vsel %vm820, %v774, 0
      %v897 = vsel %vm820, %v775, 0
      %v900 = vsel %vm820, %v776, 0
      %v903 = vsel %vm820, %v777, 0
      %v906 = vsel %vm820, %v778, 0
      %v909 = vsel %vm820, %v779, 0
      %v912 = vsel %vm820, %v780, 0
      %v915 = vsel %vm820, %v781, 0
      %v918 = vsel %vm820, %v782, 0
      %v921 = vsel %vm820, %v783, 0
      %v924 = vsel %vm820, %v784, 0
      %v927 = vsel %vm820, %v785, 0
      %v930 = vsel %vm820, %v786, 0
      %v933 = vsel %vm820, %v787, 0
      %v936 = vsel %vm820, %v788, 0
      %v939 = vsel %vm820, %v789, 0
      %v942 = vsel %vm820, %v790, 0
      %v945 = vsel %vm820, %v791, 0
      %v948 = vsel %vm820, %v792, 0
      %v951 = vsel %vm820, %v793, 0
      %v954 = vsel %vm820, %v794, 0
      %v957 = vsel %vm820, %v795, 0
      %v960 = vsel %vm820, %v796, 0
      %v963 = vsel %vm820, %v797, 0
      %v966 = vsel %vm820, %v798, 0
      %v969 = vsel %vm820, %v799, 0
      %v972 = vsel %vm820, %v800, 0
      %v975 = vsel %vm820, %v801, 0
      %v978 = vsel %vm820, %v802, 0
      %v981 = vsel %vm820, %v803, 0
      %v984 = vsel %vm820, %v804, 0
      %v987 = vsel %vm820, %v805, 0
      %v990 = vsel %vm820, %v806, 0
      %v993 = vsel %vm820, %v807, 0
      %v996 = vsel %vm820, %v808, 0
      %v999 = vsel %vm820, %v809, 0
      %v1002 = vsel %vm820, %v810, 0
      %v1005 = vsel %vm820, %v811, 0
      %v1008 = vsel %vm820, %v812, 0
      %v1011 = vsel %vm820, %v813, 0
      %1013 = vmatprep.subr.bf16.mxu0 0
      %1014 = vmatpush1.bf16.msra.mxu0 %v818
      %1015 = vmatprep.subr.bf16.mxu0 0
      %1016 = vmatpush1.bf16.msra.mxu0 0
      %1017 = vmatprep.subr.bf16.mxu0 0
      %1018 = vmatpush1.bf16.msra.mxu0 0
      %1019 = vmatprep.subr.bf16.mxu0 0
      %1020 = vmatpush1.bf16.msra.mxu0 0
      %1021 = vmatprep.subr.bf16.mxu0 0
      %1022 = vmatpush1.bf16.msra.mxu0 0
      %1023 = vmatprep.subr.bf16.mxu0 0
      %1024 = vmatpush1.bf16.msra.mxu0 0
      %1025 = vmatprep.subr.bf16.mxu0 0
      %1026 = vmatpush1.bf16.msra.mxu0 0
      %1027 = vmatprep.subr.bf16.mxu0 0
      %1028 = vmatpush1.bf16.msra.mxu0 0
      %1029 = vmatprep.subr.bf16.mxu0 0
      %1030 = vmatpush1.bf16.msra.mxu0 0
      %1031 = vmatprep.subr.bf16.mxu0 0
      %1032 = vmatpush1.bf16.msra.mxu0 0
      %1033 = vmatprep.subr.bf16.mxu0 0
      %1034 = vmatpush1.bf16.msra.mxu0 0
      %1035 = vmatprep.subr.bf16.mxu0 0
      %1036 = vmatpush1.bf16.msra.mxu0 0
      %1037 = vmatprep.subr.bf16.mxu0 0
      %1038 = vmatpush1.bf16.msra.mxu0 0
      %1039 = vmatprep.subr.bf16.mxu0 0
      %1040 = vmatpush1.bf16.msra.mxu0 0
      %1041 = vmatprep.subr.bf16.mxu0 0
      %1042 = vmatpush1.bf16.msra.mxu0 0
      %1043 = vmatprep.subr.bf16.mxu0 0
      %1044 = vmatpush1.bf16.msra.mxu0 0
      %1045 = vmatprep.mubr.bf16.mxu0 0
      %1046 = vmatmul.mubr.bf16.gmra.mrb[0].mxu0 %v822
      %v1047 = vpop.f32.mrb[0].mxu0
      %v1048 = vadd.f32 %v492, %v1047
      %v1049 = vpop.f32.mrb[0].mxu0
      %v1050 = vpop.f32.mrb[0].mxu0
      %v1051 = vadd.f32 %v492, %v1050
      %v1052 = vpop.f32.mrb[0].mxu0
      %1053 = vmatprep.mubr.bf16.mxu0 0
      %1054 = vmatmul.mubr.bf16.gmra.mrb[0].mxu0 %v825
      %v1055 = vpop.f32.mrb[0].mxu0
      %v1056 = vadd.f32 %v492, %v1055
      %v1057 = vpop.f32.mrb[0].mxu0
      %v1058 = vpop.f32.mrb[0].mxu0
      %v1059 = vadd.f32 %v492, %v1058
      %v1060 = vpop.f32.mrb[0].mxu0
      %1061 = vmatprep.mubr.bf16.mxu0 0
      %1062 = vmatmul.mubr.bf16.gmra.mrb[0].mxu0 %v828
      %v1063 = vpop.f32.mrb[0].mxu0
      %v1064 = vadd.f32 %v492, %v1063
      %v1065 = vpop.f32.mrb[0].mxu0
      %v1066 = vpop.f32.mrb[0].mxu0
      %v1067 = vadd.f32 %v492, %v1066
      %v1068 = vpop.f32.mrb[0].mxu0
      %1069 = vmatprep.mubr.bf16.mxu0 0
      %1070 = vmatmul.mubr.bf16.gmra.mrb[0].mxu0 %v831
      %v1071 = vpop.f32.mrb[0].mxu0
      %v1072 = vadd.f32 %v492, %v1071
      %v1073 = vpop.f32.mrb[0].mxu0
      %v1074 = vpop.f32.mrb[0].mxu0
      %v1075 = vadd.f32 %v492, %v1074
      %v1076 = vpop.f32.mrb[0].mxu0
      %1077 = vmatprep.mubr.bf16.mxu0 0
      %1078 = vmatmul.mubr.bf16.gmra.mrb[0].mxu0 %v834
      %v1079 = vpop.f32.mrb[0].mxu0
      %v1080 = vadd.f32 %v492, %v1079
      %v1081 = vpop.f32.mrb[0].mxu0
      %v1082 = vpop.f32.mrb[0].mxu0
      %v1083 = vadd.f32 %v492, %v1082
      %v1084 = vpop.f32.mrb[0].mxu0
      %1085 = vmatprep.mubr.bf16.mxu0 0
      %1086 = vmatmul.mubr.bf16.gmra.mrb[0].mxu0 %v837
      %v1087 = vpop.f32.mrb[0].mxu0
      %v1088 = vadd.f32 %v492, %v1087
      %v1089 = vpop.f32.mrb[0].mxu0
      %v1090 = vpop.f32.mrb[0].mxu0
      %v1091 = vadd.f32 %v492, %v1090
      %v1092 = vpop.f32.mrb[0].mxu0
      %1093 = vmatprep.mubr.bf16.mxu0 0
      %1094 = vmatmul.mubr.bf16.gmra.mrb[0].mxu0 %v840
      %v1095 = vpop.f32.mrb[0].mxu0
      %v1096 = vadd.f32 %v492, %v1095
      %v1097 = vpop.f32.mrb[0].mxu0
      %v1098 = vpop.f32.mrb[0].mxu0
      %v1099 = vadd.f32 %v492, %v1098
      %v1100 = vpop.f32.mrb[0].mxu0
      %1101 = vmatprep.mubr.bf16.mxu0 0
      %1102 = vmatmul.mubr.bf16.gmra.mrb[0].mxu0 %v843
      %v1103 = vpop.f32.mrb[0].mxu0
      %v1104 = vadd.f32 %v492, %v1103
      %v1105 = vpop.f32.mrb[0].mxu0
      %v1106 = vpop.f32.mrb[0].mxu0
      %v1107 = vadd.f32 %v492, %v1106
      %v1108 = vpop.f32.mrb[0].mxu0
      %1109 = vmatprep.mubr.bf16.mxu0 0
      %1110 = vmatmul.mubr.bf16.gmra.mrb[0].mxu0 %v846
      %v1111 = vpop.f32.mrb[0].mxu0
      %v1112 = vadd.f32 %v492, %v1111
      %v1113 = vpop.f32.mrb[0].mxu0
      %v1114 = vpop.f32.mrb[0].mxu0
      %v1115 = vadd.f32 %v492, %v1114
      %v1116 = vpop.f32.mrb[0].mxu0
      %1117 = vmatprep.mubr.bf16.mxu0 0
      %1118 = vmatmul.mubr.bf16.gmra.mrb[0].mxu0 %v849
      %v1119 = vpop.f32.mrb[0].mxu0
      %v1120 = vadd.f32 %v492, %v1119
      %v1121 = vpop.f32.mrb[0].mxu0
      %v1122 = vpop.f32.mrb[0].mxu0
      %v1123 = vadd.f32 %v492, %v1122
      %v1124 = vpop.f32.mrb[0].mxu0
      %1125 = vmatprep.mubr.bf16.mxu0 0
      %1126 = vmatmul.mubr.bf16.gmra.mrb[0].mxu0 %v852
      %v1127 = vpop.f32.mrb[0].mxu0
      %v1128 = vadd.f32 %v492, %v1127
      %v1129 = vpop.f32.mrb[0].mxu0
      %v1130 = vpop.f32.mrb[0].mxu0
      %v1131 = vadd.f32 %v492, %v1130
      %v1132 = vpop.f32.mrb[0].mxu0
      %1133 = vmatprep.mubr.bf16.mxu0 0
      %1134 = vmatmul.mubr.bf16.gmra.mrb[0].mxu0 %v855
      %v1135 = vpop.f32.mrb[0].mxu0
      %v1136 = vadd.f32 %v492, %v1135
      %v1137 = vpop.f32.mrb[0].mxu0
      %v1138 = vpop.f32.mrb[0].mxu0
      %v1139 = vadd.f32 %v492, %v1138
      %v1140 = vpop.f32.mrb[0].mxu0
      %1141 = vmatprep.mubr.bf16.mxu0 0
      %1142 = vmatmul.mubr.bf16.gmra.mrb[0].mxu0 %v858
      %v1143 = vpop.f32.mrb[0].mxu0
      %v1144 = vadd.f32 %v492, %v1143
      %v1145 = vpop.f32.mrb[0].mxu0
      %v1146 = vpop.f32.mrb[0].mxu0
      %v1147 = vadd.f32 %v492, %v1146
      %v1148 = vpop.f32.mrb[0].mxu0
      %1149 = vmatprep.mubr.bf16.mxu0 0
      %1150 = vmatmul.mubr.bf16.gmra.mrb[0].mxu0 %v861
      %v1151 = vpop.f32.mrb[0].mxu0
      %v1152 = vadd.f32 %v492, %v1151
      %v1153 = vpop.f32.mrb[0].mxu0
      %v1154 = vpop.f32.mrb[0].mxu0
      %v1155 = vadd.f32 %v492, %v1154
      %v1156 = vpop.f32.mrb[0].mxu0
      %1157 = vmatprep.mubr.bf16.mxu0 0
      %1158 = vmatmul.mubr.bf16.gmra.mrb[0].mxu0 %v864
      %v1159 = vpop.f32.mrb[0].mxu0
      %v1160 = vadd.f32 %v492, %v1159
      %v1161 = vpop.f32.mrb[0].mxu0
      %v1162 = vpop.f32.mrb[0].mxu0
      %v1163 = vadd.f32 %v492, %v1162
      %v1164 = vpop.f32.mrb[0].mxu0
      %1165 = vmatprep.mubr.bf16.mxu0 0
      %1166 = vmatmul.mubr.bf16.gmra.mrb[0].mxu0 %v867
      %v1167 = vpop.f32.mrb[0].mxu0
      %v1168 = vadd.f32 %v492, %v1167
      %v1169 = vpop.f32.mrb[0].mxu0
      %v1170 = vpop.f32.mrb[0].mxu0
      %v1171 = vadd.f32 %v492, %v1170
      %v1172 = vpop.f32.mrb[0].mxu0
      %1173 = vmatprep.mubr.bf16.mxu0 0
      %1174 = vmatmul.mubr.bf16.gmra.mrb[0].mxu0 %v870
      %v1175 = vpop.f32.mrb[0].mxu0
      %v1176 = vadd.f32 %v492, %v1175
      %v1177 = vpop.f32.mrb[0].mxu0
      %v1178 = vpop.f32.mrb[0].mxu0
      %v1179 = vadd.f32 %v492, %v1178
      %v1180 = vpop.f32.mrb[0].mxu0
      %1181 = vmatprep.mubr.bf16.mxu0 0
      %1182 = vmatmul.mubr.bf16.gmra.mrb[0].mxu0 %v873
      %v1183 = vpop.f32.mrb[0].mxu0
      %v1184 = vadd.f32 %v492, %v1183
      %v1185 = vpop.f32.mrb[0].mxu0
      %v1186 = vpop.f32.mrb[0].mxu0
      %v1187 = vadd.f32 %v492, %v1186
      %v1188 = vpop.f32.mrb[0].mxu0
      %1189 = vmatprep.mubr.bf16.mxu0 0
      %1190 = vmatmul.mubr.bf16.gmra.mrb[0].mxu0 %v876
      %v1191 = vpop.f32.mrb[0].mxu0
      %v1192 = vadd.f32 %v492, %v1191
      %v1193 = vpop.f32.mrb[0].mxu0
      %v1194 = vpop.f32.mrb[0].mxu0
      %v1195 = vadd.f32 %v492, %v1194
      %v1196 = vpop.f32.mrb[0].mxu0
      %1197 = vmatprep.mubr.bf16.mxu0 0
      %1198 = vmatmul.mubr.bf16.gmra.mrb[0].mxu0 %v879
      %v1199 = vpop.f32.mrb[0].mxu0
      %v1200 = vadd.f32 %v492, %v1199
      %v1201 = vpop.f32.mrb[0].mxu0
      %v1202 = vpop.f32.mrb[0].mxu0
      %v1203 = vadd.f32 %v492, %v1202
      %v1204 = vpop.f32.mrb[0].mxu0
      %1205 = vmatprep.mubr.bf16.mxu0 0
      %1206 = vmatmul.mubr.bf16.gmra.mrb[0].mxu0 %v882
      %v1207 = vpop.f32.mrb[0].mxu0
      %v1208 = vadd.f32 %v492, %v1207
      %v1209 = vpop.f32.mrb[0].mxu0
      %v1210 = vpop.f32.mrb[0].mxu0
      %v1211 = vadd.f32 %v492, %v1210
      %v1212 = vpop.f32.mrb[0].mxu0
      %1213 = vmatprep.mubr.bf16.mxu0 0
      %1214 = vmatmul.mubr.bf16.gmra.mrb[0].mxu0 %v885
      %v1215 = vpop.f32.mrb[0].mxu0
      %v1216 = vadd.f32 %v492, %v1215
      %v1217 = vpop.f32.mrb[0].mxu0
      %v1218 = vpop.f32.mrb[0].mxu0
      %v1219 = vadd.f32 %v492, %v1218
      %v1220 = vpop.f32.mrb[0].mxu0
      %1221 = vmatprep.mubr.bf16.mxu0 0
      %1222 = vmatmul.mubr.bf16.gmra.mrb[0].mxu0 %v888
      %v1223 = vpop.f32.mrb[0].mxu0
      %v1224 = vadd.f32 %v492, %v1223
      %v1225 = vpop.f32.mrb[0].mxu0
      %v1226 = vpop.f32.mrb[0].mxu0
      %v1227 = vadd.f32 %v492, %v1226
      %v1228 = vpop.f32.mrb[0].mxu0
      %1229 = vmatprep.mubr.bf16.mxu0 0
      %1230 = vmatmul.mubr.bf16.gmra.mrb[0].mxu0 %v891
      %v1231 = vpop.f32.mrb[0].mxu0
      %v1232 = vadd.f32 %v492, %v1231
      %v1233 = vpop.f32.mrb[0].mxu0
      %v1234 = vpop.f32.mrb[0].mxu0
      %v1235 = vadd.f32 %v492, %v1234
      %v1236 = vpop.f32.mrb[0].mxu0
      %1237 = vmatprep.mubr.bf16.mxu0 0
      %1238 = vmatmul.mubr.bf16.gmra.mrb[0].mxu0 %v894
      %v1239 = vpop.f32.mrb[0].mxu0
      %v1240 = vadd.f32 %v492, %v1239
      %v1241 = vpop.f32.mrb[0].mxu0
      %v1242 = vpop.f32.mrb[0].mxu0
      %v1243 = vadd.f32 %v492, %v1242
      %v1244 = vpop.f32.mrb[0].mxu0
      %1245 = vmatprep.mubr.bf16.mxu0 0
      %1246 = vmatmul.mubr.bf16.gmra.mrb[0].mxu0 %v897
      %v1247 = vpop.f32.mrb[0].mxu0
      %v1248 = vadd.f32 %v492, %v1247
      %v1249 = vpop.f32.mrb[0].mxu0
      %v1250 = vpop.f32.mrb[0].mxu0
      %v1251 = vadd.f32 %v492, %v1250
      %v1252 = vpop.f32.mrb[0].mxu0
      %1253 = vmatprep.mubr.bf16.mxu0 0
      %1254 = vmatmul.mubr.bf16.gmra.mrb[0].mxu0 %v900
      %v1255 = vpop.f32.mrb[0].mxu0
      %v1256 = vadd.f32 %v492, %v1255
      %v1257 = vpop.f32.mrb[0].mxu0
      %v1258 = vpop.f32.mrb[0].mxu0
      %v1259 = vadd.f32 %v492, %v1258
      %v1260 = vpop.f32.mrb[0].mxu0
      %1261 = vmatprep.mubr.bf16.mxu0 0
      %1262 = vmatmul.mubr.bf16.gmra.mrb[0].mxu0 %v903
      %v1263 = vpop.f32.mrb[0].mxu0
      %v1264 = vadd.f32 %v492, %v1263
      %v1265 = vpop.f32.mrb[0].mxu0
      %v1266 = vpop.f32.mrb[0].mxu0
      %v1267 = vadd.f32 %v492, %v1266
      %v1268 = vpop.f32.mrb[0].mxu0
      %1269 = vmatprep.mubr.bf16.mxu0 0
      %1270 = vmatmul.mubr.bf16.gmra.mrb[0].mxu0 %v906
      %v1271 = vpop.f32.mrb[0].mxu0
      %v1272 = vadd.f32 %v492, %v1271
      %v1273 = vpop.f32.mrb[0].mxu0
      %v1274 = vpop.f32.mrb[0].mxu0
      %v1275 = vadd.f32 %v492, %v1274
      %v1276 = vpop.f32.mrb[0].mxu0
      %1277 = vmatprep.mubr.bf16.mxu0 0
      %1278 = vmatmul.mubr.bf16.gmra.mrb[0].mxu0 %v909
      %v1279 = vpop.f32.mrb[0].mxu0
      %v1280 = vadd.f32 %v492, %v1279
      %v1281 = vpop.f32.mrb[0].mxu0
      %v1282 = vpop.f32.mrb[0].mxu0
      %v1283 = vadd.f32 %v492, %v1282
      %v1284 = vpop.f32.mrb[0].mxu0
      %1285 = vmatprep.mubr.bf16.mxu0 0
      %1286 = vmatmul.mubr.bf16.gmra.mrb[0].mxu0 %v912
      %v1287 = vpop.f32.mrb[0].mxu0
      %v1288 = vadd.f32 %v492, %v1287
      %v1289 = vpop.f32.mrb[0].mxu0
      %v1290 = vpop.f32.mrb[0].mxu0
      %v1291 = vadd.f32 %v492, %v1290
      %v1292 = vpop.f32.mrb[0].mxu0
      %1293 = vmatprep.mubr.bf16.mxu0 0
      %1294 = vmatmul.mubr.bf16.gmra.mrb[0].mxu0 %v915
      %v1295 = vpop.f32.mrb[0].mxu0
      %v1296 = vadd.f32 %v492, %v1295
      %v1297 = vpop.f32.mrb[0].mxu0
      %v1298 = vpop.f32.mrb[0].mxu0
      %v1299 = vadd.f32 %v492, %v1298
      %v1300 = vpop.f32.mrb[0].mxu0
      %1301 = vmatprep.mubr.bf16.mxu0 0
      %1302 = vmatmul.mubr.bf16.gmra.mrb[0].mxu0 %v918
      %v1303 = vpop.f32.mrb[0].mxu0
      %v1304 = vadd.f32 %v492, %v1303
      %v1305 = vpop.f32.mrb[0].mxu0
      %v1306 = vpop.f32.mrb[0].mxu0
      %v1307 = vadd.f32 %v492, %v1306
      %v1308 = vpop.f32.mrb[0].mxu0
      %1309 = vmatprep.mubr.bf16.mxu0 0
      %1310 = vmatmul.mubr.bf16.gmra.mrb[0].mxu0 %v921
      %v1311 = vpop.f32.mrb[0].mxu0
      %v1312 = vadd.f32 %v492, %v1311
      %v1313 = vpop.f32.mrb[0].mxu0
      %v1314 = vpop.f32.mrb[0].mxu0
      %v1315 = vadd.f32 %v492, %v1314
      %v1316 = vpop.f32.mrb[0].mxu0
      %1317 = vmatprep.mubr.bf16.mxu0 0
      %1318 = vmatmul.mubr.bf16.gmra.mrb[0].mxu0 %v924
      %v1319 = vpop.f32.mrb[0].mxu0
      %v1320 = vadd.f32 %v492, %v1319
      %v1321 = vpop.f32.mrb[0].mxu0
      %v1322 = vpop.f32.mrb[0].mxu0
      %v1323 = vadd.f32 %v492, %v1322
      %v1324 = vpop.f32.mrb[0].mxu0
      %1325 = vmatprep.mubr.bf16.mxu0 0
      %1326 = vmatmul.mubr.bf16.gmra.mrb[0].mxu0 %v927
      %v1327 = vpop.f32.mrb[0].mxu0
      %v1328 = vadd.f32 %v492, %v1327
      %v1329 = vpop.f32.mrb[0].mxu0
      %v1330 = vpop.f32.mrb[0].mxu0
      %v1331 = vadd.f32 %v492, %v1330
      %v1332 = vpop.f32.mrb[0].mxu0
      %1333 = vmatprep.mubr.bf16.mxu0 0
      %1334 = vmatmul.mubr.bf16.gmra.mrb[0].mxu0 %v930
      %v1335 = vpop.f32.mrb[0].mxu0
      %v1336 = vadd.f32 %v492, %v1335
      %v1337 = vpop.f32.mrb[0].mxu0
      %v1338 = vpop.f32.mrb[0].mxu0
      %v1339 = vadd.f32 %v492, %v1338
      %v1340 = vpop.f32.mrb[0].mxu0
      %1341 = vmatprep.mubr.bf16.mxu0 0
      %1342 = vmatmul.mubr.bf16.gmra.mrb[0].mxu0 %v933
      %v1343 = vpop.f32.mrb[0].mxu0
      %v1344 = vadd.f32 %v492, %v1343
      %v1345 = vpop.f32.mrb[0].mxu0
      %v1346 = vpop.f32.mrb[0].mxu0
      %v1347 = vadd.f32 %v492, %v1346
      %v1348 = vpop.f32.mrb[0].mxu0
      %1349 = vmatprep.mubr.bf16.mxu0 0
      %1350 = vmatmul.mubr.bf16.gmra.mrb[0].mxu0 %v936
      %v1351 = vpop.f32.mrb[0].mxu0
      %v1352 = vadd.f32 %v492, %v1351
      %v1353 = vpop.f32.mrb[0].mxu0
      %v1354 = vpop.f32.mrb[0].mxu0
      %v1355 = vadd.f32 %v492, %v1354
      %v1356 = vpop.f32.mrb[0].mxu0
      %1357 = vmatprep.mubr.bf16.mxu0 0
      %1358 = vmatmul.mubr.bf16.gmra.mrb[0].mxu0 %v939
      %v1359 = vpop.f32.mrb[0].mxu0
      %v1360 = vadd.f32 %v492, %v1359
      %v1361 = vpop.f32.mrb[0].mxu0
      %v1362 = vpop.f32.mrb[0].mxu0
      %v1363 = vadd.f32 %v492, %v1362
      %v1364 = vpop.f32.mrb[0].mxu0
      %1365 = vmatprep.mubr.bf16.mxu0 0
      %1366 = vmatmul.mubr.bf16.gmra.mrb[0].mxu0 %v942
      %v1367 = vpop.f32.mrb[0].mxu0
      %v1368 = vadd.f32 %v492, %v1367
      %v1369 = vpop.f32.mrb[0].mxu0
      %v1370 = vpop.f32.mrb[0].mxu0
      %v1371 = vadd.f32 %v492, %v1370
      %v1372 = vpop.f32.mrb[0].mxu0
      %1373 = vmatprep.mubr.bf16.mxu0 0
      %1374 = vmatmul.mubr.bf16.gmra.mrb[0].mxu0 %v945
      %v1375 = vpop.f32.mrb[0].mxu0
      %v1376 = vadd.f32 %v492, %v1375
      %v1377 = vpop.f32.mrb[0].mxu0
      %v1378 = vpop.f32.mrb[0].mxu0
      %v1379 = vadd.f32 %v492, %v1378
      %v1380 = vpop.f32.mrb[0].mxu0
      %1381 = vmatprep.mubr.bf16.mxu0 0
      %1382 = vmatmul.mubr.bf16.gmra.mrb[0].mxu0 %v948
      %v1383 = vpop.f32.mrb[0].mxu0
      %v1384 = vadd.f32 %v492, %v1383
      %v1385 = vpop.f32.mrb[0].mxu0
      %v1386 = vpop.f32.mrb[0].mxu0
      %v1387 = vadd.f32 %v492, %v1386
      %v1388 = vpop.f32.mrb[0].mxu0
      %1389 = vmatprep.mubr.bf16.mxu0 0
      %1390 = vmatmul.mubr.bf16.gmra.mrb[0].mxu0 %v951
      %v1391 = vpop.f32.mrb[0].mxu0
      %v1392 = vadd.f32 %v492, %v1391
      %v1393 = vpop.f32.mrb[0].mxu0
      %v1394 = vpop.f32.mrb[0].mxu0
      %v1395 = vadd.f32 %v492, %v1394
      %v1396 = vpop.f32.mrb[0].mxu0
      %1397 = vmatprep.mubr.bf16.mxu0 0
      %1398 = vmatmul.mubr.bf16.gmra.mrb[0].mxu0 %v954
      %v1399 = vpop.f32.mrb[0].mxu0
      %v1400 = vadd.f32 %v492, %v1399
      %v1401 = vpop.f32.mrb[0].mxu0
      %v1402 = vpop.f32.mrb[0].mxu0
      %v1403 = vadd.f32 %v492, %v1402
      %v1404 = vpop.f32.mrb[0].mxu0
      %1405 = vmatprep.mubr.bf16.mxu0 0
      %1406 = vmatmul.mubr.bf16.gmra.mrb[0].mxu0 %v957
      %v1407 = vpop.f32.mrb[0].mxu0
      %v1408 = vadd.f32 %v492, %v1407
      %v1409 = vpop.f32.mrb[0].mxu0
      %v1410 = vpop.f32.mrb[0].mxu0
      %v1411 = vadd.f32 %v492, %v1410
      %v1412 = vpop.f32.mrb[0].mxu0
      %1413 = vmatprep.mubr.bf16.mxu0 0
      %1414 = vmatmul.mubr.bf16.gmra.mrb[0].mxu0 %v960
      %v1415 = vpop.f32.mrb[0].mxu0
      %v1416 = vadd.f32 %v492, %v1415
      %v1417 = vpop.f32.mrb[0].mxu0
      %v1418 = vpop.f32.mrb[0].mxu0
      %v1419 = vadd.f32 %v492, %v1418
      %v1420 = vpop.f32.mrb[0].mxu0
      %1421 = vmatprep.mubr.bf16.mxu0 0
      %1422 = vmatmul.mubr.bf16.gmra.mrb[0].mxu0 %v963
      %v1423 = vpop.f32.mrb[0].mxu0
      %v1424 = vadd.f32 %v492, %v1423
      %v1425 = vpop.f32.mrb[0].mxu0
      %v1426 = vpop.f32.mrb[0].mxu0
      %v1427 = vadd.f32 %v492, %v1426
      %v1428 = vpop.f32.mrb[0].mxu0
      %1429 = vmatprep.mubr.bf16.mxu0 0
      %1430 = vmatmul.mubr.bf16.gmra.mrb[0].mxu0 %v966
      %v1431 = vpop.f32.mrb[0].mxu0
      %v1432 = vadd.f32 %v492, %v1431
      %v1433 = vpop.f32.mrb[0].mxu0
      %v1434 = vpop.f32.mrb[0].mxu0
      %v1435 = vadd.f32 %v492, %v1434
      %v1436 = vpop.f32.mrb[0].mxu0
      %1437 = vmatprep.mubr.bf16.mxu0 0
      %1438 = vmatmul.mubr.bf16.gmra.mrb[0].mxu0 %v969
      %v1439 = vpop.f32.mrb[0].mxu0
      %v1440 = vadd.f32 %v492, %v1439
      %v1441 = vpop.f32.mrb[0].mxu0
      %v1442 = vpop.f32.mrb[0].mxu0
      %v1443 = vadd.f32 %v492, %v1442
      %v1444 = vpop.f32.mrb[0].mxu0
      %1445 = vmatprep.mubr.bf16.mxu0 0
      %1446 = vmatmul.mubr.bf16.gmra.mrb[0].mxu0 %v972
      %v1447 = vpop.f32.mrb[0].mxu0
      %v1448 = vadd.f32 %v492, %v1447
      %v1449 = vpop.f32.mrb[0].mxu0
      %v1450 = vpop.f32.mrb[0].mxu0
      %v1451 = vadd.f32 %v492, %v1450
      %v1452 = vpop.f32.mrb[0].mxu0
      %1453 = vmatprep.mubr.bf16.mxu0 0
      %1454 = vmatmul.mubr.bf16.gmra.mrb[0].mxu0 %v975
      %v1455 = vpop.f32.mrb[0].mxu0
      %v1456 = vadd.f32 %v492, %v1455
      %v1457 = vpop.f32.mrb[0].mxu0
      %v1458 = vpop.f32.mrb[0].mxu0
      %v1459 = vadd.f32 %v492, %v1458
      %v1460 = vpop.f32.mrb[0].mxu0
      %1461 = vmatprep.mubr.bf16.mxu0 0
      %1462 = vmatmul.mubr.bf16.gmra.mrb[0].mxu0 %v978
      %v1463 = vpop.f32.mrb[0].mxu0
      %v1464 = vadd.f32 %v492, %v1463
      %v1465 = vpop.f32.mrb[0].mxu0
      %v1466 = vpop.f32.mrb[0].mxu0
      %v1467 = vadd.f32 %v492, %v1466
      %v1468 = vpop.f32.mrb[0].mxu0
      %1469 = vmatprep.mubr.bf16.mxu0 0
      %1470 = vmatmul.mubr.bf16.gmra.mrb[0].mxu0 %v981
      %v1471 = vpop.f32.mrb[0].mxu0
      %v1472 = vadd.f32 %v492, %v1471
      %v1473 = vpop.f32.mrb[0].mxu0
      %v1474 = vpop.f32.mrb[0].mxu0
      %v1475 = vadd.f32 %v492, %v1474
      %v1476 = vpop.f32.mrb[0].mxu0
      %1477 = vmatprep.mubr.bf16.mxu0 0
      %1478 = vmatmul.mubr.bf16.gmra.mrb[0].mxu0 %v984
      %v1479 = vpop.f32.mrb[0].mxu0
      %v1480 = vadd.f32 %v492, %v1479
      %v1481 = vpop.f32.mrb[0].mxu0
      %v1482 = vpop.f32.mrb[0].mxu0
      %v1483 = vadd.f32 %v492, %v1482
      %v1484 = vpop.f32.mrb[0].mxu0
      %1485 = vmatprep.mubr.bf16.mxu0 0
      %1486 = vmatmul.mubr.bf16.gmra.mrb[0].mxu0 %v987
      %v1487 = vpop.f32.mrb[0].mxu0
      %v1488 = vadd.f32 %v492, %v1487
      %v1489 = vpop.f32.mrb[0].mxu0
      %v1490 = vpop.f32.mrb[0].mxu0
      %v1491 = vadd.f32 %v492, %v1490
      %v1492 = vpop.f32.mrb[0].mxu0
      %1493 = vmatprep.mubr.bf16.mxu0 0
      %1494 = vmatmul.mubr.bf16.gmra.mrb[0].mxu0 %v990
      %v1495 = vpop.f32.mrb[0].mxu0
      %v1496 = vadd.f32 %v492, %v1495
      %v1497 = vpop.f32.mrb[0].mxu0
      %v1498 = vpop.f32.mrb[0].mxu0
      %v1499 = vadd.f32 %v492, %v1498
      %v1500 = vpop.f32.mrb[0].mxu0
      %1501 = vmatprep.mubr.bf16.mxu0 0
      %1502 = vmatmul.mubr.bf16.gmra.mrb[0].mxu0 %v993
      %v1503 = vpop.f32.mrb[0].mxu0
      %v1504 = vadd.f32 %v492, %v1503
      %v1505 = vpop.f32.mrb[0].mxu0
      %v1506 = vpop.f32.mrb[0].mxu0
      %v1507 = vadd.f32 %v492, %v1506
      %v1508 = vpop.f32.mrb[0].mxu0
      %1509 = vmatprep.mubr.bf16.mxu0 0
      %1510 = vmatmul.mubr.bf16.gmra.mrb[0].mxu0 %v996
      %v1511 = vpop.f32.mrb[0].mxu0
      %v1512 = vadd.f32 %v492, %v1511
      %v1513 = vpop.f32.mrb[0].mxu0
      %v1514 = vpop.f32.mrb[0].mxu0
      %v1515 = vadd.f32 %v492, %v1514
      %v1516 = vpop.f32.mrb[0].mxu0
      %1517 = vmatprep.mubr.bf16.mxu0 0
      %1518 = vmatmul.mubr.bf16.gmra.mrb[0].mxu0 %v999
      %v1519 = vpop.f32.mrb[0].mxu0
      %v1520 = vadd.f32 %v492, %v1519
      %v1521 = vpop.f32.mrb[0].mxu0
      %v1522 = vpop.f32.mrb[0].mxu0
      %v1523 = vadd.f32 %v492, %v1522
      %v1524 = vpop.f32.mrb[0].mxu0
      %1525 = vmatprep.mubr.bf16.mxu0 0
      %1526 = vmatmul.mubr.bf16.gmra.mrb[0].mxu0 %v1002
      %v1527 = vpop.f32.mrb[0].mxu0
      %v1528 = vadd.f32 %v492, %v1527
      %v1529 = vpop.f32.mrb[0].mxu0
      %v1530 = vpop.f32.mrb[0].mxu0
      %v1531 = vadd.f32 %v492, %v1530
      %v1532 = vpop.f32.mrb[0].mxu0
      %1533 = vmatprep.mubr.bf16.mxu0 0
      %1534 = vmatmul.mubr.bf16.gmra.mrb[0].mxu0 %v1005
      %v1535 = vpop.f32.mrb[0].mxu0
      %v1536 = vadd.f32 %v492, %v1535
      %v1537 = vpop.f32.mrb[0].mxu0
      %v1538 = vpop.f32.mrb[0].mxu0
      %v1539 = vadd.f32 %v492, %v1538
      %v1540 = vpop.f32.mrb[0].mxu0
      %1541 = vmatprep.mubr.bf16.mxu0 0
      %1542 = vmatmul.mubr.bf16.gmra.mrb[0].mxu0 %v1008
      %v1543 = vpop.f32.mrb[0].mxu0
      %v1544 = vadd.f32 %v492, %v1543
      %v1545 = vpop.f32.mrb[0].mxu0
      %v1546 = vpop.f32.mrb[0].mxu0
      %v1547 = vadd.f32 %v492, %v1546
      %v1548 = vpop.f32.mrb[0].mxu0
      %1549 = vmatprep.mubr.bf16.mxu0 0
      %1550 = vmatmul.mubr.bf16.gmra.mrb[0].mxu0 %v1011
      %v1551 = vpop.f32.mrb[0].mxu0
      %v1552 = vadd.f32 %v492, %v1551
      %v1553 = vpop.f32.mrb[0].mxu0
      %v1554 = vpop.f32.mrb[0].mxu0
      %v1555 = vadd.f32 %v492, %v1554
      %v1556 = vpop.f32.mrb[0].mxu0
      %1557 = vdwg.mxu0
      %v1558 = vadd.f32 %v1048, 3.0
      %v1559 = vadd.f32 %v1051, 3.0
      %v1560 = vadd.f32 %v1056, 3.0
      %v1561 = vadd.f32 %v1059, 3.0
      %v1562 = vadd.f32 %v1064, 3.0
      %v1563 = vadd.f32 %v1067, 3.0
      %v1564 = vadd.f32 %v1072, 3.0
      %v1565 = vadd.f32 %v1075, 3.0
      %v1566 = vadd.f32 %v1080, 3.0
      %v1567 = vadd.f32 %v1083, 3.0
      %v1568 = vadd.f32 %v1088, 3.0
      %v1569 = vadd.f32 %v1091, 3.0
      %v1570 = vadd.f32 %v1096, 3.0
      %v1571 = vadd.f32 %v1099, 3.0
      %v1572 = vadd.f32 %v1104, 3.0
      %v1573 = vadd.f32 %v1107, 3.0
      %v1574 = vadd.f32 %v1112, 3.0
      %v1575 = vadd.f32 %v1115, 3.0
      %v1576 = vadd.f32 %v1120, 3.0
      %v1577 = vadd.f32 %v1123, 3.0
      %v1578 = vadd.f32 %v1128, 3.0
      %v1579 = vadd.f32 %v1131, 3.0
      %v1580 = vadd.f32 %v1136, 3.0
      %v1581 = vadd.f32 %v1139, 3.0
      %v1582 = vadd.f32 %v1144, 3.0
      %v1583 = vadd.f32 %v1147, 3.0
      %v1584 = vadd.f32 %v1152, 3.0
      %v1585 = vadd.f32 %v1155, 3.0
      %v1586 = vadd.f32 %v1160, 3.0
      %v1587 = vadd.f32 %v1163, 3.0
      %v1588 = vadd.f32 %v1168, 3.0
      %v1589 = vadd.f32 %v1171, 3.0
      %v1590 = vadd.f32 %v1176, 3.0
      %v1591 = vadd.f32 %v1179, 3.0
      %v1592 = vadd.f32 %v1184, 3.0
      %v1593 = vadd.f32 %v1187, 3.0
      %v1594 = vadd.f32 %v1192, 3.0
      %v1595 = vadd.f32 %v1195, 3.0
      %v1596 = vadd.f32 %v1200, 3.0
      %v1597 = vadd.f32 %v1203, 3.0
      %v1598 = vadd.f32 %v1208, 3.0
      %v1599 = vadd.f32 %v1211, 3.0
      %v1600 = vadd.f32 %v1216, 3.0
      %v1601 = vadd.f32 %v1219, 3.0
      %v1602 = vadd.f32 %v1224, 3.0
      %v1603 = vadd.f32 %v1227, 3.0
      %v1604 = vadd.f32 %v1232, 3.0
      %v1605 = vadd.f32 %v1235, 3.0
      %v1606 = vadd.f32 %v1240, 3.0
      %v1607 = vadd.f32 %v1243, 3.0
      %v1608 = vadd.f32 %v1248, 3.0
      %v1609 = vadd.f32 %v1251, 3.0
      %v1610 = vadd.f32 %v1256, 3.0
      %v1611 = vadd.f32 %v1259, 3.0
      %v1612 = vadd.f32 %v1264, 3.0
      %v1613 = vadd.f32 %v1267, 3.0
      %v1614 = vadd.f32 %v1272, 3.0
      %v1615 = vadd.f32 %v1275, 3.0
      %v1616 = vadd.f32 %v1280, 3.0
      %v1617 = vadd.f32 %v1283, 3.0
      %v1618 = vadd.f32 %v1288, 3.0
      %v1619 = vadd.f32 %v1291, 3.0
      %v1620 = vadd.f32 %v1296, 3.0
      %v1621 = vadd.f32 %v1299, 3.0
      %v1622 = vadd.f32 %v1304, 3.0
      %v1623 = vadd.f32 %v1307, 3.0
      %v1624 = vadd.f32 %v1312, 3.0
      %v1625 = vadd.f32 %v1315, 3.0
      %v1626 = vadd.f32 %v1320, 3.0
      %v1627 = vadd.f32 %v1323, 3.0
      %v1628 = vadd.f32 %v1328, 3.0
      %v1629 = vadd.f32 %v1331, 3.0
      %v1630 = vadd.f32 %v1336, 3.0
      %v1631 = vadd.f32 %v1339, 3.0
      %v1632 = vadd.f32 %v1344, 3.0
      %v1633 = vadd.f32 %v1347, 3.0
      %v1634 = vadd.f32 %v1352, 3.0
      %v1635 = vadd.f32 %v1355, 3.0
      %v1636 = vadd.f32 %v1360, 3.0
      %v1637 = vadd.f32 %v1363, 3.0
      %v1638 = vadd.f32 %v1368, 3.0
      %v1639 = vadd.f32 %v1371, 3.0
      %v1640 = vadd.f32 %v1376, 3.0
      %v1641 = vadd.f32 %v1379, 3.0
      %v1642 = vadd.f32 %v1384, 3.0
      %v1643 = vadd.f32 %v1387, 3.0
      %v1644 = vadd.f32 %v1392, 3.0
      %v1645 = vadd.f32 %v1395, 3.0
      %v1646 = vadd.f32 %v1400, 3.0
      %v1647 = vadd.f32 %v1403, 3.0
      %v1648 = vadd.f32 %v1408, 3.0
      %v1649 = vadd.f32 %v1411, 3.0
      %v1650 = vadd.f32 %v1416, 3.0
      %v1651 = vadd.f32 %v1419, 3.0
      %v1652 = vadd.f32 %v1424, 3.0
      %v1653 = vadd.f32 %v1427, 3.0
      %v1654 = vadd.f32 %v1432, 3.0
      %v1655 = vadd.f32 %v1435, 3.0
      %v1656 = vadd.f32 %v1440, 3.0
      %v1657 = vadd.f32 %v1443, 3.0
      %v1658 = vadd.f32 %v1448, 3.0
      %v1659 = vadd.f32 %v1451, 3.0
      %v1660 = vadd.f32 %v1456, 3.0
      %v1661 = vadd.f32 %v1459, 3.0
      %v1662 = vadd.f32 %v1464, 3.0
      %v1663 = vadd.f32 %v1467, 3.0
      %v1664 = vadd.f32 %v1472, 3.0
      %v1665 = vadd.f32 %v1475, 3.0
      %v1666 = vadd.f32 %v1480, 3.0
      %v1667 = vadd.f32 %v1483, 3.0
      %v1668 = vadd.f32 %v1488, 3.0
      %v1669 = vadd.f32 %v1491, 3.0
      %v1670 = vadd.f32 %v1496, 3.0
      %v1671 = vadd.f32 %v1499, 3.0
      %v1672 = vadd.f32 %v1504, 3.0
      %v1673 = vadd.f32 %v1507, 3.0
      %v1674 = vadd.f32 %v1512, 3.0
      %v1675 = vadd.f32 %v1515, 3.0
      %v1676 = vadd.f32 %v1520, 3.0
      %v1677 = vadd.f32 %v1523, 3.0
      %v1678 = vadd.f32 %v1528, 3.0
      %v1679 = vadd.f32 %v1531, 3.0
      %v1680 = vadd.f32 %v1536, 3.0
      %v1681 = vadd.f32 %v1539, 3.0
      %v1682 = vadd.f32 %v1544, 3.0
      %v1683 = vadd.f32 %v1547, 3.0
      %v1684 = vadd.f32 %v1552, 3.0
      %v1685 = vadd.f32 %v1555, 3.0
      %v1686 = vmax.f32 %v1558, 0.0
      %v1687 = vmax.f32 %v1559, 0.0
      %v1688 = vmax.f32 %v1560, 0.0
      %v1689 = vmax.f32 %v1561, 0.0
      %v1690 = vmax.f32 %v1562, 0.0
      %v1691 = vmax.f32 %v1563, 0.0
      %v1692 = vmax.f32 %v1564, 0.0
      %v1693 = vmax.f32 %v1565, 0.0
      %v1694 = vmax.f32 %v1566, 0.0
      %v1695 = vmax.f32 %v1567, 0.0
      %v1696 = vmax.f32 %v1568, 0.0
      %v1697 = vmax.f32 %v1569, 0.0
      %v1698 = vmax.f32 %v1570, 0.0
      %v1699 = vmax.f32 %v1571, 0.0
      %v1700 = vmax.f32 %v1572, 0.0
      %v1701 = vmax.f32 %v1573, 0.0
      %v1702 = vmax.f32 %v1574, 0.0
      %v1703 = vmax.f32 %v1575, 0.0
      %v1704 = vmax.f32 %v1576, 0.0
      %v1705 = vmax.f32 %v1577, 0.0
      %v1706 = vmax.f32 %v1578, 0.0
      %v1707 = vmax.f32 %v1579, 0.0
      %v1708 = vmax.f32 %v1580, 0.0
      %v1709 = vmax.f32 %v1581, 0.0
      %v1710 = vmax.f32 %v1582, 0.0
      %v1711 = vmax.f32 %v1583, 0.0
      %v1712 = vmax.f32 %v1584, 0.0
      %v1713 = vmax.f32 %v1585, 0.0
      %v1714 = vmax.f32 %v1586, 0.0
      %v1715 = vmax.f32 %v1587, 0.0
      %v1716 = vmax.f32 %v1588, 0.0
      %v1717 = vmax.f32 %v1589, 0.0
      %v1718 = vmax.f32 %v1590, 0.0
      %v1719 = vmax.f32 %v1591, 0.0
      %v1720 = vmax.f32 %v1592, 0.0
      %v1721 = vmax.f32 %v1593, 0.0
      %v1722 = vmax.f32 %v1594, 0.0
      %v1723 = vmax.f32 %v1595, 0.0
      %v1724 = vmax.f32 %v1596, 0.0
      %v1725 = vmax.f32 %v1597, 0.0
      %v1726 = vmax.f32 %v1598, 0.0
      %v1727 = vmax.f32 %v1599, 0.0
      %v1728 = vmax.f32 %v1600, 0.0
      %v1729 = vmax.f32 %v1601, 0.0
      %v1730 = vmax.f32 %v1602, 0.0
      %v1731 = vmax.f32 %v1603, 0.0
      %v1732 = vmax.f32 %v1604, 0.0
      %v1733 = vmax.f32 %v1605, 0.0
      %v1734 = vmax.f32 %v1606, 0.0
      %v1735 = vmax.f32 %v1607, 0.0
      %v1736 = vmax.f32 %v1608, 0.0
      %v1737 = vmax.f32 %v1609, 0.0
      %v1738 = vmax.f32 %v1610, 0.0
      %v1739 = vmax.f32 %v1611, 0.0
      %v1740 = vmax.f32 %v1612, 0.0
      %v1741 = vmax.f32 %v1613, 0.0
      %v1742 = vmax.f32 %v1614, 0.0
      %v1743 = vmax.f32 %v1615, 0.0
      %v1744 = vmax.f32 %v1616, 0.0
      %v1745 = vmax.f32 %v1617, 0.0
      %v1746 = vmax.f32 %v1618, 0.0
      %v1747 = vmax.f32 %v1619, 0.0
      %v1748 = vmax.f32 %v1620, 0.0
      %v1749 = vmax.f32 %v1621, 0.0
      %v1750 = vmax.f32 %v1622, 0.0
      %v1751 = vmax.f32 %v1623, 0.0
      %v1752 = vmax.f32 %v1624, 0.0
      %v1753 = vmax.f32 %v1625, 0.0
      %v1754 = vmax.f32 %v1626, 0.0
      %v1755 = vmax.f32 %v1627, 0.0
      %v1756 = vmax.f32 %v1628, 0.0
      %v1757 = vmax.f32 %v1629, 0.0
      %v1758 = vmax.f32 %v1630, 0.0
      %v1759 = vmax.f32 %v1631, 0.0
      %v1760 = vmax.f32 %v1632, 0.0
      %v1761 = vmax.f32 %v1633, 0.0
      %v1762 = vmax.f32 %v1634, 0.0
      %v1763 = vmax.f32 %v1635, 0.0
      %v1764 = vmax.f32 %v1636, 0.0
      %v1765 = vmax.f32 %v1637, 0.0
      %v1766 = vmax.f32 %v1638, 0.0
      %v1767 = vmax.f32 %v1639, 0.0
      %v1768 = vmax.f32 %v1640, 0.0
      %v1769 = vmax.f32 %v1641, 0.0
      %v1770 = vmax.f32 %v1642, 0.0
      %v1771 = vmax.f32 %v1643, 0.0
      %v1772 = vmax.f32 %v1644, 0.0
      %v1773 = vmax.f32 %v1645, 0.0
      %v1774 = vmax.f32 %v1646, 0.0
      %v1775 = vmax.f32 %v1647, 0.0
      %v1776 = vmax.f32 %v1648, 0.0
      %v1777 = vmax.f32 %v1649, 0.0
      %v1778 = vmax.f32 %v1650, 0.0
      %v1779 = vmax.f32 %v1651, 0.0
      %v1780 = vmax.f32 %v1652, 0.0
      %v1781 = vmax.f32 %v1653, 0.0
      %v1782 = vmax.f32 %v1654, 0.0
      %v1783 = vmax.f32 %v1655, 0.0
      %v1784 = vmax.f32 %v1656, 0.0
      %v1785 = vmax.f32 %v1657, 0.0
      %v1786 = vmax.f32 %v1658, 0.0
      %v1787 = vmax.f32 %v1659, 0.0
      %v1788 = vmax.f32 %v1660, 0.0
      %v1789 = vmax.f32 %v1661, 0.0
      %v1790 = vmax.f32 %v1662, 0.0
      %v1791 = vmax.f32 %v1663, 0.0
      %v1792 = vmax.f32 %v1664, 0.0
      %v1793 = vmax.f32 %v1665, 0.0
      %v1794 = vmax.f32 %v1666, 0.0
      %v1795 = vmax.f32 %v1667, 0.0
      %v1796 = vmax.f32 %v1668, 0.0
      %v1797 = vmax.f32 %v1669, 0.0
      %v1798 = vmax.f32 %v1670, 0.0
      %v1799 = vmax.f32 %v1671, 0.0
      %v1800 = vmax.f32 %v1672, 0.0
      %v1801 = vmax.f32 %v1673, 0.0
      %v1802 = vmax.f32 %v1674, 0.0
      %v1803 = vmax.f32 %v1675, 0.0
      %v1804 = vmax.f32 %v1676, 0.0
      %v1805 = vmax.f32 %v1677, 0.0
      %v1806 = vmax.f32 %v1678, 0.0
      %v1807 = vmax.f32 %v1679, 0.0
      %v1808 = vmax.f32 %v1680, 0.0
      %v1809 = vmax.f32 %v1681, 0.0
      %v1810 = vmax.f32 %v1682, 0.0
      %v1811 = vmax.f32 %v1683, 0.0
      %v1812 = vmax.f32 %v1684, 0.0
      %v1813 = vmax.f32 %v1685, 0.0
      %v1814 = vmin.f32 %v1686, 6.0
      %v1815 = vmin.f32 %v1687, 6.0
      %v1816 = vmin.f32 %v1688, 6.0
      %v1817 = vmin.f32 %v1689, 6.0
      %v1818 = vmin.f32 %v1690, 6.0
      %v1819 = vmin.f32 %v1691, 6.0
      %v1820 = vmin.f32 %v1692, 6.0
      %v1821 = vmin.f32 %v1693, 6.0
      %v1822 = vmin.f32 %v1694, 6.0
      %v1823 = vmin.f32 %v1695, 6.0
      %v1824 = vmin.f32 %v1696, 6.0
      %v1825 = vmin.f32 %v1697, 6.0
      %v1826 = vmin.f32 %v1698, 6.0
      %v1827 = vmin.f32 %v1699, 6.0
      %v1828 = vmin.f32 %v1700, 6.0
      %v1829 = vmin.f32 %v1701, 6.0
      %v1830 = vmin.f32 %v1702, 6.0
      %v1831 = vmin.f32 %v1703, 6.0
      %v1832 = vmin.f32 %v1704, 6.0
      %v1833 = vmin.f32 %v1705, 6.0
      %v1834 = vmin.f32 %v1706, 6.0
      %v1835 = vmin.f32 %v1707, 6.0
      %v1836 = vmin.f32 %v1708, 6.0
      %v1837 = vmin.f32 %v1709, 6.0
      %v1838 = vmin.f32 %v1710, 6.0
      %v1839 = vmin.f32 %v1711, 6.0
      %v1840 = vmin.f32 %v1712, 6.0
      %v1841 = vmin.f32 %v1713, 6.0
      %v1842 = vmin.f32 %v1714, 6.0
      %v1843 = vmin.f32 %v1715, 6.0
      %v1844 = vmin.f32 %v1716, 6.0
      %v1845 = vmin.f32 %v1717, 6.0
      %v1846 = vmin.f32 %v1718, 6.0
      %v1847 = vmin.f32 %v1719, 6.0
      %v1848 = vmin.f32 %v1720, 6.0
      %v1849 = vmin.f32 %v1721, 6.0
      %v1850 = vmin.f32 %v1722, 6.0
      %v1851 = vmin.f32 %v1723, 6.0
      %v1852 = vmin.f32 %v1724, 6.0
      %v1853 = vmin.f32 %v1725, 6.0
      %v1854 = vmin.f32 %v1726, 6.0
      %v1855 = vmin.f32 %v1727, 6.0
      %v1856 = vmin.f32 %v1728, 6.0
      %v1857 = vmin.f32 %v1729, 6.0
      %v1858 = vmin.f32 %v1730, 6.0
      %v1859 = vmin.f32 %v1731, 6.0
      %v1860 = vmin.f32 %v1732, 6.0
      %v1861 = vmin.f32 %v1733, 6.0
      %v1862 = vmin.f32 %v1734, 6.0
      %v1863 = vmin.f32 %v1735, 6.0
      %v1864 = vmin.f32 %v1736, 6.0
      %v1865 = vmin.f32 %v1737, 6.0
      %v1866 = vmin.f32 %v1738, 6.0
      %v1867 = vmin.f32 %v1739, 6.0
      %v1868 = vmin.f32 %v1740, 6.0
      %v1869 = vmin.f32 %v1741, 6.0
      %v1870 = vmin.f32 %v1742, 6.0
      %v1871 = vmin.f32 %v1743, 6.0
      %v1872 = vmin.f32 %v1744, 6.0
      %v1873 = vmin.f32 %v1745, 6.0
      %v1874 = vmin.f32 %v1746, 6.0
      %v1875 = vmin.f32 %v1747, 6.0
      %v1876 = vmin.f32 %v1748, 6.0
      %v1877 = vmin.f32 %v1749, 6.0
      %v1878 = vmin.f32 %v1750, 6.0
      %v1879 = vmin.f32 %v1751, 6.0
      %v1880 = vmin.f32 %v1752, 6.0
      %v1881 = vmin.f32 %v1753, 6.0
      %v1882 = vmin.f32 %v1754, 6.0
      %v1883 = vmin.f32 %v1755, 6.0
      %v1884 = vmin.f32 %v1756, 6.0
      %v1885 = vmin.f32 %v1757, 6.0
      %v1886 = vmin.f32 %v1758, 6.0
      %v1887 = vmin.f32 %v1759, 6.0
      %v1888 = vmin.f32 %v1760, 6.0
      %v1889 = vmin.f32 %v1761, 6.0
      %v1890 = vmin.f32 %v1762, 6.0
      %v1891 = vmin.f32 %v1763, 6.0
      %v1892 = vmin.f32 %v1764, 6.0
      %v1893 = vmin.f32 %v1765, 6.0
      %v1894 = vmin.f32 %v1766, 6.0
      %v1895 = vmin.f32 %v1767, 6.0
      %v1896 = vmin.f32 %v1768, 6.0
      %v1897 = vmin.f32 %v1769, 6.0
      %v1898 = vmin.f32 %v1770, 6.0
      %v1899 = vmin.f32 %v1771, 6.0
      %v1900 = vmin.f32 %v1772, 6.0
      %v1901 = vmin.f32 %v1773, 6.0
      %v1902 = vmin.f32 %v1774, 6.0
      %v1903 = vmin.f32 %v1775, 6.0
      %v1904 = vmin.f32 %v1776, 6.0
      %v1905 = vmin.f32 %v1777, 6.0
      %v1906 = vmin.f32 %v1778, 6.0
      %v1907 = vmin.f32 %v1779, 6.0
      %v1908 = vmin.f32 %v1780, 6.0
      %v1909 = vmin.f32 %v1781, 6.0
      %v1910 = vmin.f32 %v1782, 6.0
      %v1911 = vmin.f32 %v1783, 6.0
      %v1912 = vmin.f32 %v1784, 6.0
      %v1913 = vmin.f32 %v1785, 6.0
      %v1914 = vmin.f32 %v1786, 6.0
      %v1915 = vmin.f32 %v1787, 6.0
      %v1916 = vmin.f32 %v1788, 6.0
      %v1917 = vmin.f32 %v1789, 6.0
      %v1918 = vmin.f32 %v1790, 6.0
      %v1919 = vmin.f32 %v1791, 6.0
      %v1920 = vmin.f32 %v1792, 6.0
      %v1921 = vmin.f32 %v1793, 6.0
      %v1922 = vmin.f32 %v1794, 6.0
      %v1923 = vmin.f32 %v1795, 6.0
      %v1924 = vmin.f32 %v1796, 6.0
      %v1925 = vmin.f32 %v1797, 6.0
      %v1926 = vmin.f32 %v1798, 6.0
      %v1927 = vmin.f32 %v1799, 6.0
      %v1928 = vmin.f32 %v1800, 6.0
      %v1929 = vmin.f32 %v1801, 6.0
      %v1930 = vmin.f32 %v1802, 6.0
      %v1931 = vmin.f32 %v1803, 6.0
      %v1932 = vmin.f32 %v1804, 6.0
      %v1933 = vmin.f32 %v1805, 6.0
      %v1934 = vmin.f32 %v1806, 6.0
      %v1935 = vmin.f32 %v1807, 6.0
      %v1936 = vmin.f32 %v1808, 6.0
      %v1937 = vmin.f32 %v1809, 6.0
      %v1938 = vmin.f32 %v1810, 6.0
      %v1939 = vmin.f32 %v1811, 6.0
      %v1940 = vmin.f32 %v1812, 6.0
      %v1941 = vmin.f32 %v1813, 6.0
      %v1942 = vmul.f32 %v1048, %v1814
      %v1943 = vmul.f32 %v1051, %v1815
      %v1944 = vmul.f32 %v1056, %v1816
      %v1945 = vmul.f32 %v1059, %v1817
      %v1946 = vmul.f32 %v1064, %v1818
      %v1947 = vmul.f32 %v1067, %v1819
      %v1948 = vmul.f32 %v1072, %v1820
      %v1949 = vmul.f32 %v1075, %v1821
      %v1950 = vmul.f32 %v1080, %v1822
      %v1951 = vmul.f32 %v1083, %v1823
      %v1952 = vmul.f32 %v1088, %v1824
      %v1953 = vmul.f32 %v1091, %v1825
      %v1954 = vmul.f32 %v1096, %v1826
      %v1955 = vmul.f32 %v1099, %v1827
      %v1956 = vmul.f32 %v1104, %v1828
      %v1957 = vmul.f32 %v1107, %v1829
      %v1958 = vmul.f32 %v1112, %v1830
      %v1959 = vmul.f32 %v1115, %v1831
      %v1960 = vmul.f32 %v1120, %v1832
      %v1961 = vmul.f32 %v1123, %v1833
      %v1962 = vmul.f32 %v1128, %v1834
      %v1963 = vmul.f32 %v1131, %v1835
      %v1964 = vmul.f32 %v1136, %v1836
      %v1965 = vmul.f32 %v1139, %v1837
      %v1966 = vmul.f32 %v1144, %v1838
      %v1967 = vmul.f32 %v1147, %v1839
      %v1968 = vmul.f32 %v1152, %v1840
      %v1969 = vmul.f32 %v1155, %v1841
      %v1970 = vmul.f32 %v1160, %v1842
      %v1971 = vmul.f32 %v1163, %v1843
      %v1972 = vmul.f32 %v1168, %v1844
      %v1973 = vmul.f32 %v1171, %v1845
      %v1974 = vmul.f32 %v1176, %v1846
      %v1975 = vmul.f32 %v1179, %v1847
      %v1976 = vmul.f32 %v1184, %v1848
      %v1977 = vmul.f32 %v1187, %v1849
      %v1978 = vmul.f32 %v1192, %v1850
      %v1979 = vmul.f32 %v1195, %v1851
      %v1980 = vmul.f32 %v1200, %v1852
      %v1981 = vmul.f32 %v1203, %v1853
      %v1982 = vmul.f32 %v1208, %v1854
      %v1983 = vmul.f32 %v1211, %v1855
      %v1984 = vmul.f32 %v1216, %v1856
      %v1985 = vmul.f32 %v1219, %v1857
      %v1986 = vmul.f32 %v1224, %v1858
      %v1987 = vmul.f32 %v1227, %v1859
      %v1988 = vmul.f32 %v1232, %v1860
      %v1989 = vmul.f32 %v1235, %v1861
      %v1990 = vmul.f32 %v1240, %v1862
      %v1991 = vmul.f32 %v1243, %v1863
      %v1992 = vmul.f32 %v1248, %v1864
      %v1993 = vmul.f32 %v1251, %v1865
      %v1994 = vmul.f32 %v1256, %v1866
      %v1995 = vmul.f32 %v1259, %v1867
      %v1996 = vmul.f32 %v1264, %v1868
      %v1997 = vmul.f32 %v1267, %v1869
      %v1998 = vmul.f32 %v1272, %v1870
      %v1999 = vmul.f32 %v1275, %v1871
      %v2000 = vmul.f32 %v1280, %v1872
      %v2001 = vmul.f32 %v1283, %v1873
      %v2002 = vmul.f32 %v1288, %v1874
      %v2003 = vmul.f32 %v1291, %v1875
      %v2004 = vmul.f32 %v1296, %v1876
      %v2005 = vmul.f32 %v1299, %v1877
      %v2006 = vmul.f32 %v1304, %v1878
      %v2007 = vmul.f32 %v1307, %v1879
      %v2008 = vmul.f32 %v1312, %v1880
      %v2009 = vmul.f32 %v1315, %v1881
      %v2010 = vmul.f32 %v1320, %v1882
      %v2011 = vmul.f32 %v1323, %v1883
      %v2012 = vmul.f32 %v1328, %v1884
      %v2013 = vmul.f32 %v1331, %v1885
      %v2014 = vmul.f32 %v1336, %v1886
      %v2015 = vmul.f32 %v1339, %v1887
      %v2016 = vmul.f32 %v1344, %v1888
      %v2017 = vmul.f32 %v1347, %v1889
      %v2018 = vmul.f32 %v1352, %v1890
      %v2019 = vmul.f32 %v1355, %v1891
      %v2020 = vmul.f32 %v1360, %v1892
      %v2021 = vmul.f32 %v1363, %v1893
      %v2022 = vmul.f32 %v1368, %v1894
      %v2023 = vmul.f32 %v1371, %v1895
      %v2024 = vmul.f32 %v1376, %v1896
      %v2025 = vmul.f32 %v1379, %v1897
      %v2026 = vmul.f32 %v1384, %v1898
      %v2027 = vmul.f32 %v1387, %v1899
      %v2028 = vmul.f32 %v1392, %v1900
      %v2029 = vmul.f32 %v1395, %v1901
      %v2030 = vmul.f32 %v1400, %v1902
      %v2031 = vmul.f32 %v1403, %v1903
      %v2032 = vmul.f32 %v1408, %v1904
      %v2033 = vmul.f32 %v1411, %v1905
      %v2034 = vmul.f32 %v1416, %v1906
      %v2035 = vmul.f32 %v1419, %v1907
      %v2036 = vmul.f32 %v1424, %v1908
      %v2037 = vmul.f32 %v1427, %v1909
      %v2038 = vmul.f32 %v1432, %v1910
      %v2039 = vmul.f32 %v1435, %v1911
      %v2040 = vmul.f32 %v1440, %v1912
      %v2041 = vmul.f32 %v1443, %v1913
      %v2042 = vmul.f32 %v1448, %v1914
      %v2043 = vmul.f32 %v1451, %v1915
      %v2044 = vmul.f32 %v1456, %v1916
      %v2045 = vmul.f32 %v1459, %v1917
      %v2046 = vmul.f32 %v1464, %v1918
      %v2047 = vmul.f32 %v1467, %v1919
      %v2048 = vmul.f32 %v1472, %v1920
      %v2049 = vmul.f32 %v1475, %v1921
      %v2050 = vmul.f32 %v1480, %v1922
      %v2051 = vmul.f32 %v1483, %v1923
      %v2052 = vmul.f32 %v1488, %v1924
      %v2053 = vmul.f32 %v1491, %v1925
      %v2054 = vmul.f32 %v1496, %v1926
      %v2055 = vmul.f32 %v1499, %v1927
      %v2056 = vmul.f32 %v1504, %v1928
      %v2057 = vmul.f32 %v1507, %v1929
      %v2058 = vmul.f32 %v1512, %v1930
      %v2059 = vmul.f32 %v1515, %v1931
      %v2060 = vmul.f32 %v1520, %v1932
      %v2061 = vmul.f32 %v1523, %v1933
      %v2062 = vmul.f32 %v1528, %v1934
      %v2063 = vmul.f32 %v1531, %v1935
      %v2064 = vmul.f32 %v1536, %v1936
      %v2065 = vmul.f32 %v1539, %v1937
      %v2066 = vmul.f32 %v1544, %v1938
      %v2067 = vmul.f32 %v1547, %v1939
      %v2068 = vmul.f32 %v1552, %v1940
      %v2069 = vmul.f32 %v1555, %v1941
      %v2070 = vmul.f32 %v1942, 0.16666667
      %v2071 = vmul.f32 %v1943, 0.16666667
      %v2072 = vmul.f32 %v1944, 0.16666667
      %v2073 = vmul.f32 %v1945, 0.16666667
      %v2074 = vmul.f32 %v1946, 0.16666667
      %v2075 = vmul.f32 %v1947, 0.16666667
      %v2076 = vmul.f32 %v1948, 0.16666667
      %v2077 = vmul.f32 %v1949, 0.16666667
      %v2078 = vmul.f32 %v1950, 0.16666667
      %v2079 = vmul.f32 %v1951, 0.16666667
      %v2080 = vmul.f32 %v1952, 0.16666667
      %v2081 = vmul.f32 %v1953, 0.16666667
      %v2082 = vmul.f32 %v1954, 0.16666667
      %v2083 = vmul.f32 %v1955, 0.16666667
      %v2084 = vmul.f32 %v1956, 0.16666667
      %v2085 = vmul.f32 %v1957, 0.16666667
      %v2086 = vmul.f32 %v1958, 0.16666667
      %v2087 = vmul.f32 %v1959, 0.16666667
      %v2088 = vmul.f32 %v1960, 0.16666667
      %v2089 = vmul.f32 %v1961, 0.16666667
      %v2090 = vmul.f32 %v1962, 0.16666667
      %v2091 = vmul.f32 %v1963, 0.16666667
      %v2092 = vmul.f32 %v1964, 0.16666667
      %v2093 = vmul.f32 %v1965, 0.16666667
      %v2094 = vmul.f32 %v1966, 0.16666667
      %v2095 = vmul.f32 %v1967, 0.16666667
      %v2096 = vmul.f32 %v1968, 0.16666667
      %v2097 = vmul.f32 %v1969, 0.16666667
      %v2098 = vmul.f32 %v1970, 0.16666667
      %v2099 = vmul.f32 %v1971, 0.16666667
      %v2100 = vmul.f32 %v1972, 0.16666667
      %v2101 = vmul.f32 %v1973, 0.16666667
      %v2102 = vmul.f32 %v1974, 0.16666667
      %v2103 = vmul.f32 %v1975, 0.16666667
      %v2104 = vmul.f32 %v1976, 0.16666667
      %v2105 = vmul.f32 %v1977, 0.16666667
      %v2106 = vmul.f32 %v1978, 0.16666667
      %v2107 = vmul.f32 %v1979, 0.16666667
      %v2108 = vmul.f32 %v1980, 0.16666667
      %v2109 = vmul.f32 %v1981, 0.16666667
      %v2110 = vmul.f32 %v1982, 0.16666667
      %v2111 = vmul.f32 %v1983, 0.16666667
      %v2112 = vmul.f32 %v1984, 0.16666667
      %v2113 = vmul.f32 %v1985, 0.16666667
      %v2114 = vmul.f32 %v1986, 0.16666667
      %v2115 = vmul.f32 %v1987, 0.16666667
      %v2116 = vmul.f32 %v1988, 0.16666667
      %v2117 = vmul.f32 %v1989, 0.16666667
      %v2118 = vmul.f32 %v1990, 0.16666667
      %v2119 = vmul.f32 %v1991, 0.16666667
      %v2120 = vmul.f32 %v1992, 0.16666667
      %v2121 = vmul.f32 %v1993, 0.16666667
      %v2122 = vmul.f32 %v1994, 0.16666667
      %v2123 = vmul.f32 %v1995, 0.16666667
      %v2124 = vmul.f32 %v1996, 0.16666667
      %v2125 = vmul.f32 %v1997, 0.16666667
      %v2126 = vmul.f32 %v1998, 0.16666667
      %v2127 = vmul.f32 %v1999, 0.16666667
      %v2128 = vmul.f32 %v2000, 0.16666667
      %v2129 = vmul.f32 %v2001, 0.16666667
      %v2130 = vmul.f32 %v2002, 0.16666667
      %v2131 = vmul.f32 %v2003, 0.16666667
      %v2132 = vmul.f32 %v2004, 0.16666667
      %v2133 = vmul.f32 %v2005, 0.16666667
      %v2134 = vmul.f32 %v2006, 0.16666667
      %v2135 = vmul.f32 %v2007, 0.16666667
      %v2136 = vmul.f32 %v2008, 0.16666667
      %v2137 = vmul.f32 %v2009, 0.16666667
      %v2138 = vmul.f32 %v2010, 0.16666667
      %v2139 = vmul.f32 %v2011, 0.16666667
      %v2140 = vmul.f32 %v2012, 0.16666667
      %v2141 = vmul.f32 %v2013, 0.16666667
      %v2142 = vmul.f32 %v2014, 0.16666667
      %v2143 = vmul.f32 %v2015, 0.16666667
      %v2144 = vmul.f32 %v2016, 0.16666667
      %v2145 = vmul.f32 %v2017, 0.16666667
      %v2146 = vmul.f32 %v2018, 0.16666667
      %v2147 = vmul.f32 %v2019, 0.16666667
      %v2148 = vmul.f32 %v2020, 0.16666667
      %v2149 = vmul.f32 %v2021, 0.16666667
      %v2150 = vmul.f32 %v2022, 0.16666667
      %v2151 = vmul.f32 %v2023, 0.16666667
      %v2152 = vmul.f32 %v2024, 0.16666667
      %v2153 = vmul.f32 %v2025, 0.16666667
      %v2154 = vmul.f32 %v2026, 0.16666667
      %v2155 = vmul.f32 %v2027, 0.16666667
      %v2156 = vmul.f32 %v2028, 0.16666667
      %v2157 = vmul.f32 %v2029, 0.16666667
      %v2158 = vmul.f32 %v2030, 0.16666667
      %v2159 = vmul.f32 %v2031, 0.16666667
      %v2160 = vmul.f32 %v2032, 0.16666667
      %v2161 = vmul.f32 %v2033, 0.16666667
      %v2162 = vmul.f32 %v2034, 0.16666667
      %v2163 = vmul.f32 %v2035, 0.16666667
      %v2164 = vmul.f32 %v2036, 0.16666667
      %v2165 = vmul.f32 %v2037, 0.16666667
      %v2166 = vmul.f32 %v2038, 0.16666667
      %v2167 = vmul.f32 %v2039, 0.16666667
      %v2168 = vmul.f32 %v2040, 0.16666667
      %v2169 = vmul.f32 %v2041, 0.16666667
      %v2170 = vmul.f32 %v2042, 0.16666667
      %v2171 = vmul.f32 %v2043, 0.16666667
      %v2172 = vmul.f32 %v2044, 0.16666667
      %v2173 = vmul.f32 %v2045, 0.16666667
      %v2174 = vmul.f32 %v2046, 0.16666667
      %v2175 = vmul.f32 %v2047, 0.16666667
      %v2176 = vmul.f32 %v2048, 0.16666667
      %v2177 = vmul.f32 %v2049, 0.16666667
      %v2178 = vmul.f32 %v2050, 0.16666667
      %v2179 = vmul.f32 %v2051, 0.16666667
      %v2180 = vmul.f32 %v2052, 0.16666667
      %v2181 = vmul.f32 %v2053, 0.16666667
      %v2182 = vmul.f32 %v2054, 0.16666667
      %v2183 = vmul.f32 %v2055, 0.16666667
      %v2184 = vmul.f32 %v2056, 0.16666667
      %v2185 = vmul.f32 %v2057, 0.16666667
      %v2186 = vmul.f32 %v2058, 0.16666667
      %v2187 = vmul.f32 %v2059, 0.16666667
      %v2188 = vmul.f32 %v2060, 0.16666667
      %v2189 = vmul.f32 %v2061, 0.16666667
      %v2190 = vmul.f32 %v2062, 0.16666667
      %v2191 = vmul.f32 %v2063, 0.16666667
      %v2192 = vmul.f32 %v2064, 0.16666667
      %v2193 = vmul.f32 %v2065, 0.16666667
      %v2194 = vmul.f32 %v2066, 0.16666667
      %v2195 = vmul.f32 %v2067, 0.16666667
      %v2196 = vmul.f32 %v2068, 0.16666667
      %v2197 = vmul.f32 %v2069, 0.16666667
      %v2198 = vpack.c.bf16 %v2071, %v2070
      %v2199 = vpack.c.bf16 %v2073, %v2072
      %v2200 = vpack.c.bf16 %v2075, %v2074
      %v2201 = vpack.c.bf16 %v2077, %v2076
      %v2202 = vpack.c.bf16 %v2079, %v2078
      %v2203 = vpack.c.bf16 %v2081, %v2080
      %v2204 = vpack.c.bf16 %v2083, %v2082
      %v2205 = vpack.c.bf16 %v2085, %v2084
      %v2206 = vpack.c.bf16 %v2087, %v2086
      %v2207 = vpack.c.bf16 %v2089, %v2088
      %v2208 = vpack.c.bf16 %v2091, %v2090
      %v2209 = vpack.c.bf16 %v2093, %v2092
      %v2210 = vpack.c.bf16 %v2095, %v2094
      %v2211 = vpack.c.bf16 %v2097, %v2096
      %v2212 = vpack.c.bf16 %v2099, %v2098
      %v2213 = vpack.c.bf16 %v2101, %v2100
      %v2214 = vpack.c.bf16 %v2103, %v2102
      %v2215 = vpack.c.bf16 %v2105, %v2104
      %v2216 = vpack.c.bf16 %v2107, %v2106
      %v2217 = vpack.c.bf16 %v2109, %v2108
      %v2218 = vpack.c.bf16 %v2111, %v2110
      %v2219 = vpack.c.bf16 %v2113, %v2112
      %v2220 = vpack.c.bf16 %v2115, %v2114
      %v2221 = vpack.c.bf16 %v2117, %v2116
      %v2222 = vpack.c.bf16 %v2119, %v2118
      %v2223 = vpack.c.bf16 %v2121, %v2120
      %v2224 = vpack.c.bf16 %v2123, %v2122
      %v2225 = vpack.c.bf16 %v2125, %v2124
      %v2226 = vpack.c.bf16 %v2127, %v2126
      %v2227 = vpack.c.bf16 %v2129, %v2128
      %v2228 = vpack.c.bf16 %v2131, %v2130
      %v2229 = vpack.c.bf16 %v2133, %v2132
      %v2230 = vpack.c.bf16 %v2135, %v2134
      %v2231 = vpack.c.bf16 %v2137, %v2136
      %v2232 = vpack.c.bf16 %v2139, %v2138
      %v2233 = vpack.c.bf16 %v2141, %v2140
      %v2234 = vpack.c.bf16 %v2143, %v2142
      %v2235 = vpack.c.bf16 %v2145, %v2144
      %v2236 = vpack.c.bf16 %v2147, %v2146
      %v2237 = vpack.c.bf16 %v2149, %v2148
      %v2238 = vpack.c.bf16 %v2151, %v2150
      %v2239 = vpack.c.bf16 %v2153, %v2152
      %v2240 = vpack.c.bf16 %v2155, %v2154
      %v2241 = vpack.c.bf16 %v2157, %v2156
      %v2242 = vpack.c.bf16 %v2159, %v2158
      %v2243 = vpack.c.bf16 %v2161, %v2160
      %v2244 = vpack.c.bf16 %v2163, %v2162
      %v2245 = vpack.c.bf16 %v2165, %v2164
      %v2246 = vpack.c.bf16 %v2167, %v2166
      %v2247 = vpack.c.bf16 %v2169, %v2168
      %v2248 = vpack.c.bf16 %v2171, %v2170
      %v2249 = vpack.c.bf16 %v2173, %v2172
      %v2250 = vpack.c.bf16 %v2175, %v2174
      %v2251 = vpack.c.bf16 %v2177, %v2176
      %v2252 = vpack.c.bf16 %v2179, %v2178
      %v2253 = vpack.c.bf16 %v2181, %v2180
      %v2254 = vpack.c.bf16 %v2183, %v2182
      %v2255 = vpack.c.bf16 %v2185, %v2184
      %v2256 = vpack.c.bf16 %v2187, %v2186
      %v2257 = vpack.c.bf16 %v2189, %v2188
      %v2258 = vpack.c.bf16 %v2191, %v2190
      %v2259 = vpack.c.bf16 %v2193, %v2192
      %v2260 = vpack.c.bf16 %v2195, %v2194
      %v2261 = vpack.c.bf16 %v2197, %v2196
      %v2262 = vld [vmem:[%s4] sm:$0xf]
      %v2263 = vld [vmem:[%s4 + $0x4] sm:$0xf]
      %v2264 = vld [vmem:[%s5] sm:$0x1]
      %v2266 = vlaneseq
      %v2267 = vshrl.u32 %v2266, 7
      %v2268 = vsub.s32 0, %v2267
      %v2269 = vrot.slane %v2264, %v2268
      %v2273 = vunpack.c.l.b16 %v2262
      %v2274 = vunpack.c.l.b16 %v2263
      %v2275 = vpack.c.b16 %v2274, %v2273
      %v2278 = vsel %vm820, %v2198, 0
      %v2281 = vsel %vm820, %v2199, 0
      %v2284 = vsel %vm820, %v2200, 0
      %v2287 = vsel %vm820, %v2201, 0
      %v2290 = vsel %vm820, %v2202, 0
      %v2293 = vsel %vm820, %v2203, 0
      %v2296 = vsel %vm820, %v2204, 0
      %v2299 = vsel %vm820, %v2205, 0
      %v2302 = vsel %vm820, %v2206, 0
      %v2305 = vsel %vm820, %v2207, 0
      %v2308 = vsel %vm820, %v2208, 0
      %v2311 = vsel %vm820, %v2209, 0
      %v2314 = vsel %vm820, %v2210, 0
      %v2317 = vsel %vm820, %v2211, 0
      %v2320 = vsel %vm820, %v2212, 0
      %v2323 = vsel %vm820, %v2213, 0
      %v2326 = vsel %vm820, %v2214, 0
      %v2329 = vsel %vm820, %v2215, 0
      %v2332 = vsel %vm820, %v2216, 0
      %v2335 = vsel %vm820, %v2217, 0
      %v2338 = vsel %vm820, %v2218, 0
      %v2341 = vsel %vm820, %v2219, 0
      %v2344 = vsel %vm820, %v2220, 0
      %v2347 = vsel %vm820, %v2221, 0
      %v2350 = vsel %vm820, %v2222, 0
      %v2353 = vsel %vm820, %v2223, 0
      %v2356 = vsel %vm820, %v2224, 0
      %v2359 = vsel %vm820, %v2225, 0
      %v2362 = vsel %vm820, %v2226, 0
      %v2365 = vsel %vm820, %v2227, 0
      %v2368 = vsel %vm820, %v2228, 0
      %v2371 = vsel %vm820, %v2229, 0
      %v2374 = vsel %vm820, %v2230, 0
      %v2377 = vsel %vm820, %v2231, 0
      %v2380 = vsel %vm820, %v2232, 0
      %v2383 = vsel %vm820, %v2233, 0
      %v2386 = vsel %vm820, %v2234, 0
      %v2389 = vsel %vm820, %v2235, 0
      %v2392 = vsel %vm820, %v2236, 0
      %v2395 = vsel %vm820, %v2237, 0
      %v2398 = vsel %vm820, %v2238, 0
      %v2401 = vsel %vm820, %v2239, 0
      %v2404 = vsel %vm820, %v2240, 0
      %v2407 = vsel %vm820, %v2241, 0
      %v2410 = vsel %vm820, %v2242, 0
      %v2413 = vsel %vm820, %v2243, 0
      %v2416 = vsel %vm820, %v2244, 0
      %v2419 = vsel %vm820, %v2245, 0
      %v2422 = vsel %vm820, %v2246, 0
      %v2425 = vsel %vm820, %v2247, 0
      %v2428 = vsel %vm820, %v2248, 0
      %v2431 = vsel %vm820, %v2249, 0
      %v2434 = vsel %vm820, %v2250, 0
      %v2437 = vsel %vm820, %v2251, 0
      %v2440 = vsel %vm820, %v2252, 0
      %v2443 = vsel %vm820, %v2253, 0
      %v2446 = vsel %vm820, %v2254, 0
      %v2449 = vsel %vm820, %v2255, 0
      %v2452 = vsel %vm820, %v2256, 0
      %v2455 = vsel %vm820, %v2257, 0
      %v2458 = vsel %vm820, %v2258, 0
      %v2461 = vsel %vm820, %v2259, 0
      %v2464 = vsel %vm820, %v2260, 0
      %v2467 = vsel %vm820, %v2261, 0
      %2469 = vmatprep.subr.bf16.mxu0 0
      %2470 = vmatpush1.bf16.msra.mxu0 %v2275
      %2471 = vmatprep.subr.bf16.mxu0 0
      %2472 = vmatpush1.bf16.msra.mxu0 0
      %2473 = vmatprep.subr.bf16.mxu0 0
      %2474 = vmatpush1.bf16.msra.mxu0 0
      %2475 = vmatprep.subr.bf16.mxu0 0
      %2476 = vmatpush1.bf16.msra.mxu0 0
      %2477 = vmatprep.subr.bf16.mxu0 0
      %2478 = vmatpush1.bf16.msra.mxu0 0
      %2479 = vmatprep.subr.bf16.mxu0 0
      %2480 = vmatpush1.bf16.msra.mxu0 0
      %2481 = vmatprep.subr.bf16.mxu0 0
      %2482 = vmatpush1.bf16.msra.mxu0 0
      %2483 = vmatprep.subr.bf16.mxu0 0
      %2484 = vmatpush1.bf16.msra.mxu0 0
      %2485 = vmatprep.subr.bf16.mxu0 0
      %2486 = vmatpush1.bf16.msra.mxu0 0
      %2487 = vmatprep.subr.bf16.mxu0 0
      %2488 = vmatpush1.bf16.msra.mxu0 0
      %2489 = vmatprep.subr.bf16.mxu0 0
      %2490 = vmatpush1.bf16.msra.mxu0 0
      %2491 = vmatprep.subr.bf16.mxu0 0
      %2492 = vmatpush1.bf16.msra.mxu0 0
      %2493 = vmatprep.subr.bf16.mxu0 0
      %2494 = vmatpush1.bf16.msra.mxu0 0
      %2495 = vmatprep.subr.bf16.mxu0 0
      %2496 = vmatpush1.bf16.msra.mxu0 0
      %2497 = vmatprep.subr.bf16.mxu0 0
      %2498 = vmatpush1.bf16.msra.mxu0 0
      %2499 = vmatprep.subr.bf16.mxu0 0
      %2500 = vmatpush1.bf16.msra.mxu0 0
      %2501 = vmatprep.mubr.bf16.mxu0 0
      %2502 = vmatmul.mubr.bf16.gmra.mrb[0].mxu0 %v2278
      %v2503 = vpop.f32.mrb[0].mxu0
      %v2504 = vadd.f32 %v2269, %v2503
      %v2505 = vpop.f32.mrb[0].mxu0
      %v2506 = vpop.f32.mrb[0].mxu0
      %v2507 = vadd.f32 %v2269, %v2506
      %v2508 = vpop.f32.mrb[0].mxu0
      %2509 = vmatprep.mubr.bf16.mxu0 0
      %2510 = vmatmul.mubr.bf16.gmra.mrb[0].mxu0 %v2281
      %v2511 = vpop.f32.mrb[0].mxu0
      %v2512 = vadd.f32 %v2269, %v2511
      %v2513 = vpop.f32.mrb[0].mxu0
      %v2514 = vpop.f32.mrb[0].mxu0
      %v2515 = vadd.f32 %v2269, %v2514
      %v2516 = vpop.f32.mrb[0].mxu0
      %2517 = vmatprep.mubr.bf16.mxu0 0
      %2518 = vmatmul.mubr.bf16.gmra.mrb[0].mxu0 %v2284
      %v2519 = vpop.f32.mrb[0].mxu0
      %v2520 = vadd.f32 %v2269, %v2519
      %v2521 = vpop.f32.mrb[0].mxu0
      %v2522 = vpop.f32.mrb[0].mxu0
      %v2523 = vadd.f32 %v2269, %v2522
      %v2524 = vpop.f32.mrb[0].mxu0
      %2525 = vmatprep.mubr.bf16.mxu0 0
      %2526 = vmatmul.mubr.bf16.gmra.mrb[0].mxu0 %v2287
      %v2527 = vpop.f32.mrb[0].mxu0
      %v2528 = vadd.f32 %v2269, %v2527
      %v2529 = vpop.f32.mrb[0].mxu0
      %v2530 = vpop.f32.mrb[0].mxu0
      %v2531 = vadd.f32 %v2269, %v2530
      %v2532 = vpop.f32.mrb[0].mxu0
      %2533 = vmatprep.mubr.bf16.mxu0 0
      %2534 = vmatmul.mubr.bf16.gmra.mrb[0].mxu0 %v2290
      %v2535 = vpop.f32.mrb[0].mxu0
      %v2536 = vadd.f32 %v2269, %v2535
      %v2537 = vpop.f32.mrb[0].mxu0
      %v2538 = vpop.f32.mrb[0].mxu0
      %v2539 = vadd.f32 %v2269, %v2538
      %v2540 = vpop.f32.mrb[0].mxu0
      %2541 = vmatprep.mubr.bf16.mxu0 0
      %2542 = vmatmul.mubr.bf16.gmra.mrb[0].mxu0 %v2293
      %v2543 = vpop.f32.mrb[0].mxu0
      %v2544 = vadd.f32 %v2269, %v2543
      %v2545 = vpop.f32.mrb[0].mxu0
      %v2546 = vpop.f32.mrb[0].mxu0
      %v2547 = vadd.f32 %v2269, %v2546
      %v2548 = vpop.f32.mrb[0].mxu0
      %2549 = vmatprep.mubr.bf16.mxu0 0
      %2550 = vmatmul.mubr.bf16.gmra.mrb[0].mxu0 %v2296
      %v2551 = vpop.f32.mrb[0].mxu0
      %v2552 = vadd.f32 %v2269, %v2551
      %v2553 = vpop.f32.mrb[0].mxu0
      %v2554 = vpop.f32.mrb[0].mxu0
      %v2555 = vadd.f32 %v2269, %v2554
      %v2556 = vpop.f32.mrb[0].mxu0
      %2557 = vmatprep.mubr.bf16.mxu0 0
      %2558 = vmatmul.mubr.bf16.gmra.mrb[0].mxu0 %v2299
      %v2559 = vpop.f32.mrb[0].mxu0
      %v2560 = vadd.f32 %v2269, %v2559
      %v2561 = vpop.f32.mrb[0].mxu0
      %v2562 = vpop.f32.mrb[0].mxu0
      %v2563 = vadd.f32 %v2269, %v2562
      %v2564 = vpop.f32.mrb[0].mxu0
      %2565 = vmatprep.mubr.bf16.mxu0 0
      %2566 = vmatmul.mubr.bf16.gmra.mrb[0].mxu0 %v2302
      %v2567 = vpop.f32.mrb[0].mxu0
      %v2568 = vadd.f32 %v2269, %v2567
      %v2569 = vpop.f32.mrb[0].mxu0
      %v2570 = vpop.f32.mrb[0].mxu0
      %v2571 = vadd.f32 %v2269, %v2570
      %v2572 = vpop.f32.mrb[0].mxu0
      %2573 = vmatprep.mubr.bf16.mxu0 0
      %2574 = vmatmul.mubr.bf16.gmra.mrb[0].mxu0 %v2305
      %v2575 = vpop.f32.mrb[0].mxu0
      %v2576 = vadd.f32 %v2269, %v2575
      %v2577 = vpop.f32.mrb[0].mxu0
      %v2578 = vpop.f32.mrb[0].mxu0
      %v2579 = vadd.f32 %v2269, %v2578
      %v2580 = vpop.f32.mrb[0].mxu0
      %2581 = vmatprep.mubr.bf16.mxu0 0
      %2582 = vmatmul.mubr.bf16.gmra.mrb[0].mxu0 %v2308
      %v2583 = vpop.f32.mrb[0].mxu0
      %v2584 = vadd.f32 %v2269, %v2583
      %v2585 = vpop.f32.mrb[0].mxu0
      %v2586 = vpop.f32.mrb[0].mxu0
      %v2587 = vadd.f32 %v2269, %v2586
      %v2588 = vpop.f32.mrb[0].mxu0
      %2589 = vmatprep.mubr.bf16.mxu0 0
      %2590 = vmatmul.mubr.bf16.gmra.mrb[0].mxu0 %v2311
      %v2591 = vpop.f32.mrb[0].mxu0
      %v2592 = vadd.f32 %v2269, %v2591
      %v2593 = vpop.f32.mrb[0].mxu0
      %v2594 = vpop.f32.mrb[0].mxu0
      %v2595 = vadd.f32 %v2269, %v2594
      %v2596 = vpop.f32.mrb[0].mxu0
      %2597 = vmatprep.mubr.bf16.mxu0 0
      %2598 = vmatmul.mubr.bf16.gmra.mrb[0].mxu0 %v2314
      %v2599 = vpop.f32.mrb[0].mxu0
      %v2600 = vadd.f32 %v2269, %v2599
      %v2601 = vpop.f32.mrb[0].mxu0
      %v2602 = vpop.f32.mrb[0].mxu0
      %v2603 = vadd.f32 %v2269, %v2602
      %v2604 = vpop.f32.mrb[0].mxu0
      %2605 = vmatprep.mubr.bf16.mxu0 0
      %2606 = vmatmul.mubr.bf16.gmra.mrb[0].mxu0 %v2317
      %v2607 = vpop.f32.mrb[0].mxu0
      %v2608 = vadd.f32 %v2269, %v2607
      %v2609 = vpop.f32.mrb[0].mxu0
      %v2610 = vpop.f32.mrb[0].mxu0
      %v2611 = vadd.f32 %v2269, %v2610
      %v2612 = vpop.f32.mrb[0].mxu0
      %2613 = vmatprep.mubr.bf16.mxu0 0
      %2614 = vmatmul.mubr.bf16.gmra.mrb[0].mxu0 %v2320
      %v2615 = vpop.f32.mrb[0].mxu0
      %v2616 = vadd.f32 %v2269, %v2615
      %v2617 = vpop.f32.mrb[0].mxu0
      %v2618 = vpop.f32.mrb[0].mxu0
      %v2619 = vadd.f32 %v2269, %v2618
      %v2620 = vpop.f32.mrb[0].mxu0
      %2621 = vmatprep.mubr.bf16.mxu0 0
      %2622 = vmatmul.mubr.bf16.gmra.mrb[0].mxu0 %v2323
      %v2623 = vpop.f32.mrb[0].mxu0
      %v2624 = vadd.f32 %v2269, %v2623
      %v2625 = vpop.f32.mrb[0].mxu0
      %v2626 = vpop.f32.mrb[0].mxu0
      %v2627 = vadd.f32 %v2269, %v2626
      %v2628 = vpop.f32.mrb[0].mxu0
      %2629 = vmatprep.mubr.bf16.mxu0 0
      %2630 = vmatmul.mubr.bf16.gmra.mrb[0].mxu0 %v2326
      %v2631 = vpop.f32.mrb[0].mxu0
      %v2632 = vadd.f32 %v2269, %v2631
      %v2633 = vpop.f32.mrb[0].mxu0
      %v2634 = vpop.f32.mrb[0].mxu0
      %v2635 = vadd.f32 %v2269, %v2634
      %v2636 = vpop.f32.mrb[0].mxu0
      %2637 = vmatprep.mubr.bf16.mxu0 0
      %2638 = vmatmul.mubr.bf16.gmra.mrb[0].mxu0 %v2329
      %v2639 = vpop.f32.mrb[0].mxu0
      %v2640 = vadd.f32 %v2269, %v2639
      %v2641 = vpop.f32.mrb[0].mxu0
      %v2642 = vpop.f32.mrb[0].mxu0
      %v2643 = vadd.f32 %v2269, %v2642
      %v2644 = vpop.f32.mrb[0].mxu0
      %2645 = vmatprep.mubr.bf16.mxu0 0
      %2646 = vmatmul.mubr.bf16.gmra.mrb[0].mxu0 %v2332
      %v2647 = vpop.f32.mrb[0].mxu0
      %v2648 = vadd.f32 %v2269, %v2647
      %v2649 = vpop.f32.mrb[0].mxu0
      %v2650 = vpop.f32.mrb[0].mxu0
      %v2651 = vadd.f32 %v2269, %v2650
      %v2652 = vpop.f32.mrb[0].mxu0
      %2653 = vmatprep.mubr.bf16.mxu0 0
      %2654 = vmatmul.mubr.bf16.gmra.mrb[0].mxu0 %v2335
      %v2655 = vpop.f32.mrb[0].mxu0
      %v2656 = vadd.f32 %v2269, %v2655
      %v2657 = vpop.f32.mrb[0].mxu0
      %v2658 = vpop.f32.mrb[0].mxu0
      %v2659 = vadd.f32 %v2269, %v2658
      %v2660 = vpop.f32.mrb[0].mxu0
      %2661 = vmatprep.mubr.bf16.mxu0 0
      %2662 = vmatmul.mubr.bf16.gmra.mrb[0].mxu0 %v2338
      %v2663 = vpop.f32.mrb[0].mxu0
      %v2664 = vadd.f32 %v2269, %v2663
      %v2665 = vpop.f32.mrb[0].mxu0
      %v2666 = vpop.f32.mrb[0].mxu0
      %v2667 = vadd.f32 %v2269, %v2666
      %v2668 = vpop.f32.mrb[0].mxu0
      %2669 = vmatprep.mubr.bf16.mxu0 0
      %2670 = vmatmul.mubr.bf16.gmra.mrb[0].mxu0 %v2341
      %v2671 = vpop.f32.mrb[0].mxu0
      %v2672 = vadd.f32 %v2269, %v2671
      %v2673 = vpop.f32.mrb[0].mxu0
      %v2674 = vpop.f32.mrb[0].mxu0
      %v2675 = vadd.f32 %v2269, %v2674
      %v2676 = vpop.f32.mrb[0].mxu0
      %2677 = vmatprep.mubr.bf16.mxu0 0
      %2678 = vmatmul.mubr.bf16.gmra.mrb[0].mxu0 %v2344
      %v2679 = vpop.f32.mrb[0].mxu0
      %v2680 = vadd.f32 %v2269, %v2679
      %v2681 = vpop.f32.mrb[0].mxu0
      %v2682 = vpop.f32.mrb[0].mxu0
      %v2683 = vadd.f32 %v2269, %v2682
      %v2684 = vpop.f32.mrb[0].mxu0
      %2685 = vmatprep.mubr.bf16.mxu0 0
      %2686 = vmatmul.mubr.bf16.gmra.mrb[0].mxu0 %v2347
      %v2687 = vpop.f32.mrb[0].mxu0
      %v2688 = vadd.f32 %v2269, %v2687
      %v2689 = vpop.f32.mrb[0].mxu0
      %v2690 = vpop.f32.mrb[0].mxu0
      %v2691 = vadd.f32 %v2269, %v2690
      %v2692 = vpop.f32.mrb[0].mxu0
      %2693 = vmatprep.mubr.bf16.mxu0 0
      %2694 = vmatmul.mubr.bf16.gmra.mrb[0].mxu0 %v2350
      %v2695 = vpop.f32.mrb[0].mxu0
      %v2696 = vadd.f32 %v2269, %v2695
      %v2697 = vpop.f32.mrb[0].mxu0
      %v2698 = vpop.f32.mrb[0].mxu0
      %v2699 = vadd.f32 %v2269, %v2698
      %v2700 = vpop.f32.mrb[0].mxu0
      %2701 = vmatprep.mubr.bf16.mxu0 0
      %2702 = vmatmul.mubr.bf16.gmra.mrb[0].mxu0 %v2353
      %v2703 = vpop.f32.mrb[0].mxu0
      %v2704 = vadd.f32 %v2269, %v2703
      %v2705 = vpop.f32.mrb[0].mxu0
      %v2706 = vpop.f32.mrb[0].mxu0
      %v2707 = vadd.f32 %v2269, %v2706
      %v2708 = vpop.f32.mrb[0].mxu0
      %2709 = vmatprep.mubr.bf16.mxu0 0
      %2710 = vmatmul.mubr.bf16.gmra.mrb[0].mxu0 %v2356
      %v2711 = vpop.f32.mrb[0].mxu0
      %v2712 = vadd.f32 %v2269, %v2711
      %v2713 = vpop.f32.mrb[0].mxu0
      %v2714 = vpop.f32.mrb[0].mxu0
      %v2715 = vadd.f32 %v2269, %v2714
      %v2716 = vpop.f32.mrb[0].mxu0
      %2717 = vmatprep.mubr.bf16.mxu0 0
      %2718 = vmatmul.mubr.bf16.gmra.mrb[0].mxu0 %v2359
      %v2719 = vpop.f32.mrb[0].mxu0
      %v2720 = vadd.f32 %v2269, %v2719
      %v2721 = vpop.f32.mrb[0].mxu0
      %v2722 = vpop.f32.mrb[0].mxu0
      %v2723 = vadd.f32 %v2269, %v2722
      %v2724 = vpop.f32.mrb[0].mxu0
      %2725 = vmatprep.mubr.bf16.mxu0 0
      %2726 = vmatmul.mubr.bf16.gmra.mrb[0].mxu0 %v2362
      %v2727 = vpop.f32.mrb[0].mxu0
      %v2728 = vadd.f32 %v2269, %v2727
      %v2729 = vpop.f32.mrb[0].mxu0
      %v2730 = vpop.f32.mrb[0].mxu0
      %v2731 = vadd.f32 %v2269, %v2730
      %v2732 = vpop.f32.mrb[0].mxu0
      %2733 = vmatprep.mubr.bf16.mxu0 0
      %2734 = vmatmul.mubr.bf16.gmra.mrb[0].mxu0 %v2365
      %v2735 = vpop.f32.mrb[0].mxu0
      %v2736 = vadd.f32 %v2269, %v2735
      %v2737 = vpop.f32.mrb[0].mxu0
      %v2738 = vpop.f32.mrb[0].mxu0
      %v2739 = vadd.f32 %v2269, %v2738
      %v2740 = vpop.f32.mrb[0].mxu0
      %2741 = vmatprep.mubr.bf16.mxu0 0
      %2742 = vmatmul.mubr.bf16.gmra.mrb[0].mxu0 %v2368
      %v2743 = vpop.f32.mrb[0].mxu0
      %v2744 = vadd.f32 %v2269, %v2743
      %v2745 = vpop.f32.mrb[0].mxu0
      %v2746 = vpop.f32.mrb[0].mxu0
      %v2747 = vadd.f32 %v2269, %v2746
      %v2748 = vpop.f32.mrb[0].mxu0
      %2749 = vmatprep.mubr.bf16.mxu0 0
      %2750 = vmatmul.mubr.bf16.gmra.mrb[0].mxu0 %v2371
      %v2751 = vpop.f32.mrb[0].mxu0
      %v2752 = vadd.f32 %v2269, %v2751
      %v2753 = vpop.f32.mrb[0].mxu0
      %v2754 = vpop.f32.mrb[0].mxu0
      %v2755 = vadd.f32 %v2269, %v2754
      %v2756 = vpop.f32.mrb[0].mxu0
      %2757 = vmatprep.mubr.bf16.mxu0 0
      %2758 = vmatmul.mubr.bf16.gmra.mrb[0].mxu0 %v2374
      %v2759 = vpop.f32.mrb[0].mxu0
      %v2760 = vadd.f32 %v2269, %v2759
      %v2761 = vpop.f32.mrb[0].mxu0
      %v2762 = vpop.f32.mrb[0].mxu0
      %v2763 = vadd.f32 %v2269, %v2762
      %v2764 = vpop.f32.mrb[0].mxu0
      %2765 = vmatprep.mubr.bf16.mxu0 0
      %2766 = vmatmul.mubr.bf16.gmra.mrb[0].mxu0 %v2377
      %v2767 = vpop.f32.mrb[0].mxu0
      %v2768 = vadd.f32 %v2269, %v2767
      %v2769 = vpop.f32.mrb[0].mxu0
      %v2770 = vpop.f32.mrb[0].mxu0
      %v2771 = vadd.f32 %v2269, %v2770
      %v2772 = vpop.f32.mrb[0].mxu0
      %2773 = vmatprep.mubr.bf16.mxu0 0
      %2774 = vmatmul.mubr.bf16.gmra.mrb[0].mxu0 %v2380
      %v2775 = vpop.f32.mrb[0].mxu0
      %v2776 = vadd.f32 %v2269, %v2775
      %v2777 = vpop.f32.mrb[0].mxu0
      %v2778 = vpop.f32.mrb[0].mxu0
      %v2779 = vadd.f32 %v2269, %v2778
      %v2780 = vpop.f32.mrb[0].mxu0
      %2781 = vmatprep.mubr.bf16.mxu0 0
      %2782 = vmatmul.mubr.bf16.gmra.mrb[0].mxu0 %v2383
      %v2783 = vpop.f32.mrb[0].mxu0
      %v2784 = vadd.f32 %v2269, %v2783
      %v2785 = vpop.f32.mrb[0].mxu0
      %v2786 = vpop.f32.mrb[0].mxu0
      %v2787 = vadd.f32 %v2269, %v2786
      %v2788 = vpop.f32.mrb[0].mxu0
      %2789 = vmatprep.mubr.bf16.mxu0 0
      %2790 = vmatmul.mubr.bf16.gmra.mrb[0].mxu0 %v2386
      %v2791 = vpop.f32.mrb[0].mxu0
      %v2792 = vadd.f32 %v2269, %v2791
      %v2793 = vpop.f32.mrb[0].mxu0
      %v2794 = vpop.f32.mrb[0].mxu0
      %v2795 = vadd.f32 %v2269, %v2794
      %v2796 = vpop.f32.mrb[0].mxu0
      %2797 = vmatprep.mubr.bf16.mxu0 0
      %2798 = vmatmul.mubr.bf16.gmra.mrb[0].mxu0 %v2389
      %v2799 = vpop.f32.mrb[0].mxu0
      %v2800 = vadd.f32 %v2269, %v2799
      %v2801 = vpop.f32.mrb[0].mxu0
      %v2802 = vpop.f32.mrb[0].mxu0
      %v2803 = vadd.f32 %v2269, %v2802
      %v2804 = vpop.f32.mrb[0].mxu0
      %2805 = vmatprep.mubr.bf16.mxu0 0
      %2806 = vmatmul.mubr.bf16.gmra.mrb[0].mxu0 %v2392
      %v2807 = vpop.f32.mrb[0].mxu0
      %v2808 = vadd.f32 %v2269, %v2807
      %v2809 = vpop.f32.mrb[0].mxu0
      %v2810 = vpop.f32.mrb[0].mxu0
      %v2811 = vadd.f32 %v2269, %v2810
      %v2812 = vpop.f32.mrb[0].mxu0
      %2813 = vmatprep.mubr.bf16.mxu0 0
      %2814 = vmatmul.mubr.bf16.gmra.mrb[0].mxu0 %v2395
      %v2815 = vpop.f32.mrb[0].mxu0
      %v2816 = vadd.f32 %v2269, %v2815
      %v2817 = vpop.f32.mrb[0].mxu0
      %v2818 = vpop.f32.mrb[0].mxu0
      %v2819 = vadd.f32 %v2269, %v2818
      %v2820 = vpop.f32.mrb[0].mxu0
      %2821 = vmatprep.mubr.bf16.mxu0 0
      %2822 = vmatmul.mubr.bf16.gmra.mrb[0].mxu0 %v2398
      %v2823 = vpop.f32.mrb[0].mxu0
      %v2824 = vadd.f32 %v2269, %v2823
      %v2825 = vpop.f32.mrb[0].mxu0
      %v2826 = vpop.f32.mrb[0].mxu0
      %v2827 = vadd.f32 %v2269, %v2826
      %v2828 = vpop.f32.mrb[0].mxu0
      %2829 = vmatprep.mubr.bf16.mxu0 0
      %2830 = vmatmul.mubr.bf16.gmra.mrb[0].mxu0 %v2401
      %v2831 = vpop.f32.mrb[0].mxu0
      %v2832 = vadd.f32 %v2269, %v2831
      %v2833 = vpop.f32.mrb[0].mxu0
      %v2834 = vpop.f32.mrb[0].mxu0
      %v2835 = vadd.f32 %v2269, %v2834
      %v2836 = vpop.f32.mrb[0].mxu0
      %2837 = vmatprep.mubr.bf16.mxu0 0
      %2838 = vmatmul.mubr.bf16.gmra.mrb[0].mxu0 %v2404
      %v2839 = vpop.f32.mrb[0].mxu0
      %v2840 = vadd.f32 %v2269, %v2839
      %v2841 = vpop.f32.mrb[0].mxu0
      %v2842 = vpop.f32.mrb[0].mxu0
      %v2843 = vadd.f32 %v2269, %v2842
      %v2844 = vpop.f32.mrb[0].mxu0
      %2845 = vmatprep.mubr.bf16.mxu0 0
      %2846 = vmatmul.mubr.bf16.gmra.mrb[0].mxu0 %v2407
      %v2847 = vpop.f32.mrb[0].mxu0
      %v2848 = vadd.f32 %v2269, %v2847
      %v2849 = vpop.f32.mrb[0].mxu0
      %v2850 = vpop.f32.mrb[0].mxu0
      %v2851 = vadd.f32 %v2269, %v2850
      %v2852 = vpop.f32.mrb[0].mxu0
      %2853 = vmatprep.mubr.bf16.mxu0 0
      %2854 = vmatmul.mubr.bf16.gmra.mrb[0].mxu0 %v2410
      %v2855 = vpop.f32.mrb[0].mxu0
      %v2856 = vadd.f32 %v2269, %v2855
      %v2857 = vpop.f32.mrb[0].mxu0
      %v2858 = vpop.f32.mrb[0].mxu0
      %v2859 = vadd.f32 %v2269, %v2858
      %v2860 = vpop.f32.mrb[0].mxu0
      %2861 = vmatprep.mubr.bf16.mxu0 0
      %2862 = vmatmul.mubr.bf16.gmra.mrb[0].mxu0 %v2413
      %v2863 = vpop.f32.mrb[0].mxu0
      %v2864 = vadd.f32 %v2269, %v2863
      %v2865 = vpop.f32.mrb[0].mxu0
      %v2866 = vpop.f32.mrb[0].mxu0
      %v2867 = vadd.f32 %v2269, %v2866
      %v2868 = vpop.f32.mrb[0].mxu0
      %2869 = vmatprep.mubr.bf16.mxu0 0
      %2870 = vmatmul.mubr.bf16.gmra.mrb[0].mxu0 %v2416
      %v2871 = vpop.f32.mrb[0].mxu0
      %v2872 = vadd.f32 %v2269, %v2871
      %v2873 = vpop.f32.mrb[0].mxu0
      %v2874 = vpop.f32.mrb[0].mxu0
      %v2875 = vadd.f32 %v2269, %v2874
      %v2876 = vpop.f32.mrb[0].mxu0
      %2877 = vmatprep.mubr.bf16.mxu0 0
      %2878 = vmatmul.mubr.bf16.gmra.mrb[0].mxu0 %v2419
      %v2879 = vpop.f32.mrb[0].mxu0
      %v2880 = vadd.f32 %v2269, %v2879
      %v2881 = vpop.f32.mrb[0].mxu0
      %v2882 = vpop.f32.mrb[0].mxu0
      %v2883 = vadd.f32 %v2269, %v2882
      %v2884 = vpop.f32.mrb[0].mxu0
      %2885 = vmatprep.mubr.bf16.mxu0 0
      %2886 = vmatmul.mubr.bf16.gmra.mrb[0].mxu0 %v2422
      %v2887 = vpop.f32.mrb[0].mxu0
      %v2888 = vadd.f32 %v2269, %v2887
      %v2889 = vpop.f32.mrb[0].mxu0
      %v2890 = vpop.f32.mrb[0].mxu0
      %v2891 = vadd.f32 %v2269, %v2890
      %v2892 = vpop.f32.mrb[0].mxu0
      %2893 = vmatprep.mubr.bf16.mxu0 0
      %2894 = vmatmul.mubr.bf16.gmra.mrb[0].mxu0 %v2425
      %v2895 = vpop.f32.mrb[0].mxu0
      %v2896 = vadd.f32 %v2269, %v2895
      %v2897 = vpop.f32.mrb[0].mxu0
      %v2898 = vpop.f32.mrb[0].mxu0
      %v2899 = vadd.f32 %v2269, %v2898
      %v2900 = vpop.f32.mrb[0].mxu0
      %2901 = vmatprep.mubr.bf16.mxu0 0
      %2902 = vmatmul.mubr.bf16.gmra.mrb[0].mxu0 %v2428
      %v2903 = vpop.f32.mrb[0].mxu0
      %v2904 = vadd.f32 %v2269, %v2903
      %v2905 = vpop.f32.mrb[0].mxu0
      %v2906 = vpop.f32.mrb[0].mxu0
      %v2907 = vadd.f32 %v2269, %v2906
      %v2908 = vpop.f32.mrb[0].mxu0
      %2909 = vmatprep.mubr.bf16.mxu0 0
      %2910 = vmatmul.mubr.bf16.gmra.mrb[0].mxu0 %v2431
      %v2911 = vpop.f32.mrb[0].mxu0
      %v2912 = vadd.f32 %v2269, %v2911
      %v2913 = vpop.f32.mrb[0].mxu0
      %v2914 = vpop.f32.mrb[0].mxu0
      %v2915 = vadd.f32 %v2269, %v2914
      %v2916 = vpop.f32.mrb[0].mxu0
      %2917 = vmatprep.mubr.bf16.mxu0 0
      %2918 = vmatmul.mubr.bf16.gmra.mrb[0].mxu0 %v2434
      %v2919 = vpop.f32.mrb[0].mxu0
      %v2920 = vadd.f32 %v2269, %v2919
      %v2921 = vpop.f32.mrb[0].mxu0
      %v2922 = vpop.f32.mrb[0].mxu0
      %v2923 = vadd.f32 %v2269, %v2922
      %v2924 = vpop.f32.mrb[0].mxu0
      %2925 = vmatprep.mubr.bf16.mxu0 0
      %2926 = vmatmul.mubr.bf16.gmra.mrb[0].mxu0 %v2437
      %v2927 = vpop.f32.mrb[0].mxu0
      %v2928 = vadd.f32 %v2269, %v2927
      %v2929 = vpop.f32.mrb[0].mxu0
      %v2930 = vpop.f32.mrb[0].mxu0
      %v2931 = vadd.f32 %v2269, %v2930
      %v2932 = vpop.f32.mrb[0].mxu0
      %2933 = vmatprep.mubr.bf16.mxu0 0
      %2934 = vmatmul.mubr.bf16.gmra.mrb[0].mxu0 %v2440
      %v2935 = vpop.f32.mrb[0].mxu0
      %v2936 = vadd.f32 %v2269, %v2935
      %v2937 = vpop.f32.mrb[0].mxu0
      %v2938 = vpop.f32.mrb[0].mxu0
      %v2939 = vadd.f32 %v2269, %v2938
      %v2940 = vpop.f32.mrb[0].mxu0
      %2941 = vmatprep.mubr.bf16.mxu0 0
      %2942 = vmatmul.mubr.bf16.gmra.mrb[0].mxu0 %v2443
      %v2943 = vpop.f32.mrb[0].mxu0
      %v2944 = vadd.f32 %v2269, %v2943
      %v2945 = vpop.f32.mrb[0].mxu0
      %v2946 = vpop.f32.mrb[0].mxu0
      %v2947 = vadd.f32 %v2269, %v2946
      %v2948 = vpop.f32.mrb[0].mxu0
      %2949 = vmatprep.mubr.bf16.mxu0 0
      %2950 = vmatmul.mubr.bf16.gmra.mrb[0].mxu0 %v2446
      %v2951 = vpop.f32.mrb[0].mxu0
      %v2952 = vadd.f32 %v2269, %v2951
      %v2953 = vpop.f32.mrb[0].mxu0
      %v2954 = vpop.f32.mrb[0].mxu0
      %v2955 = vadd.f32 %v2269, %v2954
      %v2956 = vpop.f32.mrb[0].mxu0
      %2957 = vmatprep.mubr.bf16.mxu0 0
      %2958 = vmatmul.mubr.bf16.gmra.mrb[0].mxu0 %v2449
      %v2959 = vpop.f32.mrb[0].mxu0
      %v2960 = vadd.f32 %v2269, %v2959
      %v2961 = vpop.f32.mrb[0].mxu0
      %v2962 = vpop.f32.mrb[0].mxu0
      %v2963 = vadd.f32 %v2269, %v2962
      %v2964 = vpop.f32.mrb[0].mxu0
      %2965 = vmatprep.mubr.bf16.mxu0 0
      %2966 = vmatmul.mubr.bf16.gmra.mrb[0].mxu0 %v2452
      %v2967 = vpop.f32.mrb[0].mxu0
      %v2968 = vadd.f32 %v2269, %v2967
      %v2969 = vpop.f32.mrb[0].mxu0
      %v2970 = vpop.f32.mrb[0].mxu0
      %v2971 = vadd.f32 %v2269, %v2970
      %v2972 = vpop.f32.mrb[0].mxu0
      %2973 = vmatprep.mubr.bf16.mxu0 0
      %2974 = vmatmul.mubr.bf16.gmra.mrb[0].mxu0 %v2455
      %v2975 = vpop.f32.mrb[0].mxu0
      %v2976 = vadd.f32 %v2269, %v2975
      %v2977 = vpop.f32.mrb[0].mxu0
      %v2978 = vpop.f32.mrb[0].mxu0
      %v2979 = vadd.f32 %v2269, %v2978
      %v2980 = vpop.f32.mrb[0].mxu0
      %2981 = vmatprep.mubr.bf16.mxu0 0
      %2982 = vmatmul.mubr.bf16.gmra.mrb[0].mxu0 %v2458
      %v2983 = vpop.f32.mrb[0].mxu0
      %v2984 = vadd.f32 %v2269, %v2983
      %v2985 = vpop.f32.mrb[0].mxu0
      %v2986 = vpop.f32.mrb[0].mxu0
      %v2987 = vadd.f32 %v2269, %v2986
      %v2988 = vpop.f32.mrb[0].mxu0
      %2989 = vmatprep.mubr.bf16.mxu0 0
      %2990 = vmatmul.mubr.bf16.gmra.mrb[0].mxu0 %v2461
      %v2991 = vpop.f32.mrb[0].mxu0
      %v2992 = vadd.f32 %v2269, %v2991
      %v2993 = vpop.f32.mrb[0].mxu0
      %v2994 = vpop.f32.mrb[0].mxu0
      %v2995 = vadd.f32 %v2269, %v2994
      %v2996 = vpop.f32.mrb[0].mxu0
      %2997 = vmatprep.mubr.bf16.mxu0 0
      %2998 = vmatmul.mubr.bf16.gmra.mrb[0].mxu0 %v2464
      %v2999 = vpop.f32.mrb[0].mxu0
      %v3000 = vadd.f32 %v2269, %v2999
      %v3001 = vpop.f32.mrb[0].mxu0
      %v3002 = vpop.f32.mrb[0].mxu0
      %v3003 = vadd.f32 %v2269, %v3002
      %v3004 = vpop.f32.mrb[0].mxu0
      %3005 = vmatprep.mubr.bf16.mxu0 0
      %3006 = vmatmul.mubr.bf16.gmra.mrb[0].mxu0 %v2467
      %v3007 = vpop.f32.mrb[0].mxu0
      %v3008 = vadd.f32 %v2269, %v3007
      %v3009 = vpop.f32.mrb[0].mxu0
      %v3010 = vpop.f32.mrb[0].mxu0
      %v3011 = vadd.f32 %v2269, %v3010
      %v3012 = vpop.f32.mrb[0].mxu0
      %3013 = vdwg.mxu0
      %v3014 = vadd.f32 %v2504, 3.0
      %v3015 = vadd.f32 %v2507, 3.0
      %v3016 = vadd.f32 %v2512, 3.0
      %v3017 = vadd.f32 %v2515, 3.0
      %v3018 = vadd.f32 %v2520, 3.0
      %v3019 = vadd.f32 %v2523, 3.0
      %v3020 = vadd.f32 %v2528, 3.0
      %v3021 = vadd.f32 %v2531, 3.0
      %v3022 = vadd.f32 %v2536, 3.0
      %v3023 = vadd.f32 %v2539, 3.0
      %v3024 = vadd.f32 %v2544, 3.0
      %v3025 = vadd.f32 %v2547, 3.0
      %v3026 = vadd.f32 %v2552, 3.0
      %v3027 = vadd.f32 %v2555, 3.0
      %v3028 = vadd.f32 %v2560, 3.0
      %v3029 = vadd.f32 %v2563, 3.0
      %v3030 = vadd.f32 %v2568, 3.0
      %v3031 = vadd.f32 %v2571, 3.0
      %v3032 = vadd.f32 %v2576, 3.0
      %v3033 = vadd.f32 %v2579, 3.0
      %v3034 = vadd.f32 %v2584, 3.0
      %v3035 = vadd.f32 %v2587, 3.0
      %v3036 = vadd.f32 %v2592, 3.0
      %v3037 = vadd.f32 %v2595, 3.0
      %v3038 = vadd.f32 %v2600, 3.0
      %v3039 = vadd.f32 %v2603, 3.0
      %v3040 = vadd.f32 %v2608, 3.0
      %v3041 = vadd.f32 %v2611, 3.0
      %v3042 = vadd.f32 %v2616, 3.0
      %v3043 = vadd.f32 %v2619, 3.0
      %v3044 = vadd.f32 %v2624, 3.0
      %v3045 = vadd.f32 %v2627, 3.0
      %v3046 = vadd.f32 %v2632, 3.0
      %v3047 = vadd.f32 %v2635, 3.0
      %v3048 = vadd.f32 %v2640, 3.0
      %v3049 = vadd.f32 %v2643, 3.0
      %v3050 = vadd.f32 %v2648, 3.0
      %v3051 = vadd.f32 %v2651, 3.0
      %v3052 = vadd.f32 %v2656, 3.0
      %v3053 = vadd.f32 %v2659, 3.0
      %v3054 = vadd.f32 %v2664, 3.0
      %v3055 = vadd.f32 %v2667, 3.0
      %v3056 = vadd.f32 %v2672, 3.0
      %v3057 = vadd.f32 %v2675, 3.0
      %v3058 = vadd.f32 %v2680, 3.0
      %v3059 = vadd.f32 %v2683, 3.0
      %v3060 = vadd.f32 %v2688, 3.0
      %v3061 = vadd.f32 %v2691, 3.0
      %v3062 = vadd.f32 %v2696, 3.0
      %v3063 = vadd.f32 %v2699, 3.0
      %v3064 = vadd.f32 %v2704, 3.0
      %v3065 = vadd.f32 %v2707, 3.0
      %v3066 = vadd.f32 %v2712, 3.0
      %v3067 = vadd.f32 %v2715, 3.0
      %v3068 = vadd.f32 %v2720, 3.0
      %v3069 = vadd.f32 %v2723, 3.0
      %v3070 = vadd.f32 %v2728, 3.0
      %v3071 = vadd.f32 %v2731, 3.0
      %v3072 = vadd.f32 %v2736, 3.0
      %v3073 = vadd.f32 %v2739, 3.0
      %v3074 = vadd.f32 %v2744, 3.0
      %v3075 = vadd.f32 %v2747, 3.0
      %v3076 = vadd.f32 %v2752, 3.0
      %v3077 = vadd.f32 %v2755, 3.0
      %v3078 = vadd.f32 %v2760, 3.0
      %v3079 = vadd.f32 %v2763, 3.0
      %v3080 = vadd.f32 %v2768, 3.0
      %v3081 = vadd.f32 %v2771, 3.0
      %v3082 = vadd.f32 %v2776, 3.0
      %v3083 = vadd.f32 %v2779, 3.0
      %v3084 = vadd.f32 %v2784, 3.0
      %v3085 = vadd.f32 %v2787, 3.0
      %v3086 = vadd.f32 %v2792, 3.0
      %v3087 = vadd.f32 %v2795, 3.0
      %v3088 = vadd.f32 %v2800, 3.0
      %v3089 = vadd.f32 %v2803, 3.0
      %v3090 = vadd.f32 %v2808, 3.0
      %v3091 = vadd.f32 %v2811, 3.0
      %v3092 = vadd.f32 %v2816, 3.0
      %v3093 = vadd.f32 %v2819, 3.0
      %v3094 = vadd.f32 %v2824, 3.0
      %v3095 = vadd.f32 %v2827, 3.0
      %v3096 = vadd.f32 %v2832, 3.0
      %v3097 = vadd.f32 %v2835, 3.0
      %v3098 = vadd.f32 %v2840, 3.0
      %v3099 = vadd.f32 %v2843, 3.0
      %v3100 = vadd.f32 %v2848, 3.0
      %v3101 = vadd.f32 %v2851, 3.0
      %v3102 = vadd.f32 %v2856, 3.0
      %v3103 = vadd.f32 %v2859, 3.0
      %v3104 = vadd.f32 %v2864, 3.0
      %v3105 = vadd.f32 %v2867, 3.0
      %v3106 = vadd.f32 %v2872, 3.0
      %v3107 = vadd.f32 %v2875, 3.0
      %v3108 = vadd.f32 %v2880, 3.0
      %v3109 = vadd.f32 %v2883, 3.0
      %v3110 = vadd.f32 %v2888, 3.0
      %v3111 = vadd.f32 %v2891, 3.0
      %v3112 = vadd.f32 %v2896, 3.0
      %v3113 = vadd.f32 %v2899, 3.0
      %v3114 = vadd.f32 %v2904, 3.0
      %v3115 = vadd.f32 %v2907, 3.0
      %v3116 = vadd.f32 %v2912, 3.0
      %v3117 = vadd.f32 %v2915, 3.0
      %v3118 = vadd.f32 %v2920, 3.0
      %v3119 = vadd.f32 %v2923, 3.0
      %v3120 = vadd.f32 %v2928, 3.0
      %v3121 = vadd.f32 %v2931, 3.0
      %v3122 = vadd.f32 %v2936, 3.0
      %v3123 = vadd.f32 %v2939, 3.0
      %v3124 = vadd.f32 %v2944, 3.0
      %v3125 = vadd.f32 %v2947, 3.0
      %v3126 = vadd.f32 %v2952, 3.0
      %v3127 = vadd.f32 %v2955, 3.0
      %v3128 = vadd.f32 %v2960, 3.0
      %v3129 = vadd.f32 %v2963, 3.0
      %v3130 = vadd.f32 %v2968, 3.0
      %v3131 = vadd.f32 %v2971, 3.0
      %v3132 = vadd.f32 %v2976, 3.0
      %v3133 = vadd.f32 %v2979, 3.0
      %v3134 = vadd.f32 %v2984, 3.0
      %v3135 = vadd.f32 %v2987, 3.0
      %v3136 = vadd.f32 %v2992, 3.0
      %v3137 = vadd.f32 %v2995, 3.0
      %v3138 = vadd.f32 %v3000, 3.0
      %v3139 = vadd.f32 %v3003, 3.0
      %v3140 = vadd.f32 %v3008, 3.0
      %v3141 = vadd.f32 %v3011, 3.0
      %v3142 = vmax.f32 %v3014, 0.0
      %v3143 = vmax.f32 %v3015, 0.0
      %v3144 = vmax.f32 %v3016, 0.0
      %v3145 = vmax.f32 %v3017, 0.0
      %v3146 = vmax.f32 %v3018, 0.0
      %v3147 = vmax.f32 %v3019, 0.0
      %v3148 = vmax.f32 %v3020, 0.0
      %v3149 = vmax.f32 %v3021, 0.0
      %v3150 = vmax.f32 %v3022, 0.0
      %v3151 = vmax.f32 %v3023, 0.0
      %v3152 = vmax.f32 %v3024, 0.0
      %v3153 = vmax.f32 %v3025, 0.0
      %v3154 = vmax.f32 %v3026, 0.0
      %v3155 = vmax.f32 %v3027, 0.0
      %v3156 = vmax.f32 %v3028, 0.0
      %v3157 = vmax.f32 %v3029, 0.0
      %v3158 = vmax.f32 %v3030, 0.0
      %v3159 = vmax.f32 %v3031, 0.0
      %v3160 = vmax.f32 %v3032, 0.0
      %v3161 = vmax.f32 %v3033, 0.0
      %v3162 = vmax.f32 %v3034, 0.0
      %v3163 = vmax.f32 %v3035, 0.0
      %v3164 = vmax.f32 %v3036, 0.0
      %v3165 = vmax.f32 %v3037, 0.0
      %v3166 = vmax.f32 %v3038, 0.0
      %v3167 = vmax.f32 %v3039, 0.0
      %v3168 = vmax.f32 %v3040, 0.0
      %v3169 = vmax.f32 %v3041, 0.0
      %v3170 = vmax.f32 %v3042, 0.0
      %v3171 = vmax.f32 %v3043, 0.0
      %v3172 = vmax.f32 %v3044, 0.0
      %v3173 = vmax.f32 %v3045, 0.0
      %v3174 = vmax.f32 %v3046, 0.0
      %v3175 = vmax.f32 %v3047, 0.0
      %v3176 = vmax.f32 %v3048, 0.0
      %v3177 = vmax.f32 %v3049, 0.0
      %v3178 = vmax.f32 %v3050, 0.0
      %v3179 = vmax.f32 %v3051, 0.0
      %v3180 = vmax.f32 %v3052, 0.0
      %v3181 = vmax.f32 %v3053, 0.0
      %v3182 = vmax.f32 %v3054, 0.0
      %v3183 = vmax.f32 %v3055, 0.0
      %v3184 = vmax.f32 %v3056, 0.0
      %v3185 = vmax.f32 %v3057, 0.0
      %v3186 = vmax.f32 %v3058, 0.0
      %v3187 = vmax.f32 %v3059, 0.0
      %v3188 = vmax.f32 %v3060, 0.0
      %v3189 = vmax.f32 %v3061, 0.0
      %v3190 = vmax.f32 %v3062, 0.0
      %v3191 = vmax.f32 %v3063, 0.0
      %v3192 = vmax.f32 %v3064, 0.0
      %v3193 = vmax.f32 %v3065, 0.0
      %v3194 = vmax.f32 %v3066, 0.0
      %v3195 = vmax.f32 %v3067, 0.0
      %v3196 = vmax.f32 %v3068, 0.0
      %v3197 = vmax.f32 %v3069, 0.0
      %v3198 = vmax.f32 %v3070, 0.0
      %v3199 = vmax.f32 %v3071, 0.0
      %v3200 = vmax.f32 %v3072, 0.0
      %v3201 = vmax.f32 %v3073, 0.0
      %v3202 = vmax.f32 %v3074, 0.0
      %v3203 = vmax.f32 %v3075, 0.0
      %v3204 = vmax.f32 %v3076, 0.0
      %v3205 = vmax.f32 %v3077, 0.0
      %v3206 = vmax.f32 %v3078, 0.0
      %v3207 = vmax.f32 %v3079, 0.0
      %v3208 = vmax.f32 %v3080, 0.0
      %v3209 = vmax.f32 %v3081, 0.0
      %v3210 = vmax.f32 %v3082, 0.0
      %v3211 = vmax.f32 %v3083, 0.0
      %v3212 = vmax.f32 %v3084, 0.0
      %v3213 = vmax.f32 %v3085, 0.0
      %v3214 = vmax.f32 %v3086, 0.0
      %v3215 = vmax.f32 %v3087, 0.0
      %v3216 = vmax.f32 %v3088, 0.0
      %v3217 = vmax.f32 %v3089, 0.0
      %v3218 = vmax.f32 %v3090, 0.0
      %v3219 = vmax.f32 %v3091, 0.0
      %v3220 = vmax.f32 %v3092, 0.0
      %v3221 = vmax.f32 %v3093, 0.0
      %v3222 = vmax.f32 %v3094, 0.0
      %v3223 = vmax.f32 %v3095, 0.0
      %v3224 = vmax.f32 %v3096, 0.0
      %v3225 = vmax.f32 %v3097, 0.0
      %v3226 = vmax.f32 %v3098, 0.0
      %v3227 = vmax.f32 %v3099, 0.0
      %v3228 = vmax.f32 %v3100, 0.0
      %v3229 = vmax.f32 %v3101, 0.0
      %v3230 = vmax.f32 %v3102, 0.0
      %v3231 = vmax.f32 %v3103, 0.0
      %v3232 = vmax.f32 %v3104, 0.0
      %v3233 = vmax.f32 %v3105, 0.0
      %v3234 = vmax.f32 %v3106, 0.0
      %v3235 = vmax.f32 %v3107, 0.0
      %v3236 = vmax.f32 %v3108, 0.0
      %v3237 = vmax.f32 %v3109, 0.0
      %v3238 = vmax.f32 %v3110, 0.0
      %v3239 = vmax.f32 %v3111, 0.0
      %v3240 = vmax.f32 %v3112, 0.0
      %v3241 = vmax.f32 %v3113, 0.0
      %v3242 = vmax.f32 %v3114, 0.0
      %v3243 = vmax.f32 %v3115, 0.0
      %v3244 = vmax.f32 %v3116, 0.0
      %v3245 = vmax.f32 %v3117, 0.0
      %v3246 = vmax.f32 %v3118, 0.0
      %v3247 = vmax.f32 %v3119, 0.0
      %v3248 = vmax.f32 %v3120, 0.0
      %v3249 = vmax.f32 %v3121, 0.0
      %v3250 = vmax.f32 %v3122, 0.0
      %v3251 = vmax.f32 %v3123, 0.0
      %v3252 = vmax.f32 %v3124, 0.0
      %v3253 = vmax.f32 %v3125, 0.0
      %v3254 = vmax.f32 %v3126, 0.0
      %v3255 = vmax.f32 %v3127, 0.0
      %v3256 = vmax.f32 %v3128, 0.0
      %v3257 = vmax.f32 %v3129, 0.0
      %v3258 = vmax.f32 %v3130, 0.0
      %v3259 = vmax.f32 %v3131, 0.0
      %v3260 = vmax.f32 %v3132, 0.0
      %v3261 = vmax.f32 %v3133, 0.0
      %v3262 = vmax.f32 %v3134, 0.0
      %v3263 = vmax.f32 %v3135, 0.0
      %v3264 = vmax.f32 %v3136, 0.0
      %v3265 = vmax.f32 %v3137, 0.0
      %v3266 = vmax.f32 %v3138, 0.0
      %v3267 = vmax.f32 %v3139, 0.0
      %v3268 = vmax.f32 %v3140, 0.0
      %v3269 = vmax.f32 %v3141, 0.0
      %v3270 = vmin.f32 %v3142, 6.0
      %v3271 = vmin.f32 %v3143, 6.0
      %v3272 = vmin.f32 %v3144, 6.0
      %v3273 = vmin.f32 %v3145, 6.0
      %v3274 = vmin.f32 %v3146, 6.0
      %v3275 = vmin.f32 %v3147, 6.0
      %v3276 = vmin.f32 %v3148, 6.0
      %v3277 = vmin.f32 %v3149, 6.0
      %v3278 = vmin.f32 %v3150, 6.0
      %v3279 = vmin.f32 %v3151, 6.0
      %v3280 = vmin.f32 %v3152, 6.0
      %v3281 = vmin.f32 %v3153, 6.0
      %v3282 = vmin.f32 %v3154, 6.0
      %v3283 = vmin.f32 %v3155, 6.0
      %v3284 = vmin.f32 %v3156, 6.0
      %v3285 = vmin.f32 %v3157, 6.0
      %v3286 = vmin.f32 %v3158, 6.0
      %v3287 = vmin.f32 %v3159, 6.0
      %v3288 = vmin.f32 %v3160, 6.0
      %v3289 = vmin.f32 %v3161, 6.0
      %v3290 = vmin.f32 %v3162, 6.0
      %v3291 = vmin.f32 %v3163, 6.0
      %v3292 = vmin.f32 %v3164, 6.0
      %v3293 = vmin.f32 %v3165, 6.0
      %v3294 = vmin.f32 %v3166, 6.0
      %v3295 = vmin.f32 %v3167, 6.0
      %v3296 = vmin.f32 %v3168, 6.0
      %v3297 = vmin.f32 %v3169, 6.0
      %v3298 = vmin.f32 %v3170, 6.0
      %v3299 = vmin.f32 %v3171, 6.0
      %v3300 = vmin.f32 %v3172, 6.0
      %v3301 = vmin.f32 %v3173, 6.0
      %v3302 = vmin.f32 %v3174, 6.0
      %v3303 = vmin.f32 %v3175, 6.0
      %v3304 = vmin.f32 %v3176, 6.0
      %v3305 = vmin.f32 %v3177, 6.0
      %v3306 = vmin.f32 %v3178, 6.0
      %v3307 = vmin.f32 %v3179, 6.0
      %v3308 = vmin.f32 %v3180, 6.0
      %v3309 = vmin.f32 %v3181, 6.0
      %v3310 = vmin.f32 %v3182, 6.0
      %v3311 = vmin.f32 %v3183, 6.0
      %v3312 = vmin.f32 %v3184, 6.0
      %v3313 = vmin.f32 %v3185, 6.0
      %v3314 = vmin.f32 %v3186, 6.0
      %v3315 = vmin.f32 %v3187, 6.0
      %v3316 = vmin.f32 %v3188, 6.0
      %v3317 = vmin.f32 %v3189, 6.0
      %v3318 = vmin.f32 %v3190, 6.0
      %v3319 = vmin.f32 %v3191, 6.0
      %v3320 = vmin.f32 %v3192, 6.0
      %v3321 = vmin.f32 %v3193, 6.0
      %v3322 = vmin.f32 %v3194, 6.0
      %v3323 = vmin.f32 %v3195, 6.0
      %v3324 = vmin.f32 %v3196, 6.0
      %v3325 = vmin.f32 %v3197, 6.0
      %v3326 = vmin.f32 %v3198, 6.0
      %v3327 = vmin.f32 %v3199, 6.0
      %v3328 = vmin.f32 %v3200, 6.0
      %v3329 = vmin.f32 %v3201, 6.0
      %v3330 = vmin.f32 %v3202, 6.0
      %v3331 = vmin.f32 %v3203, 6.0
      %v3332 = vmin.f32 %v3204, 6.0
      %v3333 = vmin.f32 %v3205, 6.0
      %v3334 = vmin.f32 %v3206, 6.0
      %v3335 = vmin.f32 %v3207, 6.0
      %v3336 = vmin.f32 %v3208, 6.0
      %v3337 = vmin.f32 %v3209, 6.0
      %v3338 = vmin.f32 %v3210, 6.0
      %v3339 = vmin.f32 %v3211, 6.0
      %v3340 = vmin.f32 %v3212, 6.0
      %v3341 = vmin.f32 %v3213, 6.0
      %v3342 = vmin.f32 %v3214, 6.0
      %v3343 = vmin.f32 %v3215, 6.0
      %v3344 = vmin.f32 %v3216, 6.0
      %v3345 = vmin.f32 %v3217, 6.0
      %v3346 = vmin.f32 %v3218, 6.0
      %v3347 = vmin.f32 %v3219, 6.0
      %v3348 = vmin.f32 %v3220, 6.0
      %v3349 = vmin.f32 %v3221, 6.0
      %v3350 = vmin.f32 %v3222, 6.0
      %v3351 = vmin.f32 %v3223, 6.0
      %v3352 = vmin.f32 %v3224, 6.0
      %v3353 = vmin.f32 %v3225, 6.0
      %v3354 = vmin.f32 %v3226, 6.0
      %v3355 = vmin.f32 %v3227, 6.0
      %v3356 = vmin.f32 %v3228, 6.0
      %v3357 = vmin.f32 %v3229, 6.0
      %v3358 = vmin.f32 %v3230, 6.0
      %v3359 = vmin.f32 %v3231, 6.0
      %v3360 = vmin.f32 %v3232, 6.0
      %v3361 = vmin.f32 %v3233, 6.0
      %v3362 = vmin.f32 %v3234, 6.0
      %v3363 = vmin.f32 %v3235, 6.0
      %v3364 = vmin.f32 %v3236, 6.0
      %v3365 = vmin.f32 %v3237, 6.0
      %v3366 = vmin.f32 %v3238, 6.0
      %v3367 = vmin.f32 %v3239, 6.0
      %v3368 = vmin.f32 %v3240, 6.0
      %v3369 = vmin.f32 %v3241, 6.0
      %v3370 = vmin.f32 %v3242, 6.0
      %v3371 = vmin.f32 %v3243, 6.0
      %v3372 = vmin.f32 %v3244, 6.0
      %v3373 = vmin.f32 %v3245, 6.0
      %v3374 = vmin.f32 %v3246, 6.0
      %v3375 = vmin.f32 %v3247, 6.0
      %v3376 = vmin.f32 %v3248, 6.0
      %v3377 = vmin.f32 %v3249, 6.0
      %v3378 = vmin.f32 %v3250, 6.0
      %v3379 = vmin.f32 %v3251, 6.0
      %v3380 = vmin.f32 %v3252, 6.0
      %v3381 = vmin.f32 %v3253, 6.0
      %v3382 = vmin.f32 %v3254, 6.0
      %v3383 = vmin.f32 %v3255, 6.0
      %v3384 = vmin.f32 %v3256, 6.0
      %v3385 = vmin.f32 %v3257, 6.0
      %v3386 = vmin.f32 %v3258, 6.0
      %v3387 = vmin.f32 %v3259, 6.0
      %v3388 = vmin.f32 %v3260, 6.0
      %v3389 = vmin.f32 %v3261, 6.0
      %v3390 = vmin.f32 %v3262, 6.0
      %v3391 = vmin.f32 %v3263, 6.0
      %v3392 = vmin.f32 %v3264, 6.0
      %v3393 = vmin.f32 %v3265, 6.0
      %v3394 = vmin.f32 %v3266, 6.0
      %v3395 = vmin.f32 %v3267, 6.0
      %v3396 = vmin.f32 %v3268, 6.0
      %v3397 = vmin.f32 %v3269, 6.0
      %v3398 = vmul.f32 %v2504, %v3270
      %v3399 = vmul.f32 %v2507, %v3271
      %v3400 = vmul.f32 %v2512, %v3272
      %v3401 = vmul.f32 %v2515, %v3273
      %v3402 = vmul.f32 %v2520, %v3274
      %v3403 = vmul.f32 %v2523, %v3275
      %v3404 = vmul.f32 %v2528, %v3276
      %v3405 = vmul.f32 %v2531, %v3277
      %v3406 = vmul.f32 %v2536, %v3278
      %v3407 = vmul.f32 %v2539, %v3279
      %v3408 = vmul.f32 %v2544, %v3280
      %v3409 = vmul.f32 %v2547, %v3281
      %v3410 = vmul.f32 %v2552, %v3282
      %v3411 = vmul.f32 %v2555, %v3283
      %v3412 = vmul.f32 %v2560, %v3284
      %v3413 = vmul.f32 %v2563, %v3285
      %v3414 = vmul.f32 %v2568, %v3286
      %v3415 = vmul.f32 %v2571, %v3287
      %v3416 = vmul.f32 %v2576, %v3288
      %v3417 = vmul.f32 %v2579, %v3289
      %v3418 = vmul.f32 %v2584, %v3290
      %v3419 = vmul.f32 %v2587, %v3291
      %v3420 = vmul.f32 %v2592, %v3292
      %v3421 = vmul.f32 %v2595, %v3293
      %v3422 = vmul.f32 %v2600, %v3294
      %v3423 = vmul.f32 %v2603, %v3295
      %v3424 = vmul.f32 %v2608, %v3296
      %v3425 = vmul.f32 %v2611, %v3297
      %v3426 = vmul.f32 %v2616, %v3298
      %v3427 = vmul.f32 %v2619, %v3299
      %v3428 = vmul.f32 %v2624, %v3300
      %v3429 = vmul.f32 %v2627, %v3301
      %v3430 = vmul.f32 %v2632, %v3302
      %v3431 = vmul.f32 %v2635, %v3303
      %v3432 = vmul.f32 %v2640, %v3304
      %v3433 = vmul.f32 %v2643, %v3305
      %v3434 = vmul.f32 %v2648, %v3306
      %v3435 = vmul.f32 %v2651, %v3307
      %v3436 = vmul.f32 %v2656, %v3308
      %v3437 = vmul.f32 %v2659, %v3309
      %v3438 = vmul.f32 %v2664, %v3310
      %v3439 = vmul.f32 %v2667, %v3311
      %v3440 = vmul.f32 %v2672, %v3312
      %v3441 = vmul.f32 %v2675, %v3313
      %v3442 = vmul.f32 %v2680, %v3314
      %v3443 = vmul.f32 %v2683, %v3315
      %v3444 = vmul.f32 %v2688, %v3316
      %v3445 = vmul.f32 %v2691, %v3317
      %v3446 = vmul.f32 %v2696, %v3318
      %v3447 = vmul.f32 %v2699, %v3319
      %v3448 = vmul.f32 %v2704, %v3320
      %v3449 = vmul.f32 %v2707, %v3321
      %v3450 = vmul.f32 %v2712, %v3322
      %v3451 = vmul.f32 %v2715, %v3323
      %v3452 = vmul.f32 %v2720, %v3324
      %v3453 = vmul.f32 %v2723, %v3325
      %v3454 = vmul.f32 %v2728, %v3326
      %v3455 = vmul.f32 %v2731, %v3327
      %v3456 = vmul.f32 %v2736, %v3328
      %v3457 = vmul.f32 %v2739, %v3329
      %v3458 = vmul.f32 %v2744, %v3330
      %v3459 = vmul.f32 %v2747, %v3331
      %v3460 = vmul.f32 %v2752, %v3332
      %v3461 = vmul.f32 %v2755, %v3333
      %v3462 = vmul.f32 %v2760, %v3334
      %v3463 = vmul.f32 %v2763, %v3335
      %v3464 = vmul.f32 %v2768, %v3336
      %v3465 = vmul.f32 %v2771, %v3337
      %v3466 = vmul.f32 %v2776, %v3338
      %v3467 = vmul.f32 %v2779, %v3339
      %v3468 = vmul.f32 %v2784, %v3340
      %v3469 = vmul.f32 %v2787, %v3341
      %v3470 = vmul.f32 %v2792, %v3342
      %v3471 = vmul.f32 %v2795, %v3343
      %v3472 = vmul.f32 %v2800, %v3344
      %v3473 = vmul.f32 %v2803, %v3345
      %v3474 = vmul.f32 %v2808, %v3346
      %v3475 = vmul.f32 %v2811, %v3347
      %v3476 = vmul.f32 %v2816, %v3348
      %v3477 = vmul.f32 %v2819, %v3349
      %v3478 = vmul.f32 %v2824, %v3350
      %v3479 = vmul.f32 %v2827, %v3351
      %v3480 = vmul.f32 %v2832, %v3352
      %v3481 = vmul.f32 %v2835, %v3353
      %v3482 = vmul.f32 %v2840, %v3354
      %v3483 = vmul.f32 %v2843, %v3355
      %v3484 = vmul.f32 %v2848, %v3356
      %v3485 = vmul.f32 %v2851, %v3357
      %v3486 = vmul.f32 %v2856, %v3358
      %v3487 = vmul.f32 %v2859, %v3359
      %v3488 = vmul.f32 %v2864, %v3360
      %v3489 = vmul.f32 %v2867, %v3361
      %v3490 = vmul.f32 %v2872, %v3362
      %v3491 = vmul.f32 %v2875, %v3363
      %v3492 = vmul.f32 %v2880, %v3364
      %v3493 = vmul.f32 %v2883, %v3365
      %v3494 = vmul.f32 %v2888, %v3366
      %v3495 = vmul.f32 %v2891, %v3367
      %v3496 = vmul.f32 %v2896, %v3368
      %v3497 = vmul.f32 %v2899, %v3369
      %v3498 = vmul.f32 %v2904, %v3370
      %v3499 = vmul.f32 %v2907, %v3371
      %v3500 = vmul.f32 %v2912, %v3372
      %v3501 = vmul.f32 %v2915, %v3373
      %v3502 = vmul.f32 %v2920, %v3374
      %v3503 = vmul.f32 %v2923, %v3375
      %v3504 = vmul.f32 %v2928, %v3376
      %v3505 = vmul.f32 %v2931, %v3377
      %v3506 = vmul.f32 %v2936, %v3378
      %v3507 = vmul.f32 %v2939, %v3379
      %v3508 = vmul.f32 %v2944, %v3380
      %v3509 = vmul.f32 %v2947, %v3381
      %v3510 = vmul.f32 %v2952, %v3382
      %v3511 = vmul.f32 %v2955, %v3383
      %v3512 = vmul.f32 %v2960, %v3384
      %v3513 = vmul.f32 %v2963, %v3385
      %v3514 = vmul.f32 %v2968, %v3386
      %v3515 = vmul.f32 %v2971, %v3387
      %v3516 = vmul.f32 %v2976, %v3388
      %v3517 = vmul.f32 %v2979, %v3389
      %v3518 = vmul.f32 %v2984, %v3390
      %v3519 = vmul.f32 %v2987, %v3391
      %v3520 = vmul.f32 %v2992, %v3392
      %v3521 = vmul.f32 %v2995, %v3393
      %v3522 = vmul.f32 %v3000, %v3394
      %v3523 = vmul.f32 %v3003, %v3395
      %v3524 = vmul.f32 %v3008, %v3396
      %v3525 = vmul.f32 %v3011, %v3397
      %v3526 = vmul.f32 %v3398, 0.16666667
      %v3527 = vmul.f32 %v3399, 0.16666667
      %v3528 = vmul.f32 %v3400, 0.16666667
      %v3529 = vmul.f32 %v3401, 0.16666667
      %v3530 = vmul.f32 %v3402, 0.16666667
      %v3531 = vmul.f32 %v3403, 0.16666667
      %v3532 = vmul.f32 %v3404, 0.16666667
      %v3533 = vmul.f32 %v3405, 0.16666667
      %v3534 = vmul.f32 %v3406, 0.16666667
      %v3535 = vmul.f32 %v3407, 0.16666667
      %v3536 = vmul.f32 %v3408, 0.16666667
      %v3537 = vmul.f32 %v3409, 0.16666667
      %v3538 = vmul.f32 %v3410, 0.16666667
      %v3539 = vmul.f32 %v3411, 0.16666667
      %v3540 = vmul.f32 %v3412, 0.16666667
      %v3541 = vmul.f32 %v3413, 0.16666667
      %v3542 = vmul.f32 %v3414, 0.16666667
      %v3543 = vmul.f32 %v3415, 0.16666667
      %v3544 = vmul.f32 %v3416, 0.16666667
      %v3545 = vmul.f32 %v3417, 0.16666667
      %v3546 = vmul.f32 %v3418, 0.16666667
      %v3547 = vmul.f32 %v3419, 0.16666667
      %v3548 = vmul.f32 %v3420, 0.16666667
      %v3549 = vmul.f32 %v3421, 0.16666667
      %v3550 = vmul.f32 %v3422, 0.16666667
      %v3551 = vmul.f32 %v3423, 0.16666667
      %v3552 = vmul.f32 %v3424, 0.16666667
      %v3553 = vmul.f32 %v3425, 0.16666667
      %v3554 = vmul.f32 %v3426, 0.16666667
      %v3555 = vmul.f32 %v3427, 0.16666667
      %v3556 = vmul.f32 %v3428, 0.16666667
      %v3557 = vmul.f32 %v3429, 0.16666667
      %v3558 = vmul.f32 %v3430, 0.16666667
      %v3559 = vmul.f32 %v3431, 0.16666667
      %v3560 = vmul.f32 %v3432, 0.16666667
      %v3561 = vmul.f32 %v3433, 0.16666667
      %v3562 = vmul.f32 %v3434, 0.16666667
      %v3563 = vmul.f32 %v3435, 0.16666667
      %v3564 = vmul.f32 %v3436, 0.16666667
      %v3565 = vmul.f32 %v3437, 0.16666667
      %v3566 = vmul.f32 %v3438, 0.16666667
      %v3567 = vmul.f32 %v3439, 0.16666667
      %v3568 = vmul.f32 %v3440, 0.16666667
      %v3569 = vmul.f32 %v3441, 0.16666667
      %v3570 = vmul.f32 %v3442, 0.16666667
      %v3571 = vmul.f32 %v3443, 0.16666667
      %v3572 = vmul.f32 %v3444, 0.16666667
      %v3573 = vmul.f32 %v3445, 0.16666667
      %v3574 = vmul.f32 %v3446, 0.16666667
      %v3575 = vmul.f32 %v3447, 0.16666667
      %v3576 = vmul.f32 %v3448, 0.16666667
      %v3577 = vmul.f32 %v3449, 0.16666667
      %v3578 = vmul.f32 %v3450, 0.16666667
      %v3579 = vmul.f32 %v3451, 0.16666667
      %v3580 = vmul.f32 %v3452, 0.16666667
      %v3581 = vmul.f32 %v3453, 0.16666667
      %v3582 = vmul.f32 %v3454, 0.16666667
      %v3583 = vmul.f32 %v3455, 0.16666667
      %v3584 = vmul.f32 %v3456, 0.16666667
      %v3585 = vmul.f32 %v3457, 0.16666667
      %v3586 = vmul.f32 %v3458, 0.16666667
      %v3587 = vmul.f32 %v3459, 0.16666667
      %v3588 = vmul.f32 %v3460, 0.16666667
      %v3589 = vmul.f32 %v3461, 0.16666667
      %v3590 = vmul.f32 %v3462, 0.16666667
      %v3591 = vmul.f32 %v3463, 0.16666667
      %v3592 = vmul.f32 %v3464, 0.16666667
      %v3593 = vmul.f32 %v3465, 0.16666667
      %v3594 = vmul.f32 %v3466, 0.16666667
      %v3595 = vmul.f32 %v3467, 0.16666667
      %v3596 = vmul.f32 %v3468, 0.16666667
      %v3597 = vmul.f32 %v3469, 0.16666667
      %v3598 = vmul.f32 %v3470, 0.16666667
      %v3599 = vmul.f32 %v3471, 0.16666667
      %v3600 = vmul.f32 %v3472, 0.16666667
      %v3601 = vmul.f32 %v3473, 0.16666667
      %v3602 = vmul.f32 %v3474, 0.16666667
      %v3603 = vmul.f32 %v3475, 0.16666667
      %v3604 = vmul.f32 %v3476, 0.16666667
      %v3605 = vmul.f32 %v3477, 0.16666667
      %v3606 = vmul.f32 %v3478, 0.16666667
      %v3607 = vmul.f32 %v3479, 0.16666667
      %v3608 = vmul.f32 %v3480, 0.16666667
      %v3609 = vmul.f32 %v3481, 0.16666667
      %v3610 = vmul.f32 %v3482, 0.16666667
      %v3611 = vmul.f32 %v3483, 0.16666667
      %v3612 = vmul.f32 %v3484, 0.16666667
      %v3613 = vmul.f32 %v3485, 0.16666667
      %v3614 = vmul.f32 %v3486, 0.16666667
      %v3615 = vmul.f32 %v3487, 0.16666667
      %v3616 = vmul.f32 %v3488, 0.16666667
      %v3617 = vmul.f32 %v3489, 0.16666667
      %v3618 = vmul.f32 %v3490, 0.16666667
      %v3619 = vmul.f32 %v3491, 0.16666667
      %v3620 = vmul.f32 %v3492, 0.16666667
      %v3621 = vmul.f32 %v3493, 0.16666667
      %v3622 = vmul.f32 %v3494, 0.16666667
      %v3623 = vmul.f32 %v3495, 0.16666667
      %v3624 = vmul.f32 %v3496, 0.16666667
      %v3625 = vmul.f32 %v3497, 0.16666667
      %v3626 = vmul.f32 %v3498, 0.16666667
      %v3627 = vmul.f32 %v3499, 0.16666667
      %v3628 = vmul.f32 %v3500, 0.16666667
      %v3629 = vmul.f32 %v3501, 0.16666667
      %v3630 = vmul.f32 %v3502, 0.16666667
      %v3631 = vmul.f32 %v3503, 0.16666667
      %v3632 = vmul.f32 %v3504, 0.16666667
      %v3633 = vmul.f32 %v3505, 0.16666667
      %v3634 = vmul.f32 %v3506, 0.16666667
      %v3635 = vmul.f32 %v3507, 0.16666667
      %v3636 = vmul.f32 %v3508, 0.16666667
      %v3637 = vmul.f32 %v3509, 0.16666667
      %v3638 = vmul.f32 %v3510, 0.16666667
      %v3639 = vmul.f32 %v3511, 0.16666667
      %v3640 = vmul.f32 %v3512, 0.16666667
      %v3641 = vmul.f32 %v3513, 0.16666667
      %v3642 = vmul.f32 %v3514, 0.16666667
      %v3643 = vmul.f32 %v3515, 0.16666667
      %v3644 = vmul.f32 %v3516, 0.16666667
      %v3645 = vmul.f32 %v3517, 0.16666667
      %v3646 = vmul.f32 %v3518, 0.16666667
      %v3647 = vmul.f32 %v3519, 0.16666667
      %v3648 = vmul.f32 %v3520, 0.16666667
      %v3649 = vmul.f32 %v3521, 0.16666667
      %v3650 = vmul.f32 %v3522, 0.16666667
      %v3651 = vmul.f32 %v3523, 0.16666667
      %v3652 = vmul.f32 %v3524, 0.16666667
      %v3653 = vmul.f32 %v3525, 0.16666667
      %v3654 = vpack.c.bf16 %v3527, %v3526
      %v3655 = vpack.c.bf16 %v3529, %v3528
      %v3656 = vpack.c.bf16 %v3531, %v3530
      %v3657 = vpack.c.bf16 %v3533, %v3532
      %v3658 = vpack.c.bf16 %v3535, %v3534
      %v3659 = vpack.c.bf16 %v3537, %v3536
      %v3660 = vpack.c.bf16 %v3539, %v3538
      %v3661 = vpack.c.bf16 %v3541, %v3540
      %v3662 = vpack.c.bf16 %v3543, %v3542
      %v3663 = vpack.c.bf16 %v3545, %v3544
      %v3664 = vpack.c.bf16 %v3547, %v3546
      %v3665 = vpack.c.bf16 %v3549, %v3548
      %v3666 = vpack.c.bf16 %v3551, %v3550
      %v3667 = vpack.c.bf16 %v3553, %v3552
      %v3668 = vpack.c.bf16 %v3555, %v3554
      %v3669 = vpack.c.bf16 %v3557, %v3556
      %v3670 = vpack.c.bf16 %v3559, %v3558
      %v3671 = vpack.c.bf16 %v3561, %v3560
      %v3672 = vpack.c.bf16 %v3563, %v3562
      %v3673 = vpack.c.bf16 %v3565, %v3564
      %v3674 = vpack.c.bf16 %v3567, %v3566
      %v3675 = vpack.c.bf16 %v3569, %v3568
      %v3676 = vpack.c.bf16 %v3571, %v3570
      %v3677 = vpack.c.bf16 %v3573, %v3572
      %v3678 = vpack.c.bf16 %v3575, %v3574
      %v3679 = vpack.c.bf16 %v3577, %v3576
      %v3680 = vpack.c.bf16 %v3579, %v3578
      %v3681 = vpack.c.bf16 %v3581, %v3580
      %v3682 = vpack.c.bf16 %v3583, %v3582
      %v3683 = vpack.c.bf16 %v3585, %v3584
      %v3684 = vpack.c.bf16 %v3587, %v3586
      %v3685 = vpack.c.bf16 %v3589, %v3588
      %v3686 = vpack.c.bf16 %v3591, %v3590
      %v3687 = vpack.c.bf16 %v3593, %v3592
      %v3688 = vpack.c.bf16 %v3595, %v3594
      %v3689 = vpack.c.bf16 %v3597, %v3596
      %v3690 = vpack.c.bf16 %v3599, %v3598
      %v3691 = vpack.c.bf16 %v3601, %v3600
      %v3692 = vpack.c.bf16 %v3603, %v3602
      %v3693 = vpack.c.bf16 %v3605, %v3604
      %v3694 = vpack.c.bf16 %v3607, %v3606
      %v3695 = vpack.c.bf16 %v3609, %v3608
      %v3696 = vpack.c.bf16 %v3611, %v3610
      %v3697 = vpack.c.bf16 %v3613, %v3612
      %v3698 = vpack.c.bf16 %v3615, %v3614
      %v3699 = vpack.c.bf16 %v3617, %v3616
      %v3700 = vpack.c.bf16 %v3619, %v3618
      %v3701 = vpack.c.bf16 %v3621, %v3620
      %v3702 = vpack.c.bf16 %v3623, %v3622
      %v3703 = vpack.c.bf16 %v3625, %v3624
      %v3704 = vpack.c.bf16 %v3627, %v3626
      %v3705 = vpack.c.bf16 %v3629, %v3628
      %v3706 = vpack.c.bf16 %v3631, %v3630
      %v3707 = vpack.c.bf16 %v3633, %v3632
      %v3708 = vpack.c.bf16 %v3635, %v3634
      %v3709 = vpack.c.bf16 %v3637, %v3636
      %v3710 = vpack.c.bf16 %v3639, %v3638
      %v3711 = vpack.c.bf16 %v3641, %v3640
      %v3712 = vpack.c.bf16 %v3643, %v3642
      %v3713 = vpack.c.bf16 %v3645, %v3644
      %v3714 = vpack.c.bf16 %v3647, %v3646
      %v3715 = vpack.c.bf16 %v3649, %v3648
      %v3716 = vpack.c.bf16 %v3651, %v3650
      %v3717 = vpack.c.bf16 %v3653, %v3652
      %vm3718 = vcmask 519168
      %3719 = vst.msk [vmem:[#allocation2] sm:$0xf] %vm3718, 0
      %3720 = vst.msk [vmem:[#allocation2 + $0x4] sm:$0xf] %vm3718, 0
      %3721 = vst.msk [vmem:[#allocation2 + $0x8] sm:$0xf] %vm3718, 0
      %3722 = vst.msk [vmem:[#allocation2 + $0xc] sm:$0xf] %vm3718, 0
      %3723 = vst.msk [vmem:[#allocation2 + $0x10] sm:$0xf] %vm3718, 0
      %3724 = vst.msk [vmem:[#allocation2 + $0x94] sm:$0xf] %vm3718, 0
      %3725 = vst.msk [vmem:[#allocation2 + $0x98] sm:$0xf] %vm3718, 0
      %3726 = vst.msk [vmem:[#allocation2 + $0x9c] sm:$0xf] %vm3718, 0
      %3727 = vst.msk [vmem:[#allocation2 + $0xa0] sm:$0xf] %vm3718, 0
      %3728 = vst.msk [vmem:[#allocation2 + $0xa4] sm:$0xf] %vm3718, 0
      %3729 = vst.msk [vmem:[#allocation2 + $0x128] sm:$0xf] %vm3718, 0
      %3730 = vst.msk [vmem:[#allocation2 + $0x12c] sm:$0xf] %vm3718, 0
      %3731 = vst.msk [vmem:[#allocation2 + $0x130] sm:$0xf] %vm3718, 0
      %3732 = vst.msk [vmem:[#allocation2 + $0x134] sm:$0xf] %vm3718, 0
      %3733 = vst.msk [vmem:[#allocation2 + $0x138] sm:$0xf] %vm3718, 0
      %3734 = vst.msk [vmem:[#allocation2 + $0x1bc] sm:$0xf] %vm3718, 0
      %3735 = vst.msk [vmem:[#allocation2 + $0x1c0] sm:$0xf] %vm3718, 0
      %3736 = vst.msk [vmem:[#allocation2 + $0x1c4] sm:$0xf] %vm3718, 0
      %3737 = vst.msk [vmem:[#allocation2 + $0x1c8] sm:$0xf] %vm3718, 0
      %3738 = vst.msk [vmem:[#allocation2 + $0x1cc] sm:$0xf] %vm3718, 0
      %v3755 = vunpack.c.l.b16 %v3654
      %v3756 = vunpack.c.h.b16 %v3654
      %v3757 = vunpack.c.l.b16 %v3655
      %v3758 = vunpack.c.h.b16 %v3655
      %v3759 = vunpack.c.l.b16 %v3656
      %v3760 = vunpack.c.h.b16 %v3656
      %v3761 = vunpack.c.l.b16 %v3657
      %v3762 = vunpack.c.h.b16 %v3657
      %v3763 = vunpack.c.l.b16 %v3658
      %v3764 = vunpack.c.h.b16 %v3658
      %v3765 = vunpack.c.l.b16 %v3659
      %v3766 = vunpack.c.h.b16 %v3659
      %v3767 = vunpack.c.l.b16 %v3660
      %v3768 = vunpack.c.h.b16 %v3660
      %v3769 = vunpack.c.l.b16 %v3661
      %v3770 = vunpack.c.h.b16 %v3661
      %v3771 = vunpack.c.l.b16 %v3662
      %v3772 = vunpack.c.h.b16 %v3662
      %v3773 = vunpack.c.l.b16 %v3663
      %v3774 = vunpack.c.h.b16 %v3663
      %v3775 = vunpack.c.l.b16 %v3664
      %v3776 = vunpack.c.h.b16 %v3664
      %v3777 = vunpack.c.l.b16 %v3665
      %v3778 = vunpack.c.h.b16 %v3665
      %v3779 = vunpack.c.l.b16 %v3666
      %v3780 = vunpack.c.h.b16 %v3666
      %v3781 = vunpack.c.l.b16 %v3667
      %v3782 = vunpack.c.h.b16 %v3667
      %v3783 = vunpack.c.l.b16 %v3668
      %v3784 = vunpack.c.h.b16 %v3668
      %v3785 = vunpack.c.l.b16 %v3669
      %v3786 = vunpack.c.h.b16 %v3669
      %v3787 = vpack.c.b16 %v3755, %v3755
      %v3788 = vpack.c.b16 %v3756, %v3756
      %v3789 = vpack.c.b16 %v3757, %v3757
      %v3790 = vpack.c.b16 %v3758, %v3758
      %v3791 = vpack.c.b16 %v3759, %v3759
      %v3792 = vpack.c.b16 %v3760, %v3760
      %v3793 = vpack.c.b16 %v3761, %v3761
      %v3794 = vpack.c.b16 %v3762, %v3762
      %v3795 = vpack.c.b16 %v3763, %v3763
      %v3796 = vpack.c.b16 %v3764, %v3764
      %v3797 = vpack.c.b16 %v3765, %v3765
      %v3798 = vpack.c.b16 %v3766, %v3766
      %v3799 = vpack.c.b16 %v3767, %v3767
      %v3800 = vpack.c.b16 %v3768, %v3768
      %v3801 = vpack.c.b16 %v3769, %v3769
      %v3802 = vpack.c.b16 %v3770, %v3770
      %v3803 = vpack.c.b16 %v3771, %v3771
      %v3804 = vpack.c.b16 %v3772, %v3772
      %v3805 = vpack.c.b16 %v3773, %v3773
      %v3806 = vpack.c.b16 %v3774, %v3774
      %v3807 = vpack.c.b16 %v3775, %v3775
      %v3808 = vpack.c.b16 %v3776, %v3776
      %v3809 = vpack.c.b16 %v3777, %v3777
      %v3810 = vpack.c.b16 %v3778, %v3778
      %v3811 = vpack.c.b16 %v3779, %v3779
      %v3812 = vpack.c.b16 %v3780, %v3780
      %v3813 = vpack.c.b16 %v3781, %v3781
      %v3814 = vpack.c.b16 %v3782, %v3782
      %v3815 = vpack.c.b16 %v3783, %v3783
      %v3816 = vpack.c.b16 %v3784, %v3784
      %v3817 = vpack.c.b16 %v3785, %v3785
      %v3818 = vpack.c.b16 %v3786, %v3786
      %3851 = vst.msk [vmem:[#allocation2 + $0x14] sm:$0xf] %vm3718, %v3787
      %3852 = vst.msk [vmem:[#allocation2 + $0x18] sm:$0xf] %vm3718, %v3788
      %3853 = vst.msk [vmem:[#allocation2 + $0x1c] sm:$0xf] %vm3718, %v3789
      %3854 = vst.msk [vmem:[#allocation2 + $0x20] sm:$0xf] %vm3718, %v3790
      %3855 = vst.msk [vmem:[#allocation2 + $0x24] sm:$0xf] %vm3718, %v3791
      %3856 = vst.msk [vmem:[#allocation2 + $0x28] sm:$0xf] %vm3718, %v3792
      %3857 = vst.msk [vmem:[#allocation2 + $0x2c] sm:$0xf] %vm3718, %v3793
      %3858 = vst.msk [vmem:[#allocation2 + $0x30] sm:$0xf] %vm3718, %v3794
      %3859 = vst.msk [vmem:[#allocation2 + $0x34] sm:$0xf] %vm3718, %v3795
      %3860 = vst.msk [vmem:[#allocation2 + $0x38] sm:$0xf] %vm3718, %v3796
      %3861 = vst.msk [vmem:[#allocation2 + $0x3c] sm:$0xf] %vm3718, %v3797
      %3862 = vst.msk [vmem:[#allocation2 + $0x40] sm:$0xf] %vm3718, %v3798
      %3863 = vst.msk [vmem:[#allocation2 + $0x44] sm:$0xf] %vm3718, %v3799
      %3864 = vst.msk [vmem:[#allocation2 + $0x48] sm:$0xf] %vm3718, %v3800
      %3865 = vst.msk [vmem:[#allocation2 + $0x4c] sm:$0xf] %vm3718, %v3801
      %3866 = vst.msk [vmem:[#allocation2 + $0x50] sm:$0xf] %vm3718, %v3802
      %3867 = vst.msk [vmem:[#allocation2 + $0x54] sm:$0xf] %vm3718, %v3803
      %3868 = vst.msk [vmem:[#allocation2 + $0x58] sm:$0xf] %vm3718, %v3804
      %3869 = vst.msk [vmem:[#allocation2 + $0x5c] sm:$0xf] %vm3718, %v3805
      %3870 = vst.msk [vmem:[#allocation2 + $0x60] sm:$0xf] %vm3718, %v3806
      %3871 = vst.msk [vmem:[#allocation2 + $0x64] sm:$0xf] %vm3718, %v3807
      %3872 = vst.msk [vmem:[#allocation2 + $0x68] sm:$0xf] %vm3718, %v3808
      %3873 = vst.msk [vmem:[#allocation2 + $0x6c] sm:$0xf] %vm3718, %v3809
      %3874 = vst.msk [vmem:[#allocation2 + $0x70] sm:$0xf] %vm3718, %v3810
      %3875 = vst.msk [vmem:[#allocation2 + $0x74] sm:$0xf] %vm3718, %v3811
      %3876 = vst.msk [vmem:[#allocation2 + $0x78] sm:$0xf] %vm3718, %v3812
      %3877 = vst.msk [vmem:[#allocation2 + $0x7c] sm:$0xf] %vm3718, %v3813
      %3878 = vst.msk [vmem:[#allocation2 + $0x80] sm:$0xf] %vm3718, %v3814
      %3879 = vst.msk [vmem:[#allocation2 + $0x84] sm:$0xf] %vm3718, %v3815
      %3880 = vst.msk [vmem:[#allocation2 + $0x88] sm:$0xf] %vm3718, %v3816
      %3881 = vst.msk [vmem:[#allocation2 + $0x8c] sm:$0xf] %vm3718, %v3817
      %3882 = vst.msk [vmem:[#allocation2 + $0x90] sm:$0xf] %vm3718, %v3818
      %v3899 = vunpack.c.l.b16 %v3670
      %v3900 = vunpack.c.h.b16 %v3670
      %v3901 = vunpack.c.l.b16 %v3671
      %v3902 = vunpack.c.h.b16 %v3671
      %v3903 = vunpack.c.l.b16 %v3672
      %v3904 = vunpack.c.h.b16 %v3672
      %v3905 = vunpack.c.l.b16 %v3673
      %v3906 = vunpack.c.h.b16 %v3673
      %v3907 = vunpack.c.l.b16 %v3674
      %v3908 = vunpack.c.h.b16 %v3674
      %v3909 = vunpack.c.l.b16 %v3675
      %v3910 = vunpack.c.h.b16 %v3675
      %v3911 = vunpack.c.l.b16 %v3676
      %v3912 = vunpack.c.h.b16 %v3676
      %v3913 = vunpack.c.l.b16 %v3677
      %v3914 = vunpack.c.h.b16 %v3677
      %v3915 = vunpack.c.l.b16 %v3678
      %v3916 = vunpack.c.h.b16 %v3678
      %v3917 = vunpack.c.l.b16 %v3679
      %v3918 = vunpack.c.h.b16 %v3679
      %v3919 = vunpack.c.l.b16 %v3680
      %v3920 = vunpack.c.h.b16 %v3680
      %v3921 = vunpack.c.l.b16 %v3681
      %v3922 = vunpack.c.h.b16 %v3681
      %v3923 = vunpack.c.l.b16 %v3682
      %v3924 = vunpack.c.h.b16 %v3682
      %v3925 = vunpack.c.l.b16 %v3683
      %v3926 = vunpack.c.h.b16 %v3683
      %v3927 = vunpack.c.l.b16 %v3684
      %v3928 = vunpack.c.h.b16 %v3684
      %v3929 = vunpack.c.l.b16 %v3685
      %v3930 = vunpack.c.h.b16 %v3685
      %v3931 = vpack.c.b16 %v3899, %v3899
      %v3932 = vpack.c.b16 %v3900, %v3900
      %v3933 = vpack.c.b16 %v3901, %v3901
      %v3934 = vpack.c.b16 %v3902, %v3902
      %v3935 = vpack.c.b16 %v3903, %v3903
      %v3936 = vpack.c.b16 %v3904, %v3904
      %v3937 = vpack.c.b16 %v3905, %v3905
      %v3938 = vpack.c.b16 %v3906, %v3906
      %v3939 = vpack.c.b16 %v3907, %v3907
      %v3940 = vpack.c.b16 %v3908, %v3908
      %v3941 = vpack.c.b16 %v3909, %v3909
      %v3942 = vpack.c.b16 %v3910, %v3910
      %v3943 = vpack.c.b16 %v3911, %v3911
      %v3944 = vpack.c.b16 %v3912, %v3912
      %v3945 = vpack.c.b16 %v3913, %v3913
      %v3946 = vpack.c.b16 %v3914, %v3914
      %v3947 = vpack.c.b16 %v3915, %v3915
      %v3948 = vpack.c.b16 %v3916, %v3916
      %v3949 = vpack.c.b16 %v3917, %v3917
      %v3950 = vpack.c.b16 %v3918, %v3918
      %v3951 = vpack.c.b16 %v3919, %v3919
      %v3952 = vpack.c.b16 %v3920, %v3920
      %v3953 = vpack.c.b16 %v3921, %v3921
      %v3954 = vpack.c.b16 %v3922, %v3922
      %v3955 = vpack.c.b16 %v3923, %v3923
      %v3956 = vpack.c.b16 %v3924, %v3924
      %v3957 = vpack.c.b16 %v3925, %v3925
      %v3958 = vpack.c.b16 %v3926, %v3926
      %v3959 = vpack.c.b16 %v3927, %v3927
      %v3960 = vpack.c.b16 %v3928, %v3928
      %v3961 = vpack.c.b16 %v3929, %v3929
      %v3962 = vpack.c.b16 %v3930, %v3930
      %s3995 = scalar_lea.vmem [#allocation2], 148
      %3996 = vst.msk [vmem:[%s3995 + $0x14] sm:$0xf] %vm3718, %v3931
      %3997 = vst.msk [vmem:[%s3995 + $0x18] sm:$0xf] %vm3718, %v3932
      %3998 = vst.msk [vmem:[%s3995 + $0x1c] sm:$0xf] %vm3718, %v3933
      %3999 = vst.msk [vmem:[%s3995 + $0x20] sm:$0xf] %vm3718, %v3934
      %4000 = vst.msk [vmem:[%s3995 + $0x24] sm:$0xf] %vm3718, %v3935
      %4001 = vst.msk [vmem:[%s3995 + $0x28] sm:$0xf] %vm3718, %v3936
      %4002 = vst.msk [vmem:[%s3995 + $0x2c] sm:$0xf] %vm3718, %v3937
      %4003 = vst.msk [vmem:[%s3995 + $0x30] sm:$0xf] %vm3718, %v3938
      %4004 = vst.msk [vmem:[%s3995 + $0x34] sm:$0xf] %vm3718, %v3939
      %4005 = vst.msk [vmem:[%s3995 + $0x38] sm:$0xf] %vm3718, %v3940
      %4006 = vst.msk [vmem:[%s3995 + $0x3c] sm:$0xf] %vm3718, %v3941
      %4007 = vst.msk [vmem:[%s3995 + $0x40] sm:$0xf] %vm3718, %v3942
      %4008 = vst.msk [vmem:[%s3995 + $0x44] sm:$0xf] %vm3718, %v3943
      %4009 = vst.msk [vmem:[%s3995 + $0x48] sm:$0xf] %vm3718, %v3944
      %4010 = vst.msk [vmem:[%s3995 + $0x4c] sm:$0xf] %vm3718, %v3945
      %4011 = vst.msk [vmem:[%s3995 + $0x50] sm:$0xf] %vm3718, %v3946
      %4012 = vst.msk [vmem:[%s3995 + $0x54] sm:$0xf] %vm3718, %v3947
      %4013 = vst.msk [vmem:[%s3995 + $0x58] sm:$0xf] %vm3718, %v3948
      %4014 = vst.msk [vmem:[%s3995 + $0x5c] sm:$0xf] %vm3718, %v3949
      %4015 = vst.msk [vmem:[%s3995 + $0x60] sm:$0xf] %vm3718, %v3950
      %4016 = vst.msk [vmem:[%s3995 + $0x64] sm:$0xf] %vm3718, %v3951
      %4017 = vst.msk [vmem:[%s3995 + $0x68] sm:$0xf] %vm3718, %v3952
      %4018 = vst.msk [vmem:[%s3995 + $0x6c] sm:$0xf] %vm3718, %v3953
      %4019 = vst.msk [vmem:[%s3995 + $0x70] sm:$0xf] %vm3718, %v3954
      %4020 = vst.msk [vmem:[%s3995 + $0x74] sm:$0xf] %vm3718, %v3955
      %4021 = vst.msk [vmem:[%s3995 + $0x78] sm:$0xf] %vm3718, %v3956
      %4022 = vst.msk [vmem:[%s3995 + $0x7c] sm:$0xf] %vm3718, %v3957
      %4023 = vst.msk [vmem:[%s3995 + $0x80] sm:$0xf] %vm3718, %v3958
      %4024 = vst.msk [vmem:[%s3995 + $0x84] sm:$0xf] %vm3718, %v3959
      %4025 = vst.msk [vmem:[%s3995 + $0x88] sm:$0xf] %vm3718, %v3960
      %4026 = vst.msk [vmem:[%s3995 + $0x8c] sm:$0xf] %vm3718, %v3961
      %4027 = vst.msk [vmem:[%s3995 + $0x90] sm:$0xf] %vm3718, %v3962
      %v4044 = vunpack.c.l.b16 %v3686
      %v4045 = vunpack.c.h.b16 %v3686
      %v4046 = vunpack.c.l.b16 %v3687
      %v4047 = vunpack.c.h.b16 %v3687
      %v4048 = vunpack.c.l.b16 %v3688
      %v4049 = vunpack.c.h.b16 %v3688
      %v4050 = vunpack.c.l.b16 %v3689
      %v4051 = vunpack.c.h.b16 %v3689
      %v4052 = vunpack.c.l.b16 %v3690
      %v4053 = vunpack.c.h.b16 %v3690
      %v4054 = vunpack.c.l.b16 %v3691
      %v4055 = vunpack.c.h.b16 %v3691
      %v4056 = vunpack.c.l.b16 %v3692
      %v4057 = vunpack.c.h.b16 %v3692
      %v4058 = vunpack.c.l.b16 %v3693
      %v4059 = vunpack.c.h.b16 %v3693
      %v4060 = vunpack.c.l.b16 %v3694
      %v4061 = vunpack.c.h.b16 %v3694
      %v4062 = vunpack.c.l.b16 %v3695
      %v4063 = vunpack.c.h.b16 %v3695
      %v4064 = vunpack.c.l.b16 %v3696
      %v4065 = vunpack.c.h.b16 %v3696
      %v4066 = vunpack.c.l.b16 %v3697
      %v4067 = vunpack.c.h.b16 %v3697
      %v4068 = vunpack.c.l.b16 %v3698
      %v4069 = vunpack.c.h.b16 %v3698
      %v4070 = vunpack.c.l.b16 %v3699
      %v4071 = vunpack.c.h.b16 %v3699
      %v4072 = vunpack.c.l.b16 %v3700
      %v4073 = vunpack.c.h.b16 %v3700
      %v4074 = vunpack.c.l.b16 %v3701
      %v4075 = vunpack.c.h.b16 %v3701
      %v4076 = vpack.c.b16 %v4044, %v4044
      %v4077 = vpack.c.b16 %v4045, %v4045
      %v4078 = vpack.c.b16 %v4046, %v4046
      %v4079 = vpack.c.b16 %v4047, %v4047
      %v4080 = vpack.c.b16 %v4048, %v4048
      %v4081 = vpack.c.b16 %v4049, %v4049
      %v4082 = vpack.c.b16 %v4050, %v4050
      %v4083 = vpack.c.b16 %v4051, %v4051
      %v4084 = vpack.c.b16 %v4052, %v4052
      %v4085 = vpack.c.b16 %v4053, %v4053
      %v4086 = vpack.c.b16 %v4054, %v4054
      %v4087 = vpack.c.b16 %v4055, %v4055
      %v4088 = vpack.c.b16 %v4056, %v4056
      %v4089 = vpack.c.b16 %v4057, %v4057
      %v4090 = vpack.c.b16 %v4058, %v4058
      %v4091 = vpack.c.b16 %v4059, %v4059
      %v4092 = vpack.c.b16 %v4060, %v4060
      %v4093 = vpack.c.b16 %v4061, %v4061
      %v4094 = vpack.c.b16 %v4062, %v4062
      %v4095 = vpack.c.b16 %v4063, %v4063
      %v4096 = vpack.c.b16 %v4064, %v4064
      %v4097 = vpack.c.b16 %v4065, %v4065
      %v4098 = vpack.c.b16 %v4066, %v4066
      %v4099 = vpack.c.b16 %v4067, %v4067
      %v4100 = vpack.c.b16 %v4068, %v4068
      %v4101 = vpack.c.b16 %v4069, %v4069
      %v4102 = vpack.c.b16 %v4070, %v4070
      %v4103 = vpack.c.b16 %v4071, %v4071
      %v4104 = vpack.c.b16 %v4072, %v4072
      %v4105 = vpack.c.b16 %v4073, %v4073
      %v4106 = vpack.c.b16 %v4074, %v4074
      %v4107 = vpack.c.b16 %v4075, %v4075
      %s4140 = scalar_lea.vmem [#allocation2], 296
      %4141 = vst.msk [vmem:[%s4140 + $0x14] sm:$0xf] %vm3718, %v4076
      %4142 = vst.msk [vmem:[%s4140 + $0x18] sm:$0xf] %vm3718, %v4077
      %4143 = vst.msk [vmem:[%s4140 + $0x1c] sm:$0xf] %vm3718, %v4078
      %4144 = vst.msk [vmem:[%s4140 + $0x20] sm:$0xf] %vm3718, %v4079
      %4145 = vst.msk [vmem:[%s4140 + $0x24] sm:$0xf] %vm3718, %v4080
      %4146 = vst.msk [vmem:[%s4140 + $0x28] sm:$0xf] %vm3718, %v4081
      %4147 = vst.msk [vmem:[%s4140 + $0x2c] sm:$0xf] %vm3718, %v4082
      %4148 = vst.msk [vmem:[%s4140 + $0x30] sm:$0xf] %vm3718, %v4083
      %4149 = vst.msk [vmem:[%s4140 + $0x34] sm:$0xf] %vm3718, %v4084
      %4150 = vst.msk [vmem:[%s4140 + $0x38] sm:$0xf] %vm3718, %v4085
      %4151 = vst.msk [vmem:[%s4140 + $0x3c] sm:$0xf] %vm3718, %v4086
      %4152 = vst.msk [vmem:[%s4140 + $0x40] sm:$0xf] %vm3718, %v4087
      %4153 = vst.msk [vmem:[%s4140 + $0x44] sm:$0xf] %vm3718, %v4088
      %4154 = vst.msk [vmem:[%s4140 + $0x48] sm:$0xf] %vm3718, %v4089
      %4155 = vst.msk [vmem:[%s4140 + $0x4c] sm:$0xf] %vm3718, %v4090
      %4156 = vst.msk [vmem:[%s4140 + $0x50] sm:$0xf] %vm3718, %v4091
      %4157 = vst.msk [vmem:[%s4140 + $0x54] sm:$0xf] %vm3718, %v4092
      %4158 = vst.msk [vmem:[%s4140 + $0x58] sm:$0xf] %vm3718, %v4093
      %4159 = vst.msk [vmem:[%s4140 + $0x5c] sm:$0xf] %vm3718, %v4094
      %4160 = vst.msk [vmem:[%s4140 + $0x60] sm:$0xf] %vm3718, %v4095
      %4161 = vst.msk [vmem:[%s4140 + $0x64] sm:$0xf] %vm3718, %v4096
      %4162 = vst.msk [vmem:[%s4140 + $0x68] sm:$0xf] %vm3718, %v4097
      %4163 = vst.msk [vmem:[%s4140 + $0x6c] sm:$0xf] %vm3718, %v4098
      %4164 = vst.msk [vmem:[%s4140 + $0x70] sm:$0xf] %vm3718, %v4099
      %4165 = vst.msk [vmem:[%s4140 + $0x74] sm:$0xf] %vm3718, %v4100
      %4166 = vst.msk [vmem:[%s4140 + $0x78] sm:$0xf] %vm3718, %v4101
      %4167 = vst.msk [vmem:[%s4140 + $0x7c] sm:$0xf] %vm3718, %v4102
      %4168 = vst.msk [vmem:[%s4140 + $0x80] sm:$0xf] %vm3718, %v4103
      %4169 = vst.msk [vmem:[%s4140 + $0x84] sm:$0xf] %vm3718, %v4104
      %4170 = vst.msk [vmem:[%s4140 + $0x88] sm:$0xf] %vm3718, %v4105
      %4171 = vst.msk [vmem:[%s4140 + $0x8c] sm:$0xf] %vm3718, %v4106
      %4172 = vst.msk [vmem:[%s4140 + $0x90] sm:$0xf] %vm3718, %v4107
      %v4189 = vunpack.c.l.b16 %v3702
      %v4190 = vunpack.c.h.b16 %v3702
      %v4191 = vunpack.c.l.b16 %v3703
      %v4192 = vunpack.c.h.b16 %v3703
      %v4193 = vunpack.c.l.b16 %v3704
      %v4194 = vunpack.c.h.b16 %v3704
      %v4195 = vunpack.c.l.b16 %v3705
      %v4196 = vunpack.c.h.b16 %v3705
      %v4197 = vunpack.c.l.b16 %v3706
      %v4198 = vunpack.c.h.b16 %v3706
      %v4199 = vunpack.c.l.b16 %v3707
      %v4200 = vunpack.c.h.b16 %v3707
      %v4201 = vunpack.c.l.b16 %v3708
      %v4202 = vunpack.c.h.b16 %v3708
      %v4203 = vunpack.c.l.b16 %v3709
      %v4204 = vunpack.c.h.b16 %v3709
      %v4205 = vunpack.c.l.b16 %v3710
      %v4206 = vunpack.c.h.b16 %v3710
      %v4207 = vunpack.c.l.b16 %v3711
      %v4208 = vunpack.c.h.b16 %v3711
      %v4209 = vunpack.c.l.b16 %v3712
      %v4210 = vunpack.c.h.b16 %v3712
      %v4211 = vunpack.c.l.b16 %v3713
      %v4212 = vunpack.c.h.b16 %v3713
      %v4213 = vunpack.c.l.b16 %v3714
      %v4214 = vunpack.c.h.b16 %v3714
      %v4215 = vunpack.c.l.b16 %v3715
      %v4216 = vunpack.c.h.b16 %v3715
      %v4217 = vunpack.c.l.b16 %v3716
      %v4218 = vunpack.c.h.b16 %v3716
      %v4219 = vunpack.c.l.b16 %v3717
      %v4220 = vunpack.c.h.b16 %v3717
      %v4221 = vpack.c.b16 %v4189, %v4189
      %v4222 = vpack.c.b16 %v4190, %v4190
      %v4223 = vpack.c.b16 %v4191, %v4191
      %v4224 = vpack.c.b16 %v4192, %v4192
      %v4225 = vpack.c.b16 %v4193, %v4193
      %v4226 = vpack.c.b16 %v4194, %v4194
      %v4227 = vpack.c.b16 %v4195, %v4195
      %v4228 = vpack.c.b16 %v4196, %v4196
      %v4229 = vpack.c.b16 %v4197, %v4197
      %v4230 = vpack.c.b16 %v4198, %v4198
      %v4231 = vpack.c.b16 %v4199, %v4199
      %v4232 = vpack.c.b16 %v4200, %v4200
      %v4233 = vpack.c.b16 %v4201, %v4201
      %v4234 = vpack.c.b16 %v4202, %v4202
      %v4235 = vpack.c.b16 %v4203, %v4203
      %v4236 = vpack.c.b16 %v4204, %v4204
      %v4237 = vpack.c.b16 %v4205, %v4205
      %v4238 = vpack.c.b16 %v4206, %v4206
      %v4239 = vpack.c.b16 %v4207, %v4207
      %v4240 = vpack.c.b16 %v4208, %v4208
      %v4241 = vpack.c.b16 %v4209, %v4209
      %v4242 = vpack.c.b16 %v4210, %v4210
      %v4243 = vpack.c.b16 %v4211, %v4211
      %v4244 = vpack.c.b16 %v4212, %v4212
      %v4245 = vpack.c.b16 %v4213, %v4213
      %v4246 = vpack.c.b16 %v4214, %v4214
      %v4247 = vpack.c.b16 %v4215, %v4215
      %v4248 = vpack.c.b16 %v4216, %v4216
      %v4249 = vpack.c.b16 %v4217, %v4217
      %v4250 = vpack.c.b16 %v4218, %v4218
      %v4251 = vpack.c.b16 %v4219, %v4219
      %v4252 = vpack.c.b16 %v4220, %v4220
      %s4285 = scalar_lea.vmem [#allocation2], 444
      %4286 = vst.msk [vmem:[%s4285 + $0x14] sm:$0xf] %vm3718, %v4221
      %4287 = vst.msk [vmem:[%s4285 + $0x18] sm:$0xf] %vm3718, %v4222
      %4288 = vst.msk [vmem:[%s4285 + $0x1c] sm:$0xf] %vm3718, %v4223
      %4289 = vst.msk [vmem:[%s4285 + $0x20] sm:$0xf] %vm3718, %v4224
      %4290 = vst.msk [vmem:[%s4285 + $0x24] sm:$0xf] %vm3718, %v4225
      %4291 = vst.msk [vmem:[%s4285 + $0x28] sm:$0xf] %vm3718, %v4226
      %4292 = vst.msk [vmem:[%s4285 + $0x2c] sm:$0xf] %vm3718, %v4227
      %4293 = vst.msk [vmem:[%s4285 + $0x30] sm:$0xf] %vm3718, %v4228
      %4294 = vst.msk [vmem:[%s4285 + $0x34] sm:$0xf] %vm3718, %v4229
      %4295 = vst.msk [vmem:[%s4285 + $0x38] sm:$0xf] %vm3718, %v4230
      %4296 = vst.msk [vmem:[%s4285 + $0x3c] sm:$0xf] %vm3718, %v4231
      %4297 = vst.msk [vmem:[%s4285 + $0x40] sm:$0xf] %vm3718, %v4232
      %4298 = vst.msk [vmem:[%s4285 + $0x44] sm:$0xf] %vm3718, %v4233
      %4299 = vst.msk [vmem:[%s4285 + $0x48] sm:$0xf] %vm3718, %v4234
      %4300 = vst.msk [vmem:[%s4285 + $0x4c] sm:$0xf] %vm3718, %v4235
      %4301 = vst.msk [vmem:[%s4285 + $0x50] sm:$0xf] %vm3718, %v4236
      %4302 = vst.msk [vmem:[%s4285 + $0x54] sm:$0xf] %vm3718, %v4237
      %4303 = vst.msk [vmem:[%s4285 + $0x58] sm:$0xf] %vm3718, %v4238
      %4304 = vst.msk [vmem:[%s4285 + $0x5c] sm:$0xf] %vm3718, %v4239
      %4305 = vst.msk [vmem:[%s4285 + $0x60] sm:$0xf] %vm3718, %v4240
      %4306 = vst.msk [vmem:[%s4285 + $0x64] sm:$0xf] %vm3718, %v4241
      %4307 = vst.msk [vmem:[%s4285 + $0x68] sm:$0xf] %vm3718, %v4242
      %4308 = vst.msk [vmem:[%s4285 + $0x6c] sm:$0xf] %vm3718, %v4243
      %4309 = vst.msk [vmem:[%s4285 + $0x70] sm:$0xf] %vm3718, %v4244
      %4310 = vst.msk [vmem:[%s4285 + $0x74] sm:$0xf] %vm3718, %v4245
      %4311 = vst.msk [vmem:[%s4285 + $0x78] sm:$0xf] %vm3718, %v4246
      %4312 = vst.msk [vmem:[%s4285 + $0x7c] sm:$0xf] %vm3718, %v4247
      %4313 = vst.msk [vmem:[%s4285 + $0x80] sm:$0xf] %vm3718, %v4248
      %4314 = vst.msk [vmem:[%s4285 + $0x84] sm:$0xf] %vm3718, %v4249
      %4315 = vst.msk [vmem:[%s4285 + $0x88] sm:$0xf] %vm3718, %v4250
      %4316 = vst.msk [vmem:[%s4285 + $0x8c] sm:$0xf] %vm3718, %v4251
      %4317 = vst.msk [vmem:[%s4285 + $0x90] sm:$0xf] %vm3718, %v4252
      %v4318 = vld [vmem:[%s6] sm:$0xff]
      %v4319 = vld [vmem:[%s6 + $0x8] sm:$0x1]
      %v4320 = vld [vmem:[%s1] sm:$0xff]
      %v4321 = vld [vmem:[%s1 + $0x8] sm:$0xff]
      %v4322 = vld [vmem:[%s1 + $0x10] sm:$0xff]
      %v4323 = vld [vmem:[%s1 + $0x18] sm:$0xff]
      %v4324 = vld [vmem:[%s1 + $0x20] sm:$0xff]
      %v4325 = vld [vmem:[%s1 + $0x28] sm:$0xff]
      %v4326 = vld [vmem:[%s1 + $0x30] sm:$0xff]
      %v4327 = vld [vmem:[%s1 + $0x38] sm:$0xff]
      %v4328 = vld [vmem:[%s1 + $0x40] sm:$0xff]
      %v4329 = vld [vmem:[%s1 + $0x48] sm:$0xff]
      %v4330 = vld [vmem:[%s1 + $0x50] sm:$0xff]
      %v4331 = vld [vmem:[%s1 + $0x58] sm:$0xff]
      %v4332 = vld [vmem:[%s1 + $0x60] sm:$0xff]
      %v4333 = vld [vmem:[%s1 + $0x68] sm:$0xff]
      %v4334 = vld [vmem:[%s1 + $0x70] sm:$0xff]
      %v4335 = vld [vmem:[%s1 + $0x78] sm:$0xff]
      %v4336 = vld [vmem:[%s1 + $0x80] sm:$0xff]
      %v4337 = vld [vmem:[%s1 + $0x88] sm:$0xff]
      %v4338 = vld [vmem:[%s1 + $0x90] sm:$0xff]
      %v4339 = vld [vmem:[%s1 + $0x98] sm:$0xff]
      %v4340 = vld [vmem:[%s1 + $0xa0] sm:$0xff]
      %v4341 = vld [vmem:[%s1 + $0xa8] sm:$0xff]
      %v4342 = vld [vmem:[%s1 + $0xb0] sm:$0xff]
      %v4343 = vld [vmem:[%s1 + $0xb8] sm:$0xff]
      %v4344 = vld [vmem:[%s1 + $0xc0] sm:$0xff]
      %v4345 = vld [vmem:[%s1 + $0xc8] sm:$0xff]
      %v4346 = vld [vmem:[%s1 + $0xd0] sm:$0xff]
      %v4347 = vld [vmem:[%s1 + $0xd8] sm:$0xff]
      %v4348 = vld [vmem:[%s1 + $0xe0] sm:$0xff]
      %v4349 = vld [vmem:[%s1 + $0xe8] sm:$0xff]
      %v4350 = vld [vmem:[%s1 + $0xf0] sm:$0xff]
      %v4351 = vld [vmem:[%s1 + $0xf8] sm:$0xff]
      %v4352 = vld [vmem:[%s7] sm:$0x1]
      %v4353 = vld [vmem:[#allocation2 + $0x14] sm:$0xf]
      %v4354 = vld [vmem:[#allocation2 + $0x18] sm:$0xf]
      %v4355 = vld [vmem:[#allocation2 + $0x1c] sm:$0xf]
      %v4356 = vld [vmem:[#allocation2 + $0x20] sm:$0xf]
      %v4357 = vld [vmem:[#allocation2 + $0x24] sm:$0xf]
      %v4358 = vld [vmem:[#allocation2 + $0x28] sm:$0xf]
      %v4359 = vld [vmem:[#allocation2 + $0x2c] sm:$0xf]
      %v4360 = vld [vmem:[#allocation2 + $0x30] sm:$0xf]
      %v4361 = vld [vmem:[#allocation2 + $0x34] sm:$0xf]
      %v4362 = vld [vmem:[#allocation2 + $0x38] sm:$0xf]
      %v4363 = vld [vmem:[#allocation2 + $0x3c] sm:$0xf]
      %v4364 = vld [vmem:[#allocation2 + $0x40] sm:$0xf]
      %v4365 = vld [vmem:[#allocation2 + $0x44] sm:$0xf]
      %v4366 = vld [vmem:[#allocation2 + $0x48] sm:$0xf]
      %v4367 = vld [vmem:[#allocation2 + $0x4c] sm:$0xf]
      %v4368 = vld [vmem:[#allocation2 + $0x50] sm:$0xf]
      %v4369 = vld [vmem:[#allocation2 + $0x54] sm:$0xf]
      %v4370 = vld [vmem:[#allocation2 + $0x58] sm:$0xf]
      %v4371 = vld [vmem:[#allocation2 + $0x5c] sm:$0xf]
      %v4372 = vld [vmem:[#allocation2 + $0x60] sm:$0xf]
      %v4373 = vld [vmem:[#allocation2 + $0x64] sm:$0xf]
      %v4374 = vld [vmem:[#allocation2 + $0x68] sm:$0xf]
      %v4375 = vld [vmem:[#allocation2 + $0x6c] sm:$0xf]
      %v4376 = vld [vmem:[#allocation2 + $0x70] sm:$0xf]
      %v4377 = vld [vmem:[#allocation2 + $0x74] sm:$0xf]
      %v4378 = vld [vmem:[#allocation2 + $0x78] sm:$0xf]
      %v4379 = vld [vmem:[#allocation2 + $0x7c] sm:$0xf]
      %v4380 = vld [vmem:[#allocation2 + $0x80] sm:$0xf]
      %v4381 = vld [vmem:[#allocation2 + $0x84] sm:$0xf]
      %v4382 = vld [vmem:[#allocation2 + $0x88] sm:$0xf]
      %v4383 = vld [vmem:[#allocation2 + $0x8c] sm:$0xf]
      %v4384 = vld [vmem:[#allocation2 + $0x90] sm:$0xf]
      %v4385 = vunpack.c.l.bf16 %v4353
      %v4386 = vunpack.c.l.bf16 %v4354
      %v4387 = vunpack.c.l.bf16 %v4355
      %v4388 = vunpack.c.l.bf16 %v4356
      %v4389 = vunpack.c.l.bf16 %v4357
      %v4390 = vunpack.c.l.bf16 %v4358
      %v4391 = vunpack.c.l.bf16 %v4359
      %v4392 = vunpack.c.l.bf16 %v4360
      %v4393 = vunpack.c.l.bf16 %v4361
      %v4394 = vunpack.c.l.bf16 %v4362
      %v4395 = vunpack.c.l.bf16 %v4363
      %v4396 = vunpack.c.l.bf16 %v4364
      %v4397 = vunpack.c.l.bf16 %v4365
      %v4398 = vunpack.c.l.bf16 %v4366
      %v4399 = vunpack.c.l.bf16 %v4367
      %v4400 = vunpack.c.l.bf16 %v4368
      %v4401 = vunpack.c.l.bf16 %v4369
      %v4402 = vunpack.c.l.bf16 %v4370
      %v4403 = vunpack.c.l.bf16 %v4371
      %v4404 = vunpack.c.l.bf16 %v4372
      %v4405 = vunpack.c.l.bf16 %v4373
      %v4406 = vunpack.c.l.bf16 %v4374
      %v4407 = vunpack.c.l.bf16 %v4375
      %v4408 = vunpack.c.l.bf16 %v4376
      %v4409 = vunpack.c.l.bf16 %v4377
      %v4410 = vunpack.c.l.bf16 %v4378
      %v4411 = vunpack.c.l.bf16 %v4379
      %v4412 = vunpack.c.l.bf16 %v4380
      %v4413 = vunpack.c.l.bf16 %v4381
      %v4414 = vunpack.c.l.bf16 %v4382
      %v4415 = vunpack.c.l.bf16 %v4383
      %v4416 = vunpack.c.l.bf16 %v4384
      %v4417 = vlaneseq
      %v4418 = vshrl.u32 %v4417, 7
      %v4419 = vsub.s32 4, %v4418
      %v4420 = vrot.slane %v4318, %v4419
      %v4421 = vmul.f32 %v4385, %v4420
      %v4422 = vmul.f32 %v4386, %v4420
      %v4423 = vmul.f32 %v4387, %v4420
      %v4424 = vmul.f32 %v4388, %v4420
      %v4425 = vmul.f32 %v4389, %v4420
      %v4426 = vmul.f32 %v4390, %v4420
      %v4427 = vmul.f32 %v4391, %v4420
      %v4428 = vmul.f32 %v4392, %v4420
      %v4429 = vmul.f32 %v4393, %v4420
      %v4430 = vmul.f32 %v4394, %v4420
      %v4431 = vmul.f32 %v4395, %v4420
      %v4432 = vmul.f32 %v4396, %v4420
      %v4433 = vmul.f32 %v4397, %v4420
      %v4434 = vmul.f32 %v4398, %v4420
      %v4435 = vmul.f32 %v4399, %v4420
      %v4436 = vmul.f32 %v4400, %v4420
      %v4437 = vmul.f32 %v4401, %v4420
      %v4438 = vmul.f32 %v4402, %v4420
      %v4439 = vmul.f32 %v4403, %v4420
      %v4440 = vmul.f32 %v4404, %v4420
      %v4441 = vmul.f32 %v4405, %v4420
      %v4442 = vmul.f32 %v4406, %v4420
      %v4443 = vmul.f32 %v4407, %v4420
      %v4444 = vmul.f32 %v4408, %v4420
      %v4445 = vmul.f32 %v4409, %v4420
      %v4446 = vmul.f32 %v4410, %v4420
      %v4447 = vmul.f32 %v4411, %v4420
      %v4448 = vmul.f32 %v4412, %v4420
      %v4449 = vmul.f32 %v4413, %v4420
      %v4450 = vmul.f32 %v4414, %v4420
      %v4451 = vmul.f32 %v4415, %v4420
      %v4452 = vmul.f32 %v4416, %v4420
      %v4454 = vlaneseq
      %v4455 = vshrl.u32 %v4454, 7
      %v4456 = vsub.s32 0, %v4455
      %v4457 = vrot.slane %v4352, %v4456
      %v4459 = vadd.f32 %v4457, %v4421
      %v4460 = vadd.f32 %v4457, %v4422
      %v4461 = vadd.f32 %v4457, %v4423
      %v4462 = vadd.f32 %v4457, %v4424
      %v4463 = vadd.f32 %v4457, %v4425
      %v4464 = vadd.f32 %v4457, %v4426
      %v4465 = vadd.f32 %v4457, %v4427
      %v4466 = vadd.f32 %v4457, %v4428
      %v4467 = vadd.f32 %v4457, %v4429
      %v4468 = vadd.f32 %v4457, %v4430
      %v4469 = vadd.f32 %v4457, %v4431
      %v4470 = vadd.f32 %v4457, %v4432
      %v4471 = vadd.f32 %v4457, %v4433
      %v4472 = vadd.f32 %v4457, %v4434
      %v4473 = vadd.f32 %v4457, %v4435
      %v4474 = vadd.f32 %v4457, %v4436
      %v4475 = vadd.f32 %v4457, %v4437
      %v4476 = vadd.f32 %v4457, %v4438
      %v4477 = vadd.f32 %v4457, %v4439
      %v4478 = vadd.f32 %v4457, %v4440
      %v4479 = vadd.f32 %v4457, %v4441
      %v4480 = vadd.f32 %v4457, %v4442
      %v4481 = vadd.f32 %v4457, %v4443
      %v4482 = vadd.f32 %v4457, %v4444
      %v4483 = vadd.f32 %v4457, %v4445
      %v4484 = vadd.f32 %v4457, %v4446
      %v4485 = vadd.f32 %v4457, %v4447
      %v4486 = vadd.f32 %v4457, %v4448
      %v4487 = vadd.f32 %v4457, %v4449
      %v4488 = vadd.f32 %v4457, %v4450
      %v4489 = vadd.f32 %v4457, %v4451
      %v4490 = vadd.f32 %v4457, %v4452
      %v4491 = vld [vmem:[%s3995 + $0x14] sm:$0xf]
      %v4492 = vld [vmem:[%s3995 + $0x18] sm:$0xf]
      %v4493 = vld [vmem:[%s3995 + $0x1c] sm:$0xf]
      %v4494 = vld [vmem:[%s3995 + $0x20] sm:$0xf]
      %v4495 = vld [vmem:[%s3995 + $0x24] sm:$0xf]
      %v4496 = vld [vmem:[%s3995 + $0x28] sm:$0xf]
      %v4497 = vld [vmem:[%s3995 + $0x2c] sm:$0xf]
      %v4498 = vld [vmem:[%s3995 + $0x30] sm:$0xf]
      %v4499 = vld [vmem:[%s3995 + $0x34] sm:$0xf]
      %v4500 = vld [vmem:[%s3995 + $0x38] sm:$0xf]
      %v4501 = vld [vmem:[%s3995 + $0x3c] sm:$0xf]
      %v4502 = vld [vmem:[%s3995 + $0x40] sm:$0xf]
      %v4503 = vld [vmem:[%s3995 + $0x44] sm:$0xf]
      %v4504 = vld [vmem:[%s3995 + $0x48] sm:$0xf]
      %v4505 = vld [vmem:[%s3995 + $0x4c] sm:$0xf]
      %v4506 = vld [vmem:[%s3995 + $0x50] sm:$0xf]
      %v4507 = vld [vmem:[%s3995 + $0x54] sm:$0xf]
      %v4508 = vld [vmem:[%s3995 + $0x58] sm:$0xf]
      %v4509 = vld [vmem:[%s3995 + $0x5c] sm:$0xf]
      %v4510 = vld [vmem:[%s3995 + $0x60] sm:$0xf]
      %v4511 = vld [vmem:[%s3995 + $0x64] sm:$0xf]
      %v4512 = vld [vmem:[%s3995 + $0x68] sm:$0xf]
      %v4513 = vld [vmem:[%s3995 + $0x6c] sm:$0xf]
      %v4514 = vld [vmem:[%s3995 + $0x70] sm:$0xf]
      %v4515 = vld [vmem:[%s3995 + $0x74] sm:$0xf]
      %v4516 = vld [vmem:[%s3995 + $0x78] sm:$0xf]
      %v4517 = vld [vmem:[%s3995 + $0x7c] sm:$0xf]
      %v4518 = vld [vmem:[%s3995 + $0x80] sm:$0xf]
      %v4519 = vld [vmem:[%s3995 + $0x84] sm:$0xf]
      %v4520 = vld [vmem:[%s3995 + $0x88] sm:$0xf]
      %v4521 = vld [vmem:[%s3995 + $0x8c] sm:$0xf]
      %v4522 = vld [vmem:[%s3995 + $0x90] sm:$0xf]
      %v4523 = vunpack.c.l.bf16 %v4491
      %v4524 = vunpack.c.l.bf16 %v4492
      %v4525 = vunpack.c.l.bf16 %v4493
      %v4526 = vunpack.c.l.bf16 %v4494
      %v4527 = vunpack.c.l.bf16 %v4495
      %v4528 = vunpack.c.l.bf16 %v4496
      %v4529 = vunpack.c.l.bf16 %v4497
      %v4530 = vunpack.c.l.bf16 %v4498
      %v4531 = vunpack.c.l.bf16 %v4499
      %v4532 = vunpack.c.l.bf16 %v4500
      %v4533 = vunpack.c.l.bf16 %v4501
      %v4534 = vunpack.c.l.bf16 %v4502
      %v4535 = vunpack.c.l.bf16 %v4503
      %v4536 = vunpack.c.l.bf16 %v4504
      %v4537 = vunpack.c.l.bf16 %v4505
      %v4538 = vunpack.c.l.bf16 %v4506
      %v4539 = vunpack.c.l.bf16 %v4507
      %v4540 = vunpack.c.l.bf16 %v4508
      %v4541 = vunpack.c.l.bf16 %v4509
      %v4542 = vunpack.c.l.bf16 %v4510
      %v4543 = vunpack.c.l.bf16 %v4511
      %v4544 = vunpack.c.l.bf16 %v4512
      %v4545 = vunpack.c.l.bf16 %v4513
      %v4546 = vunpack.c.l.bf16 %v4514
      %v4547 = vunpack.c.l.bf16 %v4515
      %v4548 = vunpack.c.l.bf16 %v4516
      %v4549 = vunpack.c.l.bf16 %v4517
      %v4550 = vunpack.c.l.bf16 %v4518
      %v4551 = vunpack.c.l.bf16 %v4519
      %v4552 = vunpack.c.l.bf16 %v4520
      %v4553 = vunpack.c.l.bf16 %v4521
      %v4554 = vunpack.c.l.bf16 %v4522
      %v4555 = vlaneseq
      %v4556 = vshrl.u32 %v4555, 7
      %v4557 = vsub.s32 5, %v4556
      %v4558 = vrot.slane %v4318, %v4557
      %v4559 = vmul.f32 %v4523, %v4558
      %v4560 = vmul.f32 %v4524, %v4558
      %v4561 = vmul.f32 %v4525, %v4558
      %v4562 = vmul.f32 %v4526, %v4558
      %v4563 = vmul.f32 %v4527, %v4558
      %v4564 = vmul.f32 %v4528, %v4558
      %v4565 = vmul.f32 %v4529, %v4558
      %v4566 = vmul.f32 %v4530, %v4558
      %v4567 = vmul.f32 %v4531, %v4558
      %v4568 = vmul.f32 %v4532, %v4558
      %v4569 = vmul.f32 %v4533, %v4558
      %v4570 = vmul.f32 %v4534, %v4558
      %v4571 = vmul.f32 %v4535, %v4558
      %v4572 = vmul.f32 %v4536, %v4558
      %v4573 = vmul.f32 %v4537, %v4558
      %v4574 = vmul.f32 %v4538, %v4558
      %v4575 = vmul.f32 %v4539, %v4558
      %v4576 = vmul.f32 %v4540, %v4558
      %v4577 = vmul.f32 %v4541, %v4558
      %v4578 = vmul.f32 %v4542, %v4558
      %v4579 = vmul.f32 %v4543, %v4558
      %v4580 = vmul.f32 %v4544, %v4558
      %v4581 = vmul.f32 %v4545, %v4558
      %v4582 = vmul.f32 %v4546, %v4558
      %v4583 = vmul.f32 %v4547, %v4558
      %v4584 = vmul.f32 %v4548, %v4558
      %v4585 = vmul.f32 %v4549, %v4558
      %v4586 = vmul.f32 %v4550, %v4558
      %v4587 = vmul.f32 %v4551, %v4558
      %v4588 = vmul.f32 %v4552, %v4558
      %v4589 = vmul.f32 %v4553, %v4558
      %v4590 = vmul.f32 %v4554, %v4558
      %v4591 = vadd.f32 %v4459, %v4559
      %v4592 = vadd.f32 %v4460, %v4560
      %v4593 = vadd.f32 %v4461, %v4561
      %v4594 = vadd.f32 %v4462, %v4562
      %v4595 = vadd.f32 %v4463, %v4563
      %v4596 = vadd.f32 %v4464, %v4564
      %v4597 = vadd.f32 %v4465, %v4565
      %v4598 = vadd.f32 %v4466, %v4566
      %v4599 = vadd.f32 %v4467, %v4567
      %v4600 = vadd.f32 %v4468, %v4568
      %v4601 = vadd.f32 %v4469, %v4569
      %v4602 = vadd.f32 %v4470, %v4570
      %v4603 = vadd.f32 %v4471, %v4571
      %v4604 = vadd.f32 %v4472, %v4572
      %v4605 = vadd.f32 %v4473, %v4573
      %v4606 = vadd.f32 %v4474, %v4574
      %v4607 = vadd.f32 %v4475, %v4575
      %v4608 = vadd.f32 %v4476, %v4576
      %v4609 = vadd.f32 %v4477, %v4577
      %v4610 = vadd.f32 %v4478, %v4578
      %v4611 = vadd.f32 %v4479, %v4579
      %v4612 = vadd.f32 %v4480, %v4580
      %v4613 = vadd.f32 %v4481, %v4581
      %v4614 = vadd.f32 %v4482, %v4582
      %v4615 = vadd.f32 %v4483, %v4583
      %v4616 = vadd.f32 %v4484, %v4584
      %v4617 = vadd.f32 %v4485, %v4585
      %v4618 = vadd.f32 %v4486, %v4586
      %v4619 = vadd.f32 %v4487, %v4587
      %v4620 = vadd.f32 %v4488, %v4588
      %v4621 = vadd.f32 %v4489, %v4589
      %v4622 = vadd.f32 %v4490, %v4590
      %v4623 = vld [vmem:[%s4140 + $0x14] sm:$0xf]
      %v4624 = vld [vmem:[%s4140 + $0x18] sm:$0xf]
      %v4625 = vld [vmem:[%s4140 + $0x1c] sm:$0xf]
      %v4626 = vld [vmem:[%s4140 + $0x20] sm:$0xf]
      %v4627 = vld [vmem:[%s4140 + $0x24] sm:$0xf]
      %v4628 = vld [vmem:[%s4140 + $0x28] sm:$0xf]
      %v4629 = vld [vmem:[%s4140 + $0x2c] sm:$0xf]
      %v4630 = vld [vmem:[%s4140 + $0x30] sm:$0xf]
      %v4631 = vld [vmem:[%s4140 + $0x34] sm:$0xf]
      %v4632 = vld [vmem:[%s4140 + $0x38] sm:$0xf]
      %v4633 = vld [vmem:[%s4140 + $0x3c] sm:$0xf]
      %v4634 = vld [vmem:[%s4140 + $0x40] sm:$0xf]
      %v4635 = vld [vmem:[%s4140 + $0x44] sm:$0xf]
      %v4636 = vld [vmem:[%s4140 + $0x48] sm:$0xf]
      %v4637 = vld [vmem:[%s4140 + $0x4c] sm:$0xf]
      %v4638 = vld [vmem:[%s4140 + $0x50] sm:$0xf]
      %v4639 = vld [vmem:[%s4140 + $0x54] sm:$0xf]
      %v4640 = vld [vmem:[%s4140 + $0x58] sm:$0xf]
      %v4641 = vld [vmem:[%s4140 + $0x5c] sm:$0xf]
      %v4642 = vld [vmem:[%s4140 + $0x60] sm:$0xf]
      %v4643 = vld [vmem:[%s4140 + $0x64] sm:$0xf]
      %v4644 = vld [vmem:[%s4140 + $0x68] sm:$0xf]
      %v4645 = vld [vmem:[%s4140 + $0x6c] sm:$0xf]
      %v4646 = vld [vmem:[%s4140 + $0x70] sm:$0xf]
      %v4647 = vld [vmem:[%s4140 + $0x74] sm:$0xf]
      %v4648 = vld [vmem:[%s4140 + $0x78] sm:$0xf]
      %v4649 = vld [vmem:[%s4140 + $0x7c] sm:$0xf]
      %v4650 = vld [vmem:[%s4140 + $0x80] sm:$0xf]
      %v4651 = vld [vmem:[%s4140 + $0x84] sm:$0xf]
      %v4652 = vld [vmem:[%s4140 + $0x88] sm:$0xf]
      %v4653 = vld [vmem:[%s4140 + $0x8c] sm:$0xf]
      %v4654 = vld [vmem:[%s4140 + $0x90] sm:$0xf]
      %v4655 = vunpack.c.l.bf16 %v4623
      %v4656 = vunpack.c.l.bf16 %v4624
      %v4657 = vunpack.c.l.bf16 %v4625
      %v4658 = vunpack.c.l.bf16 %v4626
      %v4659 = vunpack.c.l.bf16 %v4627
      %v4660 = vunpack.c.l.bf16 %v4628
      %v4661 = vunpack.c.l.bf16 %v4629
      %v4662 = vunpack.c.l.bf16 %v4630
      %v4663 = vunpack.c.l.bf16 %v4631
      %v4664 = vunpack.c.l.bf16 %v4632
      %v4665 = vunpack.c.l.bf16 %v4633
      %v4666 = vunpack.c.l.bf16 %v4634
      %v4667 = vunpack.c.l.bf16 %v4635
      %v4668 = vunpack.c.l.bf16 %v4636
      %v4669 = vunpack.c.l.bf16 %v4637
      %v4670 = vunpack.c.l.bf16 %v4638
      %v4671 = vunpack.c.l.bf16 %v4639
      %v4672 = vunpack.c.l.bf16 %v4640
      %v4673 = vunpack.c.l.bf16 %v4641
      %v4674 = vunpack.c.l.bf16 %v4642
      %v4675 = vunpack.c.l.bf16 %v4643
      %v4676 = vunpack.c.l.bf16 %v4644
      %v4677 = vunpack.c.l.bf16 %v4645
      %v4678 = vunpack.c.l.bf16 %v4646
      %v4679 = vunpack.c.l.bf16 %v4647
      %v4680 = vunpack.c.l.bf16 %v4648
      %v4681 = vunpack.c.l.bf16 %v4649
      %v4682 = vunpack.c.l.bf16 %v4650
      %v4683 = vunpack.c.l.bf16 %v4651
      %v4684 = vunpack.c.l.bf16 %v4652
      %v4685 = vunpack.c.l.bf16 %v4653
      %v4686 = vunpack.c.l.bf16 %v4654
      %v4687 = vlaneseq
      %v4688 = vshrl.u32 %v4687, 7
      %v4689 = vsub.s32 7, %v4688
      %v4690 = vrot.slane %v4318, %v4689
      %v4691 = vmul.f32 %v4655, %v4690
      %v4692 = vmul.f32 %v4656, %v4690
      %v4693 = vmul.f32 %v4657, %v4690
      %v4694 = vmul.f32 %v4658, %v4690
      %v4695 = vmul.f32 %v4659, %v4690
      %v4696 = vmul.f32 %v4660, %v4690
      %v4697 = vmul.f32 %v4661, %v4690
      %v4698 = vmul.f32 %v4662, %v4690
      %v4699 = vmul.f32 %v4663, %v4690
      %v4700 = vmul.f32 %v4664, %v4690
      %v4701 = vmul.f32 %v4665, %v4690
      %v4702 = vmul.f32 %v4666, %v4690
      %v4703 = vmul.f32 %v4667, %v4690
      %v4704 = vmul.f32 %v4668, %v4690
      %v4705 = vmul.f32 %v4669, %v4690
      %v4706 = vmul.f32 %v4670, %v4690
      %v4707 = vmul.f32 %v4671, %v4690
      %v4708 = vmul.f32 %v4672, %v4690
      %v4709 = vmul.f32 %v4673, %v4690
      %v4710 = vmul.f32 %v4674, %v4690
      %v4711 = vmul.f32 %v4675, %v4690
      %v4712 = vmul.f32 %v4676, %v4690
      %v4713 = vmul.f32 %v4677, %v4690
      %v4714 = vmul.f32 %v4678, %v4690
      %v4715 = vmul.f32 %v4679, %v4690
      %v4716 = vmul.f32 %v4680, %v4690
      %v4717 = vmul.f32 %v4681, %v4690
      %v4718 = vmul.f32 %v4682, %v4690
      %v4719 = vmul.f32 %v4683, %v4690
      %v4720 = vmul.f32 %v4684, %v4690
      %v4721 = vmul.f32 %v4685, %v4690
      %v4722 = vmul.f32 %v4686, %v4690
      %v4723 = vadd.f32 %v4591, %v4691
      %v4724 = vadd.f32 %v4592, %v4692
      %v4725 = vadd.f32 %v4593, %v4693
      %v4726 = vadd.f32 %v4594, %v4694
      %v4727 = vadd.f32 %v4595, %v4695
      %v4728 = vadd.f32 %v4596, %v4696
      %v4729 = vadd.f32 %v4597, %v4697
      %v4730 = vadd.f32 %v4598, %v4698
      %v4731 = vadd.f32 %v4599, %v4699
      %v4732 = vadd.f32 %v4600, %v4700
      %v4733 = vadd.f32 %v4601, %v4701
      %v4734 = vadd.f32 %v4602, %v4702
      %v4735 = vadd.f32 %v4603, %v4703
      %v4736 = vadd.f32 %v4604, %v4704
      %v4737 = vadd.f32 %v4605, %v4705
      %v4738 = vadd.f32 %v4606, %v4706
      %v4739 = vadd.f32 %v4607, %v4707
      %v4740 = vadd.f32 %v4608, %v4708
      %v4741 = vadd.f32 %v4609, %v4709
      %v4742 = vadd.f32 %v4610, %v4710
      %v4743 = vadd.f32 %v4611, %v4711
      %v4744 = vadd.f32 %v4612, %v4712
      %v4745 = vadd.f32 %v4613, %v4713
      %v4746 = vadd.f32 %v4614, %v4714
      %v4747 = vadd.f32 %v4615, %v4715
      %v4748 = vadd.f32 %v4616, %v4716
      %v4749 = vadd.f32 %v4617, %v4717
      %v4750 = vadd.f32 %v4618, %v4718
      %v4751 = vadd.f32 %v4619, %v4719
      %v4752 = vadd.f32 %v4620, %v4720
      %v4753 = vadd.f32 %v4621, %v4721
      %v4754 = vadd.f32 %v4622, %v4722
      %v4755 = vld [vmem:[%s4140 + $0x4] sm:$0xf]
      %v4756 = vld [vmem:[%s4140 + $0x8] sm:$0xf]
      %v4757 = vld [vmem:[%s4140 + $0xc] sm:$0xf]
      %v4758 = vld [vmem:[%s4140 + $0x10] sm:$0xf]
      %v4759 = vunpack.c.l.bf16 %v4755
      %v4760 = vunpack.c.l.bf16 %v4756
      %v4761 = vunpack.c.l.bf16 %v4757
      %v4762 = vunpack.c.l.bf16 %v4758
      %v4763 = vlaneseq
      %v4764 = vshrl.u32 %v4763, 7
      %v4765 = vsub.s32 1, %v4764
      %v4766 = vrot.slane %v4318, %v4765
      %v4767 = vmul.f32 %v4759, %v4766
      %v4768 = vmul.f32 %v4760, %v4766
      %v4769 = vmul.f32 %v4761, %v4766
      %v4770 = vmul.f32 %v4762, %v4766
      %v4771 = vmul.f32 %v4655, %v4766
      %v4772 = vmul.f32 %v4656, %v4766
      %v4773 = vmul.f32 %v4657, %v4766
      %v4774 = vmul.f32 %v4658, %v4766
      %v4775 = vmul.f32 %v4659, %v4766
      %v4776 = vmul.f32 %v4660, %v4766
      %v4777 = vmul.f32 %v4661, %v4766
      %v4778 = vmul.f32 %v4662, %v4766
      %v4779 = vmul.f32 %v4663, %v4766
      %v4780 = vmul.f32 %v4664, %v4766
      %v4781 = vmul.f32 %v4665, %v4766
      %v4782 = vmul.f32 %v4666, %v4766
      %v4783 = vmul.f32 %v4667, %v4766
      %v4784 = vmul.f32 %v4668, %v4766
      %v4785 = vmul.f32 %v4669, %v4766
      %v4786 = vmul.f32 %v4670, %v4766
      %v4787 = vmul.f32 %v4671, %v4766
      %v4788 = vmul.f32 %v4672, %v4766
      %v4789 = vmul.f32 %v4673, %v4766
      %v4790 = vmul.f32 %v4674, %v4766
      %v4791 = vmul.f32 %v4675, %v4766
      %v4792 = vmul.f32 %v4676, %v4766
      %v4793 = vmul.f32 %v4677, %v4766
      %v4794 = vmul.f32 %v4678, %v4766
      %v4795 = vmul.f32 %v4679, %v4766
      %v4796 = vmul.f32 %v4680, %v4766
      %v4797 = vmul.f32 %v4681, %v4766
      %v4798 = vmul.f32 %v4682, %v4766
      %v4799 = vadd.f32 %v4723, %v4767
      %v4800 = vadd.f32 %v4724, %v4768
      %v4801 = vadd.f32 %v4725, %v4769
      %v4802 = vadd.f32 %v4726, %v4770
      %v4803 = vadd.f32 %v4727, %v4771
      %v4804 = vadd.f32 %v4728, %v4772
      %v4805 = vadd.f32 %v4729, %v4773
      %v4806 = vadd.f32 %v4730, %v4774
      %v4807 = vadd.f32 %v4731, %v4775
      %v4808 = vadd.f32 %v4732, %v4776
      %v4809 = vadd.f32 %v4733, %v4777
      %v4810 = vadd.f32 %v4734, %v4778
      %v4811 = vadd.f32 %v4735, %v4779
      %v4812 = vadd.f32 %v4736, %v4780
      %v4813 = vadd.f32 %v4737, %v4781
      %v4814 = vadd.f32 %v4738, %v4782
      %v4815 = vadd.f32 %v4739, %v4783
      %v4816 = vadd.f32 %v4740, %v4784
      %v4817 = vadd.f32 %v4741, %v4785
      %v4818 = vadd.f32 %v4742, %v4786
      %v4819 = vadd.f32 %v4743, %v4787
      %v4820 = vadd.f32 %v4744, %v4788
      %v4821 = vadd.f32 %v4745, %v4789
      %v4822 = vadd.f32 %v4746, %v4790
      %v4823 = vadd.f32 %v4747, %v4791
      %v4824 = vadd.f32 %v4748, %v4792
      %v4825 = vadd.f32 %v4749, %v4793
      %v4826 = vadd.f32 %v4750, %v4794
      %v4827 = vadd.f32 %v4751, %v4795
      %v4828 = vadd.f32 %v4752, %v4796
      %v4829 = vadd.f32 %v4753, %v4797
      %v4830 = vadd.f32 %v4754, %v4798
      %v4831 = vld [vmem:[%s4285 + $0x14] sm:$0xf]
      %v4832 = vld [vmem:[%s4285 + $0x18] sm:$0xf]
      %v4833 = vld [vmem:[%s4285 + $0x1c] sm:$0xf]
      %v4834 = vld [vmem:[%s4285 + $0x20] sm:$0xf]
      %v4835 = vld [vmem:[%s4285 + $0x24] sm:$0xf]
      %v4836 = vld [vmem:[%s4285 + $0x28] sm:$0xf]
      %v4837 = vld [vmem:[%s4285 + $0x2c] sm:$0xf]
      %v4838 = vld [vmem:[%s4285 + $0x30] sm:$0xf]
      %v4839 = vld [vmem:[%s4285 + $0x34] sm:$0xf]
      %v4840 = vld [vmem:[%s4285 + $0x38] sm:$0xf]
      %v4841 = vld [vmem:[%s4285 + $0x3c] sm:$0xf]
      %v4842 = vld [vmem:[%s4285 + $0x40] sm:$0xf]
      %v4843 = vld [vmem:[%s4285 + $0x44] sm:$0xf]
      %v4844 = vld [vmem:[%s4285 + $0x48] sm:$0xf]
      %v4845 = vld [vmem:[%s4285 + $0x4c] sm:$0xf]
      %v4846 = vld [vmem:[%s4285 + $0x50] sm:$0xf]
      %v4847 = vld [vmem:[%s4285 + $0x54] sm:$0xf]
      %v4848 = vld [vmem:[%s4285 + $0x58] sm:$0xf]
      %v4849 = vld [vmem:[%s4285 + $0x5c] sm:$0xf]
      %v4850 = vld [vmem:[%s4285 + $0x60] sm:$0xf]
      %v4851 = vld [vmem:[%s4285 + $0x64] sm:$0xf]
      %v4852 = vld [vmem:[%s4285 + $0x68] sm:$0xf]
      %v4853 = vld [vmem:[%s4285 + $0x6c] sm:$0xf]
      %v4854 = vld [vmem:[%s4285 + $0x70] sm:$0xf]
      %v4855 = vld [vmem:[%s4285 + $0x74] sm:$0xf]
      %v4856 = vld [vmem:[%s4285 + $0x78] sm:$0xf]
      %v4857 = vld [vmem:[%s4285 + $0x7c] sm:$0xf]
      %v4858 = vld [vmem:[%s4285 + $0x80] sm:$0xf]
      %v4859 = vld [vmem:[%s4285 + $0x84] sm:$0xf]
      %v4860 = vld [vmem:[%s4285 + $0x88] sm:$0xf]
      %v4861 = vld [vmem:[%s4285 + $0x8c] sm:$0xf]
      %v4862 = vld [vmem:[%s4285 + $0x90] sm:$0xf]
      %v4863 = vunpack.c.l.bf16 %v4831
      %v4864 = vunpack.c.l.bf16 %v4832
      %v4865 = vunpack.c.l.bf16 %v4833
      %v4866 = vunpack.c.l.bf16 %v4834
      %v4867 = vunpack.c.l.bf16 %v4835
      %v4868 = vunpack.c.l.bf16 %v4836
      %v4869 = vunpack.c.l.bf16 %v4837
      %v4870 = vunpack.c.l.bf16 %v4838
      %v4871 = vunpack.c.l.bf16 %v4839
      %v4872 = vunpack.c.l.bf16 %v4840
      %v4873 = vunpack.c.l.bf16 %v4841
      %v4874 = vunpack.c.l.bf16 %v4842
      %v4875 = vunpack.c.l.bf16 %v4843
      %v4876 = vunpack.c.l.bf16 %v4844
      %v4877 = vunpack.c.l.bf16 %v4845
      %v4878 = vunpack.c.l.bf16 %v4846
      %v4879 = vunpack.c.l.bf16 %v4847
      %v4880 = vunpack.c.l.bf16 %v4848
      %v4881 = vunpack.c.l.bf16 %v4849
      %v4882 = vunpack.c.l.bf16 %v4850
      %v4883 = vunpack.c.l.bf16 %v4851
      %v4884 = vunpack.c.l.bf16 %v4852
      %v4885 = vunpack.c.l.bf16 %v4853
      %v4886 = vunpack.c.l.bf16 %v4854
      %v4887 = vunpack.c.l.bf16 %v4855
      %v4888 = vunpack.c.l.bf16 %v4856
      %v4889 = vunpack.c.l.bf16 %v4857
      %v4890 = vunpack.c.l.bf16 %v4858
      %v4891 = vunpack.c.l.bf16 %v4859
      %v4892 = vunpack.c.l.bf16 %v4860
      %v4893 = vunpack.c.l.bf16 %v4861
      %v4894 = vunpack.c.l.bf16 %v4862
      %v4895 = vlaneseq
      %v4896 = vshrl.u32 %v4895, 7
      %v4897 = vsub.s32 0, %v4896
      %v4898 = vrot.slane %v4319, %v4897
      %v4899 = vmul.f32 %v4863, %v4898
      %v4900 = vmul.f32 %v4864, %v4898
      %v4901 = vmul.f32 %v4865, %v4898
      %v4902 = vmul.f32 %v4866, %v4898
      %v4903 = vmul.f32 %v4867, %v4898
      %v4904 = vmul.f32 %v4868, %v4898
      %v4905 = vmul.f32 %v4869, %v4898
      %v4906 = vmul.f32 %v4870, %v4898
      %v4907 = vmul.f32 %v4871, %v4898
      %v4908 = vmul.f32 %v4872, %v4898
      %v4909 = vmul.f32 %v4873, %v4898
      %v4910 = vmul.f32 %v4874, %v4898
      %v4911 = vmul.f32 %v4875, %v4898
      %v4912 = vmul.f32 %v4876, %v4898
      %v4913 = vmul.f32 %v4877, %v4898
      %v4914 = vmul.f32 %v4878, %v4898
      %v4915 = vmul.f32 %v4879, %v4898
      %v4916 = vmul.f32 %v4880, %v4898
      %v4917 = vmul.f32 %v4881, %v4898
      %v4918 = vmul.f32 %v4882, %v4898
      %v4919 = vmul.f32 %v4883, %v4898
      %v4920 = vmul.f32 %v4884, %v4898
      %v4921 = vmul.f32 %v4885, %v4898
      %v4922 = vmul.f32 %v4886, %v4898
      %v4923 = vmul.f32 %v4887, %v4898
      %v4924 = vmul.f32 %v4888, %v4898
      %v4925 = vmul.f32 %v4889, %v4898
      %v4926 = vmul.f32 %v4890, %v4898
      %v4927 = vmul.f32 %v4891, %v4898
      %v4928 = vmul.f32 %v4892, %v4898
      %v4929 = vmul.f32 %v4893, %v4898
      %v4930 = vmul.f32 %v4894, %v4898
      %v4931 = vadd.f32 %v4799, %v4899
      %v4932 = vadd.f32 %v4800, %v4900
      %v4933 = vadd.f32 %v4801, %v4901
      %v4934 = vadd.f32 %v4802, %v4902
      %v4935 = vadd.f32 %v4803, %v4903
      %v4936 = vadd.f32 %v4804, %v4904
      %v4937 = vadd.f32 %v4805, %v4905
      %v4938 = vadd.f32 %v4806, %v4906
      %v4939 = vadd.f32 %v4807, %v4907
      %v4940 = vadd.f32 %v4808, %v4908
      %v4941 = vadd.f32 %v4809, %v4909
      %v4942 = vadd.f32 %v4810, %v4910
      %v4943 = vadd.f32 %v4811, %v4911
      %v4944 = vadd.f32 %v4812, %v4912
      %v4945 = vadd.f32 %v4813, %v4913
      %v4946 = vadd.f32 %v4814, %v4914
      %v4947 = vadd.f32 %v4815, %v4915
      %v4948 = vadd.f32 %v4816, %v4916
      %v4949 = vadd.f32 %v4817, %v4917
      %v4950 = vadd.f32 %v4818, %v4918
      %v4951 = vadd.f32 %v4819, %v4919
      %v4952 = vadd.f32 %v4820, %v4920
      %v4953 = vadd.f32 %v4821, %v4921
      %v4954 = vadd.f32 %v4822, %v4922
      %v4955 = vadd.f32 %v4823, %v4923
      %v4956 = vadd.f32 %v4824, %v4924
      %v4957 = vadd.f32 %v4825, %v4925
      %v4958 = vadd.f32 %v4826, %v4926
      %v4959 = vadd.f32 %v4827, %v4927
      %v4960 = vadd.f32 %v4828, %v4928
      %v4961 = vadd.f32 %v4829, %v4929
      %v4962 = vadd.f32 %v4830, %v4930
      %v4963 = vld [vmem:[%s4285 + $0x4] sm:$0xf]
      %v4964 = vld [vmem:[%s4285 + $0x8] sm:$0xf]
      %v4965 = vld [vmem:[%s4285 + $0xc] sm:$0xf]
      %v4966 = vld [vmem:[%s4285 + $0x10] sm:$0xf]
      %v4967 = vunpack.c.l.bf16 %v4963
      %v4968 = vunpack.c.l.bf16 %v4964
      %v4969 = vunpack.c.l.bf16 %v4965
      %v4970 = vunpack.c.l.bf16 %v4966
      %v4971 = vlaneseq
      %v4972 = vshrl.u32 %v4971, 7
      %v4973 = vsub.s32 2, %v4972
      %v4974 = vrot.slane %v4318, %v4973
      %v4975 = vmul.f32 %v4967, %v4974
      %v4976 = vmul.f32 %v4968, %v4974
      %v4977 = vmul.f32 %v4969, %v4974
      %v4978 = vmul.f32 %v4970, %v4974
      %v4979 = vmul.f32 %v4863, %v4974
      %v4980 = vmul.f32 %v4864, %v4974
      %v4981 = vmul.f32 %v4865, %v4974
      %v4982 = vmul.f32 %v4866, %v4974
      %v4983 = vmul.f32 %v4867, %v4974
      %v4984 = vmul.f32 %v4868, %v4974
      %v4985 = vmul.f32 %v4869, %v4974
      %v4986 = vmul.f32 %v4870, %v4974
      %v4987 = vmul.f32 %v4871, %v4974
      %v4988 = vmul.f32 %v4872, %v4974
      %v4989 = vmul.f32 %v4873, %v4974
      %v4990 = vmul.f32 %v4874, %v4974
      %v4991 = vmul.f32 %v4875, %v4974
      %v4992 = vmul.f32 %v4876, %v4974
      %v4993 = vmul.f32 %v4877, %v4974
      %v4994 = vmul.f32 %v4878, %v4974
      %v4995 = vmul.f32 %v4879, %v4974
      %v4996 = vmul.f32 %v4880, %v4974
      %v4997 = vmul.f32 %v4881, %v4974
      %v4998 = vmul.f32 %v4882, %v4974
      %v4999 = vmul.f32 %v4883, %v4974
      %v5000 = vmul.f32 %v4884, %v4974
      %v5001 = vmul.f32 %v4885, %v4974
      %v5002 = vmul.f32 %v4886, %v4974
      %v5003 = vmul.f32 %v4887, %v4974
      %v5004 = vmul.f32 %v4888, %v4974
      %v5005 = vmul.f32 %v4889, %v4974
      %v5006 = vmul.f32 %v4890, %v4974
      %v5007 = vadd.f32 %v4931, %v4975
      %v5008 = vadd.f32 %v4932, %v4976
      %v5009 = vadd.f32 %v4933, %v4977
      %v5010 = vadd.f32 %v4934, %v4978
      %v5011 = vadd.f32 %v4935, %v4979
      %v5012 = vadd.f32 %v4936, %v4980
      %v5013 = vadd.f32 %v4937, %v4981
      %v5014 = vadd.f32 %v4938, %v4982
      %v5015 = vadd.f32 %v4939, %v4983
      %v5016 = vadd.f32 %v4940, %v4984
      %v5017 = vadd.f32 %v4941, %v4985
      %v5018 = vadd.f32 %v4942, %v4986
      %v5019 = vadd.f32 %v4943, %v4987
      %v5020 = vadd.f32 %v4944, %v4988
      %v5021 = vadd.f32 %v4945, %v4989
      %v5022 = vadd.f32 %v4946, %v4990
      %v5023 = vadd.f32 %v4947, %v4991
      %v5024 = vadd.f32 %v4948, %v4992
      %v5025 = vadd.f32 %v4949, %v4993
      %v5026 = vadd.f32 %v4950, %v4994
      %v5027 = vadd.f32 %v4951, %v4995
      %v5028 = vadd.f32 %v4952, %v4996
      %v5029 = vadd.f32 %v4953, %v4997
      %v5030 = vadd.f32 %v4954, %v4998
      %v5031 = vadd.f32 %v4955, %v4999
      %v5032 = vadd.f32 %v4956, %v5000
      %v5033 = vadd.f32 %v4957, %v5001
      %v5034 = vadd.f32 %v4958, %v5002
      %v5035 = vadd.f32 %v4959, %v5003
      %v5036 = vadd.f32 %v4960, %v5004
      %v5037 = vadd.f32 %v4961, %v5005
      %v5038 = vadd.f32 %v4962, %v5006
      %v5039 = vld [vmem:[%s3995 + $0x10] sm:$0x8]
      %v5040 = vld [vmem:[%s4285] sm:$0x8]
      %v5041 = vunpack.c.l.bf16 %v5039
      %v5042 = vlaneseq
      %v5043 = vshrl.u32 %v5042, 7
      %v5044 = vsub.s32 3, %v5043
      %v5045 = vrot.slane %v4318, %v5044
      %v5046 = vmul.f32 %v5041, %v5045
      %v5047 = vmul.f32 %v4523, %v5045
      %v5048 = vmul.f32 %v4524, %v5045
      %v5049 = vmul.f32 %v4525, %v5045
      %v5050 = vmul.f32 %v4526, %v5045
      %v5051 = vmul.f32 %v4527, %v5045
      %v5052 = vmul.f32 %v4528, %v5045
      %v5053 = vmul.f32 %v4529, %v5045
      %v5054 = vmul.f32 %v4530, %v5045
      %v5055 = vmul.f32 %v4531, %v5045
      %v5056 = vmul.f32 %v4532, %v5045
      %v5057 = vmul.f32 %v4533, %v5045
      %v5058 = vmul.f32 %v4534, %v5045
      %v5059 = vmul.f32 %v4535, %v5045
      %v5060 = vmul.f32 %v4536, %v5045
      %v5061 = vmul.f32 %v4537, %v5045
      %v5062 = vmul.f32 %v4538, %v5045
      %v5063 = vmul.f32 %v4539, %v5045
      %v5064 = vmul.f32 %v4540, %v5045
      %v5065 = vmul.f32 %v4541, %v5045
      %v5066 = vmul.f32 %v4542, %v5045
      %v5067 = vmul.f32 %v4543, %v5045
      %v5068 = vmul.f32 %v4544, %v5045
      %v5069 = vmul.f32 %v4545, %v5045
      %v5070 = vmul.f32 %v4546, %v5045
      %v5071 = vmul.f32 %v4547, %v5045
      %v5072 = vmul.f32 %v4548, %v5045
      %v5073 = vmul.f32 %v4549, %v5045
      %v5074 = vmul.f32 %v4550, %v5045
      %v5075 = vmul.f32 %v4551, %v5045
      %v5076 = vmul.f32 %v4552, %v5045
      %v5077 = vmul.f32 %v4553, %v5045
      %v5078 = vmul.f32 %v4554, %v5045
      %5080 = vset.pattern.permute.xlu0 0
      %5081 = vperm.xlu0 %5080, %v4320
      %v5082 = vpop.permute.xlu0 %5081
      %5084 = vset.pattern.permute.xlu0 0
      %5085 = vperm.xlu0 %5084, %v4321
      %v5086 = vpop.permute.xlu0 %5085
      %5088 = vset.pattern.permute.xlu0 0
      %5089 = vperm.xlu0 %5088, %v4322
      %v5090 = vpop.permute.xlu0 %5089
      %5092 = vset.pattern.permute.xlu0 0
      %5093 = vperm.xlu0 %5092, %v4323
      %v5094 = vpop.permute.xlu0 %5093
      %5096 = vset.pattern.permute.xlu0 0
      %5097 = vperm.xlu0 %5096, %v4324
      %v5098 = vpop.permute.xlu0 %5097
      %5100 = vset.pattern.permute.xlu0 0
      %5101 = vperm.xlu0 %5100, %v4325
      %v5102 = vpop.permute.xlu0 %5101
      %5104 = vset.pattern.permute.xlu0 0
      %5105 = vperm.xlu0 %5104, %v4326
      %v5106 = vpop.permute.xlu0 %5105
      %5108 = vset.pattern.permute.xlu0 0
      %5109 = vperm.xlu0 %5108, %v4327
      %v5110 = vpop.permute.xlu0 %5109
      %5112 = vset.pattern.permute.xlu0 0
      %5113 = vperm.xlu0 %5112, %v4328
      %v5114 = vpop.permute.xlu0 %5113
      %5116 = vset.pattern.permute.xlu0 0
      %5117 = vperm.xlu0 %5116, %v4329
      %v5118 = vpop.permute.xlu0 %5117
      %5120 = vset.pattern.permute.xlu0 0
      %5121 = vperm.xlu0 %5120, %v4330
      %v5122 = vpop.permute.xlu0 %5121
      %5124 = vset.pattern.permute.xlu0 0
      %5125 = vperm.xlu0 %5124, %v4331
      %v5126 = vpop.permute.xlu0 %5125
      %5128 = vset.pattern.permute.xlu0 0
      %5129 = vperm.xlu0 %5128, %v4332
      %v5130 = vpop.permute.xlu0 %5129
      %5132 = vset.pattern.permute.xlu0 0
      %5133 = vperm.xlu0 %5132, %v4333
      %v5134 = vpop.permute.xlu0 %5133
      %5136 = vset.pattern.permute.xlu0 0
      %5137 = vperm.xlu0 %5136, %v4334
      %v5138 = vpop.permute.xlu0 %5137
      %5140 = vset.pattern.permute.xlu0 0
      %5141 = vperm.xlu0 %5140, %v4335
      %v5142 = vpop.permute.xlu0 %5141
      %5144 = vset.pattern.permute.xlu0 0
      %5145 = vperm.xlu0 %5144, %v4336
      %v5146 = vpop.permute.xlu0 %5145
      %5148 = vset.pattern.permute.xlu0 0
      %5149 = vperm.xlu0 %5148, %v4337
      %v5150 = vpop.permute.xlu0 %5149
      %5152 = vset.pattern.permute.xlu0 0
      %5153 = vperm.xlu0 %5152, %v4338
      %v5154 = vpop.permute.xlu0 %5153
      %5156 = vset.pattern.permute.xlu0 0
      %5157 = vperm.xlu0 %5156, %v4339
      %v5158 = vpop.permute.xlu0 %5157
      %5160 = vset.pattern.permute.xlu0 0
      %5161 = vperm.xlu0 %5160, %v4340
      %v5162 = vpop.permute.xlu0 %5161
      %5164 = vset.pattern.permute.xlu0 0
      %5165 = vperm.xlu0 %5164, %v4341
      %v5166 = vpop.permute.xlu0 %5165
      %5168 = vset.pattern.permute.xlu0 0
      %5169 = vperm.xlu0 %5168, %v4342
      %v5170 = vpop.permute.xlu0 %5169
      %5172 = vset.pattern.permute.xlu0 0
      %5173 = vperm.xlu0 %5172, %v4343
      %v5174 = vpop.permute.xlu0 %5173
      %5176 = vset.pattern.permute.xlu0 0
      %5177 = vperm.xlu0 %5176, %v4344
      %v5178 = vpop.permute.xlu0 %5177
      %5180 = vset.pattern.permute.xlu0 0
      %5181 = vperm.xlu0 %5180, %v4345
      %v5182 = vpop.permute.xlu0 %5181
      %5184 = vset.pattern.permute.xlu0 0
      %5185 = vperm.xlu0 %5184, %v4346
      %v5186 = vpop.permute.xlu0 %5185
      %5188 = vset.pattern.permute.xlu0 0
      %5189 = vperm.xlu0 %5188, %v4347
      %v5190 = vpop.permute.xlu0 %5189
      %5192 = vset.pattern.permute.xlu0 0
      %5193 = vperm.xlu0 %5192, %v4348
      %v5194 = vpop.permute.xlu0 %5193
      %5196 = vset.pattern.permute.xlu0 0
      %5197 = vperm.xlu0 %5196, %v4349
      %v5198 = vpop.permute.xlu0 %5197
      %5200 = vset.pattern.permute.xlu0 0
      %5201 = vperm.xlu0 %5200, %v4350
      %v5202 = vpop.permute.xlu0 %5201
      %5204 = vset.pattern.permute.xlu0 0
      %5205 = vperm.xlu0 %5204, %v4351
      %v5206 = vpop.permute.xlu0 %5205
      %vm5207 = vcmask 1046528
      %v5208 = vrot.slane %v5082, 1
      %v5209 = vrot.slane %v5086, 1
      %v5210 = vsel %vm5207, %v5208, %v5209
      %v5211 = vrot.slane %v5090, 1
      %v5212 = vsel %vm5207, %v5209, %v5211
      %v5213 = vrot.slane %v5094, 1
      %v5214 = vsel %vm5207, %v5211, %v5213
      %v5215 = vrot.slane %v5098, 1
      %v5216 = vsel %vm5207, %v5213, %v5215
      %v5217 = vrot.slane %v5102, 1
      %v5218 = vsel %vm5207, %v5215, %v5217
      %v5219 = vrot.slane %v5106, 1
      %v5220 = vsel %vm5207, %v5217, %v5219
      %v5221 = vrot.slane %v5110, 1
      %v5222 = vsel %vm5207, %v5219, %v5221
      %v5223 = vrot.slane %v5114, 1
      %v5224 = vsel %vm5207, %v5221, %v5223
      %v5225 = vrot.slane %v5118, 1
      %v5226 = vsel %vm5207, %v5223, %v5225
      %v5227 = vrot.slane %v5122, 1
      %v5228 = vsel %vm5207, %v5225, %v5227
      %v5229 = vrot.slane %v5126, 1
      %v5230 = vsel %vm5207, %v5227, %v5229
      %v5231 = vrot.slane %v5130, 1
      %v5232 = vsel %vm5207, %v5229, %v5231
      %v5233 = vrot.slane %v5134, 1
      %v5234 = vsel %vm5207, %v5231, %v5233
      %v5235 = vrot.slane %v5138, 1
      %v5236 = vsel %vm5207, %v5233, %v5235
      %v5237 = vrot.slane %v5142, 1
      %v5238 = vsel %vm5207, %v5235, %v5237
      %v5239 = vrot.slane %v5146, 1
      %v5240 = vsel %vm5207, %v5237, %v5239
      %v5241 = vrot.slane %v5150, 1
      %v5242 = vsel %vm5207, %v5239, %v5241
      %v5243 = vrot.slane %v5154, 1
      %v5244 = vsel %vm5207, %v5241, %v5243
      %v5245 = vrot.slane %v5158, 1
      %v5246 = vsel %vm5207, %v5243, %v5245
      %v5247 = vrot.slane %v5162, 1
      %v5248 = vsel %vm5207, %v5245, %v5247
      %v5249 = vrot.slane %v5166, 1
      %v5250 = vsel %vm5207, %v5247, %v5249
      %v5251 = vrot.slane %v5170, 1
      %v5252 = vsel %vm5207, %v5249, %v5251
      %v5253 = vrot.slane %v5174, 1
      %v5254 = vsel %vm5207, %v5251, %v5253
      %v5255 = vrot.slane %v5178, 1
      %v5256 = vsel %vm5207, %v5253, %v5255
      %v5257 = vrot.slane %v5182, 1
      %v5258 = vsel %vm5207, %v5255, %v5257
      %v5259 = vrot.slane %v5186, 1
      %v5260 = vsel %vm5207, %v5257, %v5259
      %v5261 = vrot.slane %v5190, 1
      %v5262 = vsel %vm5207, %v5259, %v5261
      %v5263 = vrot.slane %v5194, 1
      %v5264 = vsel %vm5207, %v5261, %v5263
      %v5265 = vrot.slane %v5198, 1
      %v5266 = vsel %vm5207, %v5263, %v5265
      %v5267 = vrot.slane %v5202, 1
      %v5268 = vsel %vm5207, %v5265, %v5267
      %v5269 = vrot.slane %v5206, 1
      %v5270 = vsel %vm5207, %v5267, %v5269
      %v5304 = vmul.f32 %v5046, %v5208
      %v5305 = vmul.f32 %v5047, %v5210
      %v5306 = vmul.f32 %v5048, %v5212
      %v5307 = vmul.f32 %v5049, %v5214
      %v5308 = vmul.f32 %v5050, %v5216
      %v5309 = vmul.f32 %v5051, %v5218
      %v5310 = vmul.f32 %v5052, %v5220
      %v5311 = vmul.f32 %v5053, %v5222
      %v5312 = vmul.f32 %v5054, %v5224
      %v5313 = vmul.f32 %v5055, %v5226
      %v5314 = vmul.f32 %v5056, %v5228
      %v5315 = vmul.f32 %v5057, %v5230
      %v5316 = vmul.f32 %v5058, %v5232
      %v5317 = vmul.f32 %v5059, %v5234
      %v5318 = vmul.f32 %v5060, %v5236
      %v5319 = vmul.f32 %v5061, %v5238
      %v5320 = vmul.f32 %v5062, %v5240
      %v5321 = vmul.f32 %v5063, %v5242
      %v5322 = vmul.f32 %v5064, %v5244
      %v5323 = vmul.f32 %v5065, %v5246
      %v5324 = vmul.f32 %v5066, %v5248
      %v5325 = vmul.f32 %v5067, %v5250
      %v5326 = vmul.f32 %v5068, %v5252
      %v5327 = vmul.f32 %v5069, %v5254
      %v5328 = vmul.f32 %v5070, %v5256
      %v5329 = vmul.f32 %v5071, %v5258
      %v5330 = vmul.f32 %v5072, %v5260
      %v5331 = vmul.f32 %v5073, %v5262
      %v5332 = vmul.f32 %v5074, %v5264
      %v5333 = vmul.f32 %v5075, %v5266
      %v5334 = vmul.f32 %v5076, %v5268
      %v5335 = vmul.f32 %v5077, %v5270
      %v5336 = vmul.f32 %v5078, %v5269
      %vm5370 = vcmask 1040384
      %v5371 = vrot.slane %v5304, 7
      %v5372 = vrot.slane %v5305, 7
      %v5373 = vsel %vm5370, %v5371, %v5372
      %v5374 = vrot.slane %v5306, 7
      %v5375 = vsel %vm5370, %v5372, %v5374
      %v5376 = vrot.slane %v5307, 7
      %v5377 = vsel %vm5370, %v5374, %v5376
      %v5378 = vrot.slane %v5308, 7
      %v5379 = vsel %vm5370, %v5376, %v5378
      %v5380 = vrot.slane %v5309, 7
      %v5381 = vsel %vm5370, %v5378, %v5380
      %v5382 = vrot.slane %v5310, 7
      %v5383 = vsel %vm5370, %v5380, %v5382
      %v5384 = vrot.slane %v5311, 7
      %v5385 = vsel %vm5370, %v5382, %v5384
      %v5386 = vrot.slane %v5312, 7
      %v5387 = vsel %vm5370, %v5384, %v5386
      %v5388 = vrot.slane %v5313, 7
      %v5389 = vsel %vm5370, %v5386, %v5388
      %v5390 = vrot.slane %v5314, 7
      %v5391 = vsel %vm5370, %v5388, %v5390
      %v5392 = vrot.slane %v5315, 7
      %v5393 = vsel %vm5370, %v5390, %v5392
      %v5394 = vrot.slane %v5316, 7
      %v5395 = vsel %vm5370, %v5392, %v5394
      %v5396 = vrot.slane %v5317, 7
      %v5397 = vsel %vm5370, %v5394, %v5396
      %v5398 = vrot.slane %v5318, 7
      %v5399 = vsel %vm5370, %v5396, %v5398
      %v5400 = vrot.slane %v5319, 7
      %v5401 = vsel %vm5370, %v5398, %v5400
      %v5402 = vrot.slane %v5320, 7
      %v5403 = vsel %vm5370, %v5400, %v5402
      %v5404 = vrot.slane %v5321, 7
      %v5405 = vsel %vm5370, %v5402, %v5404
      %v5406 = vrot.slane %v5322, 7
      %v5407 = vsel %vm5370, %v5404, %v5406
      %v5408 = vrot.slane %v5323, 7
      %v5409 = vsel %vm5370, %v5406, %v5408
      %v5410 = vrot.slane %v5324, 7
      %v5411 = vsel %vm5370, %v5408, %v5410
      %v5412 = vrot.slane %v5325, 7
      %v5413 = vsel %vm5370, %v5410, %v5412
      %v5414 = vrot.slane %v5326, 7
      %v5415 = vsel %vm5370, %v5412, %v5414
      %v5416 = vrot.slane %v5327, 7
      %v5417 = vsel %vm5370, %v5414, %v5416
      %v5418 = vrot.slane %v5328, 7
      %v5419 = vsel %vm5370, %v5416, %v5418
      %v5420 = vrot.slane %v5329, 7
      %v5421 = vsel %vm5370, %v5418, %v5420
      %v5422 = vrot.slane %v5330, 7
      %v5423 = vsel %vm5370, %v5420, %v5422
      %v5424 = vrot.slane %v5331, 7
      %v5425 = vsel %vm5370, %v5422, %v5424
      %v5426 = vrot.slane %v5332, 7
      %v5427 = vsel %vm5370, %v5424, %v5426
      %v5428 = vrot.slane %v5333, 7
      %v5429 = vsel %vm5370, %v5426, %v5428
      %v5430 = vrot.slane %v5334, 7
      %v5431 = vsel %vm5370, %v5428, %v5430
      %v5432 = vrot.slane %v5335, 7
      %v5433 = vsel %vm5370, %v5430, %v5432
      %v5434 = vrot.slane %v5336, 7
      %v5435 = vsel %vm5370, %v5432, %v5434
      %v5468 = vadd.f32 %v5007, %v5373
      %v5469 = vadd.f32 %v5008, %v5375
      %v5470 = vadd.f32 %v5009, %v5377
      %v5471 = vadd.f32 %v5010, %v5379
      %v5472 = vadd.f32 %v5011, %v5381
      %v5473 = vadd.f32 %v5012, %v5383
      %v5474 = vadd.f32 %v5013, %v5385
      %v5475 = vadd.f32 %v5014, %v5387
      %v5476 = vadd.f32 %v5015, %v5389
      %v5477 = vadd.f32 %v5016, %v5391
      %v5478 = vadd.f32 %v5017, %v5393
      %v5479 = vadd.f32 %v5018, %v5395
      %v5480 = vadd.f32 %v5019, %v5397
      %v5481 = vadd.f32 %v5020, %v5399
      %v5482 = vadd.f32 %v5021, %v5401
      %v5483 = vadd.f32 %v5022, %v5403
      %v5484 = vadd.f32 %v5023, %v5405
      %v5485 = vadd.f32 %v5024, %v5407
      %v5486 = vadd.f32 %v5025, %v5409
      %v5487 = vadd.f32 %v5026, %v5411
      %v5488 = vadd.f32 %v5027, %v5413
      %v5489 = vadd.f32 %v5028, %v5415
      %v5490 = vadd.f32 %v5029, %v5417
      %v5491 = vadd.f32 %v5030, %v5419
      %v5492 = vadd.f32 %v5031, %v5421
      %v5493 = vadd.f32 %v5032, %v5423
      %v5494 = vadd.f32 %v5033, %v5425
      %v5495 = vadd.f32 %v5034, %v5427
      %v5496 = vadd.f32 %v5035, %v5429
      %v5497 = vadd.f32 %v5036, %v5431
      %v5498 = vadd.f32 %v5037, %v5433
      %v5499 = vadd.f32 %v5038, %v5435
      %v5500 = vlaneseq
      %v5501 = vshrl.u32 %v5500, 7
      %v5502 = vsub.s32 6, %v5501
      %v5503 = vrot.slane %v4318, %v5502
      %v5504 = vmul.f32 %v4970, %v5503
      %v5505 = vmul.f32 %v4863, %v5503
      %v5506 = vmul.f32 %v4864, %v5503
      %v5507 = vmul.f32 %v4865, %v5503
      %v5508 = vmul.f32 %v4866, %v5503
      %v5509 = vmul.f32 %v4867, %v5503
      %v5510 = vmul.f32 %v4868, %v5503
      %v5511 = vmul.f32 %v4869, %v5503
      %v5512 = vmul.f32 %v4870, %v5503
      %v5513 = vmul.f32 %v4871, %v5503
      %v5514 = vmul.f32 %v4872, %v5503
      %v5515 = vmul.f32 %v4873, %v5503
      %v5516 = vmul.f32 %v4874, %v5503
      %v5517 = vmul.f32 %v4875, %v5503
      %v5518 = vmul.f32 %v4876, %v5503
      %v5519 = vmul.f32 %v4877, %v5503
      %v5520 = vmul.f32 %v4878, %v5503
      %v5521 = vmul.f32 %v4879, %v5503
      %v5522 = vmul.f32 %v4880, %v5503
      %v5523 = vmul.f32 %v4881, %v5503
      %v5524 = vmul.f32 %v4882, %v5503
      %v5525 = vmul.f32 %v4883, %v5503
      %v5526 = vmul.f32 %v4884, %v5503
      %v5527 = vmul.f32 %v4885, %v5503
      %v5528 = vmul.f32 %v4886, %v5503
      %v5529 = vmul.f32 %v4887, %v5503
      %v5530 = vmul.f32 %v4888, %v5503
      %v5531 = vmul.f32 %v4889, %v5503
      %v5532 = vmul.f32 %v4890, %v5503
      %v5533 = vmul.f32 %v4891, %v5503
      %v5534 = vmul.f32 %v4892, %v5503
      %v5535 = vmul.f32 %v4893, %v5503
      %v5536 = vmul.f32 %v4894, %v5503
      %v5537 = vmul.f32 %v5504, %v5208
      %v5538 = vmul.f32 %v5505, %v5210
      %v5539 = vmul.f32 %v5506, %v5212
      %v5540 = vmul.f32 %v5507, %v5214
      %v5541 = vmul.f32 %v5508, %v5216
      %v5542 = vmul.f32 %v5509, %v5218
      %v5543 = vmul.f32 %v5510, %v5220
      %v5544 = vmul.f32 %v5511, %v5222
      %v5545 = vmul.f32 %v5512, %v5224
      %v5546 = vmul.f32 %v5513, %v5226
      %v5547 = vmul.f32 %v5514, %v5228
      %v5548 = vmul.f32 %v5515, %v5230
      %v5549 = vmul.f32 %v5516, %v5232
      %v5550 = vmul.f32 %v5517, %v5234
      %v5551 = vmul.f32 %v5518, %v5236
      %v5552 = vmul.f32 %v5519, %v5238
      %v5553 = vmul.f32 %v5520, %v5240
      %v5554 = vmul.f32 %v5521, %v5242
      %v5555 = vmul.f32 %v5522, %v5244
      %v5556 = vmul.f32 %v5523, %v5246
      %v5557 = vmul.f32 %v5524, %v5248
      %v5558 = vmul.f32 %v5525, %v5250
      %v5559 = vmul.f32 %v5526, %v5252
      %v5560 = vmul.f32 %v5527, %v5254
      %v5561 = vmul.f32 %v5528, %v5256
      %v5562 = vmul.f32 %v5529, %v5258
      %v5563 = vmul.f32 %v5530, %v5260
      %v5564 = vmul.f32 %v5531, %v5262
      %v5565 = vmul.f32 %v5532, %v5264
      %v5566 = vmul.f32 %v5533, %v5266
      %v5567 = vmul.f32 %v5534, %v5268
      %v5568 = vmul.f32 %v5535, %v5270
      %v5569 = vmul.f32 %v5536, %v5269
      %v5603 = vrot.slane %v5537, 7
      %v5604 = vrot.slane %v5538, 7
      %v5605 = vsel %vm5370, %v5603, %v5604
      %v5606 = vrot.slane %v5539, 7
      %v5607 = vsel %vm5370, %v5604, %v5606
      %v5608 = vrot.slane %v5540, 7
      %v5609 = vsel %vm5370, %v5606, %v5608
      %v5610 = vrot.slane %v5541, 7
      %v5611 = vsel %vm5370, %v5608, %v5610
      %v5612 = vrot.slane %v5542, 7
      %v5613 = vsel %vm5370, %v5610, %v5612
      %v5614 = vrot.slane %v5543, 7
      %v5615 = vsel %vm5370, %v5612, %v5614
      %v5616 = vrot.slane %v5544, 7
      %v5617 = vsel %vm5370, %v5614, %v5616
      %v5618 = vrot.slane %v5545, 7
      %v5619 = vsel %vm5370, %v5616, %v5618
      %v5620 = vrot.slane %v5546, 7
      %v5621 = vsel %vm5370, %v5618, %v5620
      %v5622 = vrot.slane %v5547, 7
      %v5623 = vsel %vm5370, %v5620, %v5622
      %v5624 = vrot.slane %v5548, 7
      %v5625 = vsel %vm5370, %v5622, %v5624
      %v5626 = vrot.slane %v5549, 7
      %v5627 = vsel %vm5370, %v5624, %v5626
      %v5628 = vrot.slane %v5550, 7
      %v5629 = vsel %vm5370, %v5626, %v5628
      %v5630 = vrot.slane %v5551, 7
      %v5631 = vsel %vm5370, %v5628, %v5630
      %v5632 = vrot.slane %v5552, 7
      %v5633 = vsel %vm5370, %v5630, %v5632
      %v5634 = vrot.slane %v5553, 7
      %v5635 = vsel %vm5370, %v5632, %v5634
      %v5636 = vrot.slane %v5554, 7
      %v5637 = vsel %vm5370, %v5634, %v5636
      %v5638 = vrot.slane %v5555, 7
      %v5639 = vsel %vm5370, %v5636, %v5638
      %v5640 = vrot.slane %v5556, 7
      %v5641 = vsel %vm5370, %v5638, %v5640
      %v5642 = vrot.slane %v5557, 7
      %v5643 = vsel %vm5370, %v5640, %v5642
      %v5644 = vrot.slane %v5558, 7
      %v5645 = vsel %vm5370, %v5642, %v5644
      %v5646 = vrot.slane %v5559, 7
      %v5647 = vsel %vm5370, %v5644, %v5646
      %v5648 = vrot.slane %v5560, 7
      %v5649 = vsel %vm5370, %v5646, %v5648
      %v5650 = vrot.slane %v5561, 7
      %v5651 = vsel %vm5370, %v5648, %v5650
      %v5652 = vrot.slane %v5562, 7
      %v5653 = vsel %vm5370, %v5650, %v5652
      %v5654 = vrot.slane %v5563, 7
      %v5655 = vsel %vm5370, %v5652, %v5654
      %v5656 = vrot.slane %v5564, 7
      %v5657 = vsel %vm5370, %v5654, %v5656
      %v5658 = vrot.slane %v5565, 7
      %v5659 = vsel %vm5370, %v5656, %v5658
      %v5660 = vrot.slane %v5566, 7
      %v5661 = vsel %vm5370, %v5658, %v5660
      %v5662 = vrot.slane %v5567, 7
      %v5663 = vsel %vm5370, %v5660, %v5662
      %v5664 = vrot.slane %v5568, 7
      %v5665 = vsel %vm5370, %v5662, %v5664
      %v5666 = vrot.slane %v5569, 7
      %v5667 = vsel %vm5370, %v5664, %v5666
      %v5700 = vadd.f32 %v5468, %v5605
      %v5701 = vadd.f32 %v5469, %v5607
      %v5702 = vadd.f32 %v5470, %v5609
      %v5703 = vadd.f32 %v5471, %v5611
      %v5704 = vadd.f32 %v5472, %v5613
      %v5705 = vadd.f32 %v5473, %v5615
      %v5706 = vadd.f32 %v5474, %v5617
      %v5707 = vadd.f32 %v5475, %v5619
      %v5708 = vadd.f32 %v5476, %v5621
      %v5709 = vadd.f32 %v5477, %v5623
      %v5710 = vadd.f32 %v5478, %v5625
      %v5711 = vadd.f32 %v5479, %v5627
      %v5712 = vadd.f32 %v5480, %v5629
      %v5713 = vadd.f32 %v5481, %v5631
      %v5714 = vadd.f32 %v5482, %v5633
      %v5715 = vadd.f32 %v5483, %v5635
      %v5716 = vadd.f32 %v5484, %v5637
      %v5717 = vadd.f32 %v5485, %v5639
      %v5718 = vadd.f32 %v5486, %v5641
      %v5719 = vadd.f32 %v5487, %v5643
      %v5720 = vadd.f32 %v5488, %v5645
      %v5721 = vadd.f32 %v5489, %v5647
      %v5722 = vadd.f32 %v5490, %v5649
      %v5723 = vadd.f32 %v5491, %v5651
      %v5724 = vadd.f32 %v5492, %v5653
      %v5725 = vadd.f32 %v5493, %v5655
      %v5726 = vadd.f32 %v5494, %v5657
      %v5727 = vadd.f32 %v5495, %v5659
      %v5728 = vadd.f32 %v5496, %v5661
      %v5729 = vadd.f32 %v5497, %v5663
      %v5730 = vadd.f32 %v5498, %v5665
      %v5731 = vadd.f32 %v5499, %v5667
      %v5732 = vunpack.c.l.bf16 %v5040
      %v5733 = vlaneseq
      %v5734 = vshrl.u32 %v5733, 7
      %v5735 = vsub.s32 0, %v5734
      %v5736 = vrot.slane %v4318, %v5735
      %v5737 = vmul.f32 %v5732, %v5736
      %v5738 = vmul.f32 %v4967, %v5736
      %v5739 = vmul.f32 %v4968, %v5736
      %v5740 = vmul.f32 %v4969, %v5736
      %v5741 = vmul.f32 %v4970, %v5736
      %v5742 = vmul.f32 %v4863, %v5736
      %v5743 = vmul.f32 %v4864, %v5736
      %v5744 = vmul.f32 %v4865, %v5736
      %v5745 = vmul.f32 %v4866, %v5736
      %v5746 = vmul.f32 %v4867, %v5736
      %v5747 = vmul.f32 %v4868, %v5736
      %v5748 = vmul.f32 %v4869, %v5736
      %v5749 = vmul.f32 %v4870, %v5736
      %v5750 = vmul.f32 %v4871, %v5736
      %v5751 = vmul.f32 %v4872, %v5736
      %v5752 = vmul.f32 %v4873, %v5736
      %v5753 = vmul.f32 %v4874, %v5736
      %v5754 = vmul.f32 %v4875, %v5736
      %v5755 = vmul.f32 %v4876, %v5736
      %v5756 = vmul.f32 %v4877, %v5736
      %v5757 = vmul.f32 %v4878, %v5736
      %v5758 = vmul.f32 %v4879, %v5736
      %v5759 = vmul.f32 %v4880, %v5736
      %v5760 = vmul.f32 %v4881, %v5736
      %v5761 = vmul.f32 %v4882, %v5736
      %v5762 = vmul.f32 %v4883, %v5736
      %v5763 = vmul.f32 %v4884, %v5736
      %v5764 = vmul.f32 %v4885, %v5736
      %v5765 = vmul.f32 %v4886, %v5736
      %v5766 = vmul.f32 %v4887, %v5736
      %v5767 = vmul.f32 %v4888, %v5736
      %v5768 = vmul.f32 %v4889, %v5736
      %v5769 = vmul.f32 %v4890, %v5736
      %v5770 = vmul.f32 %v5737, %v5208
      %v5771 = vmul.f32 %v5738, %v5210
      %v5772 = vmul.f32 %v5739, %v5212
      %v5773 = vmul.f32 %v5740, %v5214
      %v5774 = vmul.f32 %v5741, %v5216
      %v5775 = vmul.f32 %v5742, %v5218
      %v5776 = vmul.f32 %v5743, %v5220
      %v5777 = vmul.f32 %v5744, %v5222
      %v5778 = vmul.f32 %v5745, %v5224
      %v5779 = vmul.f32 %v5746, %v5226
      %v5780 = vmul.f32 %v5747, %v5228
      %v5781 = vmul.f32 %v5748, %v5230
      %v5782 = vmul.f32 %v5749, %v5232
      %v5783 = vmul.f32 %v5750, %v5234
      %v5784 = vmul.f32 %v5751, %v5236
      %v5785 = vmul.f32 %v5752, %v5238
      %v5786 = vmul.f32 %v5753, %v5240
      %v5787 = vmul.f32 %v5754, %v5242
      %v5788 = vmul.f32 %v5755, %v5244
      %v5789 = vmul.f32 %v5756, %v5246
      %v5790 = vmul.f32 %v5757, %v5248
      %v5791 = vmul.f32 %v5758, %v5250
      %v5792 = vmul.f32 %v5759, %v5252
      %v5793 = vmul.f32 %v5760, %v5254
      %v5794 = vmul.f32 %v5761, %v5256
      %v5795 = vmul.f32 %v5762, %v5258
      %v5796 = vmul.f32 %v5763, %v5260
      %v5797 = vmul.f32 %v5764, %v5262
      %v5798 = vmul.f32 %v5765, %v5264
      %v5799 = vmul.f32 %v5766, %v5266
      %v5800 = vmul.f32 %v5767, %v5268
      %v5801 = vmul.f32 %v5768, %v5270
      %v5802 = vmul.f32 %v5769, %v5269
      %v5836 = vrot.slane %v5770, 7
      %v5837 = vrot.slane %v5771, 7
      %v5838 = vsel %vm5370, %v5836, %v5837
      %v5839 = vrot.slane %v5772, 7
      %v5840 = vsel %vm5370, %v5837, %v5839
      %v5841 = vrot.slane %v5773, 7
      %v5842 = vsel %vm5370, %v5839, %v5841
      %v5843 = vrot.slane %v5774, 7
      %v5844 = vsel %vm5370, %v5841, %v5843
      %v5845 = vrot.slane %v5775, 7
      %v5846 = vsel %vm5370, %v5843, %v5845
      %v5847 = vrot.slane %v5776, 7
      %v5848 = vsel %vm5370, %v5845, %v5847
      %v5849 = vrot.slane %v5777, 7
      %v5850 = vsel %vm5370, %v5847, %v5849
      %v5851 = vrot.slane %v5778, 7
      %v5852 = vsel %vm5370, %v5849, %v5851
      %v5853 = vrot.slane %v5779, 7
      %v5854 = vsel %vm5370, %v5851, %v5853
      %v5855 = vrot.slane %v5780, 7
      %v5856 = vsel %vm5370, %v5853, %v5855
      %v5857 = vrot.slane %v5781, 7
      %v5858 = vsel %vm5370, %v5855, %v5857
      %v5859 = vrot.slane %v5782, 7
      %v5860 = vsel %vm5370, %v5857, %v5859
      %v5861 = vrot.slane %v5783, 7
      %v5862 = vsel %vm5370, %v5859, %v5861
      %v5863 = vrot.slane %v5784, 7
      %v5864 = vsel %vm5370, %v5861, %v5863
      %v5865 = vrot.slane %v5785, 7
      %v5866 = vsel %vm5370, %v5863, %v5865
      %v5867 = vrot.slane %v5786, 7
      %v5868 = vsel %vm5370, %v5865, %v5867
      %v5869 = vrot.slane %v5787, 7
      %v5870 = vsel %vm5370, %v5867, %v5869
      %v5871 = vrot.slane %v5788, 7
      %v5872 = vsel %vm5370, %v5869, %v5871
      %v5873 = vrot.slane %v5789, 7
      %v5874 = vsel %vm5370, %v5871, %v5873
      %v5875 = vrot.slane %v5790, 7
      %v5876 = vsel %vm5370, %v5873, %v5875
      %v5877 = vrot.slane %v5791, 7
      %v5878 = vsel %vm5370, %v5875, %v5877
      %v5879 = vrot.slane %v5792, 7
      %v5880 = vsel %vm5370, %v5877, %v5879
      %v5881 = vrot.slane %v5793, 7
      %v5882 = vsel %vm5370, %v5879, %v5881
      %v5883 = vrot.slane %v5794, 7
      %v5884 = vsel %vm5370, %v5881, %v5883
      %v5885 = vrot.slane %v5795, 7
      %v5886 = vsel %vm5370, %v5883, %v5885
      %v5887 = vrot.slane %v5796, 7
      %v5888 = vsel %vm5370, %v5885, %v5887
      %v5889 = vrot.slane %v5797, 7
      %v5890 = vsel %vm5370, %v5887, %v5889
      %v5891 = vrot.slane %v5798, 7
      %v5892 = vsel %vm5370, %v5889, %v5891
      %v5893 = vrot.slane %v5799, 7
      %v5894 = vsel %vm5370, %v5891, %v5893
      %v5895 = vrot.slane %v5800, 7
      %v5896 = vsel %vm5370, %v5893, %v5895
      %v5897 = vrot.slane %v5801, 7
      %v5898 = vsel %vm5370, %v5895, %v5897
      %v5899 = vrot.slane %v5802, 7
      %v5900 = vsel %vm5370, %v5897, %v5899
      %v5933 = vadd.f32 %v5700, %v5838
      %v5934 = vadd.f32 %v5701, %v5840
      %v5935 = vadd.f32 %v5702, %v5842
      %v5936 = vadd.f32 %v5703, %v5844
      %v5937 = vadd.f32 %v5704, %v5846
      %v5938 = vadd.f32 %v5705, %v5848
      %v5939 = vadd.f32 %v5706, %v5850
      %v5940 = vadd.f32 %v5707, %v5852
      %v5941 = vadd.f32 %v5708, %v5854
      %v5942 = vadd.f32 %v5709, %v5856
      %v5943 = vadd.f32 %v5710, %v5858
      %v5944 = vadd.f32 %v5711, %v5860
      %v5945 = vadd.f32 %v5712, %v5862
      %v5946 = vadd.f32 %v5713, %v5864
      %v5947 = vadd.f32 %v5714, %v5866
      %v5948 = vadd.f32 %v5715, %v5868
      %v5949 = vadd.f32 %v5716, %v5870
      %v5950 = vadd.f32 %v5717, %v5872
      %v5951 = vadd.f32 %v5718, %v5874
      %v5952 = vadd.f32 %v5719, %v5876
      %v5953 = vadd.f32 %v5720, %v5878
      %v5954 = vadd.f32 %v5721, %v5880
      %v5955 = vadd.f32 %v5722, %v5882
      %v5956 = vadd.f32 %v5723, %v5884
      %v5957 = vadd.f32 %v5724, %v5886
      %v5958 = vadd.f32 %v5725, %v5888
      %v5959 = vadd.f32 %v5726, %v5890
      %v5960 = vadd.f32 %v5727, %v5892
      %v5961 = vadd.f32 %v5728, %v5894
      %v5962 = vadd.f32 %v5729, %v5896
      %v5963 = vadd.f32 %v5730, %v5898
      %v5964 = vadd.f32 %v5731, %v5900
      %v5965 = vadd.f32 %v5933, 3.0
      %v5966 = vadd.f32 %v5934, 3.0
      %v5967 = vadd.f32 %v5935, 3.0
      %v5968 = vadd.f32 %v5936, 3.0
      %v5969 = vadd.f32 %v5937, 3.0
      %v5970 = vadd.f32 %v5938, 3.0
      %v5971 = vadd.f32 %v5939, 3.0
      %v5972 = vadd.f32 %v5940, 3.0
      %v5973 = vadd.f32 %v5941, 3.0
      %v5974 = vadd.f32 %v5942, 3.0
      %v5975 = vadd.f32 %v5943, 3.0
      %v5976 = vadd.f32 %v5944, 3.0
      %v5977 = vadd.f32 %v5945, 3.0
      %v5978 = vadd.f32 %v5946, 3.0
      %v5979 = vadd.f32 %v5947, 3.0
      %v5980 = vadd.f32 %v5948, 3.0
      %v5981 = vadd.f32 %v5949, 3.0
      %v5982 = vadd.f32 %v5950, 3.0
      %v5983 = vadd.f32 %v5951, 3.0
      %v5984 = vadd.f32 %v5952, 3.0
      %v5985 = vadd.f32 %v5953, 3.0
      %v5986 = vadd.f32 %v5954, 3.0
      %v5987 = vadd.f32 %v5955, 3.0
      %v5988 = vadd.f32 %v5956, 3.0
      %v5989 = vadd.f32 %v5957, 3.0
      %v5990 = vadd.f32 %v5958, 3.0
      %v5991 = vadd.f32 %v5959, 3.0
      %v5992 = vadd.f32 %v5960, 3.0
      %v5993 = vadd.f32 %v5961, 3.0
      %v5994 = vadd.f32 %v5962, 3.0
      %v5995 = vadd.f32 %v5963, 3.0
      %v5996 = vadd.f32 %v5964, 3.0
      %v5997 = vmax.f32 %v5965, 0.0
      %v5998 = vmax.f32 %v5966, 0.0
      %v5999 = vmax.f32 %v5967, 0.0
      %v6000 = vmax.f32 %v5968, 0.0
      %v6001 = vmax.f32 %v5969, 0.0
      %v6002 = vmax.f32 %v5970, 0.0
      %v6003 = vmax.f32 %v5971, 0.0
      %v6004 = vmax.f32 %v5972, 0.0
      %v6005 = vmax.f32 %v5973, 0.0
      %v6006 = vmax.f32 %v5974, 0.0
      %v6007 = vmax.f32 %v5975, 0.0
      %v6008 = vmax.f32 %v5976, 0.0
      %v6009 = vmax.f32 %v5977, 0.0
      %v6010 = vmax.f32 %v5978, 0.0
      %v6011 = vmax.f32 %v5979, 0.0
      %v6012 = vmax.f32 %v5980, 0.0
      %v6013 = vmax.f32 %v5981, 0.0
      %v6014 = vmax.f32 %v5982, 0.0
      %v6015 = vmax.f32 %v5983, 0.0
      %v6016 = vmax.f32 %v5984, 0.0
      %v6017 = vmax.f32 %v5985, 0.0
      %v6018 = vmax.f32 %v5986, 0.0
      %v6019 = vmax.f32 %v5987, 0.0
      %v6020 = vmax.f32 %v5988, 0.0
      %v6021 = vmax.f32 %v5989, 0.0
      %v6022 = vmax.f32 %v5990, 0.0
      %v6023 = vmax.f32 %v5991, 0.0
      %v6024 = vmax.f32 %v5992, 0.0
      %v6025 = vmax.f32 %v5993, 0.0
      %v6026 = vmax.f32 %v5994, 0.0
      %v6027 = vmax.f32 %v5995, 0.0
      %v6028 = vmax.f32 %v5996, 0.0
      %v6029 = vmin.f32 %v5997, 6.0
      %v6030 = vmin.f32 %v5998, 6.0
      %v6031 = vmin.f32 %v5999, 6.0
      %v6032 = vmin.f32 %v6000, 6.0
      %v6033 = vmin.f32 %v6001, 6.0
      %v6034 = vmin.f32 %v6002, 6.0
      %v6035 = vmin.f32 %v6003, 6.0
      %v6036 = vmin.f32 %v6004, 6.0
      %v6037 = vmin.f32 %v6005, 6.0
      %v6038 = vmin.f32 %v6006, 6.0
      %v6039 = vmin.f32 %v6007, 6.0
      %v6040 = vmin.f32 %v6008, 6.0
      %v6041 = vmin.f32 %v6009, 6.0
      %v6042 = vmin.f32 %v6010, 6.0
      %v6043 = vmin.f32 %v6011, 6.0
      %v6044 = vmin.f32 %v6012, 6.0
      %v6045 = vmin.f32 %v6013, 6.0
      %v6046 = vmin.f32 %v6014, 6.0
      %v6047 = vmin.f32 %v6015, 6.0
      %v6048 = vmin.f32 %v6016, 6.0
      %v6049 = vmin.f32 %v6017, 6.0
      %v6050 = vmin.f32 %v6018, 6.0
      %v6051 = vmin.f32 %v6019, 6.0
      %v6052 = vmin.f32 %v6020, 6.0
      %v6053 = vmin.f32 %v6021, 6.0
      %v6054 = vmin.f32 %v6022, 6.0
      %v6055 = vmin.f32 %v6023, 6.0
      %v6056 = vmin.f32 %v6024, 6.0
      %v6057 = vmin.f32 %v6025, 6.0
      %v6058 = vmin.f32 %v6026, 6.0
      %v6059 = vmin.f32 %v6027, 6.0
      %v6060 = vmin.f32 %v6028, 6.0
      %v6061 = vmul.f32 %v5933, %v6029
      %v6062 = vmul.f32 %v5934, %v6030
      %v6063 = vmul.f32 %v5935, %v6031
      %v6064 = vmul.f32 %v5936, %v6032
      %v6065 = vmul.f32 %v5937, %v6033
      %v6066 = vmul.f32 %v5938, %v6034
      %v6067 = vmul.f32 %v5939, %v6035
      %v6068 = vmul.f32 %v5940, %v6036
      %v6069 = vmul.f32 %v5941, %v6037
      %v6070 = vmul.f32 %v5942, %v6038
      %v6071 = vmul.f32 %v5943, %v6039
      %v6072 = vmul.f32 %v5944, %v6040
      %v6073 = vmul.f32 %v5945, %v6041
      %v6074 = vmul.f32 %v5946, %v6042
      %v6075 = vmul.f32 %v5947, %v6043
      %v6076 = vmul.f32 %v5948, %v6044
      %v6077 = vmul.f32 %v5949, %v6045
      %v6078 = vmul.f32 %v5950, %v6046
      %v6079 = vmul.f32 %v5951, %v6047
      %v6080 = vmul.f32 %v5952, %v6048
      %v6081 = vmul.f32 %v5953, %v6049
      %v6082 = vmul.f32 %v5954, %v6050
      %v6083 = vmul.f32 %v5955, %v6051
      %v6084 = vmul.f32 %v5956, %v6052
      %v6085 = vmul.f32 %v5957, %v6053
      %v6086 = vmul.f32 %v5958, %v6054
      %v6087 = vmul.f32 %v5959, %v6055
      %v6088 = vmul.f32 %v5960, %v6056
      %v6089 = vmul.f32 %v5961, %v6057
      %v6090 = vmul.f32 %v5962, %v6058
      %v6091 = vmul.f32 %v5963, %v6059
      %v6092 = vmul.f32 %v5964, %v6060
      %v6093 = vmul.f32 %v6061, 0.16666667
      %v6094 = vmul.f32 %v6062, 0.16666667
      %v6095 = vmul.f32 %v6063, 0.16666667
      %v6096 = vmul.f32 %v6064, 0.16666667
      %v6097 = vmul.f32 %v6065, 0.16666667
      %v6098 = vmul.f32 %v6066, 0.16666667
      %v6099 = vmul.f32 %v6067, 0.16666667
      %v6100 = vmul.f32 %v6068, 0.16666667
      %v6101 = vmul.f32 %v6069, 0.16666667
      %v6102 = vmul.f32 %v6070, 0.16666667
      %v6103 = vmul.f32 %v6071, 0.16666667
      %v6104 = vmul.f32 %v6072, 0.16666667
      %v6105 = vmul.f32 %v6073, 0.16666667
      %v6106 = vmul.f32 %v6074, 0.16666667
      %v6107 = vmul.f32 %v6075, 0.16666667
      %v6108 = vmul.f32 %v6076, 0.16666667
      %v6109 = vmul.f32 %v6077, 0.16666667
      %v6110 = vmul.f32 %v6078, 0.16666667
      %v6111 = vmul.f32 %v6079, 0.16666667
      %v6112 = vmul.f32 %v6080, 0.16666667
      %v6113 = vmul.f32 %v6081, 0.16666667
      %v6114 = vmul.f32 %v6082, 0.16666667
      %v6115 = vmul.f32 %v6083, 0.16666667
      %v6116 = vmul.f32 %v6084, 0.16666667
      %v6117 = vmul.f32 %v6085, 0.16666667
      %v6118 = vmul.f32 %v6086, 0.16666667
      %v6119 = vmul.f32 %v6087, 0.16666667
      %v6120 = vmul.f32 %v6088, 0.16666667
      %v6121 = vmul.f32 %v6089, 0.16666667
      %v6122 = vmul.f32 %v6090, 0.16666667
      %v6123 = vmul.f32 %v6091, 0.16666667
      %v6124 = vmul.f32 %v6092, 0.16666667
      %v6125 = vpack.c.bf16 %v6094, %v6093
      %v6126 = vpack.c.bf16 %v6096, %v6095
      %v6127 = vpack.c.bf16 %v6098, %v6097
      %v6128 = vpack.c.bf16 %v6100, %v6099
      %v6129 = vpack.c.bf16 %v6102, %v6101
      %v6130 = vpack.c.bf16 %v6104, %v6103
      %v6131 = vpack.c.bf16 %v6106, %v6105
      %v6132 = vpack.c.bf16 %v6108, %v6107
      %v6133 = vpack.c.bf16 %v6110, %v6109
      %v6134 = vpack.c.bf16 %v6112, %v6111
      %v6135 = vpack.c.bf16 %v6114, %v6113
      %v6136 = vpack.c.bf16 %v6116, %v6115
      %v6137 = vpack.c.bf16 %v6118, %v6117
      %v6138 = vpack.c.bf16 %v6120, %v6119
      %v6139 = vpack.c.bf16 %v6122, %v6121
      %v6140 = vpack.c.bf16 %v6124, %v6123
      %v6141 = vld [vmem:[%s8] sm:$0xf]
      %v6142 = vld [vmem:[%s8 + $0x4] sm:$0xf]
      %v6143 = vld [vmem:[%s8 + $0x8] sm:$0xf]
      %v6144 = vld [vmem:[%s8 + $0xc] sm:$0xf]
      %v6145 = vld [vmem:[%s8 + $0x10] sm:$0xf]
      %v6146 = vld [vmem:[%s8 + $0x14] sm:$0xf]
      %v6147 = vld [vmem:[%s8 + $0x18] sm:$0xf]
      %v6148 = vld [vmem:[%s8 + $0x1c] sm:$0xf]
      %v6149 = vld [vmem:[%s9] sm:$0x1]
      %v6151 = vlaneseq
      %v6152 = vshrl.u32 %v6151, 7
      %v6153 = vsub.s32 0, %v6152
      %v6154 = vrot.slane %v6149, %v6153
      %v6164 = vunpack.c.l.b16 %v6141
      %v6165 = vunpack.c.l.b16 %v6142
      %v6166 = vunpack.c.l.b16 %v6143
      %v6167 = vunpack.c.l.b16 %v6144
      %v6168 = vunpack.c.l.b16 %v6145
      %v6169 = vunpack.c.l.b16 %v6146
      %v6170 = vunpack.c.l.b16 %v6147
      %v6171 = vunpack.c.l.b16 %v6148
      %v6172 = vpack.c.b16 %v6165, %v6164
      %v6173 = vpack.c.b16 %v6167, %v6166
      %v6174 = vpack.c.b16 %v6169, %v6168
      %v6175 = vpack.c.b16 %v6171, %v6170
      %vm6180 = vcmask 523264
      %v6182 = vsel %vm6180, %v6125, 0
      %v6185 = vsel %vm6180, %v6126, 0
      %v6188 = vsel %vm6180, %v6127, 0
      %v6191 = vsel %vm6180, %v6128, 0
      %v6194 = vsel %vm6180, %v6129, 0
      %v6197 = vsel %vm6180, %v6130, 0
      %v6200 = vsel %vm6180, %v6131, 0
      %v6203 = vsel %vm6180, %v6132, 0
      %v6206 = vsel %vm6180, %v6133, 0
      %v6209 = vsel %vm6180, %v6134, 0
      %v6212 = vsel %vm6180, %v6135, 0
      %v6215 = vsel %vm6180, %v6136, 0
      %v6218 = vsel %vm6180, %v6137, 0
      %v6221 = vsel %vm6180, %v6138, 0
      %v6224 = vsel %vm6180, %v6139, 0
      %v6227 = vsel %vm6180, %v6140, 0
      %6229 = vmatprep.subr.bf16.mxu0 0
      %6230 = vmatpush1.bf16.msra.mxu0 %v6172
      %6231 = vmatprep.subr.bf16.mxu0 0
      %6232 = vmatpush1.bf16.msra.mxu0 %v6173
      %6233 = vmatprep.subr.bf16.mxu0 0
      %6234 = vmatpush1.bf16.msra.mxu0 %v6174
      %6235 = vmatprep.subr.bf16.mxu0 0
      %6236 = vmatpush1.bf16.msra.mxu0 %v6175
      %6237 = vmatprep.subr.bf16.mxu0 0
      %6238 = vmatpush1.bf16.msra.mxu0 0
      %6239 = vmatprep.subr.bf16.mxu0 0
      %6240 = vmatpush1.bf16.msra.mxu0 0
      %6241 = vmatprep.subr.bf16.mxu0 0
      %6242 = vmatpush1.bf16.msra.mxu0 0
      %6243 = vmatprep.subr.bf16.mxu0 0
      %6244 = vmatpush1.bf16.msra.mxu0 0
      %6245 = vmatprep.subr.bf16.mxu0 0
      %6246 = vmatpush1.bf16.msra.mxu0 0
      %6247 = vmatprep.subr.bf16.mxu0 0
      %6248 = vmatpush1.bf16.msra.mxu0 0
      %6249 = vmatprep.subr.bf16.mxu0 0
      %6250 = vmatpush1.bf16.msra.mxu0 0
      %6251 = vmatprep.subr.bf16.mxu0 0
      %6252 = vmatpush1.bf16.msra.mxu0 0
      %6253 = vmatprep.subr.bf16.mxu0 0
      %6254 = vmatpush1.bf16.msra.mxu0 0
      %6255 = vmatprep.subr.bf16.mxu0 0
      %6256 = vmatpush1.bf16.msra.mxu0 0
      %6257 = vmatprep.subr.bf16.mxu0 0
      %6258 = vmatpush1.bf16.msra.mxu0 0
      %6259 = vmatprep.subr.bf16.mxu0 0
      %6260 = vmatpush1.bf16.msra.mxu0 0
      %6261 = vmatprep.mubr.bf16.mxu0 0
      %6262 = vmatmul.mubr.bf16.gmra.mrb[0].mxu0 %v6182
      %v6263 = vpop.f32.mrb[0].mxu0
      %v6264 = vadd.f32 %v6154, %v6263
      %v6265 = vpop.f32.mrb[0].mxu0
      %v6266 = vpop.f32.mrb[0].mxu0
      %v6267 = vadd.f32 %v6154, %v6266
      %v6268 = vpop.f32.mrb[0].mxu0
      %6269 = vmatprep.mubr.bf16.mxu0 0
      %6270 = vmatmul.mubr.bf16.gmra.mrb[0].mxu0 %v6185
      %v6271 = vpop.f32.mrb[0].mxu0
      %v6272 = vadd.f32 %v6154, %v6271
      %v6273 = vpop.f32.mrb[0].mxu0
      %v6274 = vpop.f32.mrb[0].mxu0
      %v6275 = vadd.f32 %v6154, %v6274
      %v6276 = vpop.f32.mrb[0].mxu0
      %6277 = vmatprep.mubr.bf16.mxu0 0
      %6278 = vmatmul.mubr.bf16.gmra.mrb[0].mxu0 %v6188
      %v6279 = vpop.f32.mrb[0].mxu0
      %v6280 = vadd.f32 %v6154, %v6279
      %v6281 = vpop.f32.mrb[0].mxu0
      %v6282 = vpop.f32.mrb[0].mxu0
      %v6283 = vadd.f32 %v6154, %v6282
      %v6284 = vpop.f32.mrb[0].mxu0
      %6285 = vmatprep.mubr.bf16.mxu0 0
      %6286 = vmatmul.mubr.bf16.gmra.mrb[0].mxu0 %v6191
      %v6287 = vpop.f32.mrb[0].mxu0
      %v6288 = vadd.f32 %v6154, %v6287
      %v6289 = vpop.f32.mrb[0].mxu0
      %v6290 = vpop.f32.mrb[0].mxu0
      %v6291 = vadd.f32 %v6154, %v6290
      %v6292 = vpop.f32.mrb[0].mxu0
      %6293 = vmatprep.mubr.bf16.mxu0 0
      %6294 = vmatmul.mubr.bf16.gmra.mrb[0].mxu0 %v6194
      %v6295 = vpop.f32.mrb[0].mxu0
      %v6296 = vadd.f32 %v6154, %v6295
      %v6297 = vpop.f32.mrb[0].mxu0
      %v6298 = vpop.f32.mrb[0].mxu0
      %v6299 = vadd.f32 %v6154, %v6298
      %v6300 = vpop.f32.mrb[0].mxu0
      %6301 = vmatprep.mubr.bf16.mxu0 0
      %6302 = vmatmul.mubr.bf16.gmra.mrb[0].mxu0 %v6197
      %v6303 = vpop.f32.mrb[0].mxu0
      %v6304 = vadd.f32 %v6154, %v6303
      %v6305 = vpop.f32.mrb[0].mxu0
      %v6306 = vpop.f32.mrb[0].mxu0
      %v6307 = vadd.f32 %v6154, %v6306
      %v6308 = vpop.f32.mrb[0].mxu0
      %6309 = vmatprep.mubr.bf16.mxu0 0
      %6310 = vmatmul.mubr.bf16.gmra.mrb[0].mxu0 %v6200
      %v6311 = vpop.f32.mrb[0].mxu0
      %v6312 = vadd.f32 %v6154, %v6311
      %v6313 = vpop.f32.mrb[0].mxu0
      %v6314 = vpop.f32.mrb[0].mxu0
      %v6315 = vadd.f32 %v6154, %v6314
      %v6316 = vpop.f32.mrb[0].mxu0
      %6317 = vmatprep.mubr.bf16.mxu0 0
      %6318 = vmatmul.mubr.bf16.gmra.mrb[0].mxu0 %v6203
      %v6319 = vpop.f32.mrb[0].mxu0
      %v6320 = vadd.f32 %v6154, %v6319
      %v6321 = vpop.f32.mrb[0].mxu0
      %v6322 = vpop.f32.mrb[0].mxu0
      %v6323 = vadd.f32 %v6154, %v6322
      %v6324 = vpop.f32.mrb[0].mxu0
      %6325 = vmatprep.mubr.bf16.mxu0 0
      %6326 = vmatmul.mubr.bf16.gmra.mrb[0].mxu0 %v6206
      %v6327 = vpop.f32.mrb[0].mxu0
      %v6328 = vadd.f32 %v6154, %v6327
      %v6329 = vpop.f32.mrb[0].mxu0
      %v6330 = vpop.f32.mrb[0].mxu0
      %v6331 = vadd.f32 %v6154, %v6330
      %v6332 = vpop.f32.mrb[0].mxu0
      %6333 = vmatprep.mubr.bf16.mxu0 0
      %6334 = vmatmul.mubr.bf16.gmra.mrb[0].mxu0 %v6209
      %v6335 = vpop.f32.mrb[0].mxu0
      %v6336 = vadd.f32 %v6154, %v6335
      %v6337 = vpop.f32.mrb[0].mxu0
      %v6338 = vpop.f32.mrb[0].mxu0
      %v6339 = vadd.f32 %v6154, %v6338
      %v6340 = vpop.f32.mrb[0].mxu0
      %6341 = vmatprep.mubr.bf16.mxu0 0
      %6342 = vmatmul.mubr.bf16.gmra.mrb[0].mxu0 %v6212
      %v6343 = vpop.f32.mrb[0].mxu0
      %v6344 = vadd.f32 %v6154, %v6343
      %v6345 = vpop.f32.mrb[0].mxu0
      %v6346 = vpop.f32.mrb[0].mxu0
      %v6347 = vadd.f32 %v6154, %v6346
      %v6348 = vpop.f32.mrb[0].mxu0
      %6349 = vmatprep.mubr.bf16.mxu0 0
      %6350 = vmatmul.mubr.bf16.gmra.mrb[0].mxu0 %v6215
      %v6351 = vpop.f32.mrb[0].mxu0
      %v6352 = vadd.f32 %v6154, %v6351
      %v6353 = vpop.f32.mrb[0].mxu0
      %v6354 = vpop.f32.mrb[0].mxu0
      %v6355 = vadd.f32 %v6154, %v6354
      %v6356 = vpop.f32.mrb[0].mxu0
      %6357 = vmatprep.mubr.bf16.mxu0 0
      %6358 = vmatmul.mubr.bf16.gmra.mrb[0].mxu0 %v6218
      %v6359 = vpop.f32.mrb[0].mxu0
      %v6360 = vadd.f32 %v6154, %v6359
      %v6361 = vpop.f32.mrb[0].mxu0
      %v6362 = vpop.f32.mrb[0].mxu0
      %v6363 = vadd.f32 %v6154, %v6362
      %v6364 = vpop.f32.mrb[0].mxu0
      %6365 = vmatprep.mubr.bf16.mxu0 0
      %6366 = vmatmul.mubr.bf16.gmra.mrb[0].mxu0 %v6221
      %v6367 = vpop.f32.mrb[0].mxu0
      %v6368 = vadd.f32 %v6154, %v6367
      %v6369 = vpop.f32.mrb[0].mxu0
      %v6370 = vpop.f32.mrb[0].mxu0
      %v6371 = vadd.f32 %v6154, %v6370
      %v6372 = vpop.f32.mrb[0].mxu0
      %6373 = vmatprep.mubr.bf16.mxu0 0
      %6374 = vmatmul.mubr.bf16.gmra.mrb[0].mxu0 %v6224
      %v6375 = vpop.f32.mrb[0].mxu0
      %v6376 = vadd.f32 %v6154, %v6375
      %v6377 = vpop.f32.mrb[0].mxu0
      %v6378 = vpop.f32.mrb[0].mxu0
      %v6379 = vadd.f32 %v6154, %v6378
      %v6380 = vpop.f32.mrb[0].mxu0
      %6381 = vmatprep.mubr.bf16.mxu0 0
      %6382 = vmatmul.mubr.bf16.gmra.mrb[0].mxu0 %v6227
      %v6383 = vpop.f32.mrb[0].mxu0
      %v6384 = vadd.f32 %v6154, %v6383
      %v6385 = vpop.f32.mrb[0].mxu0
      %v6386 = vpop.f32.mrb[0].mxu0
      %v6387 = vadd.f32 %v6154, %v6386
      %v6388 = vpop.f32.mrb[0].mxu0
      %6389 = vdwg.mxu0
      %vm6390 = vcmask 261120
      %v6391 = vsel %vm6390, %v6264, 0.0
      %v6392 = vsel %vm6390, %v6267, 0.0
      %v6393 = vadd.f32 %v6391, %v6392
      %v6394 = vsel %vm6390, %v6272, 0.0
      %v6395 = vadd.f32 %v6393, %v6394
      %v6396 = vsel %vm6390, %v6275, 0.0
      %v6397 = vadd.f32 %v6395, %v6396
      %v6398 = vsel %vm6390, %v6280, 0.0
      %v6399 = vadd.f32 %v6397, %v6398
      %v6400 = vsel %vm6390, %v6283, 0.0
      %v6401 = vadd.f32 %v6399, %v6400
      %v6402 = vsel %vm6390, %v6288, 0.0
      %v6403 = vadd.f32 %v6401, %v6402
      %v6404 = vsel %vm6390, %v6291, 0.0
      %v6405 = vadd.f32 %v6403, %v6404
      %v6406 = vsel %vm6390, %v6296, 0.0
      %v6407 = vadd.f32 %v6405, %v6406
      %v6408 = vsel %vm6390, %v6299, 0.0
      %v6409 = vadd.f32 %v6407, %v6408
      %v6410 = vsel %vm6390, %v6304, 0.0
      %v6411 = vadd.f32 %v6409, %v6410
      %v6412 = vsel %vm6390, %v6307, 0.0
      %v6413 = vadd.f32 %v6411, %v6412
      %v6414 = vsel %vm6390, %v6312, 0.0
      %v6415 = vadd.f32 %v6413, %v6414
      %v6416 = vsel %vm6390, %v6315, 0.0
      %v6417 = vadd.f32 %v6415, %v6416
      %v6418 = vsel %vm6390, %v6320, 0.0
      %v6419 = vadd.f32 %v6417, %v6418
      %v6420 = vsel %vm6390, %v6323, 0.0
      %v6421 = vadd.f32 %v6419, %v6420
      %v6422 = vsel %vm6390, %v6328, 0.0
      %v6423 = vadd.f32 %v6421, %v6422
      %v6424 = vsel %vm6390, %v6331, 0.0
      %v6425 = vadd.f32 %v6423, %v6424
      %v6426 = vsel %vm6390, %v6336, 0.0
      %v6427 = vadd.f32 %v6425, %v6426
      %v6428 = vsel %vm6390, %v6339, 0.0
      %v6429 = vadd.f32 %v6427, %v6428
      %v6430 = vsel %vm6390, %v6344, 0.0
      %v6431 = vadd.f32 %v6429, %v6430
      %v6432 = vsel %vm6390, %v6347, 0.0
      %v6433 = vadd.f32 %v6431, %v6432
      %v6434 = vsel %vm6390, %v6352, 0.0
      %v6435 = vadd.f32 %v6433, %v6434
      %v6436 = vsel %vm6390, %v6355, 0.0
      %v6437 = vadd.f32 %v6435, %v6436
      %v6438 = vsel %vm6390, %v6360, 0.0
      %v6439 = vadd.f32 %v6437, %v6438
      %v6440 = vsel %vm6390, %v6363, 0.0
      %v6441 = vadd.f32 %v6439, %v6440
      %v6442 = vsel %vm6390, %v6368, 0.0
      %v6443 = vadd.f32 %v6441, %v6442
      %v6444 = vsel %vm6390, %v6371, 0.0
      %v6445 = vadd.f32 %v6443, %v6444
      %v6446 = vsel %vm6390, %v6376, 0.0
      %v6447 = vadd.f32 %v6445, %v6446
      %v6448 = vsel %vm6390, %v6379, 0.0
      %v6449 = vadd.f32 %v6447, %v6448
      %v6450 = vsel %vm6390, %v6384, 0.0
      %v6451 = vadd.f32 %v6449, %v6450
      %v6452 = vsel %vm6390, %v6387, 0.0
      %v6453 = vadd.f32 %v6451, %v6452
      %v6454 = vrot.slane %v6453, 4
      %v6455 = vadd.f32 %v6453, %v6454
      %v6456 = vrot.slane %v6455, 2
      %v6457 = vadd.f32 %v6455, %v6456
      %v6458 = vrot.slane %v6457, 1
      %v6459 = vadd.f32 %v6457, %v6458
      %v6460 = vrcp.pop 256.0
      %v6461 = vmul.f32 %v6459, %v6460
      %vm6462 = vcmask 253952
      %6463 = vst.msk [vmem:[%s355] sm:$0x1] %vm6462, %v6461
      %p6464 = scmp.lt.s32.totalorder %s21, 1
      %s6465 = scalar_select %p6464, %s21, 1
      %s6466 = scalar_lea.vmem %s10, %s6465
      // Predicated region
      $region61: #{mobilenet_encoder_forward.4} parent=59 // pred_check
        %p6467 = pneg %p254
      $region62: #{mobilenet_encoder_forward.4} parent=59 // pred_check_branch
        %6469 = sbr.rel (%p6467) target = $region64
      $region63: #{mobilenet_encoder_forward.4} parent=59 // pred_region
        _
      $region64: #{mobilenet_encoder_forward.4} parent=59 // pred_fallthru
        _
    $region60: #{mobilenet_encoder_forward.4} parent=5 // pred_fallthru
      _
    %p6470 = scmp.le.s32.totalorder 2, %s16
    // Predicated region
    $region65: #{mobilenet_encoder_forward.4} parent=5 // pred_check
      %p6471 = pneg %p6470
    $region66: #{mobilenet_encoder_forward.4} parent=5 // pred_check_branch
      %6473 = sbr.rel (%p6471) target = $region68
    $region67: #{mobilenet_encoder_forward.4} parent=5 // pred_region
      %s6474 = ssub.s32 %s16, 2
      // Predicated region
      $region69: #{mobilenet_encoder_forward.4} parent=67 // pred_check
        %p6475 = pneg %p260
      $region70: #{mobilenet_encoder_forward.4} parent=67 // pred_check_branch
        %6477 = sbr.rel (%p6475) target = $region72
      $region71: #{mobilenet_encoder_forward.4} parent=67 // pred_region
        %p6478 = scmp.lt.s32.totalorder %s22, 1
        %s6479 = scalar_select %p6478, %s22, 1
        %s6480 = scalar_lea.vmem %s10, %s6479
      $region72: #{mobilenet_encoder_forward.4} parent=67 // pred_fallthru
        _
    $region68: #{mobilenet_encoder_forward.4} parent=5 // pred_fallthru
      _
  $region6: #{mobilenet_encoder_forward.4} parent=0 // loop_footer
    %s20 = sadd.s32 1, %s16
  $region7: #{mobilenet_encoder_forward.4} parent=0 // loop_footer_branch
    %15 = sbr.rel target = $region3
  $region8: #{mobilenet_encoder_forward.4} parent=0 // loop_exit
    _

</llo_original>
